<compile_context>
chip_gen: v5e
topology: v5e:2x2
jax: 0.10.0
libtpu: 0.0.40
codegen_flags: <defaults>
</compile_context>

<pallas_src>
import functools

import jax
import jax.numpy as jnp
import numpy as np
from jax import lax
from jax.experimental import pallas as pl
from jax.experimental.pallas import tpu as pltpu

EPS = 1e-5


# ----------------------------------------------------------------------------
# Fully fused PASPP kernel (one grid step = one batch element)
# ----------------------------------------------------------------------------
def _paspp_kernel(x_ref, w1_ref, t1_ref, w3_ref, t2_ref, wo_ref, to_ref,
                  wf_ref, tf_ref, o_ref, pad_ref, *, H, W, c4, dilations,
                  dmax, split_out):
    OC = 4 * c4
    c2 = 2 * c4
    HW = H * W
    Hp, Wp = H + 2 * dmax, W + 2 * dmax
    cdt = w1_ref.dtype                      # MXU operand dtype (bf16 default)
    pdt = pad_ref.dtype

    # ---- stage 1: four 1x1 convs + BN + ReLU fused into one matmul --------
    b = jnp.dot(x_ref[0], w1_ref[...], preferred_element_type=jnp.float32)
    b = jnp.maximum(b + t1_ref[...], 0.0)            # (HW, OC) = [x1|x2|x3|x4]

    # residual halves kept in f32 (added after the stage-3 epilogue)
    x12 = b[:, 0 * c4:1 * c4] + b[:, 1 * c4:2 * c4]
    x34 = b[:, 2 * c4:3 * c4] + b[:, 3 * c4:4 * c4]

    # ---- stage 2: channel-packed zero-padded plane in VMEM ----------------
    # Zero only the halo frame (interior fully overwritten every grid step;
    # per-step frame zeroing is megacore-safe).
    pad_ref[0:dmax, :, :] = jnp.zeros((dmax, Wp, OC), pdt)
    pad_ref[dmax + H:Hp, :, :] = jnp.zeros((dmax, Wp, OC), pdt)
    pad_ref[dmax:dmax + H, 0:dmax, :] = jnp.zeros((H, dmax, OC), pdt)
    pad_ref[dmax:dmax + H, dmax + W:Wp, :] = jnp.zeros((H, dmax, OC), pdt)
    pad_ref[dmax:dmax + H, dmax:dmax + W, :] = b.astype(pdt).reshape(H, W, OC)

    # ---- stage 3: four dilated 3x3 convs as 9 tap-accumulated matmuls -----
    # Each tap operand is (HW, OC) (4 branch-shifted reads, c4 wide each);
    # W_tap is a block-diagonal (OC, OC) with the per-branch (c4, c4) blocks.
    y = None
    for ki in range(3):
        for kj in range(3):
            taps = []
            for br, d in enumerate(dilations):
                r0 = dmax + (ki - 1) * d
                c0 = dmax + (kj - 1) * d
                taps.append(
                    pad_ref[r0:r0 + H, c0:c0 + W, br * c4:(br + 1) * c4])
            op = jnp.concatenate(taps, axis=-1).reshape(HW, OC)     # bf16
            part = jnp.dot(op, w3_ref[ki * 3 + kj],
                           preferred_element_type=jnp.float32)
            y = part if y is None else y + part

    # BN shift + ReLU, then residuals (x12 for branches 1,2; x34 for 3,4).
    y = (jnp.maximum(y + t2_ref[...], 0.0)
         + jnp.concatenate([x12, x12, x34, x34], axis=-1))          # (HW, OC)

    # ---- stage 4: out1/out2 1x1 convs + final 1x1 conv --------------------
    if split_out:
        # two dense (HW, c2) @ (c2, c2) matmuls (2x fewer MACs; best when the
        # MXU is 128 wide, e.g. v5e)
        a = jnp.dot(y[:, :c2].astype(cdt), wo_ref[:c2, :c2],
                    preferred_element_type=jnp.float32)
        bb = jnp.dot(y[:, c2:].astype(cdt), wo_ref[c2:, c2:],
                     preferred_element_type=jnp.float32)
        ab = jnp.concatenate([a, bb], axis=-1)
    else:
        # fused block-diagonal (OC, OC) matmul (best on 256-wide MXU)
        ab = jnp.dot(y.astype(cdt), wo_ref[...],
                     preferred_element_type=jnp.float32)
    ab = jnp.maximum(ab + to_ref[...], 0.0)                          # [a|b]

    out = jnp.dot(ab.astype(cdt), wf_ref[...],
                  preferred_element_type=jnp.float32)
    out = jnp.maximum(out + tf_ref[...], 0.0)
    o_ref[0] = out.astype(o_ref.dtype)


# ----------------------------------------------------------------------------
# BN folding helper
# ----------------------------------------------------------------------------
def fold_bn(bn, conv_bias=None):
    s = bn["gamma"] / jnp.sqrt(bn["var"] + EPS)
    b = conv_bias if conv_bias is not None else 0.0
    t = bn["beta"] + s * (b - bn["mean"])
    return s, t


def _vmem_limit_bytes():
    # Generation-dependent limit: ~75% of physical VMEM, capped at 100 MiB
    # (=> ~96 MiB on v5e/v6e's 128 MiB, ~48 MiB on v7x's 64 MiB).
    try:
        cap = int(pltpu.get_tpu_info().vmem_capacity_bytes)
    except Exception:
        cap = 64 * 1024 * 1024
    return int(min(cap * 3 // 4, 100 * 1024 * 1024))


# ----------------------------------------------------------------------------
# Wrapper: fold BN / pack weights (bf16), launch the single fused kernel
# ----------------------------------------------------------------------------
def paspp_forward(x_nhwc, p, dilations=(1, 2, 4, 8), *,
                  mxu_dtype=jnp.bfloat16, split_out_convs=False):
    N, H, W, Cin = x_nhwc.shape
    c4 = p["w1_1"].shape[1]
    OC = 4 * c4
    c2 = 2 * c4
    dmax = max(dilations)
    Hp, Wp = H + 2 * dmax, W + 2 * dmax

    # -- branch 1x1 convs: concat weight columns, fold BN scale into weights
    w1_cols, t1_cols = [], []
    for i in range(1, 5):
        s, t = fold_bn(p[f"bn1_{i}"], p[f"b1_{i}"])
        w1_cols.append(p[f"w1_{i}"] * s[None, :])
        t1_cols.append(t)
    w1f = jnp.concatenate(w1_cols, axis=1).astype(mxu_dtype)      # (Cin, OC)
    t1 = jnp.concatenate(t1_cols)[None, :]                        # (1, OC) f32

    # -- dilated 3x3 convs: per-tap block-diagonal weights (9, OC, OC) ------
    w3tap = jnp.zeros((9, OC, OC), jnp.float32)
    t2_cols = []
    for br in range(4):
        s, t = fold_bn(p[f"bn2_{br + 1}"])
        w = p[f"w3_{br + 1}"] * s[None, None, None, :]             # (3,3,c4,c4)
        for ki in range(3):
            for kj in range(3):
                w3tap = w3tap.at[ki * 3 + kj,
                                 br * c4:(br + 1) * c4,
                                 br * c4:(br + 1) * c4].set(w[ki, kj])
        t2_cols.append(t)
    w3tap = w3tap.astype(mxu_dtype)
    t2 = jnp.concatenate(t2_cols)[None, :]                         # (1, OC)

    # -- out1/out2 1x1 convs: block-diagonal (OC, OC) -----------------------
    s, ta = fold_bn(p["bn_out1"], p["b_out1"])
    wo1 = p["w_out1"] * s[None, :]
    s, tb = fold_bn(p["bn_out2"], p["b_out2"])
    wo2 = p["w_out2"] * s[None, :]
    wobd = jnp.zeros((OC, OC), jnp.float32)
    wobd = wobd.at[:c2, :c2].set(wo1).at[c2:, c2:].set(wo2).astype(mxu_dtype)
    tob = jnp.concatenate([ta, tb])[None, :]                       # (1, OC)

    # -- final 1x1 conv ------------------------------------------------------
    s, t_fin = fold_bn(p["bn_fin"], p["b_fin"])
    wff = (p["w_fin"] * s[None, :]).astype(mxu_dtype)
    tf = t_fin[None, :]                                            # (1, OC)

    xf = x_nhwc.reshape(N, H * W, Cin).astype(mxu_dtype)

    kern = functools.partial(_paspp_kernel, H=H, W=W, c4=c4,
                             dilations=tuple(dilations), dmax=dmax,
                             split_out=split_out_convs)
    out = pl.pallas_call(
        kern,
        out_shape=jax.ShapeDtypeStruct((N, H * W, OC), jnp.float32),
        grid_spec=pltpu.PrefetchScalarGridSpec(
            num_scalar_prefetch=0,
            grid=(N,),
            in_specs=[
                pl.BlockSpec((1, H * W, Cin), lambda n: (n, 0, 0)),
                pl.BlockSpec((Cin, OC), lambda n: (0, 0)),
                pl.BlockSpec((1, OC), lambda n: (0, 0)),
                pl.BlockSpec((9, OC, OC), lambda n: (0, 0, 0)),
                pl.BlockSpec((1, OC), lambda n: (0, 0)),
                pl.BlockSpec((OC, OC), lambda n: (0, 0)),
                pl.BlockSpec((1, OC), lambda n: (0, 0)),
                pl.BlockSpec((OC, OC), lambda n: (0, 0)),
                pl.BlockSpec((1, OC), lambda n: (0, 0)),
            ],
            out_specs=pl.BlockSpec((1, H * W, OC), lambda n: (n, 0, 0)),
            scratch_shapes=[
                pltpu.VMEM((Hp, Wp, OC), mxu_dtype),   # channel-packed plane
            ],
        ),
        compiler_params=pltpu.CompilerParams(
            dimension_semantics=("parallel",),
            vmem_limit_bytes=_vmem_limit_bytes(),
        ),
    )(xf, w1f, t1, w3tap, t2, wobd, tob, wff, tf)
    return out.reshape(N, H, W, OC)


# ----------------------------------------------------------------------------
# Parameter construction (deterministic, synthetic)
# ----------------------------------------------------------------------------
def make_params(key, in_ch, out_ch):
    c4 = out_ch // 4
    c2 = out_ch // 2
    keys = iter(jax.random.split(key, 64))

    def nrm(shape, s=0.1):
        return jax.random.normal(next(keys), shape, jnp.float32) * s

    def bn(c):
        return dict(
            gamma=1.0 + nrm((c,)),
            beta=nrm((c,)),
            mean=nrm((c,)),
            var=1.0 + jnp.abs(nrm((c,))),
        )

    p = {}
    for i in range(1, 5):
        p[f"w1_{i}"] = nrm((in_ch, c4))            # 1x1 conv weight (Cin, Cout)
        p[f"b1_{i}"] = nrm((c4,))
        p[f"bn1_{i}"] = bn(c4)
        p[f"w3_{i}"] = nrm((3, 3, c4, c4))         # 3x3 conv weight HWIO
        p[f"bn2_{i}"] = bn(c4)
    p["w_out1"] = nrm((c2, c2)); p["b_out1"] = nrm((c2,)); p["bn_out1"] = bn(c2)
    p["w_out2"] = nrm((c2, c2)); p["b_out2"] = nrm((c2,)); p["bn_out2"] = bn(c2)
    p["w_fin"] = nrm((out_ch, out_ch)); p["b_fin"] = nrm((out_ch,)); p["bn_fin"] = bn(out_ch)
    return p


# ----------------------------------------------------------------------------
# Pure-JAX reference (for correctness check)
# ----------------------------------------------------------------------------
def ref_paspp(x, p, dilations=(1, 2, 4, 8)):
    def bn_relu(y, bn):
        return jax.nn.relu(
            (y - bn["mean"]) / jnp.sqrt(bn["var"] + EPS) * bn["gamma"] + bn["beta"]
        )

    def pw(x, w, b):
        return jnp.einsum("nhwc,co->nhwo", x, w, precision=lax.Precision.HIGHEST) + b

    def dconv(x, w, d):
        return lax.conv_general_dilated(
            x, w, window_strides=(1, 1), padding=((d, d), (d, d)),
            rhs_dilation=(d, d), dimension_numbers=("NHWC", "HWIO", "NHWC"),
            precision=lax.Precision.HIGHEST,
        )

    xs = [bn_relu(pw(x, p[f"w1_{i}"], p[f"b1_{i}"]), p[f"bn1_{i}"]) for i in range(1, 5)]
    x1, x2, x3, x4 = xs
    x12 = x1 + x2
    x34 = x3 + x4
    y1 = bn_relu(dconv(x1, p["w3_1"], dilations[0]), p["bn2_1"]) + x12
    y2 = bn_relu(dconv(x2, p["w3_2"], dilations[1]), p["bn2_2"]) + x12
    y3 = bn_relu(dconv(x3, p["w3_3"], dilations[2]), p["bn2_3"]) + x34
    y4 = bn_relu(dconv(x4, p["w3_4"], dilations[3]), p["bn2_4"]) + x34
    a = jnp.concatenate([y1, y2], axis=-1)
    b = jnp.concatenate([y3, y4], axis=-1)
    a = bn_relu(pw(a, p["w_out1"], p["b_out1"]), p["bn_out1"])
    b = bn_relu(pw(b, p["w_out2"], p["b_out2"]), p["bn_out2"])
    y = jnp.concatenate([a, b], axis=-1)
    return bn_relu(pw(y, p["w_fin"], p["b_fin"]), p["bn_fin"])


if __name__ == "__main__":
    key = jax.random.PRNGKey(0)
    kx, kp = jax.random.split(key)

    N, H, W = 2, 16, 16
    in_ch, out_ch = 4, 16

    # PyTorch-convention NCHW input, converted to NHWC for the kernel.
    x_nchw = jax.random.normal(kx, (N, in_ch, H, W), jnp.float32)
    x_nhwc = jnp.transpose(x_nchw, (0, 2, 3, 1))

    params = make_params(kp, in_ch, out_ch)

    y_nhwc = jax.block_until_ready(paspp_forward(x_nhwc, params))
    y_nchw = jnp.transpose(y_nhwc, (0, 3, 1, 2))  # back to PyTorch NCHW

    # Tolerance widened vs. the f32 version: MXU operands are bf16
    # (accumulation stays f32), reference uses f32 HIGHEST.
    y_ref = jnp.transpose(ref_paspp(x_nhwc, params), (0, 3, 1, 2))
    np.testing.assert_allclose(
        np.asarray(y_nchw), np.asarray(y_ref), atol=3e-2, rtol=3e-2
    )

    print("KERNEL_OK")
</pallas_src>

<mosaic_0001>
module attributes {stable_mosaic.version = 11 : i64} {
  func.func @_paspp_kernel(%arg0: i32, %arg1: memref<1x256x4xbf16, #tpu.memory_space<vmem>>, %arg2: memref<4x16xbf16, #tpu.memory_space<vmem>>, %arg3: memref<1x16xf32, #tpu.memory_space<vmem>>, %arg4: memref<9x16x16xbf16, #tpu.memory_space<vmem>>, %arg5: memref<1x16xf32, #tpu.memory_space<vmem>>, %arg6: memref<16x16xbf16, #tpu.memory_space<vmem>>, %arg7: memref<1x16xf32, #tpu.memory_space<vmem>>, %arg8: memref<16x16xbf16, #tpu.memory_space<vmem>>, %arg9: memref<1x16xf32, #tpu.memory_space<vmem>>, %arg10: memref<1x256x16xf32, #tpu.memory_space<vmem>>, %arg11: memref<32x32x16xbf16, #tpu.memory_space<vmem>>) attributes {dimension_semantics = [#tpu.dimension_semantics<parallel>], iteration_bounds = array<i64: 2>, scalar_prefetch = 0 : i64, scratch_operands = 1 : i64, tpu.core_type = #tpu.core_type<tc>, window_params = [{transform_indices = @transform_0, window_bounds = array<i64: 1, 256, 4>}, {pipeline_mode = #tpu.pipeline_mode<synchronous>, transform_indices = @transform_1, window_bounds = array<i64: 4, 16>}, {pipeline_mode = #tpu.pipeline_mode<synchronous>, transform_indices = @transform_2, window_bounds = array<i64: 1, 16>}, {pipeline_mode = #tpu.pipeline_mode<synchronous>, transform_indices = @transform_3, window_bounds = array<i64: 9, 16, 16>}, {pipeline_mode = #tpu.pipeline_mode<synchronous>, transform_indices = @transform_4, window_bounds = array<i64: 1, 16>}, {pipeline_mode = #tpu.pipeline_mode<synchronous>, transform_indices = @transform_5, window_bounds = array<i64: 16, 16>}, {pipeline_mode = #tpu.pipeline_mode<synchronous>, transform_indices = @transform_6, window_bounds = array<i64: 1, 16>}, {pipeline_mode = #tpu.pipeline_mode<synchronous>, transform_indices = @transform_7, window_bounds = array<i64: 16, 16>}, {pipeline_mode = #tpu.pipeline_mode<synchronous>, transform_indices = @transform_8, window_bounds = array<i64: 1, 16>}, {transform_indices = @transform_9, window_bounds = array<i64: 1, 256, 16>}]} {
    %c0 = arith.constant 0 : index
    %c0_0 = arith.constant 0 : index
    %c0_1 = arith.constant 0 : index
    %0 = vector.load %arg1[%c0, %c0_0, %c0_1] : memref<1x256x4xbf16, #tpu.memory_space<vmem>>, vector<1x256x4xbf16>
    %1 = vector.shape_cast %0 : vector<1x256x4xbf16> to vector<256x4xbf16>
    %c0_2 = arith.constant 0 : index
    %c0_3 = arith.constant 0 : index
    %2 = vector.load %arg2[%c0_2, %c0_3] : memref<4x16xbf16, #tpu.memory_space<vmem>>, vector<4x16xbf16>
    %cst = arith.constant dense<0.000000e+00> : vector<256x16xf32>
    %3 = tpu.matmul %1, %2, %cst {dimension_numbers = #tpu.dot_dimension_numbers<[1], [0], [0], [1], [0, 0, 1, 1], [], []>} : vector<256x4xbf16>, vector<4x16xbf16>, vector<256x16xf32> -> vector<256x16xf32>
    %c0_4 = arith.constant 0 : index
    %c0_5 = arith.constant 0 : index
    %4 = vector.load %arg3[%c0_4, %c0_5] : memref<1x16xf32, #tpu.memory_space<vmem>>, vector<1x16xf32>
    %5 = vector.broadcast %4 : vector<1x16xf32> to vector<256x16xf32>
    %6 = arith.addf %3, %5 : vector<256x16xf32>
    %cst_6 = arith.constant 0.000000e+00 : f32
    %7 = vector.broadcast %cst_6 : f32 to vector<256x16xf32>
    %8 = arith.maximumf %6, %7 : vector<256x16xf32>
    %9 = vector.extract_strided_slice %8 {offsets = [0, 0], sizes = [256, 4], strides = [1, 1]} : vector<256x16xf32> to vector<256x4xf32>
    %10 = vector.extract_strided_slice %8 {offsets = [0, 4], sizes = [256, 4], strides = [1, 1]} : vector<256x16xf32> to vector<256x4xf32>
    %11 = arith.addf %9, %10 : vector<256x4xf32>
    %12 = vector.extract_strided_slice %8 {offsets = [0, 8], sizes = [256, 4], strides = [1, 1]} : vector<256x16xf32> to vector<256x4xf32>
    %13 = vector.extract_strided_slice %8 {offsets = [0, 12], sizes = [256, 4], strides = [1, 1]} : vector<256x16xf32> to vector<256x4xf32>
    %14 = arith.addf %12, %13 : vector<256x4xf32>
    %cst_7 = arith.constant 0.000000e+00 : bf16
    %15 = vector.broadcast %cst_7 : bf16 to vector<8x32x16xbf16>
    %c0_8 = arith.constant 0 : index
    %c0_9 = arith.constant 0 : index
    %c0_10 = arith.constant 0 : index
    %16 = vector.load %arg11[%c0_8, %c0_9, %c0_10] : memref<32x32x16xbf16, #tpu.memory_space<vmem>>, vector<8x32x16xbf16>
    tpu.vector_store %arg11[%c0_8, %c0_9, %c0_10], %15 {strides = array<i32>} : memref<32x32x16xbf16, #tpu.memory_space<vmem>>, vector<8x32x16xbf16>,
    %cst_11 = arith.constant 0.000000e+00 : bf16
    %17 = vector.broadcast %cst_11 : bf16 to vector<8x32x16xbf16>
    %c24 = arith.constant 24 : index
    %c0_12 = arith.constant 0 : index
    %c0_13 = arith.constant 0 : index
    %18 = vector.load %arg11[%c24, %c0_12, %c0_13] : memref<32x32x16xbf16, #tpu.memory_space<vmem>>, vector<8x32x16xbf16>
    tpu.vector_store %arg11[%c24, %c0_12, %c0_13], %17 {strides = array<i32>} : memref<32x32x16xbf16, #tpu.memory_space<vmem>>, vector<8x32x16xbf16>,
    %cst_14 = arith.constant 0.000000e+00 : bf16
    %19 = vector.broadcast %cst_14 : bf16 to vector<16x8x16xbf16>
    %c8 = arith.constant 8 : index
    %c0_15 = arith.constant 0 : index
    %c0_16 = arith.constant 0 : index
    %20 = vector.load %arg11[%c8, %c0_15, %c0_16] : memref<32x32x16xbf16, #tpu.memory_space<vmem>>, vector<16x8x16xbf16>
    tpu.vector_store %arg11[%c8, %c0_15, %c0_16], %19 {strides = array<i32>} : memref<32x32x16xbf16, #tpu.memory_space<vmem>>, vector<16x8x16xbf16>,
    %cst_17 = arith.constant 0.000000e+00 : bf16
    %21 = vector.broadcast %cst_17 : bf16 to vector<16x8x16xbf16>
    %c8_18 = arith.constant 8 : index
    %c24_19 = arith.constant 24 : index
    %c0_20 = arith.constant 0 : index
    %22 = vector.load %arg11[%c8_18, %c24_19, %c0_20] : memref<32x32x16xbf16, #tpu.memory_space<vmem>>, vector<16x8x16xbf16>
    tpu.vector_store %arg11[%c8_18, %c24_19, %c0_20], %21 {strides = array<i32>} : memref<32x32x16xbf16, #tpu.memory_space<vmem>>, vector<16x8x16xbf16>,
    %23 = arith.truncf %8 : vector<256x16xf32> to vector<256x16xbf16>
    %24 = vector.shape_cast %23 : vector<256x16xbf16> to vector<16x16x16xbf16>
    %c8_21 = arith.constant 8 : index
    %c8_22 = arith.constant 8 : index
    %c0_23 = arith.constant 0 : index
    %25 = vector.load %arg11[%c8_21, %c8_22, %c0_23] : memref<32x32x16xbf16, #tpu.memory_space<vmem>>, vector<16x16x16xbf16>
    tpu.vector_store %arg11[%c8_21, %c8_22, %c0_23], %24 {strides = array<i32>} : memref<32x32x16xbf16, #tpu.memory_space<vmem>>, vector<16x16x16xbf16>,
    %c7 = arith.constant 7 : index
    %c7_24 = arith.constant 7 : index
    %c0_25 = arith.constant 0 : index
    %26 = vector.load %arg11[%c7, %c7_24, %c0_25] : memref<32x32x16xbf16, #tpu.memory_space<vmem>>, vector<16x16x4xbf16>
    %c6 = arith.constant 6 : index
    %c6_26 = arith.constant 6 : index
    %c4 = arith.constant 4 : index
    %27 = vector.load %arg11[%c6, %c6_26, %c4] : memref<32x32x16xbf16, #tpu.memory_space<vmem>>, vector<16x16x4xbf16>
    %c4_27 = arith.constant 4 : index
    %c4_28 = arith.constant 4 : index
    %c8_29 = arith.constant 8 : index
    %28 = vector.load %arg11[%c4_27, %c4_28, %c8_29] : memref<32x32x16xbf16, #tpu.memory_space<vmem>>, vector<16x16x4xbf16>
    %c0_30 = arith.constant 0 : index
    %c0_31 = arith.constant 0 : index
    %c12 = arith.constant 12 : index
    %29 = vector.load %arg11[%c0_30, %c0_31, %c12] : memref<32x32x16xbf16, #tpu.memory_space<vmem>>, vector<16x16x4xbf16>
    %30 = tpu.concatenate %26, %27, %28, %29 in 2 : vector<16x16x4xbf16>, vector<16x16x4xbf16>, vector<16x16x4xbf16>, vector<16x16x4xbf16> -> vector<16x16x16xbf16>
    %31 = vector.shape_cast %30 : vector<16x16x16xbf16> to vector<256x16xbf16>
    %c0_32 = arith.constant 0 : index
    %c0_33 = arith.constant 0 : index
    %c0_34 = arith.constant 0 : index
    %32 = vector.load %arg4[%c0_32, %c0_33, %c0_34] : memref<9x16x16xbf16, #tpu.memory_space<vmem>>, vector<1x16x16xbf16>
    %33 = vector.shape_cast %32 : vector<1x16x16xbf16> to vector<16x16xbf16>
    %cst_35 = arith.constant dense<0.000000e+00> : vector<256x16xf32>
    %34 = tpu.matmul %31, %33, %cst_35 {dimension_numbers = #tpu.dot_dimension_numbers<[1], [0], [0], [1], [0, 0, 1, 1], [], []>} : vector<256x16xbf16>, vector<16x16xbf16>, vector<256x16xf32> -> vector<256x16xf32>
    %c7_36 = arith.constant 7 : index
    %c8_37 = arith.constant 8 : index
    %c0_38 = arith.constant 0 : index
    %35 = vector.load %arg11[%c7_36, %c8_37, %c0_38] : memref<32x32x16xbf16, #tpu.memory_space<vmem>>, vector<16x16x4xbf16>
    %c6_39 = arith.constant 6 : index
    %c8_40 = arith.constant 8 : index
    %c4_41 = arith.constant 4 : index
    %36 = vector.load %arg11[%c6_39, %c8_40, %c4_41] : memref<32x32x16xbf16, #tpu.memory_space<vmem>>, vector<16x16x4xbf16>
    %c4_42 = arith.constant 4 : index
    %c8_43 = arith.constant 8 : index
    %c8_44 = arith.constant 8 : index
    %37 = vector.load %arg11[%c4_42, %c8_43, %c8_44] : memref<32x32x16xbf16, #tpu.memory_space<vmem>>, vector<16x16x4xbf16>
    %c0_45 = arith.constant 0 : index
    %c8_46 = arith.constant 8 : index
    %c12_47 = arith.constant 12 : index
    %38 = vector.load %arg11[%c0_45, %c8_46, %c12_47] : memref<32x32x16xbf16, #tpu.memory_space<vmem>>, vector<16x16x4xbf16>
    %39 = tpu.concatenate %35, %36, %37, %38 in 2 : vector<16x16x4xbf16>, vector<16x16x4xbf16>, vector<16x16x4xbf16>, vector<16x16x4xbf16> -> vector<16x16x16xbf16>
    %40 = vector.shape_cast %39 : vector<16x16x16xbf16> to vector<256x16xbf16>
    %c1 = arith.constant 1 : index
    %c0_48 = arith.constant 0 : index
    %c0_49 = arith.constant 0 : index
    %41 = vector.load %arg4[%c1, %c0_48, %c0_49] : memref<9x16x16xbf16, #tpu.memory_space<vmem>>, vector<1x16x16xbf16>
    %42 = vector.shape_cast %41 : vector<1x16x16xbf16> to vector<16x16xbf16>
    %cst_50 = arith.constant dense<0.000000e+00> : vector<256x16xf32>
    %43 = tpu.matmul %40, %42, %cst_50 {dimension_numbers = #tpu.dot_dimension_numbers<[1], [0], [0], [1], [0, 0, 1, 1], [], []>} : vector<256x16xbf16>, vector<16x16xbf16>, vector<256x16xf32> -> vector<256x16xf32>
    %44 = arith.addf %34, %43 : vector<256x16xf32>
    %c7_51 = arith.constant 7 : index
    %c9 = arith.constant 9 : index
    %c0_52 = arith.constant 0 : index
    %45 = vector.load %arg11[%c7_51, %c9, %c0_52] : memref<32x32x16xbf16, #tpu.memory_space<vmem>>, vector<16x16x4xbf16>
    %c6_53 = arith.constant 6 : index
    %c10 = arith.constant 10 : index
    %c4_54 = arith.constant 4 : index
    %46 = vector.load %arg11[%c6_53, %c10, %c4_54] : memref<32x32x16xbf16, #tpu.memory_space<vmem>>, vector<16x16x4xbf16>
    %c4_55 = arith.constant 4 : index
    %c12_56 = arith.constant 12 : index
    %c8_57 = arith.constant 8 : index
    %47 = vector.load %arg11[%c4_55, %c12_56, %c8_57] : memref<32x32x16xbf16, #tpu.memory_space<vmem>>, vector<16x16x4xbf16>
    %c0_58 = arith.constant 0 : index
    %c16 = arith.constant 16 : index
    %c12_59 = arith.constant 12 : index
    %48 = vector.load %arg11[%c0_58, %c16, %c12_59] : memref<32x32x16xbf16, #tpu.memory_space<vmem>>, vector<16x16x4xbf16>
    %49 = tpu.concatenate %45, %46, %47, %48 in 2 : vector<16x16x4xbf16>, vector<16x16x4xbf16>, vector<16x16x4xbf16>, vector<16x16x4xbf16> -> vector<16x16x16xbf16>
    %50 = vector.shape_cast %49 : vector<16x16x16xbf16> to vector<256x16xbf16>
    %c2 = arith.constant 2 : index
    %c0_60 = arith.constant 0 : index
    %c0_61 = arith.constant 0 : index
    %51 = vector.load %arg4[%c2, %c0_60, %c0_61] : memref<9x16x16xbf16, #tpu.memory_space<vmem>>, vector<1x16x16xbf16>
    %52 = vector.shape_cast %51 : vector<1x16x16xbf16> to vector<16x16xbf16>
    %cst_62 = arith.constant dense<0.000000e+00> : vector<256x16xf32>
    %53 = tpu.matmul %50, %52, %cst_62 {dimension_numbers = #tpu.dot_dimension_numbers<[1], [0], [0], [1], [0, 0, 1, 1], [], []>} : vector<256x16xbf16>, vector<16x16xbf16>, vector<256x16xf32> -> vector<256x16xf32>
    %54 = arith.addf %44, %53 : vector<256x16xf32>
    %c8_63 = arith.constant 8 : index
    %c7_64 = arith.constant 7 : index
    %c0_65 = arith.constant 0 : index
    %55 = vector.load %arg11[%c8_63, %c7_64, %c0_65] : memref<32x32x16xbf16, #tpu.memory_space<vmem>>, vector<16x16x4xbf16>
    %c8_66 = arith.constant 8 : index
    %c6_67 = arith.constant 6 : index
    %c4_68 = arith.constant 4 : index
    %56 = vector.load %arg11[%c8_66, %c6_67, %c4_68] : memref<32x32x16xbf16, #tpu.memory_space<vmem>>, vector<16x16x4xbf16>
    %c8_69 = arith.constant 8 : index
    %c4_70 = arith.constant 4 : index
    %c8_71 = arith.constant 8 : index
    %57 = vector.load %arg11[%c8_69, %c4_70, %c8_71] : memref<32x32x16xbf16, #tpu.memory_space<vmem>>, vector<16x16x4xbf16>
    %c8_72 = arith.constant 8 : index
    %c0_73 = arith.constant 0 : index
    %c12_74 = arith.constant 12 : index
    %58 = vector.load %arg11[%c8_72, %c0_73, %c12_74] : memref<32x32x16xbf16, #tpu.memory_space<vmem>>, vector<16x16x4xbf16>
    %59 = tpu.concatenate %55, %56, %57, %58 in 2 : vector<16x16x4xbf16>, vector<16x16x4xbf16>, vector<16x16x4xbf16>, vector<16x16x4xbf16> -> vector<16x16x16xbf16>
    %60 = vector.shape_cast %59 : vector<16x16x16xbf16> to vector<256x16xbf16>
    %c3 = arith.constant 3 : index
    %c0_75 = arith.constant 0 : index
    %c0_76 = arith.constant 0 : index
    %61 = vector.load %arg4[%c3, %c0_75, %c0_76] : memref<9x16x16xbf16, #tpu.memory_space<vmem>>, vector<1x16x16xbf16>
    %62 = vector.shape_cast %61 : vector<1x16x16xbf16> to vector<16x16xbf16>
    %cst_77 = arith.constant dense<0.000000e+00> : vector<256x16xf32>
    %63 = tpu.matmul %60, %62, %cst_77 {dimension_numbers = #tpu.dot_dimension_numbers<[1], [0], [0], [1], [0, 0, 1, 1], [], []>} : vector<256x16xbf16>, vector<16x16xbf16>, vector<256x16xf32> -> vector<256x16xf32>
    %64 = arith.addf %54, %63 : vector<256x16xf32>
    %c8_78 = arith.constant 8 : index
    %c8_79 = arith.constant 8 : index
    %c0_80 = arith.constant 0 : index
    %65 = vector.load %arg11[%c8_78, %c8_79, %c0_80] : memref<32x32x16xbf16, #tpu.memory_space<vmem>>, vector<16x16x4xbf16>
    %c8_81 = arith.constant 8 : index
    %c8_82 = arith.constant 8 : index
    %c4_83 = arith.constant 4 : index
    %66 = vector.load %arg11[%c8_81, %c8_82, %c4_83] : memref<32x32x16xbf16, #tpu.memory_space<vmem>>, vector<16x16x4xbf16>
    %c8_84 = arith.constant 8 : index
    %c8_85 = arith.constant 8 : index
    %c8_86 = arith.constant 8 : index
    %67 = vector.load %arg11[%c8_84, %c8_85, %c8_86] : memref<32x32x16xbf16, #tpu.memory_space<vmem>>, vector<16x16x4xbf16>
    %c8_87 = arith.constant 8 : index
    %c8_88 = arith.constant 8 : index
    %c12_89 = arith.constant 12 : index
    %68 = vector.load %arg11[%c8_87, %c8_88, %c12_89] : memref<32x32x16xbf16, #tpu.memory_space<vmem>>, vector<16x16x4xbf16>
    %69 = tpu.concatenate %65, %66, %67, %68 in 2 : vector<16x16x4xbf16>, vector<16x16x4xbf16>, vector<16x16x4xbf16>, vector<16x16x4xbf16> -> vector<16x16x16xbf16>
    %70 = vector.shape_cast %69 : vector<16x16x16xbf16> to vector<256x16xbf16>
    %c4_90 = arith.constant 4 : index
    %c0_91 = arith.constant 0 : index
    %c0_92 = arith.constant 0 : index
    %71 = vector.load %arg4[%c4_90, %c0_91, %c0_92] : memref<9x16x16xbf16, #tpu.memory_space<vmem>>, vector<1x16x16xbf16>
    %72 = vector.shape_cast %71 : vector<1x16x16xbf16> to vector<16x16xbf16>
    %cst_93 = arith.constant dense<0.000000e+00> : vector<256x16xf32>
    %73 = tpu.matmul %70, %72, %cst_93 {dimension_numbers = #tpu.dot_dimension_numbers<[1], [0], [0], [1], [0, 0, 1, 1], [], []>} : vector<256x16xbf16>, vector<16x16xbf16>, vector<256x16xf32> -> vector<256x16xf32>
    %74 = arith.addf %64, %73 : vector<256x16xf32>
    %c8_94 = arith.constant 8 : index
    %c9_95 = arith.constant 9 : index
    %c0_96 = arith.constant 0 : index
    %75 = vector.load %arg11[%c8_94, %c9_95, %c0_96] : memref<32x32x16xbf16, #tpu.memory_space<vmem>>, vector<16x16x4xbf16>
    %c8_97 = arith.constant 8 : index
    %c10_98 = arith.constant 10 : index
    %c4_99 = arith.constant 4 : index
    %76 = vector.load %arg11[%c8_97, %c10_98, %c4_99] : memref<32x32x16xbf16, #tpu.memory_space<vmem>>, vector<16x16x4xbf16>
    %c8_100 = arith.constant 8 : index
    %c12_101 = arith.constant 12 : index
    %c8_102 = arith.constant 8 : index
    %77 = vector.load %arg11[%c8_100, %c12_101, %c8_102] : memref<32x32x16xbf16, #tpu.memory_space<vmem>>, vector<16x16x4xbf16>
    %c8_103 = arith.constant 8 : index
    %c16_104 = arith.constant 16 : index
    %c12_105 = arith.constant 12 : index
    %78 = vector.load %arg11[%c8_103, %c16_104, %c12_105] : memref<32x32x16xbf16, #tpu.memory_space<vmem>>, vector<16x16x4xbf16>
    %79 = tpu.concatenate %75, %76, %77, %78 in 2 : vector<16x16x4xbf16>, vector<16x16x4xbf16>, vector<16x16x4xbf16>, vector<16x16x4xbf16> -> vector<16x16x16xbf16>
    %80 = vector.shape_cast %79 : vector<16x16x16xbf16> to vector<256x16xbf16>
    %c5 = arith.constant 5 : index
    %c0_106 = arith.constant 0 : index
    %c0_107 = arith.constant 0 : index
    %81 = vector.load %arg4[%c5, %c0_106, %c0_107] : memref<9x16x16xbf16, #tpu.memory_space<vmem>>, vector<1x16x16xbf16>
    %82 = vector.shape_cast %81 : vector<1x16x16xbf16> to vector<16x16xbf16>
    %cst_108 = arith.constant dense<0.000000e+00> : vector<256x16xf32>
    %83 = tpu.matmul %80, %82, %cst_108 {dimension_numbers = #tpu.dot_dimension_numbers<[1], [0], [0], [1], [0, 0, 1, 1], [], []>} : vector<256x16xbf16>, vector<16x16xbf16>, vector<256x16xf32> -> vector<256x16xf32>
    %84 = arith.addf %74, %83 : vector<256x16xf32>
    %c9_109 = arith.constant 9 : index
    %c7_110 = arith.constant 7 : index
    %c0_111 = arith.constant 0 : index
    %85 = vector.load %arg11[%c9_109, %c7_110, %c0_111] : memref<32x32x16xbf16, #tpu.memory_space<vmem>>, vector<16x16x4xbf16>
    %c10_112 = arith.constant 10 : index
    %c6_113 = arith.constant 6 : index
    %c4_114 = arith.constant 4 : index
    %86 = vector.load %arg11[%c10_112, %c6_113, %c4_114] : memref<32x32x16xbf16, #tpu.memory_space<vmem>>, vector<16x16x4xbf16>
    %c12_115 = arith.constant 12 : index
    %c4_116 = arith.constant 4 : index
    %c8_117 = arith.constant 8 : index
    %87 = vector.load %arg11[%c12_115, %c4_116, %c8_117] : memref<32x32x16xbf16, #tpu.memory_space<vmem>>, vector<16x16x4xbf16>
    %c16_118 = arith.constant 16 : index
    %c0_119 = arith.constant 0 : index
    %c12_120 = arith.constant 12 : index
    %88 = vector.load %arg11[%c16_118, %c0_119, %c12_120] : memref<32x32x16xbf16, #tpu.memory_space<vmem>>, vector<16x16x4xbf16>
    %89 = tpu.concatenate %85, %86, %87, %88 in 2 : vector<16x16x4xbf16>, vector<16x16x4xbf16>, vector<16x16x4xbf16>, vector<16x16x4xbf16> -> vector<16x16x16xbf16>
    %90 = vector.shape_cast %89 : vector<16x16x16xbf16> to vector<256x16xbf16>
    %c6_121 = arith.constant 6 : index
    %c0_122 = arith.constant 0 : index
    %c0_123 = arith.constant 0 : index
    %91 = vector.load %arg4[%c6_121, %c0_122, %c0_123] : memref<9x16x16xbf16, #tpu.memory_space<vmem>>, vector<1x16x16xbf16>
    %92 = vector.shape_cast %91 : vector<1x16x16xbf16> to vector<16x16xbf16>
    %cst_124 = arith.constant dense<0.000000e+00> : vector<256x16xf32>
    %93 = tpu.matmul %90, %92, %cst_124 {dimension_numbers = #tpu.dot_dimension_numbers<[1], [0], [0], [1], [0, 0, 1, 1], [], []>} : vector<256x16xbf16>, vector<16x16xbf16>, vector<256x16xf32> -> vector<256x16xf32>
    %94 = arith.addf %84, %93 : vector<256x16xf32>
    %c9_125 = arith.constant 9 : index
    %c8_126 = arith.constant 8 : index
    %c0_127 = arith.constant 0 : index
    %95 = vector.load %arg11[%c9_125, %c8_126, %c0_127] : memref<32x32x16xbf16, #tpu.memory_space<vmem>>, vector<16x16x4xbf16>
    %c10_128 = arith.constant 10 : index
    %c8_129 = arith.constant 8 : index
    %c4_130 = arith.constant 4 : index
    %96 = vector.load %arg11[%c10_128, %c8_129, %c4_130] : memref<32x32x16xbf16, #tpu.memory_space<vmem>>, vector<16x16x4xbf16>
    %c12_131 = arith.constant 12 : index
    %c8_132 = arith.constant 8 : index
    %c8_133 = arith.constant 8 : index
    %97 = vector.load %arg11[%c12_131, %c8_132, %c8_133] : memref<32x32x16xbf16, #tpu.memory_space<vmem>>, vector<16x16x4xbf16>
    %c16_134 = arith.constant 16 : index
    %c8_135 = arith.constant 8 : index
    %c12_136 = arith.constant 12 : index
    %98 = vector.load %arg11[%c16_134, %c8_135, %c12_136] : memref<32x32x16xbf16, #tpu.memory_space<vmem>>, vector<16x16x4xbf16>
    %99 = tpu.concatenate %95, %96, %97, %98 in 2 : vector<16x16x4xbf16>, vector<16x16x4xbf16>, vector<16x16x4xbf16>, vector<16x16x4xbf16> -> vector<16x16x16xbf16>
    %100 = vector.shape_cast %99 : vector<16x16x16xbf16> to vector<256x16xbf16>
    %c7_137 = arith.constant 7 : index
    %c0_138 = arith.constant 0 : index
    %c0_139 = arith.constant 0 : index
    %101 = vector.load %arg4[%c7_137, %c0_138, %c0_139] : memref<9x16x16xbf16, #tpu.memory_space<vmem>>, vector<1x16x16xbf16>
    %102 = vector.shape_cast %101 : vector<1x16x16xbf16> to vector<16x16xbf16>
    %cst_140 = arith.constant dense<0.000000e+00> : vector<256x16xf32>
    %103 = tpu.matmul %100, %102, %cst_140 {dimension_numbers = #tpu.dot_dimension_numbers<[1], [0], [0], [1], [0, 0, 1, 1], [], []>} : vector<256x16xbf16>, vector<16x16xbf16>, vector<256x16xf32> -> vector<256x16xf32>
    %104 = arith.addf %94, %103 : vector<256x16xf32>
    %c9_141 = arith.constant 9 : index
    %c9_142 = arith.constant 9 : index
    %c0_143 = arith.constant 0 : index
    %105 = vector.load %arg11[%c9_141, %c9_142, %c0_143] : memref<32x32x16xbf16, #tpu.memory_space<vmem>>, vector<16x16x4xbf16>
    %c10_144 = arith.constant 10 : index
    %c10_145 = arith.constant 10 : index
    %c4_146 = arith.constant 4 : index
    %106 = vector.load %arg11[%c10_144, %c10_145, %c4_146] : memref<32x32x16xbf16, #tpu.memory_space<vmem>>, vector<16x16x4xbf16>
    %c12_147 = arith.constant 12 : index
    %c12_148 = arith.constant 12 : index
    %c8_149 = arith.constant 8 : index
    %107 = vector.load %arg11[%c12_147, %c12_148, %c8_149] : memref<32x32x16xbf16, #tpu.memory_space<vmem>>, vector<16x16x4xbf16>
    %c16_150 = arith.constant 16 : index
    %c16_151 = arith.constant 16 : index
    %c12_152 = arith.constant 12 : index
    %108 = vector.load %arg11[%c16_150, %c16_151, %c12_152] : memref<32x32x16xbf16, #tpu.memory_space<vmem>>, vector<16x16x4xbf16>
    %109 = tpu.concatenate %105, %106, %107, %108 in 2 : vector<16x16x4xbf16>, vector<16x16x4xbf16>, vector<16x16x4xbf16>, vector<16x16x4xbf16> -> vector<16x16x16xbf16>
    %110 = vector.shape_cast %109 : vector<16x16x16xbf16> to vector<256x16xbf16>
    %c8_153 = arith.constant 8 : index
    %c0_154 = arith.constant 0 : index
    %c0_155 = arith.constant 0 : index
    %111 = vector.load %arg4[%c8_153, %c0_154, %c0_155] : memref<9x16x16xbf16, #tpu.memory_space<vmem>>, vector<1x16x16xbf16>
    %112 = vector.shape_cast %111 : vector<1x16x16xbf16> to vector<16x16xbf16>
    %cst_156 = arith.constant dense<0.000000e+00> : vector<256x16xf32>
    %113 = tpu.matmul %110, %112, %cst_156 {dimension_numbers = #tpu.dot_dimension_numbers<[1], [0], [0], [1], [0, 0, 1, 1], [], []>} : vector<256x16xbf16>, vector<16x16xbf16>, vector<256x16xf32> -> vector<256x16xf32>
    %114 = arith.addf %104, %113 : vector<256x16xf32>
    %c0_157 = arith.constant 0 : index
    %c0_158 = arith.constant 0 : index
    %115 = vector.load %arg5[%c0_157, %c0_158] : memref<1x16xf32, #tpu.memory_space<vmem>>, vector<1x16xf32>
    %116 = vector.broadcast %115 : vector<1x16xf32> to vector<256x16xf32>
    %117 = arith.addf %114, %116 : vector<256x16xf32>
    %cst_159 = arith.constant 0.000000e+00 : f32
    %118 = vector.broadcast %cst_159 : f32 to vector<256x16xf32>
    %119 = arith.maximumf %117, %118 : vector<256x16xf32>
    %120 = tpu.concatenate %11, %11, %14, %14 in 1 : vector<256x4xf32>, vector<256x4xf32>, vector<256x4xf32>, vector<256x4xf32> -> vector<256x16xf32>
    %121 = arith.addf %119, %120 : vector<256x16xf32>
    %122 = arith.truncf %121 : vector<256x16xf32> to vector<256x16xbf16>
    %c0_160 = arith.constant 0 : index
    %c0_161 = arith.constant 0 : index
    %123 = vector.load %arg6[%c0_160, %c0_161] : memref<16x16xbf16, #tpu.memory_space<vmem>>, vector<16x16xbf16>
    %cst_162 = arith.constant dense<0.000000e+00> : vector<256x16xf32>
    %124 = tpu.matmul %122, %123, %cst_162 {dimension_numbers = #tpu.dot_dimension_numbers<[1], [0], [0], [1], [0, 0, 1, 1], [], []>} : vector<256x16xbf16>, vector<16x16xbf16>, vector<256x16xf32> -> vector<256x16xf32>
    %c0_163 = arith.constant 0 : index
    %c0_164 = arith.constant 0 : index
    %125 = vector.load %arg7[%c0_163, %c0_164] : memref<1x16xf32, #tpu.memory_space<vmem>>, vector<1x16xf32>
    %126 = vector.broadcast %125 : vector<1x16xf32> to vector<256x16xf32>
    %127 = arith.addf %124, %126 : vector<256x16xf32>
    %cst_165 = arith.constant 0.000000e+00 : f32
    %128 = vector.broadcast %cst_165 : f32 to vector<256x16xf32>
    %129 = arith.maximumf %127, %128 : vector<256x16xf32>
    %130 = arith.truncf %129 : vector<256x16xf32> to vector<256x16xbf16>
    %c0_166 = arith.constant 0 : index
    %c0_167 = arith.constant 0 : index
    %131 = vector.load %arg8[%c0_166, %c0_167] : memref<16x16xbf16, #tpu.memory_space<vmem>>, vector<16x16xbf16>
    %cst_168 = arith.constant dense<0.000000e+00> : vector<256x16xf32>
    %132 = tpu.matmul %130, %131, %cst_168 {dimension_numbers = #tpu.dot_dimension_numbers<[1], [0], [0], [1], [0, 0, 1, 1], [], []>} : vector<256x16xbf16>, vector<16x16xbf16>, vector<256x16xf32> -> vector<256x16xf32>
    %c0_169 = arith.constant 0 : index
    %c0_170 = arith.constant 0 : index
    %133 = vector.load %arg9[%c0_169, %c0_170] : memref<1x16xf32, #tpu.memory_space<vmem>>, vector<1x16xf32>
    %134 = vector.broadcast %133 : vector<1x16xf32> to vector<256x16xf32>
    %135 = arith.addf %132, %134 : vector<256x16xf32>
    %cst_171 = arith.constant 0.000000e+00 : f32
    %136 = vector.broadcast %cst_171 : f32 to vector<256x16xf32>
    %137 = arith.maximumf %135, %136 : vector<256x16xf32>
    %c0_172 = arith.constant 0 : index
    %c0_173 = arith.constant 0 : index
    %c0_174 = arith.constant 0 : index
    %138 = vector.load %arg10[%c0_172, %c0_173, %c0_174] : memref<1x256x16xf32, #tpu.memory_space<vmem>>, vector<1x256x16xf32>
    %139 = vector.shape_cast %138 : vector<1x256x16xf32> to vector<256x16xf32>
    %140 = vector.shape_cast %137 : vector<256x16xf32> to vector<1x256x16xf32>
    tpu.vector_store %arg10[%c0_172, %c0_173, %c0_174], %140 {strides = array<i32>} : memref<1x256x16xf32, #tpu.memory_space<vmem>>, vector<1x256x16xf32>,
    return
  }
  func.func @transform_0(%arg0: i32) -> (i32, i32, i32) {
    %c0_i32 = arith.constant 0 : i32
    %c0_i32_0 = arith.constant 0 : i32
    %c0_i32_1 = arith.constant 0 : i32
    return %arg0, %c0_i32, %c0_i32_0 : i32, i32, i32
  }
  func.func @transform_1(%arg0: i32) -> (i32, i32) {
    %c0_i32 = arith.constant 0 : i32
    %c0_i32_0 = arith.constant 0 : i32
    %c0_i32_1 = arith.constant 0 : i32
    return %c0_i32, %c0_i32_0 : i32, i32
  }
  func.func @transform_2(%arg0: i32) -> (i32, i32) {
    %c0_i32 = arith.constant 0 : i32
    %c0_i32_0 = arith.constant 0 : i32
    %c0_i32_1 = arith.constant 0 : i32
    return %c0_i32, %c0_i32_0 : i32, i32
  }
  func.func @transform_3(%arg0: i32) -> (i32, i32, i32) {
    %c0_i32 = arith.constant 0 : i32
    %c0_i32_0 = arith.constant 0 : i32
    %c0_i32_1 = arith.constant 0 : i32
    %c0_i32_2 = arith.constant 0 : i32
    return %c0_i32, %c0_i32_0, %c0_i32_1 : i32, i32, i32
  }
  func.func @transform_4(%arg0: i32) -> (i32, i32) {
    %c0_i32 = arith.constant 0 : i32
    %c0_i32_0 = arith.constant 0 : i32
    %c0_i32_1 = arith.constant 0 : i32
    return %c0_i32, %c0_i32_0 : i32, i32
  }
  func.func @transform_5(%arg0: i32) -> (i32, i32) {
    %c0_i32 = arith.constant 0 : i32
    %c0_i32_0 = arith.constant 0 : i32
    %c0_i32_1 = arith.constant 0 : i32
    return %c0_i32, %c0_i32_0 : i32, i32
  }
  func.func @transform_6(%arg0: i32) -> (i32, i32) {
    %c0_i32 = arith.constant 0 : i32
    %c0_i32_0 = arith.constant 0 : i32
    %c0_i32_1 = arith.constant 0 : i32
    return %c0_i32, %c0_i32_0 : i32, i32
  }
  func.func @transform_7(%arg0: i32) -> (i32, i32) {
    %c0_i32 = arith.constant 0 : i32
    %c0_i32_0 = arith.constant 0 : i32
    %c0_i32_1 = arith.constant 0 : i32
    return %c0_i32, %c0_i32_0 : i32, i32
  }
  func.func @transform_8(%arg0: i32) -> (i32, i32) {
    %c0_i32 = arith.constant 0 : i32
    %c0_i32_0 = arith.constant 0 : i32
    %c0_i32_1 = arith.constant 0 : i32
    return %c0_i32, %c0_i32_0 : i32, i32
  }
  func.func @transform_9(%arg0: i32) -> (i32, i32, i32) {
    %c0_i32 = arith.constant 0 : i32
    %c0_i32_0 = arith.constant 0 : i32
    %c0_i32_1 = arith.constant 0 : i32
    return %arg0, %c0_i32, %c0_i32_0 : i32, i32, i32
  }
}

</mosaic_0001>

<llo_original>
// kernel: tpu_custom_call.1
$region0: #{tpu_custom_call.1}
  #allocation0 [shape = 'u32[]', space=smem, size = 0x4, offset = 0x4, fixed_abs, tag = 'smem constant byte address 0x4 - core index']
  #allocation1 [shape = 'u32[72,128]{1,0:T(1,128)}', space=vmem, size = 0x9000, scoped, tag = 'internal scratch']
  #allocation2 [shape = 'bf16[32,32,16]{2,1,0:T(8,128)(2,1)}', space=vmem, size = 0x40000, scoped, tag = 'scratch operand']
  %s0 = inlined_call_operand.vmem [shape: bf16[2,256,4], index: 0, kind: input, shape index: {}]
  %s1 = inlined_call_operand.vmem [shape: bf16[4,16], index: 1, kind: input, shape index: {}]
  %s2 = inlined_call_operand.vmem [shape: f32[1,16], index: 2, kind: input, shape index: {}]
  %s3 = inlined_call_operand.vmem [shape: bf16[9,16,16], index: 3, kind: input, shape index: {}]
  %s4 = inlined_call_operand.vmem [shape: f32[1,16], index: 4, kind: input, shape index: {}]
  %s5 = inlined_call_operand.vmem [shape: bf16[16,16], index: 5, kind: input, shape index: {}]
  %s6 = inlined_call_operand.vmem [shape: f32[1,16], index: 6, kind: input, shape index: {}]
  %s7 = inlined_call_operand.vmem [shape: bf16[16,16], index: 7, kind: input, shape index: {}]
  %s8 = inlined_call_operand.vmem [shape: f32[1,16], index: 8, kind: input, shape index: {}]
  %s9 = inlined_call_operand.vmem [shape: f32[2,256,16], index: 9, kind: output, shape index: {}]
  %s10 = sld [smem:[#allocation0]]
  $region69: #{tpu_custom_call.1} parent=0
    _
  %s12 = ssub.s32 1, %s10
  %s13 = scalar_select 0, %s12, %s10
  loop: start=0, step=1, limit=4
  $region2: #{tpu_custom_call.1} parent=0 // loop_pre_header
    _
  $region3: #{tpu_custom_call.1} parent=0 // loop_header
    %s15 = sphi 0, %s19
    %p16 = scmp.ge.s32.totalorder %s15, 4
    %s25 = sphi 0, %s27
    %s28 = sphi 0, %s25
    %s29 = sphi 0, %s28
    %s45 = sphi 0, %s29
    %s49 = sphi 0, %s49
    %s51 = sphi 0, %s49
    %s52 = sphi 0, %s51
    %s66 = sphi 0, %s52
    %s70 = sphi 0, %s70
    %s72 = sphi 0, %s70
    %s73 = sphi 0, %s72
    %s87 = sphi 0, %s73
    %s91 = sphi 0, %s91
    %s93 = sphi 0, %s91
    %s94 = sphi 0, %s93
    %s108 = sphi 0, %s94
    %s112 = sphi 0, %s112
    %s114 = sphi 0, %s112
    %s115 = sphi 0, %s114
    %s129 = sphi 0, %s115
    %s133 = sphi 0, %s133
    %s135 = sphi 0, %s133
    %s136 = sphi 0, %s135
    %s150 = sphi 0, %s136
    %s154 = sphi 0, %s154
    %s156 = sphi 0, %s154
    %s157 = sphi 0, %s156
    %s171 = sphi 0, %s157
    %s175 = sphi 0, %s175
    %s177 = sphi 0, %s175
    %s178 = sphi 0, %s177
    %s192 = sphi 0, %s178
    %s196 = sphi 0, %s196
    %s198 = sphi 0, %s196
    %s199 = sphi 0, %s198
    %s213 = sphi 0, %s199
    %s219 = sphi 0, %s221
    %s222 = sphi 0, %s219
    %s223 = sphi 0, %s222
    %s239 = sphi 0, %s223
  $region4: #{tpu_custom_call.1} parent=0 // loop_header_branch
    %18 = sbr.rel (%p16) target = $region8
  $region5: #{tpu_custom_call.1} parent=0 // loop_body
    %s20 = ssub.s32 %s15, 1
    %s21 = ssub.s32 %s15, 2
    %s22 = sadd.s32 %s15, 1
    %s23 = ssub.s32 %s15, %s22
    %p24 = scmp.eq.s32.totalorder %s23, 0
    %s26 = sadd.s32 %s25, 1
    %s27 = scalar_select %p24, %s25, %s26
    %p30 = pneg %p24
    %p31 = scmp.eq.s32.totalorder %s15, 1
    %p32 = por %p30, %p31
    %p33 = scmp.ne.s32.totalorder %s25, %s28
    %p34 = scmp.eq.s32.totalorder %s15, 0
    %p35 = por %p33, %p34
    %p36 = scmp.ne.s32.totalorder %s25, %s28
    %p37 = scmp.eq.s32.totalorder %s20, 1
    %p38 = por %p36, %p37
    %p39 = scmp.ne.s32.totalorder %s28, %s29
    %p40 = scmp.eq.s32.totalorder %s20, 0
    %p41 = por %p39, %p40
    %p42 = scmp.ne.s32.totalorder %s28, %s29
    %p43 = scmp.eq.s32.totalorder %s21, 1
    %p44 = por %p42, %p43
    %p46 = scmp.ne.s32.totalorder %s29, %s45
    %p47 = scmp.eq.s32.totalorder %s21, 0
    %p48 = por %p46, %p47
    %s50 = sadd.s32 %s49, 1
    %p53 = scmp.eq.s32.totalorder %s15, 1
    %p54 = scmp.ne.s32.totalorder %s49, %s51
    %p55 = scmp.eq.s32.totalorder %s15, 0
    %p56 = por %p54, %p55
    %p57 = scmp.ne.s32.totalorder %s49, %s51
    %p58 = scmp.eq.s32.totalorder %s20, 1
    %p59 = por %p57, %p58
    %p60 = scmp.ne.s32.totalorder %s51, %s52
    %p61 = scmp.eq.s32.totalorder %s20, 0
    %p62 = por %p60, %p61
    %p63 = scmp.ne.s32.totalorder %s51, %s52
    %p64 = scmp.eq.s32.totalorder %s21, 1
    %p65 = por %p63, %p64
    %p67 = scmp.ne.s32.totalorder %s52, %s66
    %p68 = scmp.eq.s32.totalorder %s21, 0
    %p69 = por %p67, %p68
    %s71 = sadd.s32 %s70, 1
    %p74 = scmp.eq.s32.totalorder %s15, 1
    %p75 = scmp.ne.s32.totalorder %s70, %s72
    %p76 = scmp.eq.s32.totalorder %s15, 0
    %p77 = por %p75, %p76
    %p78 = scmp.ne.s32.totalorder %s70, %s72
    %p79 = scmp.eq.s32.totalorder %s20, 1
    %p80 = por %p78, %p79
    %p81 = scmp.ne.s32.totalorder %s72, %s73
    %p82 = scmp.eq.s32.totalorder %s20, 0
    %p83 = por %p81, %p82
    %p84 = scmp.ne.s32.totalorder %s72, %s73
    %p85 = scmp.eq.s32.totalorder %s21, 1
    %p86 = por %p84, %p85
    %p88 = scmp.ne.s32.totalorder %s73, %s87
    %p89 = scmp.eq.s32.totalorder %s21, 0
    %p90 = por %p88, %p89
    %s92 = sadd.s32 %s91, 1
    %p95 = scmp.eq.s32.totalorder %s15, 1
    %p96 = scmp.ne.s32.totalorder %s91, %s93
    %p97 = scmp.eq.s32.totalorder %s15, 0
    %p98 = por %p96, %p97
    %p99 = scmp.ne.s32.totalorder %s91, %s93
    %p100 = scmp.eq.s32.totalorder %s20, 1
    %p101 = por %p99, %p100
    %p102 = scmp.ne.s32.totalorder %s93, %s94
    %p103 = scmp.eq.s32.totalorder %s20, 0
    %p104 = por %p102, %p103
    %p105 = scmp.ne.s32.totalorder %s93, %s94
    %p106 = scmp.eq.s32.totalorder %s21, 1
    %p107 = por %p105, %p106
    %p109 = scmp.ne.s32.totalorder %s94, %s108
    %p110 = scmp.eq.s32.totalorder %s21, 0
    %p111 = por %p109, %p110
    %s113 = sadd.s32 %s112, 1
    %p116 = scmp.eq.s32.totalorder %s15, 1
    %p117 = scmp.ne.s32.totalorder %s112, %s114
    %p118 = scmp.eq.s32.totalorder %s15, 0
    %p119 = por %p117, %p118
    %p120 = scmp.ne.s32.totalorder %s112, %s114
    %p121 = scmp.eq.s32.totalorder %s20, 1
    %p122 = por %p120, %p121
    %p123 = scmp.ne.s32.totalorder %s114, %s115
    %p124 = scmp.eq.s32.totalorder %s20, 0
    %p125 = por %p123, %p124
    %p126 = scmp.ne.s32.totalorder %s114, %s115
    %p127 = scmp.eq.s32.totalorder %s21, 1
    %p128 = por %p126, %p127
    %p130 = scmp.ne.s32.totalorder %s115, %s129
    %p131 = scmp.eq.s32.totalorder %s21, 0
    %p132 = por %p130, %p131
    %s134 = sadd.s32 %s133, 1
    %p137 = scmp.eq.s32.totalorder %s15, 1
    %p138 = scmp.ne.s32.totalorder %s133, %s135
    %p139 = scmp.eq.s32.totalorder %s15, 0
    %p140 = por %p138, %p139
    %p141 = scmp.ne.s32.totalorder %s133, %s135
    %p142 = scmp.eq.s32.totalorder %s20, 1
    %p143 = por %p141, %p142
    %p144 = scmp.ne.s32.totalorder %s135, %s136
    %p145 = scmp.eq.s32.totalorder %s20, 0
    %p146 = por %p144, %p145
    %p147 = scmp.ne.s32.totalorder %s135, %s136
    %p148 = scmp.eq.s32.totalorder %s21, 1
    %p149 = por %p147, %p148
    %p151 = scmp.ne.s32.totalorder %s136, %s150
    %p152 = scmp.eq.s32.totalorder %s21, 0
    %p153 = por %p151, %p152
    %s155 = sadd.s32 %s154, 1
    %p158 = scmp.eq.s32.totalorder %s15, 1
    %p159 = scmp.ne.s32.totalorder %s154, %s156
    %p160 = scmp.eq.s32.totalorder %s15, 0
    %p161 = por %p159, %p160
    %p162 = scmp.ne.s32.totalorder %s154, %s156
    %p163 = scmp.eq.s32.totalorder %s20, 1
    %p164 = por %p162, %p163
    %p165 = scmp.ne.s32.totalorder %s156, %s157
    %p166 = scmp.eq.s32.totalorder %s20, 0
    %p167 = por %p165, %p166
    %p168 = scmp.ne.s32.totalorder %s156, %s157
    %p169 = scmp.eq.s32.totalorder %s21, 1
    %p170 = por %p168, %p169
    %p172 = scmp.ne.s32.totalorder %s157, %s171
    %p173 = scmp.eq.s32.totalorder %s21, 0
    %p174 = por %p172, %p173
    %s176 = sadd.s32 %s175, 1
    %p179 = scmp.eq.s32.totalorder %s15, 1
    %p180 = scmp.ne.s32.totalorder %s175, %s177
    %p181 = scmp.eq.s32.totalorder %s15, 0
    %p182 = por %p180, %p181
    %p183 = scmp.ne.s32.totalorder %s175, %s177
    %p184 = scmp.eq.s32.totalorder %s20, 1
    %p185 = por %p183, %p184
    %p186 = scmp.ne.s32.totalorder %s177, %s178
    %p187 = scmp.eq.s32.totalorder %s20, 0
    %p188 = por %p186, %p187
    %p189 = scmp.ne.s32.totalorder %s177, %s178
    %p190 = scmp.eq.s32.totalorder %s21, 1
    %p191 = por %p189, %p190
    %p193 = scmp.ne.s32.totalorder %s178, %s192
    %p194 = scmp.eq.s32.totalorder %s21, 0
    %p195 = por %p193, %p194
    %s197 = sadd.s32 %s196, 1
    %p200 = scmp.eq.s32.totalorder %s15, 1
    %p201 = scmp.ne.s32.totalorder %s196, %s198
    %p202 = scmp.eq.s32.totalorder %s15, 0
    %p203 = por %p201, %p202
    %p204 = scmp.ne.s32.totalorder %s196, %s198
    %p205 = scmp.eq.s32.totalorder %s20, 1
    %p206 = por %p204, %p205
    %p207 = scmp.ne.s32.totalorder %s198, %s199
    %p208 = scmp.eq.s32.totalorder %s20, 0
    %p209 = por %p207, %p208
    %p210 = scmp.ne.s32.totalorder %s198, %s199
    %p211 = scmp.eq.s32.totalorder %s21, 1
    %p212 = por %p210, %p211
    %p214 = scmp.ne.s32.totalorder %s199, %s213
    %p215 = scmp.eq.s32.totalorder %s21, 0
    %p216 = por %p214, %p215
    %s217 = ssub.s32 %s15, %s22
    %p218 = scmp.eq.s32.totalorder %s217, 0
    %s220 = sadd.s32 %s219, 1
    %s221 = scalar_select %p218, %s219, %s220
    %p224 = pneg %p218
    %p225 = scmp.eq.s32.totalorder %s15, 1
    %p226 = por %p224, %p225
    %p227 = scmp.ne.s32.totalorder %s219, %s222
    %p228 = scmp.eq.s32.totalorder %s15, 0
    %p229 = por %p227, %p228
    %p230 = scmp.ne.s32.totalorder %s219, %s222
    %p231 = scmp.eq.s32.totalorder %s20, 1
    %p232 = por %p230, %p231
    %p233 = scmp.ne.s32.totalorder %s222, %s223
    %p234 = scmp.eq.s32.totalorder %s20, 0
    %p235 = por %p233, %p234
    %p236 = scmp.ne.s32.totalorder %s222, %s223
    %p237 = scmp.eq.s32.totalorder %s21, 1
    %p238 = por %p236, %p237
    %p240 = scmp.ne.s32.totalorder %s223, %s239
    %p241 = scmp.eq.s32.totalorder %s21, 0
    %p242 = por %p240, %p241
    %p243 = scmp.le.s32.totalorder 1, %s15
    %p244 = scmp.lt.s32.totalorder %s15, 3
    %p245 = pnand %p243, %p244
    %p246 = pneg %p245
    // Predicated region
    $region9: #{tpu_custom_call.1} parent=5 // pred_check
      _
    $region10: #{tpu_custom_call.1} parent=5 // pred_check_branch
      %248 = sbr.rel (%p245) target = $region12
    $region11: #{tpu_custom_call.1} parent=5 // pred_region
      %s249 = ssub.s32 %s15, 1
      // Predicated region
      $region13: #{tpu_custom_call.1} parent=11 // pred_check
        %p250 = pneg %p62
      $region14: #{tpu_custom_call.1} parent=11 // pred_check_branch
        %252 = sbr.rel (%p250) target = $region16
      $region15: #{tpu_custom_call.1} parent=11 // pred_region
        _
      $region16: #{tpu_custom_call.1} parent=11 // pred_fallthru
        _
      // Predicated region
      $region17: #{tpu_custom_call.1} parent=11 // pred_check
        %p253 = pneg %p83
      $region18: #{tpu_custom_call.1} parent=11 // pred_check_branch
        %255 = sbr.rel (%p253) target = $region20
      $region19: #{tpu_custom_call.1} parent=11 // pred_region
        _
      $region20: #{tpu_custom_call.1} parent=11 // pred_fallthru
        _
      // Predicated region
      $region21: #{tpu_custom_call.1} parent=11 // pred_check
        %p256 = pneg %p104
      $region22: #{tpu_custom_call.1} parent=11 // pred_check_branch
        %258 = sbr.rel (%p256) target = $region24
      $region23: #{tpu_custom_call.1} parent=11 // pred_region
        _
      $region24: #{tpu_custom_call.1} parent=11 // pred_fallthru
        _
      // Predicated region
      $region25: #{tpu_custom_call.1} parent=11 // pred_check
        %p259 = pneg %p125
      $region26: #{tpu_custom_call.1} parent=11 // pred_check_branch
        %261 = sbr.rel (%p259) target = $region28
      $region27: #{tpu_custom_call.1} parent=11 // pred_region
        _
      $region28: #{tpu_custom_call.1} parent=11 // pred_fallthru
        _
      // Predicated region
      $region29: #{tpu_custom_call.1} parent=11 // pred_check
        %p262 = pneg %p146
      $region30: #{tpu_custom_call.1} parent=11 // pred_check_branch
        %264 = sbr.rel (%p262) target = $region32
      $region31: #{tpu_custom_call.1} parent=11 // pred_region
        _
      $region32: #{tpu_custom_call.1} parent=11 // pred_fallthru
        _
      // Predicated region
      $region33: #{tpu_custom_call.1} parent=11 // pred_check
        %p265 = pneg %p167
      $region34: #{tpu_custom_call.1} parent=11 // pred_check_branch
        %267 = sbr.rel (%p265) target = $region36
      $region35: #{tpu_custom_call.1} parent=11 // pred_region
        _
      $region36: #{tpu_custom_call.1} parent=11 // pred_fallthru
        _
      // Predicated region
      $region37: #{tpu_custom_call.1} parent=11 // pred_check
        %p268 = pneg %p188
      $region38: #{tpu_custom_call.1} parent=11 // pred_check_branch
        %270 = sbr.rel (%p268) target = $region40
      $region39: #{tpu_custom_call.1} parent=11 // pred_region
        _
      $region40: #{tpu_custom_call.1} parent=11 // pred_fallthru
        _
      // Predicated region
      $region41: #{tpu_custom_call.1} parent=11 // pred_check
        %p271 = pneg %p209
      $region42: #{tpu_custom_call.1} parent=11 // pred_check_branch
        %273 = sbr.rel (%p271) target = $region44
      $region43: #{tpu_custom_call.1} parent=11 // pred_region
        _
      $region44: #{tpu_custom_call.1} parent=11 // pred_fallthru
        _
    $region12: #{tpu_custom_call.1} parent=5 // pred_fallthru
      _
    %p274 = scmp.lt.s32.totalorder %s15, 2
    // Predicated region
    $region45: #{tpu_custom_call.1} parent=5 // pred_check
      %p275 = pneg %p274
    $region46: #{tpu_custom_call.1} parent=5 // pred_check_branch
      %277 = sbr.rel (%p275) target = $region48
    $region47: #{tpu_custom_call.1} parent=5 // pred_region
      // Predicated region
      $region49: #{tpu_custom_call.1} parent=47 // pred_check
        %p278 = pneg %p35
      $region50: #{tpu_custom_call.1} parent=47 // pred_check_branch
        %280 = sbr.rel (%p278) target = $region52
      $region51: #{tpu_custom_call.1} parent=47 // pred_region
        %p281 = scmp.lt.s32.totalorder %s15, 1
        %s282 = scalar_select %p281, %s15, 1
        %s283 = smul.addr %s282, 32
        %s284 = smul.addr %s283, 4
        %s285 = scalar_lea.vmem %s0, %s284
      $region52: #{tpu_custom_call.1} parent=47 // pred_fallthru
        _
    $region48: #{tpu_custom_call.1} parent=5 // pred_fallthru
      _
    %p286 = scmp.le.s32.totalorder 1, %s15
    %p287 = scmp.lt.s32.totalorder %s15, 3
    %p288 = pnand %p286, %p287
    %p289 = pneg %p288
    // Predicated region
    $region53: #{tpu_custom_call.1} parent=5 // pred_check
      _
    $region54: #{tpu_custom_call.1} parent=5 // pred_check_branch
      %291 = sbr.rel (%p288) target = $region56
    $region55: #{tpu_custom_call.1} parent=5 // pred_region
      %s292 = ssub.s32 %s15, 1
      %p293 = scmp.lt.s32.totalorder %s20, 1
      %s294 = scalar_select %p293, %s20, 1
      %s295 = smul.addr %s294, 32
      %s296 = smul.addr %s295, 4
      %s297 = scalar_lea.vmem %s0, %s296
      %p298 = pneg %p41
      %p299 = pneg %p38
      %p300 = pneg %p62
      %p301 = pneg %p59
      %p302 = pneg %p83
      %p303 = pneg %p80
      %p304 = pneg %p104
      %p305 = pneg %p101
      %p306 = pneg %p125
      %p307 = pneg %p122
      %p308 = pneg %p146
      %p309 = pneg %p143
      %p310 = pneg %p167
      %p311 = pneg %p164
      %p312 = pneg %p188
      %p313 = pneg %p185
      %p314 = pneg %p209
      %p315 = pneg %p206
      %p316 = pneg %p235
      %p317 = pneg %p232
      %p318 = scmp.lt.s32.totalorder %s20, 1
      %s319 = scalar_select %p318, %s20, 1
      %s320 = smul.addr %s319, 32
      %s321 = smul.addr %s320, 8
      %s322 = scalar_lea.vmem %s9, %s321
      %p323 = scmp.lt.s32.totalorder %s20, 1
      %s324 = scalar_select %p323, %s20, 1
      %s325 = smul.addr %s324, 32
      %s326 = smul.addr %s325, 4
      %s327 = scalar_lea.vmem %s0, %s326
      %p328 = scmp.lt.s32.totalorder %s20, 1
      %s329 = scalar_select %p328, %s20, 1
      %s330 = smul.addr %s329, 32
      %s331 = smul.addr %s330, 8
      %s332 = scalar_lea.vmem %s9, %s331
      %v334 = vld [vmem:[%s327] sm:$0xf]
      %v335 = vld [vmem:[%s327 + $0x4] sm:$0xf]
      %v336 = vld [vmem:[%s327 + $0x8] sm:$0xf]
      %v337 = vld [vmem:[%s327 + $0xc] sm:$0xf]
      %v338 = vld [vmem:[%s327 + $0x10] sm:$0xf]
      %v339 = vld [vmem:[%s327 + $0x14] sm:$0xf]
      %v340 = vld [vmem:[%s327 + $0x18] sm:$0xf]
      %v341 = vld [vmem:[%s327 + $0x1c] sm:$0xf]
      %v342 = vld [vmem:[%s327 + $0x20] sm:$0xf]
      %v343 = vld [vmem:[%s327 + $0x24] sm:$0xf]
      %v344 = vld [vmem:[%s327 + $0x28] sm:$0xf]
      %v345 = vld [vmem:[%s327 + $0x2c] sm:$0xf]
      %v346 = vld [vmem:[%s327 + $0x30] sm:$0xf]
      %v347 = vld [vmem:[%s327 + $0x34] sm:$0xf]
      %v348 = vld [vmem:[%s327 + $0x38] sm:$0xf]
      %v349 = vld [vmem:[%s327 + $0x3c] sm:$0xf]
      %v350 = vld [vmem:[%s327 + $0x40] sm:$0xf]
      %v351 = vld [vmem:[%s327 + $0x44] sm:$0xf]
      %v352 = vld [vmem:[%s327 + $0x48] sm:$0xf]
      %v353 = vld [vmem:[%s327 + $0x4c] sm:$0xf]
      %v354 = vld [vmem:[%s327 + $0x50] sm:$0xf]
      %v355 = vld [vmem:[%s327 + $0x54] sm:$0xf]
      %v356 = vld [vmem:[%s327 + $0x58] sm:$0xf]
      %v357 = vld [vmem:[%s327 + $0x5c] sm:$0xf]
      %v358 = vld [vmem:[%s327 + $0x60] sm:$0xf]
      %v359 = vld [vmem:[%s327 + $0x64] sm:$0xf]
      %v360 = vld [vmem:[%s327 + $0x68] sm:$0xf]
      %v361 = vld [vmem:[%s327 + $0x6c] sm:$0xf]
      %v362 = vld [vmem:[%s327 + $0x70] sm:$0xf]
      %v363 = vld [vmem:[%s327 + $0x74] sm:$0xf]
      %v364 = vld [vmem:[%s327 + $0x78] sm:$0xf]
      %v365 = vld [vmem:[%s327 + $0x7c] sm:$0xf]
      %v366 = vld [vmem:[%s1] sm:$0x3]
      %v367 = vld [vmem:[%s2] sm:$0x1]
      %v369 = vperm.slane %v367, 0
      %v403 = vunpack.c.l.b16 %v334
      %v404 = vunpack.c.l.b16 %v335
      %v405 = vunpack.c.l.b16 %v336
      %v406 = vunpack.c.l.b16 %v337
      %v407 = vunpack.c.l.b16 %v338
      %v408 = vunpack.c.l.b16 %v339
      %v409 = vunpack.c.l.b16 %v340
      %v410 = vunpack.c.l.b16 %v341
      %v411 = vunpack.c.l.b16 %v342
      %v412 = vunpack.c.l.b16 %v343
      %v413 = vunpack.c.l.b16 %v344
      %v414 = vunpack.c.l.b16 %v345
      %v415 = vunpack.c.l.b16 %v346
      %v416 = vunpack.c.l.b16 %v347
      %v417 = vunpack.c.l.b16 %v348
      %v418 = vunpack.c.l.b16 %v349
      %v419 = vunpack.c.l.b16 %v350
      %v420 = vunpack.c.l.b16 %v351
      %v421 = vunpack.c.l.b16 %v352
      %v422 = vunpack.c.l.b16 %v353
      %v423 = vunpack.c.l.b16 %v354
      %v424 = vunpack.c.l.b16 %v355
      %v425 = vunpack.c.l.b16 %v356
      %v426 = vunpack.c.l.b16 %v357
      %v427 = vunpack.c.l.b16 %v358
      %v428 = vunpack.c.l.b16 %v359
      %v429 = vunpack.c.l.b16 %v360
      %v430 = vunpack.c.l.b16 %v361
      %v431 = vunpack.c.l.b16 %v362
      %v432 = vunpack.c.l.b16 %v363
      %v433 = vunpack.c.l.b16 %v364
      %v434 = vunpack.c.l.b16 %v365
      %v435 = vpack.c.b16 %v404, %v403
      %v436 = vpack.c.b16 %v406, %v405
      %v437 = vpack.c.b16 %v408, %v407
      %v438 = vpack.c.b16 %v410, %v409
      %v439 = vpack.c.b16 %v412, %v411
      %v440 = vpack.c.b16 %v414, %v413
      %v441 = vpack.c.b16 %v416, %v415
      %v442 = vpack.c.b16 %v418, %v417
      %v443 = vpack.c.b16 %v420, %v419
      %v444 = vpack.c.b16 %v422, %v421
      %v445 = vpack.c.b16 %v424, %v423
      %v446 = vpack.c.b16 %v426, %v425
      %v447 = vpack.c.b16 %v428, %v427
      %v448 = vpack.c.b16 %v430, %v429
      %v449 = vpack.c.b16 %v432, %v431
      %v450 = vpack.c.b16 %v434, %v433
      %vm451 = vcmask 31744
      %v453 = vsel %vm451, %v435, 0
      %v456 = vsel %vm451, %v436, 0
      %v459 = vsel %vm451, %v437, 0
      %v462 = vsel %vm451, %v438, 0
      %v465 = vsel %vm451, %v439, 0
      %v468 = vsel %vm451, %v440, 0
      %v471 = vsel %vm451, %v441, 0
      %v474 = vsel %vm451, %v442, 0
      %v477 = vsel %vm451, %v443, 0
      %v480 = vsel %vm451, %v444, 0
      %v483 = vsel %vm451, %v445, 0
      %v486 = vsel %vm451, %v446, 0
      %v489 = vsel %vm451, %v447, 0
      %v492 = vsel %vm451, %v448, 0
      %v495 = vsel %vm451, %v449, 0
      %v498 = vsel %vm451, %v450, 0
      %vm500 = vcmask 1041408
      %v502 = vsel %vm500, %v366, 0
      %504 = vmatpush.bf16.msra.mxu0 0
      %505 = vmatpush.bf16.msra.mxu0 0
      %506 = vmatpush.bf16.msra.mxu0 0
      %507 = vmatpush.bf16.msra.mxu0 0
      %508 = vmatpush.bf16.msra.mxu0 0
      %509 = vmatpush.bf16.msra.mxu0 0
      %510 = vmatpush.bf16.msra.mxu0 0
      %511 = vmatpush.bf16.msra.mxu0 %v502
      %512 = vmatmul.bf16.gmra.mxu0 %v453
      %v513 = vpop.f32.mrf.mxu0
      %v514 = vadd.f32 %v369, %v513
      %v515 = vpop.f32.mrf.mxu0
      %v516 = vadd.f32 %v369, %v515
      %517 = vmatmul.bf16.gmra.mxu0 %v456
      %v518 = vpop.f32.mrf.mxu0
      %v519 = vadd.f32 %v369, %v518
      %v520 = vpop.f32.mrf.mxu0
      %v521 = vadd.f32 %v369, %v520
      %522 = vmatmul.bf16.gmra.mxu0 %v459
      %v523 = vpop.f32.mrf.mxu0
      %v524 = vadd.f32 %v369, %v523
      %v525 = vpop.f32.mrf.mxu0
      %v526 = vadd.f32 %v369, %v525
      %527 = vmatmul.bf16.gmra.mxu0 %v462
      %v528 = vpop.f32.mrf.mxu0
      %v529 = vadd.f32 %v369, %v528
      %v530 = vpop.f32.mrf.mxu0
      %v531 = vadd.f32 %v369, %v530
      %532 = vmatmul.bf16.gmra.mxu0 %v465
      %v533 = vpop.f32.mrf.mxu0
      %v534 = vadd.f32 %v369, %v533
      %v535 = vpop.f32.mrf.mxu0
      %v536 = vadd.f32 %v369, %v535
      %537 = vmatmul.bf16.gmra.mxu0 %v468
      %v538 = vpop.f32.mrf.mxu0
      %v539 = vadd.f32 %v369, %v538
      %v540 = vpop.f32.mrf.mxu0
      %v541 = vadd.f32 %v369, %v540
      %542 = vmatmul.bf16.gmra.mxu0 %v471
      %v543 = vpop.f32.mrf.mxu0
      %v544 = vadd.f32 %v369, %v543
      %v545 = vpop.f32.mrf.mxu0
      %v546 = vadd.f32 %v369, %v545
      %547 = vmatmul.bf16.gmra.mxu0 %v474
      %v548 = vpop.f32.mrf.mxu0
      %v549 = vadd.f32 %v369, %v548
      %v550 = vpop.f32.mrf.mxu0
      %v551 = vadd.f32 %v369, %v550
      %552 = vmatmul.bf16.gmra.mxu0 %v477
      %v553 = vpop.f32.mrf.mxu0
      %v554 = vadd.f32 %v369, %v553
      %v555 = vpop.f32.mrf.mxu0
      %v556 = vadd.f32 %v369, %v555
      %557 = vmatmul.bf16.gmra.mxu0 %v480
      %v558 = vpop.f32.mrf.mxu0
      %v559 = vadd.f32 %v369, %v558
      %v560 = vpop.f32.mrf.mxu0
      %v561 = vadd.f32 %v369, %v560
      %562 = vmatmul.bf16.gmra.mxu0 %v483
      %v563 = vpop.f32.mrf.mxu0
      %v564 = vadd.f32 %v369, %v563
      %v565 = vpop.f32.mrf.mxu0
      %v566 = vadd.f32 %v369, %v565
      %567 = vmatmul.bf16.gmra.mxu0 %v486
      %v568 = vpop.f32.mrf.mxu0
      %v569 = vadd.f32 %v369, %v568
      %v570 = vpop.f32.mrf.mxu0
      %v571 = vadd.f32 %v369, %v570
      %572 = vmatmul.bf16.gmra.mxu0 %v489
      %v573 = vpop.f32.mrf.mxu0
      %v574 = vadd.f32 %v369, %v573
      %v575 = vpop.f32.mrf.mxu0
      %v576 = vadd.f32 %v369, %v575
      %577 = vmatmul.bf16.gmra.mxu0 %v492
      %v578 = vpop.f32.mrf.mxu0
      %v579 = vadd.f32 %v369, %v578
      %v580 = vpop.f32.mrf.mxu0
      %v581 = vadd.f32 %v369, %v580
      %582 = vmatmul.bf16.gmra.mxu0 %v495
      %v583 = vpop.f32.mrf.mxu0
      %v584 = vadd.f32 %v369, %v583
      %v585 = vpop.f32.mrf.mxu0
      %v586 = vadd.f32 %v369, %v585
      %587 = vmatmul.bf16.gmra.mxu0 %v498
      %v588 = vpop.f32.mrf.mxu0
      %v589 = vadd.f32 %v369, %v588
      %v590 = vpop.f32.mrf.mxu0
      %v591 = vadd.f32 %v369, %v590
      %592 = vdwg.mxu0
      %v593 = vmax.f32 %v514, 0.0
      %v594 = vmax.f32 %v516, 0.0
      %v595 = vmax.f32 %v519, 0.0
      %v596 = vmax.f32 %v521, 0.0
      %v597 = vmax.f32 %v524, 0.0
      %v598 = vmax.f32 %v526, 0.0
      %v599 = vmax.f32 %v529, 0.0
      %v600 = vmax.f32 %v531, 0.0
      %v601 = vmax.f32 %v534, 0.0
      %v602 = vmax.f32 %v536, 0.0
      %v603 = vmax.f32 %v539, 0.0
      %v604 = vmax.f32 %v541, 0.0
      %v605 = vmax.f32 %v544, 0.0
      %v606 = vmax.f32 %v546, 0.0
      %v607 = vmax.f32 %v549, 0.0
      %v608 = vmax.f32 %v551, 0.0
      %v609 = vmax.f32 %v554, 0.0
      %v610 = vmax.f32 %v556, 0.0
      %v611 = vmax.f32 %v559, 0.0
      %v612 = vmax.f32 %v561, 0.0
      %v613 = vmax.f32 %v564, 0.0
      %v614 = vmax.f32 %v566, 0.0
      %v615 = vmax.f32 %v569, 0.0
      %v616 = vmax.f32 %v571, 0.0
      %v617 = vmax.f32 %v574, 0.0
      %v618 = vmax.f32 %v576, 0.0
      %v619 = vmax.f32 %v579, 0.0
      %v620 = vmax.f32 %v581, 0.0
      %v621 = vmax.f32 %v584, 0.0
      %v622 = vmax.f32 %v586, 0.0
      %v623 = vmax.f32 %v589, 0.0
      %v624 = vmax.f32 %v591, 0.0
      %657 = vrot.lane.b32.xlu0 %v593, 124
      %v658 = vpop.permute.xlu0 %657
      %659 = vrot.lane.b32.xlu0 %v594, 124
      %v660 = vpop.permute.xlu0 %659
      %661 = vrot.lane.b32.xlu0 %v595, 124
      %v662 = vpop.permute.xlu0 %661
      %663 = vrot.lane.b32.xlu0 %v596, 124
      %v664 = vpop.permute.xlu0 %663
      %665 = vrot.lane.b32.xlu0 %v597, 124
      %v666 = vpop.permute.xlu0 %665
      %667 = vrot.lane.b32.xlu0 %v598, 124
      %v668 = vpop.permute.xlu0 %667
      %669 = vrot.lane.b32.xlu0 %v599, 124
      %v670 = vpop.permute.xlu0 %669
      %671 = vrot.lane.b32.xlu0 %v600, 124
      %v672 = vpop.permute.xlu0 %671
      %673 = vrot.lane.b32.xlu0 %v601, 124
      %v674 = vpop.permute.xlu0 %673
      %675 = vrot.lane.b32.xlu0 %v602, 124
      %v676 = vpop.permute.xlu0 %675
      %677 = vrot.lane.b32.xlu0 %v603, 124
      %v678 = vpop.permute.xlu0 %677
      %679 = vrot.lane.b32.xlu0 %v604, 124
      %v680 = vpop.permute.xlu0 %679
      %681 = vrot.lane.b32.xlu0 %v605, 124
      %v682 = vpop.permute.xlu0 %681
      %683 = vrot.lane.b32.xlu0 %v606, 124
      %v684 = vpop.permute.xlu0 %683
      %685 = vrot.lane.b32.xlu0 %v607, 124
      %v686 = vpop.permute.xlu0 %685
      %687 = vrot.lane.b32.xlu0 %v608, 124
      %v688 = vpop.permute.xlu0 %687
      %689 = vrot.lane.b32.xlu0 %v609, 124
      %v690 = vpop.permute.xlu0 %689
      %691 = vrot.lane.b32.xlu0 %v610, 124
      %v692 = vpop.permute.xlu0 %691
      %693 = vrot.lane.b32.xlu0 %v611, 124
      %v694 = vpop.permute.xlu0 %693
      %695 = vrot.lane.b32.xlu0 %v612, 124
      %v696 = vpop.permute.xlu0 %695
      %697 = vrot.lane.b32.xlu0 %v613, 124
      %v698 = vpop.permute.xlu0 %697
      %699 = vrot.lane.b32.xlu0 %v614, 124
      %v700 = vpop.permute.xlu0 %699
      %701 = vrot.lane.b32.xlu0 %v615, 124
      %v702 = vpop.permute.xlu0 %701
      %703 = vrot.lane.b32.xlu0 %v616, 124
      %v704 = vpop.permute.xlu0 %703
      %705 = vrot.lane.b32.xlu0 %v617, 124
      %v706 = vpop.permute.xlu0 %705
      %707 = vrot.lane.b32.xlu0 %v618, 124
      %v708 = vpop.permute.xlu0 %707
      %709 = vrot.lane.b32.xlu0 %v619, 124
      %v710 = vpop.permute.xlu0 %709
      %711 = vrot.lane.b32.xlu0 %v620, 124
      %v712 = vpop.permute.xlu0 %711
      %713 = vrot.lane.b32.xlu0 %v621, 124
      %v714 = vpop.permute.xlu0 %713
      %715 = vrot.lane.b32.xlu0 %v622, 124
      %v716 = vpop.permute.xlu0 %715
      %717 = vrot.lane.b32.xlu0 %v623, 124
      %v718 = vpop.permute.xlu0 %717
      %719 = vrot.lane.b32.xlu0 %v624, 124
      %v720 = vpop.permute.xlu0 %719
      %v753 = vadd.f32 %v593, %v658
      %v754 = vadd.f32 %v594, %v660
      %v755 = vadd.f32 %v595, %v662
      %v756 = vadd.f32 %v596, %v664
      %v757 = vadd.f32 %v597, %v666
      %v758 = vadd.f32 %v598, %v668
      %v759 = vadd.f32 %v599, %v670
      %v760 = vadd.f32 %v600, %v672
      %v761 = vadd.f32 %v601, %v674
      %v762 = vadd.f32 %v602, %v676
      %v763 = vadd.f32 %v603, %v678
      %v764 = vadd.f32 %v604, %v680
      %v765 = vadd.f32 %v605, %v682
      %v766 = vadd.f32 %v606, %v684
      %v767 = vadd.f32 %v607, %v686
      %v768 = vadd.f32 %v608, %v688
      %v769 = vadd.f32 %v609, %v690
      %v770 = vadd.f32 %v610, %v692
      %v771 = vadd.f32 %v611, %v694
      %v772 = vadd.f32 %v612, %v696
      %v773 = vadd.f32 %v613, %v698
      %v774 = vadd.f32 %v614, %v700
      %v775 = vadd.f32 %v615, %v702
      %v776 = vadd.f32 %v616, %v704
      %v777 = vadd.f32 %v617, %v706
      %v778 = vadd.f32 %v618, %v708
      %v779 = vadd.f32 %v619, %v710
      %v780 = vadd.f32 %v620, %v712
      %v781 = vadd.f32 %v621, %v714
      %v782 = vadd.f32 %v622, %v716
      %v783 = vadd.f32 %v623, %v718
      %v784 = vadd.f32 %v624, %v720
      %vm785 = vcmask 125952
      %786 = vst.msk [vmem:[#allocation2] sm:$0xf] %vm785, 0
      %787 = vst.msk [vmem:[#allocation2 + $0x4] sm:$0xf] %vm785, 0
      %788 = vst.msk [vmem:[#allocation2 + $0x8] sm:$0xf] %vm785, 0
      %789 = vst.msk [vmem:[#allocation2 + $0xc] sm:$0xf] %vm785, 0
      %790 = vst.msk [vmem:[#allocation2 + $0x10] sm:$0xf] %vm785, 0
      %791 = vst.msk [vmem:[#allocation2 + $0x14] sm:$0xf] %vm785, 0
      %792 = vst.msk [vmem:[#allocation2 + $0x18] sm:$0xf] %vm785, 0
      %793 = vst.msk [vmem:[#allocation2 + $0x1c] sm:$0xf] %vm785, 0
      %794 = vst.msk [vmem:[#allocation2 + $0x20] sm:$0xf] %vm785, 0
      %795 = vst.msk [vmem:[#allocation2 + $0x24] sm:$0xf] %vm785, 0
      %796 = vst.msk [vmem:[#allocation2 + $0x28] sm:$0xf] %vm785, 0
      %797 = vst.msk [vmem:[#allocation2 + $0x2c] sm:$0xf] %vm785, 0
      %798 = vst.msk [vmem:[#allocation2 + $0x30] sm:$0xf] %vm785, 0
      %799 = vst.msk [vmem:[#allocation2 + $0x34] sm:$0xf] %vm785, 0
      %800 = vst.msk [vmem:[#allocation2 + $0x38] sm:$0xf] %vm785, 0
      %801 = vst.msk [vmem:[#allocation2 + $0x3c] sm:$0xf] %vm785, 0
      %802 = vst.msk [vmem:[#allocation2 + $0x40] sm:$0xf] %vm785, 0
      %803 = vst.msk [vmem:[#allocation2 + $0x44] sm:$0xf] %vm785, 0
      %804 = vst.msk [vmem:[#allocation2 + $0x48] sm:$0xf] %vm785, 0
      %805 = vst.msk [vmem:[#allocation2 + $0x4c] sm:$0xf] %vm785, 0
      %806 = vst.msk [vmem:[#allocation2 + $0x50] sm:$0xf] %vm785, 0
      %807 = vst.msk [vmem:[#allocation2 + $0x54] sm:$0xf] %vm785, 0
      %808 = vst.msk [vmem:[#allocation2 + $0x58] sm:$0xf] %vm785, 0
      %809 = vst.msk [vmem:[#allocation2 + $0x5c] sm:$0xf] %vm785, 0
      %810 = vst.msk [vmem:[#allocation2 + $0x60] sm:$0xf] %vm785, 0
      %811 = vst.msk [vmem:[#allocation2 + $0x64] sm:$0xf] %vm785, 0
      %812 = vst.msk [vmem:[#allocation2 + $0x68] sm:$0xf] %vm785, 0
      %813 = vst.msk [vmem:[#allocation2 + $0x6c] sm:$0xf] %vm785, 0
      %814 = vst.msk [vmem:[#allocation2 + $0x70] sm:$0xf] %vm785, 0
      %815 = vst.msk [vmem:[#allocation2 + $0x74] sm:$0xf] %vm785, 0
      %816 = vst.msk [vmem:[#allocation2 + $0x78] sm:$0xf] %vm785, 0
      %817 = vst.msk [vmem:[#allocation2 + $0x7c] sm:$0xf] %vm785, 0
      %s818 = scalar_lea.vmem [#allocation2], 384
      %819 = vst.msk [vmem:[%s818] sm:$0xf] %vm785, 0
      %820 = vst.msk [vmem:[%s818 + $0x4] sm:$0xf] %vm785, 0
      %821 = vst.msk [vmem:[%s818 + $0x8] sm:$0xf] %vm785, 0
      %822 = vst.msk [vmem:[%s818 + $0xc] sm:$0xf] %vm785, 0
      %823 = vst.msk [vmem:[%s818 + $0x10] sm:$0xf] %vm785, 0
      %824 = vst.msk [vmem:[%s818 + $0x14] sm:$0xf] %vm785, 0
      %825 = vst.msk [vmem:[%s818 + $0x18] sm:$0xf] %vm785, 0
      %826 = vst.msk [vmem:[%s818 + $0x1c] sm:$0xf] %vm785, 0
      %827 = vst.msk [vmem:[%s818 + $0x20] sm:$0xf] %vm785, 0
      %828 = vst.msk [vmem:[%s818 + $0x24] sm:$0xf] %vm785, 0
      %829 = vst.msk [vmem:[%s818 + $0x28] sm:$0xf] %vm785, 0
      %830 = vst.msk [vmem:[%s818 + $0x2c] sm:$0xf] %vm785, 0
      %831 = vst.msk [vmem:[%s818 + $0x30] sm:$0xf] %vm785, 0
      %832 = vst.msk [vmem:[%s818 + $0x34] sm:$0xf] %vm785, 0
      %833 = vst.msk [vmem:[%s818 + $0x38] sm:$0xf] %vm785, 0
      %834 = vst.msk [vmem:[%s818 + $0x3c] sm:$0xf] %vm785, 0
      %835 = vst.msk [vmem:[%s818 + $0x40] sm:$0xf] %vm785, 0
      %836 = vst.msk [vmem:[%s818 + $0x44] sm:$0xf] %vm785, 0
      %837 = vst.msk [vmem:[%s818 + $0x48] sm:$0xf] %vm785, 0
      %838 = vst.msk [vmem:[%s818 + $0x4c] sm:$0xf] %vm785, 0
      %839 = vst.msk [vmem:[%s818 + $0x50] sm:$0xf] %vm785, 0
      %840 = vst.msk [vmem:[%s818 + $0x54] sm:$0xf] %vm785, 0
      %841 = vst.msk [vmem:[%s818 + $0x58] sm:$0xf] %vm785, 0
      %842 = vst.msk [vmem:[%s818 + $0x5c] sm:$0xf] %vm785, 0
      %843 = vst.msk [vmem:[%s818 + $0x60] sm:$0xf] %vm785, 0
      %844 = vst.msk [vmem:[%s818 + $0x64] sm:$0xf] %vm785, 0
      %845 = vst.msk [vmem:[%s818 + $0x68] sm:$0xf] %vm785, 0
      %846 = vst.msk [vmem:[%s818 + $0x6c] sm:$0xf] %vm785, 0
      %847 = vst.msk [vmem:[%s818 + $0x70] sm:$0xf] %vm785, 0
      %848 = vst.msk [vmem:[%s818 + $0x74] sm:$0xf] %vm785, 0
      %849 = vst.msk [vmem:[%s818 + $0x78] sm:$0xf] %vm785, 0
      %850 = vst.msk [vmem:[%s818 + $0x7c] sm:$0xf] %vm785, 0
      %s851 = scalar_lea.vmem [#allocation2], 128
      %852 = vst.msk [vmem:[%s851] sm:$0xf] %vm785, 0
      %853 = vst.msk [vmem:[%s851 + $0x10] sm:$0xf] %vm785, 0
      %854 = vst.msk [vmem:[%s851 + $0x20] sm:$0xf] %vm785, 0
      %855 = vst.msk [vmem:[%s851 + $0x30] sm:$0xf] %vm785, 0
      %856 = vst.msk [vmem:[%s851 + $0x40] sm:$0xf] %vm785, 0
      %857 = vst.msk [vmem:[%s851 + $0x50] sm:$0xf] %vm785, 0
      %858 = vst.msk [vmem:[%s851 + $0x60] sm:$0xf] %vm785, 0
      %859 = vst.msk [vmem:[%s851 + $0x70] sm:$0xf] %vm785, 0
      %860 = vst.msk [vmem:[%s851 + $0x80] sm:$0xf] %vm785, 0
      %861 = vst.msk [vmem:[%s851 + $0x90] sm:$0xf] %vm785, 0
      %862 = vst.msk [vmem:[%s851 + $0xa0] sm:$0xf] %vm785, 0
      %863 = vst.msk [vmem:[%s851 + $0xb0] sm:$0xf] %vm785, 0
      %864 = vst.msk [vmem:[%s851 + $0xc0] sm:$0xf] %vm785, 0
      %865 = vst.msk [vmem:[%s851 + $0xd0] sm:$0xf] %vm785, 0
      %866 = vst.msk [vmem:[%s851 + $0xe0] sm:$0xf] %vm785, 0
      %867 = vst.msk [vmem:[%s851 + $0xf0] sm:$0xf] %vm785, 0
      %868 = vst.msk [vmem:[%s851 + $0xc] sm:$0xf] %vm785, 0
      %869 = vst.msk [vmem:[%s851 + $0x1c] sm:$0xf] %vm785, 0
      %870 = vst.msk [vmem:[%s851 + $0x2c] sm:$0xf] %vm785, 0
      %871 = vst.msk [vmem:[%s851 + $0x3c] sm:$0xf] %vm785, 0
      %872 = vst.msk [vmem:[%s851 + $0x4c] sm:$0xf] %vm785, 0
      %873 = vst.msk [vmem:[%s851 + $0x5c] sm:$0xf] %vm785, 0
      %874 = vst.msk [vmem:[%s851 + $0x6c] sm:$0xf] %vm785, 0
      %875 = vst.msk [vmem:[%s851 + $0x7c] sm:$0xf] %vm785, 0
      %876 = vst.msk [vmem:[%s851 + $0x8c] sm:$0xf] %vm785, 0
      %877 = vst.msk [vmem:[%s851 + $0x9c] sm:$0xf] %vm785, 0
      %878 = vst.msk [vmem:[%s851 + $0xac] sm:$0xf] %vm785, 0
      %879 = vst.msk [vmem:[%s851 + $0xbc] sm:$0xf] %vm785, 0
      %880 = vst.msk [vmem:[%s851 + $0xcc] sm:$0xf] %vm785, 0
      %881 = vst.msk [vmem:[%s851 + $0xdc] sm:$0xf] %vm785, 0
      %882 = vst.msk [vmem:[%s851 + $0xec] sm:$0xf] %vm785, 0
      %883 = vst.msk [vmem:[%s851 + $0xfc] sm:$0xf] %vm785, 0
      %v884 = vpack.c.bf16 %v593, %v593
      %v885 = vpack.c.bf16 %v594, %v594
      %v886 = vpack.c.bf16 %v595, %v595
      %v887 = vpack.c.bf16 %v596, %v596
      %v888 = vpack.c.bf16 %v597, %v597
      %v889 = vpack.c.bf16 %v598, %v598
      %v890 = vpack.c.bf16 %v599, %v599
      %v891 = vpack.c.bf16 %v600, %v600
      %v892 = vpack.c.bf16 %v601, %v601
      %v893 = vpack.c.bf16 %v602, %v602
      %v894 = vpack.c.bf16 %v603, %v603
      %v895 = vpack.c.bf16 %v604, %v604
      %v896 = vpack.c.bf16 %v605, %v605
      %v897 = vpack.c.bf16 %v606, %v606
      %v898 = vpack.c.bf16 %v607, %v607
      %v899 = vpack.c.bf16 %v608, %v608
      %v900 = vpack.c.bf16 %v609, %v609
      %v901 = vpack.c.bf16 %v610, %v610
      %v902 = vpack.c.bf16 %v611, %v611
      %v903 = vpack.c.bf16 %v612, %v612
      %v904 = vpack.c.bf16 %v613, %v613
      %v905 = vpack.c.bf16 %v614, %v614
      %v906 = vpack.c.bf16 %v615, %v615
      %v907 = vpack.c.bf16 %v616, %v616
      %v908 = vpack.c.bf16 %v617, %v617
      %v909 = vpack.c.bf16 %v618, %v618
      %v910 = vpack.c.bf16 %v619, %v619
      %v911 = vpack.c.bf16 %v620, %v620
      %v912 = vpack.c.bf16 %v621, %v621
      %v913 = vpack.c.bf16 %v622, %v622
      %v914 = vpack.c.bf16 %v623, %v623
      %v915 = vpack.c.bf16 %v624, %v624
      %916 = vst.msk [vmem:[%s851 + $0x4] sm:$0xf] %vm785, %v884
      %917 = vst.msk [vmem:[%s851 + $0x8] sm:$0xf] %vm785, %v885
      %918 = vst.msk [vmem:[%s851 + $0x14] sm:$0xf] %vm785, %v886
      %919 = vst.msk [vmem:[%s851 + $0x18] sm:$0xf] %vm785, %v887
      %920 = vst.msk [vmem:[%s851 + $0x24] sm:$0xf] %vm785, %v888
      %921 = vst.msk [vmem:[%s851 + $0x28] sm:$0xf] %vm785, %v889
      %922 = vst.msk [vmem:[%s851 + $0x34] sm:$0xf] %vm785, %v890
      %923 = vst.msk [vmem:[%s851 + $0x38] sm:$0xf] %vm785, %v891
      %924 = vst.msk [vmem:[%s851 + $0x44] sm:$0xf] %vm785, %v892
      %925 = vst.msk [vmem:[%s851 + $0x48] sm:$0xf] %vm785, %v893
      %926 = vst.msk [vmem:[%s851 + $0x54] sm:$0xf] %vm785, %v894
      %927 = vst.msk [vmem:[%s851 + $0x58] sm:$0xf] %vm785, %v895
      %928 = vst.msk [vmem:[%s851 + $0x64] sm:$0xf] %vm785, %v896
      %929 = vst.msk [vmem:[%s851 + $0x68] sm:$0xf] %vm785, %v897
      %930 = vst.msk [vmem:[%s851 + $0x74] sm:$0xf] %vm785, %v898
      %931 = vst.msk [vmem:[%s851 + $0x78] sm:$0xf] %vm785, %v899
      %932 = vst.msk [vmem:[%s851 + $0x84] sm:$0xf] %vm785, %v900
      %933 = vst.msk [vmem:[%s851 + $0x88] sm:$0xf] %vm785, %v901
      %934 = vst.msk [vmem:[%s851 + $0x94] sm:$0xf] %vm785, %v902
      %935 = vst.msk [vmem:[%s851 + $0x98] sm:$0xf] %vm785, %v903
      %936 = vst.msk [vmem:[%s851 + $0xa4] sm:$0xf] %vm785, %v904
      %937 = vst.msk [vmem:[%s851 + $0xa8] sm:$0xf] %vm785, %v905
      %938 = vst.msk [vmem:[%s851 + $0xb4] sm:$0xf] %vm785, %v906
      %939 = vst.msk [vmem:[%s851 + $0xb8] sm:$0xf] %vm785, %v907
      %940 = vst.msk [vmem:[%s851 + $0xc4] sm:$0xf] %vm785, %v908
      %941 = vst.msk [vmem:[%s851 + $0xc8] sm:$0xf] %vm785, %v909
      %942 = vst.msk [vmem:[%s851 + $0xd4] sm:$0xf] %vm785, %v910
      %943 = vst.msk [vmem:[%s851 + $0xd8] sm:$0xf] %vm785, %v911
      %944 = vst.msk [vmem:[%s851 + $0xe4] sm:$0xf] %vm785, %v912
      %945 = vst.msk [vmem:[%s851 + $0xe8] sm:$0xf] %vm785, %v913
      %946 = vst.msk [vmem:[%s851 + $0xf4] sm:$0xf] %vm785, %v914
      %947 = vst.msk [vmem:[%s851 + $0xf8] sm:$0xf] %vm785, %v915
      %s948 = scalar_lea.vmem [#allocation2], 112
      %v949 = vld [vmem:[%s948] sm:$0x8]
      %v950 = vld [vmem:[%s948 + $0x4] sm:$0xf]
      %v951 = vld [vmem:[%s948 + $0x8] sm:$0xf]
      %v952 = vld [vmem:[%s948 + $0x10] sm:$0x8]
      %v953 = vld [vmem:[%s948 + $0x14] sm:$0xf]
      %v954 = vld [vmem:[%s948 + $0x18] sm:$0xf]
      %v955 = vld [vmem:[%s948 + $0x20] sm:$0x8]
      %v956 = vld [vmem:[%s948 + $0x24] sm:$0xf]
      %v957 = vld [vmem:[%s948 + $0x28] sm:$0xf]
      %v958 = vld [vmem:[%s948 + $0x30] sm:$0x8]
      %v959 = vld [vmem:[%s948 + $0x34] sm:$0xf]
      %v960 = vld [vmem:[%s948 + $0x38] sm:$0xf]
      %v961 = vld [vmem:[%s948 + $0x40] sm:$0x8]
      %v962 = vld [vmem:[%s948 + $0x44] sm:$0xf]
      %v963 = vld [vmem:[%s948 + $0x48] sm:$0xf]
      %v964 = vld [vmem:[%s948 + $0x50] sm:$0x8]
      %v965 = vld [vmem:[%s948 + $0x54] sm:$0xf]
      %v966 = vld [vmem:[%s948 + $0x58] sm:$0xf]
      %v967 = vld [vmem:[%s948 + $0x60] sm:$0x8]
      %v968 = vld [vmem:[%s948 + $0x64] sm:$0xf]
      %v969 = vld [vmem:[%s948 + $0x68] sm:$0xf]
      %v970 = vld [vmem:[%s948 + $0x70] sm:$0x8]
      %v971 = vld [vmem:[%s948 + $0x74] sm:$0xf]
      %v972 = vld [vmem:[%s948 + $0x78] sm:$0xf]
      %v973 = vld [vmem:[%s948 + $0x80] sm:$0x8]
      %v974 = vld [vmem:[%s948 + $0x84] sm:$0xf]
      %v975 = vld [vmem:[%s948 + $0x88] sm:$0xf]
      %v976 = vld [vmem:[%s948 + $0x90] sm:$0x8]
      %v977 = vld [vmem:[%s948 + $0x94] sm:$0xf]
      %v978 = vld [vmem:[%s948 + $0x98] sm:$0xf]
      %v979 = vld [vmem:[%s948 + $0xa0] sm:$0x8]
      %v980 = vld [vmem:[%s948 + $0xa4] sm:$0xf]
      %v981 = vld [vmem:[%s948 + $0xa8] sm:$0xf]
      %v982 = vld [vmem:[%s948 + $0xb0] sm:$0x8]
      %v983 = vld [vmem:[%s948 + $0xb4] sm:$0xf]
      %v984 = vld [vmem:[%s948 + $0xb8] sm:$0xf]
      %v985 = vld [vmem:[%s948 + $0xc0] sm:$0x8]
      %v986 = vld [vmem:[%s948 + $0xc4] sm:$0xf]
      %v987 = vld [vmem:[%s948 + $0xc8] sm:$0xf]
      %v988 = vld [vmem:[%s948 + $0xd0] sm:$0x8]
      %v989 = vld [vmem:[%s948 + $0xd4] sm:$0xf]
      %v990 = vld [vmem:[%s948 + $0xd8] sm:$0xf]
      %v991 = vld [vmem:[%s948 + $0xe0] sm:$0x8]
      %v992 = vld [vmem:[%s948 + $0xe4] sm:$0xf]
      %v993 = vld [vmem:[%s948 + $0xe8] sm:$0xf]
      %v994 = vld [vmem:[%s948 + $0xf0] sm:$0x8]
      %v995 = vld [vmem:[%s948 + $0xf4] sm:$0xf]
      %v996 = vld [vmem:[%s948 + $0xf8] sm:$0xf]
      %s997 = scalar_lea.vmem [#allocation2], 96
      %v998 = vld [vmem:[%s997] sm:$0x8]
      %v999 = vld [vmem:[%s997 + $0x4] sm:$0xf]
      %v1000 = vld [vmem:[%s997 + $0x8] sm:$0x7]
      %v1001 = vld [vmem:[%s997 + $0x10] sm:$0x8]
      %v1002 = vld [vmem:[%s997 + $0x14] sm:$0xf]
      %v1003 = vld [vmem:[%s997 + $0x18] sm:$0x7]
      %v1004 = vld [vmem:[%s997 + $0x20] sm:$0x8]
      %v1005 = vld [vmem:[%s997 + $0x24] sm:$0xf]
      %v1006 = vld [vmem:[%s997 + $0x28] sm:$0x7]
      %v1007 = vld [vmem:[%s997 + $0x30] sm:$0x8]
      %v1008 = vld [vmem:[%s997 + $0x34] sm:$0xf]
      %v1009 = vld [vmem:[%s997 + $0x38] sm:$0x7]
      %v1010 = vld [vmem:[%s997 + $0x40] sm:$0x8]
      %v1011 = vld [vmem:[%s997 + $0x44] sm:$0xf]
      %v1012 = vld [vmem:[%s997 + $0x48] sm:$0x7]
      %v1013 = vld [vmem:[%s997 + $0x50] sm:$0x8]
      %v1014 = vld [vmem:[%s997 + $0x54] sm:$0xf]
      %v1015 = vld [vmem:[%s997 + $0x58] sm:$0x7]
      %v1016 = vld [vmem:[%s997 + $0x60] sm:$0x8]
      %v1017 = vld [vmem:[%s997 + $0x64] sm:$0xf]
      %v1018 = vld [vmem:[%s997 + $0x68] sm:$0x7]
      %v1019 = vld [vmem:[%s997 + $0x70] sm:$0x8]
      %v1020 = vld [vmem:[%s997 + $0x74] sm:$0xf]
      %v1021 = vld [vmem:[%s997 + $0x78] sm:$0x7]
      %v1022 = vld [vmem:[%s997 + $0x80] sm:$0x8]
      %v1023 = vld [vmem:[%s997 + $0x84] sm:$0xf]
      %v1024 = vld [vmem:[%s997 + $0x88] sm:$0x7]
      %v1025 = vld [vmem:[%s997 + $0x90] sm:$0x8]
      %v1026 = vld [vmem:[%s997 + $0x94] sm:$0xf]
      %v1027 = vld [vmem:[%s997 + $0x98] sm:$0x7]
      %v1028 = vld [vmem:[%s997 + $0xa0] sm:$0x8]
      %v1029 = vld [vmem:[%s997 + $0xa4] sm:$0xf]
      %v1030 = vld [vmem:[%s997 + $0xa8] sm:$0x7]
      %v1031 = vld [vmem:[%s997 + $0xb0] sm:$0x8]
      %v1032 = vld [vmem:[%s997 + $0xb4] sm:$0xf]
      %v1033 = vld [vmem:[%s997 + $0xb8] sm:$0x7]
      %v1034 = vld [vmem:[%s997 + $0xc0] sm:$0x8]
      %v1035 = vld [vmem:[%s997 + $0xc4] sm:$0xf]
      %v1036 = vld [vmem:[%s997 + $0xc8] sm:$0x7]
      %v1037 = vld [vmem:[%s997 + $0xd0] sm:$0x8]
      %v1038 = vld [vmem:[%s997 + $0xd4] sm:$0xf]
      %v1039 = vld [vmem:[%s997 + $0xd8] sm:$0x7]
      %v1040 = vld [vmem:[%s997 + $0xe0] sm:$0x8]
      %v1041 = vld [vmem:[%s997 + $0xe4] sm:$0xf]
      %v1042 = vld [vmem:[%s997 + $0xe8] sm:$0x7]
      %v1043 = vld [vmem:[%s997 + $0xf0] sm:$0x8]
      %v1044 = vld [vmem:[%s997 + $0xf4] sm:$0xf]
      %v1045 = vld [vmem:[%s997 + $0xf8] sm:$0x7]
      %s1046 = scalar_lea.vmem [#allocation2], 64
      %v1047 = vld [vmem:[%s1046] sm:$0xc]
      %v1048 = vld [vmem:[%s1046 + $0x4] sm:$0xf]
      %v1049 = vld [vmem:[%s1046 + $0x8] sm:$0x3]
      %v1050 = vld [vmem:[%s1046 + $0x10] sm:$0xc]
      %v1051 = vld [vmem:[%s1046 + $0x14] sm:$0xf]
      %v1052 = vld [vmem:[%s1046 + $0x18] sm:$0x3]
      %v1053 = vld [vmem:[%s1046 + $0x20] sm:$0xc]
      %v1054 = vld [vmem:[%s1046 + $0x24] sm:$0xf]
      %v1055 = vld [vmem:[%s1046 + $0x28] sm:$0x3]
      %v1056 = vld [vmem:[%s1046 + $0x30] sm:$0xc]
      %v1057 = vld [vmem:[%s1046 + $0x34] sm:$0xf]
      %v1058 = vld [vmem:[%s1046 + $0x38] sm:$0x3]
      %v1059 = vld [vmem:[%s1046 + $0x40] sm:$0xc]
      %v1060 = vld [vmem:[%s1046 + $0x44] sm:$0xf]
      %v1061 = vld [vmem:[%s1046 + $0x48] sm:$0x3]
      %v1062 = vld [vmem:[%s1046 + $0x50] sm:$0xc]
      %v1063 = vld [vmem:[%s1046 + $0x54] sm:$0xf]
      %v1064 = vld [vmem:[%s1046 + $0x58] sm:$0x3]
      %v1065 = vld [vmem:[%s1046 + $0x60] sm:$0xc]
      %v1066 = vld [vmem:[%s1046 + $0x64] sm:$0xf]
      %v1067 = vld [vmem:[%s1046 + $0x68] sm:$0x3]
      %v1068 = vld [vmem:[%s1046 + $0x70] sm:$0xc]
      %v1069 = vld [vmem:[%s1046 + $0x74] sm:$0xf]
      %v1070 = vld [vmem:[%s1046 + $0x78] sm:$0x3]
      %v1071 = vld [vmem:[%s1046 + $0x80] sm:$0xc]
      %v1072 = vld [vmem:[%s1046 + $0x84] sm:$0xf]
      %v1073 = vld [vmem:[%s1046 + $0x88] sm:$0x3]
      %v1074 = vld [vmem:[%s1046 + $0x90] sm:$0xc]
      %v1075 = vld [vmem:[%s1046 + $0x94] sm:$0xf]
      %v1076 = vld [vmem:[%s1046 + $0x98] sm:$0x3]
      %v1077 = vld [vmem:[%s1046 + $0xa0] sm:$0xc]
      %v1078 = vld [vmem:[%s1046 + $0xa4] sm:$0xf]
      %v1079 = vld [vmem:[%s1046 + $0xa8] sm:$0x3]
      %v1080 = vld [vmem:[%s1046 + $0xb0] sm:$0xc]
      %v1081 = vld [vmem:[%s1046 + $0xb4] sm:$0xf]
      %v1082 = vld [vmem:[%s1046 + $0xb8] sm:$0x3]
      %v1083 = vld [vmem:[%s1046 + $0xc0] sm:$0xc]
      %v1084 = vld [vmem:[%s1046 + $0xc4] sm:$0xf]
      %v1085 = vld [vmem:[%s1046 + $0xc8] sm:$0x3]
      %v1086 = vld [vmem:[%s1046 + $0xd0] sm:$0xc]
      %v1087 = vld [vmem:[%s1046 + $0xd4] sm:$0xf]
      %v1088 = vld [vmem:[%s1046 + $0xd8] sm:$0x3]
      %v1089 = vld [vmem:[%s1046 + $0xe0] sm:$0xc]
      %v1090 = vld [vmem:[%s1046 + $0xe4] sm:$0xf]
      %v1091 = vld [vmem:[%s1046 + $0xe8] sm:$0x3]
      %v1092 = vld [vmem:[%s1046 + $0xf0] sm:$0xc]
      %v1093 = vld [vmem:[%s1046 + $0xf4] sm:$0xf]
      %v1094 = vld [vmem:[%s1046 + $0xf8] sm:$0x3]
      %v1095 = vld [vmem:[#allocation2] sm:$0xf]
      %v1096 = vld [vmem:[#allocation2 + $0x4] sm:$0xf]
      %v1097 = vld [vmem:[#allocation2 + $0x10] sm:$0xf]
      %v1098 = vld [vmem:[#allocation2 + $0x14] sm:$0xf]
      %v1099 = vld [vmem:[#allocation2 + $0x20] sm:$0xf]
      %v1100 = vld [vmem:[#allocation2 + $0x24] sm:$0xf]
      %v1101 = vld [vmem:[#allocation2 + $0x30] sm:$0xf]
      %v1102 = vld [vmem:[#allocation2 + $0x34] sm:$0xf]
      %v1103 = vld [vmem:[#allocation2 + $0x40] sm:$0xf]
      %v1104 = vld [vmem:[#allocation2 + $0x44] sm:$0xf]
      %v1105 = vld [vmem:[#allocation2 + $0x50] sm:$0xf]
      %v1106 = vld [vmem:[#allocation2 + $0x54] sm:$0xf]
      %v1107 = vld [vmem:[#allocation2 + $0x60] sm:$0xf]
      %v1108 = vld [vmem:[#allocation2 + $0x64] sm:$0xf]
      %v1109 = vld [vmem:[#allocation2 + $0x70] sm:$0xf]
      %v1110 = vld [vmem:[#allocation2 + $0x74] sm:$0xf]
      %v1111 = vld [vmem:[#allocation2 + $0x80] sm:$0xf]
      %v1112 = vld [vmem:[#allocation2 + $0x84] sm:$0xf]
      %v1113 = vld [vmem:[#allocation2 + $0x90] sm:$0xf]
      %v1114 = vld [vmem:[#allocation2 + $0x94] sm:$0xf]
      %v1115 = vld [vmem:[#allocation2 + $0xa0] sm:$0xf]
      %v1116 = vld [vmem:[#allocation2 + $0xa4] sm:$0xf]
      %v1117 = vld [vmem:[#allocation2 + $0xb0] sm:$0xf]
      %v1118 = vld [vmem:[#allocation2 + $0xb4] sm:$0xf]
      %v1119 = vld [vmem:[#allocation2 + $0xc0] sm:$0xf]
      %v1120 = vld [vmem:[#allocation2 + $0xc4] sm:$0xf]
      %v1121 = vld [vmem:[#allocation2 + $0xd0] sm:$0xf]
      %v1122 = vld [vmem:[#allocation2 + $0xd4] sm:$0xf]
      %v1123 = vld [vmem:[#allocation2 + $0xe0] sm:$0xf]
      %v1124 = vld [vmem:[#allocation2 + $0xe4] sm:$0xf]
      %v1125 = vld [vmem:[#allocation2 + $0xf0] sm:$0xf]
      %v1126 = vld [vmem:[#allocation2 + $0xf4] sm:$0xf]
      %v1175 = vunpack.c.l.b16 %v949
      %v1176 = vunpack.c.l.b16 %v950
      %v1177 = vunpack.c.l.b16 %v951
      %v1178 = vunpack.c.l.b16 %v952
      %v1179 = vunpack.c.l.b16 %v953
      %v1180 = vunpack.c.l.b16 %v954
      %v1181 = vunpack.c.l.b16 %v955
      %v1182 = vunpack.c.l.b16 %v956
      %v1183 = vunpack.c.l.b16 %v957
      %v1184 = vunpack.c.l.b16 %v958
      %v1185 = vunpack.c.l.b16 %v959
      %v1186 = vunpack.c.l.b16 %v960
      %v1187 = vunpack.c.l.b16 %v961
      %v1188 = vunpack.c.l.b16 %v962
      %v1189 = vunpack.c.l.b16 %v963
      %v1190 = vunpack.c.l.b16 %v964
      %v1191 = vunpack.c.l.b16 %v965
      %v1192 = vunpack.c.l.b16 %v966
      %v1193 = vunpack.c.l.b16 %v967
      %v1194 = vunpack.c.l.b16 %v968
      %v1195 = vunpack.c.l.b16 %v969
      %v1196 = vunpack.c.l.b16 %v970
      %v1197 = vunpack.c.l.b16 %v971
      %v1198 = vunpack.c.l.b16 %v972
      %v1199 = vunpack.c.l.b16 %v973
      %v1200 = vunpack.c.l.b16 %v974
      %v1201 = vunpack.c.l.b16 %v975
      %v1202 = vunpack.c.l.b16 %v976
      %v1203 = vunpack.c.l.b16 %v977
      %v1204 = vunpack.c.l.b16 %v978
      %v1205 = vunpack.c.l.b16 %v979
      %v1206 = vunpack.c.l.b16 %v980
      %v1207 = vunpack.c.l.b16 %v981
      %v1208 = vunpack.c.l.b16 %v982
      %v1209 = vunpack.c.l.b16 %v983
      %v1210 = vunpack.c.l.b16 %v984
      %v1211 = vunpack.c.l.b16 %v985
      %v1212 = vunpack.c.l.b16 %v986
      %v1213 = vunpack.c.l.b16 %v987
      %v1214 = vunpack.c.l.b16 %v988
      %v1215 = vunpack.c.l.b16 %v989
      %v1216 = vunpack.c.l.b16 %v990
      %v1217 = vunpack.c.l.b16 %v991
      %v1218 = vunpack.c.l.b16 %v992
      %v1219 = vunpack.c.l.b16 %v993
      %v1220 = vunpack.c.l.b16 %v994
      %v1221 = vunpack.c.l.b16 %v995
      %v1222 = vunpack.c.l.b16 %v996
      %v1223 = vpack.c.b16 %v1176, %v1175
      %v1224 = vpack.c.b16 %v1177, %v1177
      %v1225 = vpack.c.b16 %v1179, %v1178
      %v1226 = vpack.c.b16 %v1180, %v1180
      %v1227 = vpack.c.b16 %v1182, %v1181
      %v1228 = vpack.c.b16 %v1183, %v1183
      %v1229 = vpack.c.b16 %v1185, %v1184
      %v1230 = vpack.c.b16 %v1186, %v1186
      %v1231 = vpack.c.b16 %v1188, %v1187
      %v1232 = vpack.c.b16 %v1189, %v1189
      %v1233 = vpack.c.b16 %v1191, %v1190
      %v1234 = vpack.c.b16 %v1192, %v1192
      %v1235 = vpack.c.b16 %v1194, %v1193
      %v1236 = vpack.c.b16 %v1195, %v1195
      %v1237 = vpack.c.b16 %v1197, %v1196
      %v1238 = vpack.c.b16 %v1198, %v1198
      %v1239 = vpack.c.b16 %v1200, %v1199
      %v1240 = vpack.c.b16 %v1201, %v1201
      %v1241 = vpack.c.b16 %v1203, %v1202
      %v1242 = vpack.c.b16 %v1204, %v1204
      %v1243 = vpack.c.b16 %v1206, %v1205
      %v1244 = vpack.c.b16 %v1207, %v1207
      %v1245 = vpack.c.b16 %v1209, %v1208
      %v1246 = vpack.c.b16 %v1210, %v1210
      %v1247 = vpack.c.b16 %v1212, %v1211
      %v1248 = vpack.c.b16 %v1213, %v1213
      %v1249 = vpack.c.b16 %v1215, %v1214
      %v1250 = vpack.c.b16 %v1216, %v1216
      %v1251 = vpack.c.b16 %v1218, %v1217
      %v1252 = vpack.c.b16 %v1219, %v1219
      %v1253 = vpack.c.b16 %v1221, %v1220
      %v1254 = vpack.c.b16 %v1222, %v1222
      %v1303 = vunpack.c.l.b16 %v998
      %v1304 = vunpack.c.l.b16 %v999
      %v1305 = vunpack.c.l.b16 %v1000
      %v1306 = vunpack.c.l.b16 %v1001
      %v1307 = vunpack.c.l.b16 %v1002
      %v1308 = vunpack.c.l.b16 %v1003
      %v1309 = vunpack.c.l.b16 %v1004
      %v1310 = vunpack.c.l.b16 %v1005
      %v1311 = vunpack.c.l.b16 %v1006
      %v1312 = vunpack.c.l.b16 %v1007
      %v1313 = vunpack.c.l.b16 %v1008
      %v1314 = vunpack.c.l.b16 %v1009
      %v1315 = vunpack.c.l.b16 %v1010
      %v1316 = vunpack.c.l.b16 %v1011
      %v1317 = vunpack.c.l.b16 %v1012
      %v1318 = vunpack.c.l.b16 %v1013
      %v1319 = vunpack.c.l.b16 %v1014
      %v1320 = vunpack.c.l.b16 %v1015
      %v1321 = vunpack.c.l.b16 %v1016
      %v1322 = vunpack.c.l.b16 %v1017
      %v1323 = vunpack.c.l.b16 %v1018
      %v1324 = vunpack.c.l.b16 %v1019
      %v1325 = vunpack.c.l.b16 %v1020
      %v1326 = vunpack.c.l.b16 %v1021
      %v1327 = vunpack.c.l.b16 %v1022
      %v1328 = vunpack.c.l.b16 %v1023
      %v1329 = vunpack.c.l.b16 %v1024
      %v1330 = vunpack.c.l.b16 %v1025
      %v1331 = vunpack.c.l.b16 %v1026
      %v1332 = vunpack.c.l.b16 %v1027
      %v1333 = vunpack.c.l.b16 %v1028
      %v1334 = vunpack.c.l.b16 %v1029
      %v1335 = vunpack.c.l.b16 %v1030
      %v1336 = vunpack.c.l.b16 %v1031
      %v1337 = vunpack.c.l.b16 %v1032
      %v1338 = vunpack.c.l.b16 %v1033
      %v1339 = vunpack.c.l.b16 %v1034
      %v1340 = vunpack.c.l.b16 %v1035
      %v1341 = vunpack.c.l.b16 %v1036
      %v1342 = vunpack.c.l.b16 %v1037
      %v1343 = vunpack.c.l.b16 %v1038
      %v1344 = vunpack.c.l.b16 %v1039
      %v1345 = vunpack.c.l.b16 %v1040
      %v1346 = vunpack.c.l.b16 %v1041
      %v1347 = vunpack.c.l.b16 %v1042
      %v1348 = vunpack.c.l.b16 %v1043
      %v1349 = vunpack.c.l.b16 %v1044
      %v1350 = vunpack.c.l.b16 %v1045
      %v1351 = vpack.c.b16 %v1304, %v1303
      %v1352 = vpack.c.b16 %v1305, %v1305
      %v1353 = vpack.c.b16 %v1307, %v1306
      %v1354 = vpack.c.b16 %v1308, %v1308
      %v1355 = vpack.c.b16 %v1310, %v1309
      %v1356 = vpack.c.b16 %v1311, %v1311
      %v1357 = vpack.c.b16 %v1313, %v1312
      %v1358 = vpack.c.b16 %v1314, %v1314
      %v1359 = vpack.c.b16 %v1316, %v1315
      %v1360 = vpack.c.b16 %v1317, %v1317
      %v1361 = vpack.c.b16 %v1319, %v1318
      %v1362 = vpack.c.b16 %v1320, %v1320
      %v1363 = vpack.c.b16 %v1322, %v1321
      %v1364 = vpack.c.b16 %v1323, %v1323
      %v1365 = vpack.c.b16 %v1325, %v1324
      %v1366 = vpack.c.b16 %v1326, %v1326
      %v1367 = vpack.c.b16 %v1328, %v1327
      %v1368 = vpack.c.b16 %v1329, %v1329
      %v1369 = vpack.c.b16 %v1331, %v1330
      %v1370 = vpack.c.b16 %v1332, %v1332
      %v1371 = vpack.c.b16 %v1334, %v1333
      %v1372 = vpack.c.b16 %v1335, %v1335
      %v1373 = vpack.c.b16 %v1337, %v1336
      %v1374 = vpack.c.b16 %v1338, %v1338
      %v1375 = vpack.c.b16 %v1340, %v1339
      %v1376 = vpack.c.b16 %v1341, %v1341
      %v1377 = vpack.c.b16 %v1343, %v1342
      %v1378 = vpack.c.b16 %v1344, %v1344
      %v1379 = vpack.c.b16 %v1346, %v1345
      %v1380 = vpack.c.b16 %v1347, %v1347
      %v1381 = vpack.c.b16 %v1349, %v1348
      %v1382 = vpack.c.b16 %v1350, %v1350
      %vm1383 = vsmask.f32 256
      %v1385 = vshrl.u32 %v1351, 16
      %v1387 = vrot.slane %v1385, 7
      %v1388 = vshll.u32 %v1351, 16
      %v1390 = vor.u32 %v1387, %v1388
      %v1392 = vshrl.u32 %v1352, 16
      %v1394 = vrot.slane %v1392, 7
      %v1395 = vshll.u32 %v1352, 16
      %v1397 = vor.u32 %v1394, %v1395
      %v1398 = vsel %vm1383, %v1387, %v1397
      %v1400 = vshrl.u32 %v1353, 16
      %v1402 = vrot.slane %v1400, 7
      %v1403 = vshll.u32 %v1353, 16
      %v1405 = vor.u32 %v1402, %v1403
      %v1407 = vshrl.u32 %v1354, 16
      %v1409 = vrot.slane %v1407, 7
      %v1410 = vshll.u32 %v1354, 16
      %v1412 = vor.u32 %v1409, %v1410
      %v1413 = vsel %vm1383, %v1402, %v1412
      %v1415 = vshrl.u32 %v1355, 16
      %v1417 = vrot.slane %v1415, 7
      %v1418 = vshll.u32 %v1355, 16
      %v1420 = vor.u32 %v1417, %v1418
      %v1422 = vshrl.u32 %v1356, 16
      %v1424 = vrot.slane %v1422, 7
      %v1425 = vshll.u32 %v1356, 16
      %v1427 = vor.u32 %v1424, %v1425
      %v1428 = vsel %vm1383, %v1417, %v1427
      %v1430 = vshrl.u32 %v1357, 16
      %v1432 = vrot.slane %v1430, 7
      %v1433 = vshll.u32 %v1357, 16
      %v1435 = vor.u32 %v1432, %v1433
      %v1437 = vshrl.u32 %v1358, 16
      %v1439 = vrot.slane %v1437, 7
      %v1440 = vshll.u32 %v1358, 16
      %v1442 = vor.u32 %v1439, %v1440
      %v1443 = vsel %vm1383, %v1432, %v1442
      %v1445 = vshrl.u32 %v1359, 16
      %v1447 = vrot.slane %v1445, 7
      %v1448 = vshll.u32 %v1359, 16
      %v1450 = vor.u32 %v1447, %v1448
      %v1452 = vshrl.u32 %v1360, 16
      %v1454 = vrot.slane %v1452, 7
      %v1455 = vshll.u32 %v1360, 16
      %v1457 = vor.u32 %v1454, %v1455
      %v1458 = vsel %vm1383, %v1447, %v1457
      %v1460 = vshrl.u32 %v1361, 16
      %v1462 = vrot.slane %v1460, 7
      %v1463 = vshll.u32 %v1361, 16
      %v1465 = vor.u32 %v1462, %v1463
      %v1467 = vshrl.u32 %v1362, 16
      %v1469 = vrot.slane %v1467, 7
      %v1470 = vshll.u32 %v1362, 16
      %v1472 = vor.u32 %v1469, %v1470
      %v1473 = vsel %vm1383, %v1462, %v1472
      %v1475 = vshrl.u32 %v1363, 16
      %v1477 = vrot.slane %v1475, 7
      %v1478 = vshll.u32 %v1363, 16
      %v1480 = vor.u32 %v1477, %v1478
      %v1482 = vshrl.u32 %v1364, 16
      %v1484 = vrot.slane %v1482, 7
      %v1485 = vshll.u32 %v1364, 16
      %v1487 = vor.u32 %v1484, %v1485
      %v1488 = vsel %vm1383, %v1477, %v1487
      %v1490 = vshrl.u32 %v1365, 16
      %v1492 = vrot.slane %v1490, 7
      %v1493 = vshll.u32 %v1365, 16
      %v1495 = vor.u32 %v1492, %v1493
      %v1497 = vshrl.u32 %v1366, 16
      %v1499 = vrot.slane %v1497, 7
      %v1500 = vshll.u32 %v1366, 16
      %v1502 = vor.u32 %v1499, %v1500
      %v1503 = vsel %vm1383, %v1492, %v1502
      %v1505 = vshrl.u32 %v1367, 16
      %v1507 = vrot.slane %v1505, 7
      %v1508 = vshll.u32 %v1367, 16
      %v1510 = vor.u32 %v1507, %v1508
      %v1512 = vshrl.u32 %v1368, 16
      %v1514 = vrot.slane %v1512, 7
      %v1515 = vshll.u32 %v1368, 16
      %v1517 = vor.u32 %v1514, %v1515
      %v1518 = vsel %vm1383, %v1507, %v1517
      %v1520 = vshrl.u32 %v1369, 16
      %v1522 = vrot.slane %v1520, 7
      %v1523 = vshll.u32 %v1369, 16
      %v1525 = vor.u32 %v1522, %v1523
      %v1527 = vshrl.u32 %v1370, 16
      %v1529 = vrot.slane %v1527, 7
      %v1530 = vshll.u32 %v1370, 16
      %v1532 = vor.u32 %v1529, %v1530
      %v1533 = vsel %vm1383, %v1522, %v1532
      %v1535 = vshrl.u32 %v1371, 16
      %v1537 = vrot.slane %v1535, 7
      %v1538 = vshll.u32 %v1371, 16
      %v1540 = vor.u32 %v1537, %v1538
      %v1542 = vshrl.u32 %v1372, 16
      %v1544 = vrot.slane %v1542, 7
      %v1545 = vshll.u32 %v1372, 16
      %v1547 = vor.u32 %v1544, %v1545
      %v1548 = vsel %vm1383, %v1537, %v1547
      %v1550 = vshrl.u32 %v1373, 16
      %v1552 = vrot.slane %v1550, 7
      %v1553 = vshll.u32 %v1373, 16
      %v1555 = vor.u32 %v1552, %v1553
      %v1557 = vshrl.u32 %v1374, 16
      %v1559 = vrot.slane %v1557, 7
      %v1560 = vshll.u32 %v1374, 16
      %v1562 = vor.u32 %v1559, %v1560
      %v1563 = vsel %vm1383, %v1552, %v1562
      %v1565 = vshrl.u32 %v1375, 16
      %v1567 = vrot.slane %v1565, 7
      %v1568 = vshll.u32 %v1375, 16
      %v1570 = vor.u32 %v1567, %v1568
      %v1572 = vshrl.u32 %v1376, 16
      %v1574 = vrot.slane %v1572, 7
      %v1575 = vshll.u32 %v1376, 16
      %v1577 = vor.u32 %v1574, %v1575
      %v1578 = vsel %vm1383, %v1567, %v1577
      %v1580 = vshrl.u32 %v1377, 16
      %v1582 = vrot.slane %v1580, 7
      %v1583 = vshll.u32 %v1377, 16
      %v1585 = vor.u32 %v1582, %v1583
      %v1587 = vshrl.u32 %v1378, 16
      %v1589 = vrot.slane %v1587, 7
      %v1590 = vshll.u32 %v1378, 16
      %v1592 = vor.u32 %v1589, %v1590
      %v1593 = vsel %vm1383, %v1582, %v1592
      %v1595 = vshrl.u32 %v1379, 16
      %v1597 = vrot.slane %v1595, 7
      %v1598 = vshll.u32 %v1379, 16
      %v1600 = vor.u32 %v1597, %v1598
      %v1602 = vshrl.u32 %v1380, 16
      %v1604 = vrot.slane %v1602, 7
      %v1605 = vshll.u32 %v1380, 16
      %v1607 = vor.u32 %v1604, %v1605
      %v1608 = vsel %vm1383, %v1597, %v1607
      %v1610 = vshrl.u32 %v1381, 16
      %v1612 = vrot.slane %v1610, 7
      %v1613 = vshll.u32 %v1381, 16
      %v1615 = vor.u32 %v1612, %v1613
      %v1617 = vshrl.u32 %v1382, 16
      %v1619 = vrot.slane %v1617, 7
      %v1620 = vshll.u32 %v1382, 16
      %v1622 = vor.u32 %v1619, %v1620
      %v1623 = vsel %vm1383, %v1612, %v1622
      %v1672 = vunpack.c.l.b16 %v1047
      %v1673 = vunpack.c.l.b16 %v1048
      %v1674 = vunpack.c.l.b16 %v1049
      %v1675 = vunpack.c.l.b16 %v1050
      %v1676 = vunpack.c.l.b16 %v1051
      %v1677 = vunpack.c.l.b16 %v1052
      %v1678 = vunpack.c.l.b16 %v1053
      %v1679 = vunpack.c.l.b16 %v1054
      %v1680 = vunpack.c.l.b16 %v1055
      %v1681 = vunpack.c.l.b16 %v1056
      %v1682 = vunpack.c.l.b16 %v1057
      %v1683 = vunpack.c.l.b16 %v1058
      %v1684 = vunpack.c.l.b16 %v1059
      %v1685 = vunpack.c.l.b16 %v1060
      %v1686 = vunpack.c.l.b16 %v1061
      %v1687 = vunpack.c.l.b16 %v1062
      %v1688 = vunpack.c.l.b16 %v1063
      %v1689 = vunpack.c.l.b16 %v1064
      %v1690 = vunpack.c.l.b16 %v1065
      %v1691 = vunpack.c.l.b16 %v1066
      %v1692 = vunpack.c.l.b16 %v1067
      %v1693 = vunpack.c.l.b16 %v1068
      %v1694 = vunpack.c.l.b16 %v1069
      %v1695 = vunpack.c.l.b16 %v1070
      %v1696 = vunpack.c.l.b16 %v1071
      %v1697 = vunpack.c.l.b16 %v1072
      %v1698 = vunpack.c.l.b16 %v1073
      %v1699 = vunpack.c.l.b16 %v1074
      %v1700 = vunpack.c.l.b16 %v1075
      %v1701 = vunpack.c.l.b16 %v1076
      %v1702 = vunpack.c.l.b16 %v1077
      %v1703 = vunpack.c.l.b16 %v1078
      %v1704 = vunpack.c.l.b16 %v1079
      %v1705 = vunpack.c.l.b16 %v1080
      %v1706 = vunpack.c.l.b16 %v1081
      %v1707 = vunpack.c.l.b16 %v1082
      %v1708 = vunpack.c.l.b16 %v1083
      %v1709 = vunpack.c.l.b16 %v1084
      %v1710 = vunpack.c.l.b16 %v1085
      %v1711 = vunpack.c.l.b16 %v1086
      %v1712 = vunpack.c.l.b16 %v1087
      %v1713 = vunpack.c.l.b16 %v1088
      %v1714 = vunpack.c.l.b16 %v1089
      %v1715 = vunpack.c.l.b16 %v1090
      %v1716 = vunpack.c.l.b16 %v1091
      %v1717 = vunpack.c.l.b16 %v1092
      %v1718 = vunpack.c.l.b16 %v1093
      %v1719 = vunpack.c.l.b16 %v1094
      %v1720 = vpack.c.b16 %v1673, %v1672
      %v1721 = vpack.c.b16 %v1674, %v1674
      %v1722 = vpack.c.b16 %v1676, %v1675
      %v1723 = vpack.c.b16 %v1677, %v1677
      %v1724 = vpack.c.b16 %v1679, %v1678
      %v1725 = vpack.c.b16 %v1680, %v1680
      %v1726 = vpack.c.b16 %v1682, %v1681
      %v1727 = vpack.c.b16 %v1683, %v1683
      %v1728 = vpack.c.b16 %v1685, %v1684
      %v1729 = vpack.c.b16 %v1686, %v1686
      %v1730 = vpack.c.b16 %v1688, %v1687
      %v1731 = vpack.c.b16 %v1689, %v1689
      %v1732 = vpack.c.b16 %v1691, %v1690
      %v1733 = vpack.c.b16 %v1692, %v1692
      %v1734 = vpack.c.b16 %v1694, %v1693
      %v1735 = vpack.c.b16 %v1695, %v1695
      %v1736 = vpack.c.b16 %v1697, %v1696
      %v1737 = vpack.c.b16 %v1698, %v1698
      %v1738 = vpack.c.b16 %v1700, %v1699
      %v1739 = vpack.c.b16 %v1701, %v1701
      %v1740 = vpack.c.b16 %v1703, %v1702
      %v1741 = vpack.c.b16 %v1704, %v1704
      %v1742 = vpack.c.b16 %v1706, %v1705
      %v1743 = vpack.c.b16 %v1707, %v1707
      %v1744 = vpack.c.b16 %v1709, %v1708
      %v1745 = vpack.c.b16 %v1710, %v1710
      %v1746 = vpack.c.b16 %v1712, %v1711
      %v1747 = vpack.c.b16 %v1713, %v1713
      %v1748 = vpack.c.b16 %v1715, %v1714
      %v1749 = vpack.c.b16 %v1716, %v1716
      %v1750 = vpack.c.b16 %v1718, %v1717
      %v1751 = vpack.c.b16 %v1719, %v1719
      %vm1752 = vsmask.f32 1280
      %v1754 = vshrl.u32 %v1720, 16
      %v1756 = vrot.slane %v1754, 6
      %v1757 = vshll.u32 %v1720, 16
      %v1759 = vrot.slane %v1757, 7
      %v1760 = vor.u32 %v1756, %v1759
      %v1762 = vshrl.u32 %v1721, 16
      %v1764 = vrot.slane %v1762, 6
      %v1765 = vshll.u32 %v1721, 16
      %v1767 = vrot.slane %v1765, 7
      %v1768 = vor.u32 %v1764, %v1767
      %v1769 = vsel %vm1752, %v1760, %v1768
      %v1771 = vshrl.u32 %v1722, 16
      %v1773 = vrot.slane %v1771, 6
      %v1774 = vshll.u32 %v1722, 16
      %v1776 = vrot.slane %v1774, 7
      %v1777 = vor.u32 %v1773, %v1776
      %v1779 = vshrl.u32 %v1723, 16
      %v1781 = vrot.slane %v1779, 6
      %v1782 = vshll.u32 %v1723, 16
      %v1784 = vrot.slane %v1782, 7
      %v1785 = vor.u32 %v1781, %v1784
      %v1786 = vsel %vm1752, %v1777, %v1785
      %v1788 = vshrl.u32 %v1724, 16
      %v1790 = vrot.slane %v1788, 6
      %v1791 = vshll.u32 %v1724, 16
      %v1793 = vrot.slane %v1791, 7
      %v1794 = vor.u32 %v1790, %v1793
      %v1796 = vshrl.u32 %v1725, 16
      %v1798 = vrot.slane %v1796, 6
      %v1799 = vshll.u32 %v1725, 16
      %v1801 = vrot.slane %v1799, 7
      %v1802 = vor.u32 %v1798, %v1801
      %v1803 = vsel %vm1752, %v1794, %v1802
      %v1805 = vshrl.u32 %v1726, 16
      %v1807 = vrot.slane %v1805, 6
      %v1808 = vshll.u32 %v1726, 16
      %v1810 = vrot.slane %v1808, 7
      %v1811 = vor.u32 %v1807, %v1810
      %v1813 = vshrl.u32 %v1727, 16
      %v1815 = vrot.slane %v1813, 6
      %v1816 = vshll.u32 %v1727, 16
      %v1818 = vrot.slane %v1816, 7
      %v1819 = vor.u32 %v1815, %v1818
      %v1820 = vsel %vm1752, %v1811, %v1819
      %v1822 = vshrl.u32 %v1728, 16
      %v1824 = vrot.slane %v1822, 6
      %v1825 = vshll.u32 %v1728, 16
      %v1827 = vrot.slane %v1825, 7
      %v1828 = vor.u32 %v1824, %v1827
      %v1830 = vshrl.u32 %v1729, 16
      %v1832 = vrot.slane %v1830, 6
      %v1833 = vshll.u32 %v1729, 16
      %v1835 = vrot.slane %v1833, 7
      %v1836 = vor.u32 %v1832, %v1835
      %v1837 = vsel %vm1752, %v1828, %v1836
      %v1839 = vshrl.u32 %v1730, 16
      %v1841 = vrot.slane %v1839, 6
      %v1842 = vshll.u32 %v1730, 16
      %v1844 = vrot.slane %v1842, 7
      %v1845 = vor.u32 %v1841, %v1844
      %v1847 = vshrl.u32 %v1731, 16
      %v1849 = vrot.slane %v1847, 6
      %v1850 = vshll.u32 %v1731, 16
      %v1852 = vrot.slane %v1850, 7
      %v1853 = vor.u32 %v1849, %v1852
      %v1854 = vsel %vm1752, %v1845, %v1853
      %v1856 = vshrl.u32 %v1732, 16
      %v1858 = vrot.slane %v1856, 6
      %v1859 = vshll.u32 %v1732, 16
      %v1861 = vrot.slane %v1859, 7
      %v1862 = vor.u32 %v1858, %v1861
      %v1864 = vshrl.u32 %v1733, 16
      %v1866 = vrot.slane %v1864, 6
      %v1867 = vshll.u32 %v1733, 16
      %v1869 = vrot.slane %v1867, 7
      %v1870 = vor.u32 %v1866, %v1869
      %v1871 = vsel %vm1752, %v1862, %v1870
      %v1873 = vshrl.u32 %v1734, 16
      %v1875 = vrot.slane %v1873, 6
      %v1876 = vshll.u32 %v1734, 16
      %v1878 = vrot.slane %v1876, 7
      %v1879 = vor.u32 %v1875, %v1878
      %v1881 = vshrl.u32 %v1735, 16
      %v1883 = vrot.slane %v1881, 6
      %v1884 = vshll.u32 %v1735, 16
      %v1886 = vrot.slane %v1884, 7
      %v1887 = vor.u32 %v1883, %v1886
      %v1888 = vsel %vm1752, %v1879, %v1887
      %v1890 = vshrl.u32 %v1736, 16
      %v1892 = vrot.slane %v1890, 6
      %v1893 = vshll.u32 %v1736, 16
      %v1895 = vrot.slane %v1893, 7
      %v1896 = vor.u32 %v1892, %v1895
      %v1898 = vshrl.u32 %v1737, 16
      %v1900 = vrot.slane %v1898, 6
      %v1901 = vshll.u32 %v1737, 16
      %v1903 = vrot.slane %v1901, 7
      %v1904 = vor.u32 %v1900, %v1903
      %v1905 = vsel %vm1752, %v1896, %v1904
      %v1907 = vshrl.u32 %v1738, 16
      %v1909 = vrot.slane %v1907, 6
      %v1910 = vshll.u32 %v1738, 16
      %v1912 = vrot.slane %v1910, 7
      %v1913 = vor.u32 %v1909, %v1912
      %v1915 = vshrl.u32 %v1739, 16
      %v1917 = vrot.slane %v1915, 6
      %v1918 = vshll.u32 %v1739, 16
      %v1920 = vrot.slane %v1918, 7
      %v1921 = vor.u32 %v1917, %v1920
      %v1922 = vsel %vm1752, %v1913, %v1921
      %v1924 = vshrl.u32 %v1740, 16
      %v1926 = vrot.slane %v1924, 6
      %v1927 = vshll.u32 %v1740, 16
      %v1929 = vrot.slane %v1927, 7
      %v1930 = vor.u32 %v1926, %v1929
      %v1932 = vshrl.u32 %v1741, 16
      %v1934 = vrot.slane %v1932, 6
      %v1935 = vshll.u32 %v1741, 16
      %v1937 = vrot.slane %v1935, 7
      %v1938 = vor.u32 %v1934, %v1937
      %v1939 = vsel %vm1752, %v1930, %v1938
      %v1941 = vshrl.u32 %v1742, 16
      %v1943 = vrot.slane %v1941, 6
      %v1944 = vshll.u32 %v1742, 16
      %v1946 = vrot.slane %v1944, 7
      %v1947 = vor.u32 %v1943, %v1946
      %v1949 = vshrl.u32 %v1743, 16
      %v1951 = vrot.slane %v1949, 6
      %v1952 = vshll.u32 %v1743, 16
      %v1954 = vrot.slane %v1952, 7
      %v1955 = vor.u32 %v1951, %v1954
      %v1956 = vsel %vm1752, %v1947, %v1955
      %v1958 = vshrl.u32 %v1744, 16
      %v1960 = vrot.slane %v1958, 6
      %v1961 = vshll.u32 %v1744, 16
      %v1963 = vrot.slane %v1961, 7
      %v1964 = vor.u32 %v1960, %v1963
      %v1966 = vshrl.u32 %v1745, 16
      %v1968 = vrot.slane %v1966, 6
      %v1969 = vshll.u32 %v1745, 16
      %v1971 = vrot.slane %v1969, 7
      %v1972 = vor.u32 %v1968, %v1971
      %v1973 = vsel %vm1752, %v1964, %v1972
      %v1975 = vshrl.u32 %v1746, 16
      %v1977 = vrot.slane %v1975, 6
      %v1978 = vshll.u32 %v1746, 16
      %v1980 = vrot.slane %v1978, 7
      %v1981 = vor.u32 %v1977, %v1980
      %v1983 = vshrl.u32 %v1747, 16
      %v1985 = vrot.slane %v1983, 6
      %v1986 = vshll.u32 %v1747, 16
      %v1988 = vrot.slane %v1986, 7
      %v1989 = vor.u32 %v1985, %v1988
      %v1990 = vsel %vm1752, %v1981, %v1989
      %v1992 = vshrl.u32 %v1748, 16
      %v1994 = vrot.slane %v1992, 6
      %v1995 = vshll.u32 %v1748, 16
      %v1997 = vrot.slane %v1995, 7
      %v1998 = vor.u32 %v1994, %v1997
      %v2000 = vshrl.u32 %v1749, 16
      %v2002 = vrot.slane %v2000, 6
      %v2003 = vshll.u32 %v1749, 16
      %v2005 = vrot.slane %v2003, 7
      %v2006 = vor.u32 %v2002, %v2005
      %v2007 = vsel %vm1752, %v1998, %v2006
      %v2009 = vshrl.u32 %v1750, 16
      %v2011 = vrot.slane %v2009, 6
      %v2012 = vshll.u32 %v1750, 16
      %v2014 = vrot.slane %v2012, 7
      %v2015 = vor.u32 %v2011, %v2014
      %v2017 = vshrl.u32 %v1751, 16
      %v2019 = vrot.slane %v2017, 6
      %v2020 = vshll.u32 %v1751, 16
      %v2022 = vrot.slane %v2020, 7
      %v2023 = vor.u32 %v2019, %v2022
      %v2024 = vsel %vm1752, %v2015, %v2023
      %v2057 = vunpack.c.l.b16 %v1095
      %v2058 = vunpack.c.l.b16 %v1096
      %v2059 = vunpack.c.l.b16 %v1097
      %v2060 = vunpack.c.l.b16 %v1098
      %v2061 = vunpack.c.l.b16 %v1099
      %v2062 = vunpack.c.l.b16 %v1100
      %v2063 = vunpack.c.l.b16 %v1101
      %v2064 = vunpack.c.l.b16 %v1102
      %v2065 = vunpack.c.l.b16 %v1103
      %v2066 = vunpack.c.l.b16 %v1104
      %v2067 = vunpack.c.l.b16 %v1105
      %v2068 = vunpack.c.l.b16 %v1106
      %v2069 = vunpack.c.l.b16 %v1107
      %v2070 = vunpack.c.l.b16 %v1108
      %v2071 = vunpack.c.l.b16 %v1109
      %v2072 = vunpack.c.l.b16 %v1110
      %v2073 = vunpack.c.l.b16 %v1111
      %v2074 = vunpack.c.l.b16 %v1112
      %v2075 = vunpack.c.l.b16 %v1113
      %v2076 = vunpack.c.l.b16 %v1114
      %v2077 = vunpack.c.l.b16 %v1115
      %v2078 = vunpack.c.l.b16 %v1116
      %v2079 = vunpack.c.l.b16 %v1117
      %v2080 = vunpack.c.l.b16 %v1118
      %v2081 = vunpack.c.l.b16 %v1119
      %v2082 = vunpack.c.l.b16 %v1120
      %v2083 = vunpack.c.l.b16 %v1121
      %v2084 = vunpack.c.l.b16 %v1122
      %v2085 = vunpack.c.l.b16 %v1123
      %v2086 = vunpack.c.l.b16 %v1124
      %v2087 = vunpack.c.l.b16 %v1125
      %v2088 = vunpack.c.l.b16 %v1126
      %v2089 = vpack.c.b16 %v2058, %v2057
      %v2090 = vpack.c.b16 %v2060, %v2059
      %v2091 = vpack.c.b16 %v2062, %v2061
      %v2092 = vpack.c.b16 %v2064, %v2063
      %v2093 = vpack.c.b16 %v2066, %v2065
      %v2094 = vpack.c.b16 %v2068, %v2067
      %v2095 = vpack.c.b16 %v2070, %v2069
      %v2096 = vpack.c.b16 %v2072, %v2071
      %v2097 = vpack.c.b16 %v2074, %v2073
      %v2098 = vpack.c.b16 %v2076, %v2075
      %v2099 = vpack.c.b16 %v2078, %v2077
      %v2100 = vpack.c.b16 %v2080, %v2079
      %v2101 = vpack.c.b16 %v2082, %v2081
      %v2102 = vpack.c.b16 %v2084, %v2083
      %v2103 = vpack.c.b16 %v2086, %v2085
      %v2104 = vpack.c.b16 %v2088, %v2087
      %v2106 = vshrl.u32 %v2089, 16
      %v2108 = vrot.slane %v2106, 4
      %v2109 = vshll.u32 %v2089, 16
      %v2111 = vrot.slane %v2109, 5
      %v2112 = vor.u32 %v2108, %v2111
      %v2114 = vshrl.u32 %v2090, 16
      %v2116 = vrot.slane %v2114, 4
      %v2117 = vshll.u32 %v2090, 16
      %v2119 = vrot.slane %v2117, 5
      %v2120 = vor.u32 %v2116, %v2119
      %v2122 = vshrl.u32 %v2091, 16
      %v2124 = vrot.slane %v2122, 4
      %v2125 = vshll.u32 %v2091, 16
      %v2127 = vrot.slane %v2125, 5
      %v2128 = vor.u32 %v2124, %v2127
      %v2130 = vshrl.u32 %v2092, 16
      %v2132 = vrot.slane %v2130, 4
      %v2133 = vshll.u32 %v2092, 16
      %v2135 = vrot.slane %v2133, 5
      %v2136 = vor.u32 %v2132, %v2135
      %v2138 = vshrl.u32 %v2093, 16
      %v2140 = vrot.slane %v2138, 4
      %v2141 = vshll.u32 %v2093, 16
      %v2143 = vrot.slane %v2141, 5
      %v2144 = vor.u32 %v2140, %v2143
      %v2146 = vshrl.u32 %v2094, 16
      %v2148 = vrot.slane %v2146, 4
      %v2149 = vshll.u32 %v2094, 16
      %v2151 = vrot.slane %v2149, 5
      %v2152 = vor.u32 %v2148, %v2151
      %v2154 = vshrl.u32 %v2095, 16
      %v2156 = vrot.slane %v2154, 4
      %v2157 = vshll.u32 %v2095, 16
      %v2159 = vrot.slane %v2157, 5
      %v2160 = vor.u32 %v2156, %v2159
      %v2162 = vshrl.u32 %v2096, 16
      %v2164 = vrot.slane %v2162, 4
      %v2165 = vshll.u32 %v2096, 16
      %v2167 = vrot.slane %v2165, 5
      %v2168 = vor.u32 %v2164, %v2167
      %v2170 = vshrl.u32 %v2097, 16
      %v2172 = vrot.slane %v2170, 4
      %v2173 = vshll.u32 %v2097, 16
      %v2175 = vrot.slane %v2173, 5
      %v2176 = vor.u32 %v2172, %v2175
      %v2178 = vshrl.u32 %v2098, 16
      %v2180 = vrot.slane %v2178, 4
      %v2181 = vshll.u32 %v2098, 16
      %v2183 = vrot.slane %v2181, 5
      %v2184 = vor.u32 %v2180, %v2183
      %v2186 = vshrl.u32 %v2099, 16
      %v2188 = vrot.slane %v2186, 4
      %v2189 = vshll.u32 %v2099, 16
      %v2191 = vrot.slane %v2189, 5
      %v2192 = vor.u32 %v2188, %v2191
      %v2194 = vshrl.u32 %v2100, 16
      %v2196 = vrot.slane %v2194, 4
      %v2197 = vshll.u32 %v2100, 16
      %v2199 = vrot.slane %v2197, 5
      %v2200 = vor.u32 %v2196, %v2199
      %v2202 = vshrl.u32 %v2101, 16
      %v2204 = vrot.slane %v2202, 4
      %v2205 = vshll.u32 %v2101, 16
      %v2207 = vrot.slane %v2205, 5
      %v2208 = vor.u32 %v2204, %v2207
      %v2210 = vshrl.u32 %v2102, 16
      %v2212 = vrot.slane %v2210, 4
      %v2213 = vshll.u32 %v2102, 16
      %v2215 = vrot.slane %v2213, 5
      %v2216 = vor.u32 %v2212, %v2215
      %v2218 = vshrl.u32 %v2103, 16
      %v2220 = vrot.slane %v2218, 4
      %v2221 = vshll.u32 %v2103, 16
      %v2223 = vrot.slane %v2221, 5
      %v2224 = vor.u32 %v2220, %v2223
      %v2226 = vshrl.u32 %v2104, 16
      %v2228 = vrot.slane %v2226, 4
      %v2229 = vshll.u32 %v2104, 16
      %v2231 = vrot.slane %v2229, 5
      %v2232 = vor.u32 %v2228, %v2231
      %v2235 = vsel %vm451, %v1223, %v1390
      %v2238 = vsel %vm451, %v1224, %v1398
      %v2241 = vsel %vm451, %v1225, %v1405
      %v2244 = vsel %vm451, %v1226, %v1413
      %v2247 = vsel %vm451, %v1227, %v1420
      %v2250 = vsel %vm451, %v1228, %v1428
      %v2253 = vsel %vm451, %v1229, %v1435
      %v2256 = vsel %vm451, %v1230, %v1443
      %v2259 = vsel %vm451, %v1231, %v1450
      %v2262 = vsel %vm451, %v1232, %v1458
      %v2265 = vsel %vm451, %v1233, %v1465
      %v2268 = vsel %vm451, %v1234, %v1473
      %v2271 = vsel %vm451, %v1235, %v1480
      %v2274 = vsel %vm451, %v1236, %v1488
      %v2277 = vsel %vm451, %v1237, %v1495
      %v2280 = vsel %vm451, %v1238, %v1503
      %v2283 = vsel %vm451, %v1239, %v1510
      %v2286 = vsel %vm451, %v1240, %v1518
      %v2289 = vsel %vm451, %v1241, %v1525
      %v2292 = vsel %vm451, %v1242, %v1533
      %v2295 = vsel %vm451, %v1243, %v1540
      %v2298 = vsel %vm451, %v1244, %v1548
      %v2301 = vsel %vm451, %v1245, %v1555
      %v2304 = vsel %vm451, %v1246, %v1563
      %v2307 = vsel %vm451, %v1247, %v1570
      %v2310 = vsel %vm451, %v1248, %v1578
      %v2313 = vsel %vm451, %v1249, %v1585
      %v2316 = vsel %vm451, %v1250, %v1593
      %v2319 = vsel %vm451, %v1251, %v1600
      %v2322 = vsel %vm451, %v1252, %v1608
      %v2325 = vsel %vm451, %v1253, %v1615
      %v2328 = vsel %vm451, %v1254, %v1623
      %vm2329 = vcmask 64512
      %v2331 = vsel %vm2329, %v2235, %v1760
      %v2333 = vsel %vm2329, %v2238, %v1769
      %v2335 = vsel %vm2329, %v2241, %v1777
      %v2337 = vsel %vm2329, %v2244, %v1786
      %v2339 = vsel %vm2329, %v2247, %v1794
      %v2341 = vsel %vm2329, %v2250, %v1803
      %v2343 = vsel %vm2329, %v2253, %v1811
      %v2345 = vsel %vm2329, %v2256, %v1820
      %v2347 = vsel %vm2329, %v2259, %v1828
      %v2349 = vsel %vm2329, %v2262, %v1837
      %v2351 = vsel %vm2329, %v2265, %v1845
      %v2353 = vsel %vm2329, %v2268, %v1854
      %v2355 = vsel %vm2329, %v2271, %v1862
      %v2357 = vsel %vm2329, %v2274, %v1871
      %v2359 = vsel %vm2329, %v2277, %v1879
      %v2361 = vsel %vm2329, %v2280, %v1888
      %v2363 = vsel %vm2329, %v2283, %v1896
      %v2365 = vsel %vm2329, %v2286, %v1905
      %v2367 = vsel %vm2329, %v2289, %v1913
      %v2369 = vsel %vm2329, %v2292, %v1922
      %v2371 = vsel %vm2329, %v2295, %v1930
      %v2373 = vsel %vm2329, %v2298, %v1939
      %v2375 = vsel %vm2329, %v2301, %v1947
      %v2377 = vsel %vm2329, %v2304, %v1956
      %v2379 = vsel %vm2329, %v2307, %v1964
      %v2381 = vsel %vm2329, %v2310, %v1973
      %v2383 = vsel %vm2329, %v2313, %v1981
      %v2385 = vsel %vm2329, %v2316, %v1990
      %v2387 = vsel %vm2329, %v2319, %v1998
      %v2389 = vsel %vm2329, %v2322, %v2007
      %v2391 = vsel %vm2329, %v2325, %v2015
      %v2393 = vsel %vm2329, %v2328, %v2024
      %vm2394 = vcmask 97280
      %v2396 = vsel %vm2394, %v2331, %v2112
      %v2397 = vsel %vm2394, %v2333, %v2112
      %v2399 = vsel %vm2394, %v2335, %v2120
      %v2400 = vsel %vm2394, %v2337, %v2120
      %v2402 = vsel %vm2394, %v2339, %v2128
      %v2403 = vsel %vm2394, %v2341, %v2128
      %v2405 = vsel %vm2394, %v2343, %v2136
      %v2406 = vsel %vm2394, %v2345, %v2136
      %v2408 = vsel %vm2394, %v2347, %v2144
      %v2409 = vsel %vm2394, %v2349, %v2144
      %v2411 = vsel %vm2394, %v2351, %v2152
      %v2412 = vsel %vm2394, %v2353, %v2152
      %v2414 = vsel %vm2394, %v2355, %v2160
      %v2415 = vsel %vm2394, %v2357, %v2160
      %v2417 = vsel %vm2394, %v2359, %v2168
      %v2418 = vsel %vm2394, %v2361, %v2168
      %v2420 = vsel %vm2394, %v2363, %v2176
      %v2421 = vsel %vm2394, %v2365, %v2176
      %v2423 = vsel %vm2394, %v2367, %v2184
      %v2424 = vsel %vm2394, %v2369, %v2184
      %v2426 = vsel %vm2394, %v2371, %v2192
      %v2427 = vsel %vm2394, %v2373, %v2192
      %v2429 = vsel %vm2394, %v2375, %v2200
      %v2430 = vsel %vm2394, %v2377, %v2200
      %v2432 = vsel %vm2394, %v2379, %v2208
      %v2433 = vsel %vm2394, %v2381, %v2208
      %v2435 = vsel %vm2394, %v2383, %v2216
      %v2436 = vsel %vm2394, %v2385, %v2216
      %v2438 = vsel %vm2394, %v2387, %v2224
      %v2439 = vsel %vm2394, %v2389, %v2224
      %v2441 = vsel %vm2394, %v2391, %v2232
      %v2442 = vsel %vm2394, %v2393, %v2232
      %vm2443 = vsmask.f32 4352
      %v2444 = vshrl.u32 %v2396, 16
      %v2446 = vrot.slane %v2444, 3
      %v2447 = vshll.u32 %v2396, 16
      %v2449 = vrot.slane %v2447, 4
      %v2450 = vor.u32 %v2446, %v2449
      %v2451 = vshrl.u32 %v2397, 16
      %v2453 = vrot.slane %v2451, 3
      %v2454 = vshll.u32 %v2397, 16
      %v2456 = vrot.slane %v2454, 4
      %v2457 = vor.u32 %v2453, %v2456
      %v2458 = vsel %vm2443, %v2450, %v2457
      %v2459 = vshrl.u32 %v2399, 16
      %v2461 = vrot.slane %v2459, 3
      %v2462 = vshll.u32 %v2399, 16
      %v2464 = vrot.slane %v2462, 4
      %v2465 = vor.u32 %v2461, %v2464
      %v2466 = vshrl.u32 %v2400, 16
      %v2468 = vrot.slane %v2466, 3
      %v2469 = vshll.u32 %v2400, 16
      %v2471 = vrot.slane %v2469, 4
      %v2472 = vor.u32 %v2468, %v2471
      %v2473 = vsel %vm2443, %v2465, %v2472
      %v2474 = vshrl.u32 %v2402, 16
      %v2476 = vrot.slane %v2474, 3
      %v2477 = vshll.u32 %v2402, 16
      %v2479 = vrot.slane %v2477, 4
      %v2480 = vor.u32 %v2476, %v2479
      %v2481 = vshrl.u32 %v2403, 16
      %v2483 = vrot.slane %v2481, 3
      %v2484 = vshll.u32 %v2403, 16
      %v2486 = vrot.slane %v2484, 4
      %v2487 = vor.u32 %v2483, %v2486
      %v2488 = vsel %vm2443, %v2480, %v2487
      %v2489 = vshrl.u32 %v2405, 16
      %v2491 = vrot.slane %v2489, 3
      %v2492 = vshll.u32 %v2405, 16
      %v2494 = vrot.slane %v2492, 4
      %v2495 = vor.u32 %v2491, %v2494
      %v2496 = vshrl.u32 %v2406, 16
      %v2498 = vrot.slane %v2496, 3
      %v2499 = vshll.u32 %v2406, 16
      %v2501 = vrot.slane %v2499, 4
      %v2502 = vor.u32 %v2498, %v2501
      %v2503 = vsel %vm2443, %v2495, %v2502
      %v2504 = vshrl.u32 %v2408, 16
      %v2506 = vrot.slane %v2504, 3
      %v2507 = vshll.u32 %v2408, 16
      %v2509 = vrot.slane %v2507, 4
      %v2510 = vor.u32 %v2506, %v2509
      %v2511 = vshrl.u32 %v2409, 16
      %v2513 = vrot.slane %v2511, 3
      %v2514 = vshll.u32 %v2409, 16
      %v2516 = vrot.slane %v2514, 4
      %v2517 = vor.u32 %v2513, %v2516
      %v2518 = vsel %vm2443, %v2510, %v2517
      %v2519 = vshrl.u32 %v2411, 16
      %v2521 = vrot.slane %v2519, 3
      %v2522 = vshll.u32 %v2411, 16
      %v2524 = vrot.slane %v2522, 4
      %v2525 = vor.u32 %v2521, %v2524
      %v2526 = vshrl.u32 %v2412, 16
      %v2528 = vrot.slane %v2526, 3
      %v2529 = vshll.u32 %v2412, 16
      %v2531 = vrot.slane %v2529, 4
      %v2532 = vor.u32 %v2528, %v2531
      %v2533 = vsel %vm2443, %v2525, %v2532
      %v2534 = vshrl.u32 %v2414, 16
      %v2536 = vrot.slane %v2534, 3
      %v2537 = vshll.u32 %v2414, 16
      %v2539 = vrot.slane %v2537, 4
      %v2540 = vor.u32 %v2536, %v2539
      %v2541 = vshrl.u32 %v2415, 16
      %v2543 = vrot.slane %v2541, 3
      %v2544 = vshll.u32 %v2415, 16
      %v2546 = vrot.slane %v2544, 4
      %v2547 = vor.u32 %v2543, %v2546
      %v2548 = vsel %vm2443, %v2540, %v2547
      %v2549 = vshrl.u32 %v2417, 16
      %v2551 = vrot.slane %v2549, 3
      %v2552 = vshll.u32 %v2417, 16
      %v2554 = vrot.slane %v2552, 4
      %v2555 = vor.u32 %v2551, %v2554
      %v2556 = vshrl.u32 %v2418, 16
      %v2558 = vrot.slane %v2556, 3
      %v2559 = vshll.u32 %v2418, 16
      %v2561 = vrot.slane %v2559, 4
      %v2562 = vor.u32 %v2558, %v2561
      %v2563 = vsel %vm2443, %v2555, %v2562
      %v2564 = vshrl.u32 %v2420, 16
      %v2566 = vrot.slane %v2564, 3
      %v2567 = vshll.u32 %v2420, 16
      %v2569 = vrot.slane %v2567, 4
      %v2570 = vor.u32 %v2566, %v2569
      %v2571 = vshrl.u32 %v2421, 16
      %v2573 = vrot.slane %v2571, 3
      %v2574 = vshll.u32 %v2421, 16
      %v2576 = vrot.slane %v2574, 4
      %v2577 = vor.u32 %v2573, %v2576
      %v2578 = vsel %vm2443, %v2570, %v2577
      %v2579 = vshrl.u32 %v2423, 16
      %v2581 = vrot.slane %v2579, 3
      %v2582 = vshll.u32 %v2423, 16
      %v2584 = vrot.slane %v2582, 4
      %v2585 = vor.u32 %v2581, %v2584
      %v2586 = vshrl.u32 %v2424, 16
      %v2588 = vrot.slane %v2586, 3
      %v2589 = vshll.u32 %v2424, 16
      %v2591 = vrot.slane %v2589, 4
      %v2592 = vor.u32 %v2588, %v2591
      %v2593 = vsel %vm2443, %v2585, %v2592
      %v2594 = vshrl.u32 %v2426, 16
      %v2596 = vrot.slane %v2594, 3
      %v2597 = vshll.u32 %v2426, 16
      %v2599 = vrot.slane %v2597, 4
      %v2600 = vor.u32 %v2596, %v2599
      %v2601 = vshrl.u32 %v2427, 16
      %v2603 = vrot.slane %v2601, 3
      %v2604 = vshll.u32 %v2427, 16
      %v2606 = vrot.slane %v2604, 4
      %v2607 = vor.u32 %v2603, %v2606
      %v2608 = vsel %vm2443, %v2600, %v2607
      %v2609 = vshrl.u32 %v2429, 16
      %v2611 = vrot.slane %v2609, 3
      %v2612 = vshll.u32 %v2429, 16
      %v2614 = vrot.slane %v2612, 4
      %v2615 = vor.u32 %v2611, %v2614
      %v2616 = vshrl.u32 %v2430, 16
      %v2618 = vrot.slane %v2616, 3
      %v2619 = vshll.u32 %v2430, 16
      %v2621 = vrot.slane %v2619, 4
      %v2622 = vor.u32 %v2618, %v2621
      %v2623 = vsel %vm2443, %v2615, %v2622
      %v2624 = vshrl.u32 %v2432, 16
      %v2626 = vrot.slane %v2624, 3
      %v2627 = vshll.u32 %v2432, 16
      %v2629 = vrot.slane %v2627, 4
      %v2630 = vor.u32 %v2626, %v2629
      %v2631 = vshrl.u32 %v2433, 16
      %v2633 = vrot.slane %v2631, 3
      %v2634 = vshll.u32 %v2433, 16
      %v2636 = vrot.slane %v2634, 4
      %v2637 = vor.u32 %v2633, %v2636
      %v2638 = vsel %vm2443, %v2630, %v2637
      %v2639 = vshrl.u32 %v2435, 16
      %v2641 = vrot.slane %v2639, 3
      %v2642 = vshll.u32 %v2435, 16
      %v2644 = vrot.slane %v2642, 4
      %v2645 = vor.u32 %v2641, %v2644
      %v2646 = vshrl.u32 %v2436, 16
      %v2648 = vrot.slane %v2646, 3
      %v2649 = vshll.u32 %v2436, 16
      %v2651 = vrot.slane %v2649, 4
      %v2652 = vor.u32 %v2648, %v2651
      %v2653 = vsel %vm2443, %v2645, %v2652
      %v2654 = vshrl.u32 %v2438, 16
      %v2656 = vrot.slane %v2654, 3
      %v2657 = vshll.u32 %v2438, 16
      %v2659 = vrot.slane %v2657, 4
      %v2660 = vor.u32 %v2656, %v2659
      %v2661 = vshrl.u32 %v2439, 16
      %v2663 = vrot.slane %v2661, 3
      %v2664 = vshll.u32 %v2439, 16
      %v2666 = vrot.slane %v2664, 4
      %v2667 = vor.u32 %v2663, %v2666
      %v2668 = vsel %vm2443, %v2660, %v2667
      %v2669 = vshrl.u32 %v2441, 16
      %v2671 = vrot.slane %v2669, 3
      %v2672 = vshll.u32 %v2441, 16
      %v2674 = vrot.slane %v2672, 4
      %v2675 = vor.u32 %v2671, %v2674
      %v2676 = vshrl.u32 %v2442, 16
      %v2678 = vrot.slane %v2676, 3
      %v2679 = vshll.u32 %v2442, 16
      %v2681 = vrot.slane %v2679, 4
      %v2682 = vor.u32 %v2678, %v2681
      %v2683 = vsel %vm2443, %v2675, %v2682
      %v2684 = vld [vmem:[%s3] sm:$0xf]
      %v2685 = vld [vmem:[%s3 + $0x4] sm:$0xf]
      %v2686 = vld [vmem:[%s997 + $0x8] sm:$0xf]
      %v2687 = vld [vmem:[%s997 + $0x18] sm:$0xf]
      %v2688 = vld [vmem:[%s997 + $0x28] sm:$0xf]
      %v2689 = vld [vmem:[%s997 + $0x38] sm:$0xf]
      %v2690 = vld [vmem:[%s997 + $0x48] sm:$0xf]
      %v2691 = vld [vmem:[%s997 + $0x58] sm:$0xf]
      %v2692 = vld [vmem:[%s997 + $0x68] sm:$0xf]
      %v2693 = vld [vmem:[%s997 + $0x78] sm:$0xf]
      %v2694 = vld [vmem:[%s997 + $0x88] sm:$0xf]
      %v2695 = vld [vmem:[%s997 + $0x98] sm:$0xf]
      %v2696 = vld [vmem:[%s997 + $0xa8] sm:$0xf]
      %v2697 = vld [vmem:[%s997 + $0xb8] sm:$0xf]
      %v2698 = vld [vmem:[%s997 + $0xc8] sm:$0xf]
      %v2699 = vld [vmem:[%s997 + $0xd8] sm:$0xf]
      %v2700 = vld [vmem:[%s997 + $0xe8] sm:$0xf]
      %v2701 = vld [vmem:[%s997 + $0xf8] sm:$0xf]
      %v2702 = vld [vmem:[%s1046 + $0x8] sm:$0xf]
      %v2703 = vld [vmem:[%s1046 + $0x18] sm:$0xf]
      %v2704 = vld [vmem:[%s1046 + $0x28] sm:$0xf]
      %v2705 = vld [vmem:[%s1046 + $0x38] sm:$0xf]
      %v2706 = vld [vmem:[%s1046 + $0x48] sm:$0xf]
      %v2707 = vld [vmem:[%s1046 + $0x58] sm:$0xf]
      %v2708 = vld [vmem:[%s1046 + $0x68] sm:$0xf]
      %v2709 = vld [vmem:[%s1046 + $0x78] sm:$0xf]
      %v2710 = vld [vmem:[%s1046 + $0x88] sm:$0xf]
      %v2711 = vld [vmem:[%s1046 + $0x98] sm:$0xf]
      %v2712 = vld [vmem:[%s1046 + $0xa8] sm:$0xf]
      %v2713 = vld [vmem:[%s1046 + $0xb8] sm:$0xf]
      %v2714 = vld [vmem:[%s1046 + $0xc8] sm:$0xf]
      %v2715 = vld [vmem:[%s1046 + $0xd8] sm:$0xf]
      %v2716 = vld [vmem:[%s1046 + $0xe8] sm:$0xf]
      %v2717 = vld [vmem:[%s1046 + $0xf8] sm:$0xf]
      %v2718 = vld [vmem:[#allocation2 + $0x8] sm:$0xf]
      %v2719 = vld [vmem:[#allocation2 + $0x18] sm:$0xf]
      %v2720 = vld [vmem:[#allocation2 + $0x28] sm:$0xf]
      %v2721 = vld [vmem:[#allocation2 + $0x38] sm:$0xf]
      %v2722 = vld [vmem:[#allocation2 + $0x48] sm:$0xf]
      %v2723 = vld [vmem:[#allocation2 + $0x58] sm:$0xf]
      %v2724 = vld [vmem:[#allocation2 + $0x68] sm:$0xf]
      %v2725 = vld [vmem:[#allocation2 + $0x78] sm:$0xf]
      %v2726 = vld [vmem:[#allocation2 + $0x88] sm:$0xf]
      %v2727 = vld [vmem:[#allocation2 + $0x98] sm:$0xf]
      %v2728 = vld [vmem:[#allocation2 + $0xa8] sm:$0xf]
      %v2729 = vld [vmem:[#allocation2 + $0xb8] sm:$0xf]
      %v2730 = vld [vmem:[#allocation2 + $0xc8] sm:$0xf]
      %v2731 = vld [vmem:[#allocation2 + $0xd8] sm:$0xf]
      %v2732 = vld [vmem:[#allocation2 + $0xe8] sm:$0xf]
      %v2733 = vld [vmem:[#allocation2 + $0xf8] sm:$0xf]
      %v2734 = vpack.c.b16 %v1177, %v1176
      %v2735 = vpack.c.b16 %v1180, %v1179
      %v2736 = vpack.c.b16 %v1183, %v1182
      %v2737 = vpack.c.b16 %v1186, %v1185
      %v2738 = vpack.c.b16 %v1189, %v1188
      %v2739 = vpack.c.b16 %v1192, %v1191
      %v2740 = vpack.c.b16 %v1195, %v1194
      %v2741 = vpack.c.b16 %v1198, %v1197
      %v2742 = vpack.c.b16 %v1201, %v1200
      %v2743 = vpack.c.b16 %v1204, %v1203
      %v2744 = vpack.c.b16 %v1207, %v1206
      %v2745 = vpack.c.b16 %v1210, %v1209
      %v2746 = vpack.c.b16 %v1213, %v1212
      %v2747 = vpack.c.b16 %v1216, %v1215
      %v2748 = vpack.c.b16 %v1219, %v1218
      %v2749 = vpack.c.b16 %v1222, %v1221
      %v2766 = vunpack.c.l.b16 %v2686
      %v2767 = vunpack.c.l.b16 %v2687
      %v2768 = vunpack.c.l.b16 %v2688
      %v2769 = vunpack.c.l.b16 %v2689
      %v2770 = vunpack.c.l.b16 %v2690
      %v2771 = vunpack.c.l.b16 %v2691
      %v2772 = vunpack.c.l.b16 %v2692
      %v2773 = vunpack.c.l.b16 %v2693
      %v2774 = vunpack.c.l.b16 %v2694
      %v2775 = vunpack.c.l.b16 %v2695
      %v2776 = vunpack.c.l.b16 %v2696
      %v2777 = vunpack.c.l.b16 %v2697
      %v2778 = vunpack.c.l.b16 %v2698
      %v2779 = vunpack.c.l.b16 %v2699
      %v2780 = vunpack.c.l.b16 %v2700
      %v2781 = vunpack.c.l.b16 %v2701
      %v2782 = vpack.c.b16 %v2766, %v1304
      %v2783 = vpack.c.b16 %v2767, %v1307
      %v2784 = vpack.c.b16 %v2768, %v1310
      %v2785 = vpack.c.b16 %v2769, %v1313
      %v2786 = vpack.c.b16 %v2770, %v1316
      %v2787 = vpack.c.b16 %v2771, %v1319
      %v2788 = vpack.c.b16 %v2772, %v1322
      %v2789 = vpack.c.b16 %v2773, %v1325
      %v2790 = vpack.c.b16 %v2774, %v1328
      %v2791 = vpack.c.b16 %v2775, %v1331
      %v2792 = vpack.c.b16 %v2776, %v1334
      %v2793 = vpack.c.b16 %v2777, %v1337
      %v2794 = vpack.c.b16 %v2778, %v1340
      %v2795 = vpack.c.b16 %v2779, %v1343
      %v2796 = vpack.c.b16 %v2780, %v1346
      %v2797 = vpack.c.b16 %v2781, %v1349
      %v2814 = vunpack.c.l.b16 %v2702
      %v2815 = vunpack.c.l.b16 %v2703
      %v2816 = vunpack.c.l.b16 %v2704
      %v2817 = vunpack.c.l.b16 %v2705
      %v2818 = vunpack.c.l.b16 %v2706
      %v2819 = vunpack.c.l.b16 %v2707
      %v2820 = vunpack.c.l.b16 %v2708
      %v2821 = vunpack.c.l.b16 %v2709
      %v2822 = vunpack.c.l.b16 %v2710
      %v2823 = vunpack.c.l.b16 %v2711
      %v2824 = vunpack.c.l.b16 %v2712
      %v2825 = vunpack.c.l.b16 %v2713
      %v2826 = vunpack.c.l.b16 %v2714
      %v2827 = vunpack.c.l.b16 %v2715
      %v2828 = vunpack.c.l.b16 %v2716
      %v2829 = vunpack.c.l.b16 %v2717
      %v2830 = vpack.c.b16 %v2814, %v1673
      %v2831 = vpack.c.b16 %v2815, %v1676
      %v2832 = vpack.c.b16 %v2816, %v1679
      %v2833 = vpack.c.b16 %v2817, %v1682
      %v2834 = vpack.c.b16 %v2818, %v1685
      %v2835 = vpack.c.b16 %v2819, %v1688
      %v2836 = vpack.c.b16 %v2820, %v1691
      %v2837 = vpack.c.b16 %v2821, %v1694
      %v2838 = vpack.c.b16 %v2822, %v1697
      %v2839 = vpack.c.b16 %v2823, %v1700
      %v2840 = vpack.c.b16 %v2824, %v1703
      %v2841 = vpack.c.b16 %v2825, %v1706
      %v2842 = vpack.c.b16 %v2826, %v1709
      %v2843 = vpack.c.b16 %v2827, %v1712
      %v2844 = vpack.c.b16 %v2828, %v1715
      %v2845 = vpack.c.b16 %v2829, %v1718
      %v2862 = vunpack.c.l.b16 %v2718
      %v2863 = vunpack.c.l.b16 %v2719
      %v2864 = vunpack.c.l.b16 %v2720
      %v2865 = vunpack.c.l.b16 %v2721
      %v2866 = vunpack.c.l.b16 %v2722
      %v2867 = vunpack.c.l.b16 %v2723
      %v2868 = vunpack.c.l.b16 %v2724
      %v2869 = vunpack.c.l.b16 %v2725
      %v2870 = vunpack.c.l.b16 %v2726
      %v2871 = vunpack.c.l.b16 %v2727
      %v2872 = vunpack.c.l.b16 %v2728
      %v2873 = vunpack.c.l.b16 %v2729
      %v2874 = vunpack.c.l.b16 %v2730
      %v2875 = vunpack.c.l.b16 %v2731
      %v2876 = vunpack.c.l.b16 %v2732
      %v2877 = vunpack.c.l.b16 %v2733
      %v2878 = vpack.c.b16 %v2862, %v2058
      %v2879 = vpack.c.b16 %v2863, %v2060
      %v2880 = vpack.c.b16 %v2864, %v2062
      %v2881 = vpack.c.b16 %v2865, %v2064
      %v2882 = vpack.c.b16 %v2866, %v2066
      %v2883 = vpack.c.b16 %v2867, %v2068
      %v2884 = vpack.c.b16 %v2868, %v2070
      %v2885 = vpack.c.b16 %v2869, %v2072
      %v2886 = vpack.c.b16 %v2870, %v2074
      %v2887 = vpack.c.b16 %v2871, %v2076
      %v2888 = vpack.c.b16 %v2872, %v2078
      %v2889 = vpack.c.b16 %v2873, %v2080
      %v2890 = vpack.c.b16 %v2874, %v2082
      %v2891 = vpack.c.b16 %v2875, %v2084
      %v2892 = vpack.c.b16 %v2876, %v2086
      %v2893 = vpack.c.b16 %v2877, %v2088
      %v2896 = vsel %vm451, %v2734, %v2782
      %v2899 = vsel %vm451, %v2735, %v2783
      %v2902 = vsel %vm451, %v2736, %v2784
      %v2905 = vsel %vm451, %v2737, %v2785
      %v2908 = vsel %vm451, %v2738, %v2786
      %v2911 = vsel %vm451, %v2739, %v2787
      %v2914 = vsel %vm451, %v2740, %v2788
      %v2917 = vsel %vm451, %v2741, %v2789
      %v2920 = vsel %vm451, %v2742, %v2790
      %v2923 = vsel %vm451, %v2743, %v2791
      %v2926 = vsel %vm451, %v2744, %v2792
      %v2929 = vsel %vm451, %v2745, %v2793
      %v2932 = vsel %vm451, %v2746, %v2794
      %v2935 = vsel %vm451, %v2747, %v2795
      %v2938 = vsel %vm451, %v2748, %v2796
      %v2941 = vsel %vm451, %v2749, %v2797
      %v2943 = vsel %vm2329, %v2896, %v2830
      %v2945 = vsel %vm2329, %v2899, %v2831
      %v2947 = vsel %vm2329, %v2902, %v2832
      %v2949 = vsel %vm2329, %v2905, %v2833
      %v2951 = vsel %vm2329, %v2908, %v2834
      %v2953 = vsel %vm2329, %v2911, %v2835
      %v2955 = vsel %vm2329, %v2914, %v2836
      %v2957 = vsel %vm2329, %v2917, %v2837
      %v2959 = vsel %vm2329, %v2920, %v2838
      %v2961 = vsel %vm2329, %v2923, %v2839
      %v2963 = vsel %vm2329, %v2926, %v2840
      %v2965 = vsel %vm2329, %v2929, %v2841
      %v2967 = vsel %vm2329, %v2932, %v2842
      %v2969 = vsel %vm2329, %v2935, %v2843
      %v2971 = vsel %vm2329, %v2938, %v2844
      %v2973 = vsel %vm2329, %v2941, %v2845
      %v2975 = vsel %vm2394, %v2943, %v2878
      %v2977 = vsel %vm2394, %v2945, %v2879
      %v2979 = vsel %vm2394, %v2947, %v2880
      %v2981 = vsel %vm2394, %v2949, %v2881
      %v2983 = vsel %vm2394, %v2951, %v2882
      %v2985 = vsel %vm2394, %v2953, %v2883
      %v2987 = vsel %vm2394, %v2955, %v2884
      %v2989 = vsel %vm2394, %v2957, %v2885
      %v2991 = vsel %vm2394, %v2959, %v2886
      %v2993 = vsel %vm2394, %v2961, %v2887
      %v2995 = vsel %vm2394, %v2963, %v2888
      %v2997 = vsel %vm2394, %v2965, %v2889
      %v2999 = vsel %vm2394, %v2967, %v2890
      %v3001 = vsel %vm2394, %v2969, %v2891
      %v3003 = vsel %vm2394, %v2971, %v2892
      %v3005 = vsel %vm2394, %v2973, %v2893
      %s3006 = scalar_lea.vmem %s3, 8
      %v3007 = vld [vmem:[%s3006] sm:$0xf]
      %v3008 = vld [vmem:[%s3006 + $0x4] sm:$0xf]
      %v3011 = vunpack.c.l.b16 %v3007
      %v3012 = vunpack.c.l.b16 %v3008
      %v3013 = vpack.c.b16 %v3012, %v3011
      %vm3015 = vcmask 130048
      %v3016 = vsel %vm3015, %v2975, 0
      %v3018 = vsel %vm3015, %v2977, 0
      %v3020 = vsel %vm3015, %v2979, 0
      %v3022 = vsel %vm3015, %v2981, 0
      %v3024 = vsel %vm3015, %v2983, 0
      %v3026 = vsel %vm3015, %v2985, 0
      %v3028 = vsel %vm3015, %v2987, 0
      %v3030 = vsel %vm3015, %v2989, 0
      %v3032 = vsel %vm3015, %v2991, 0
      %v3034 = vsel %vm3015, %v2993, 0
      %v3036 = vsel %vm3015, %v2995, 0
      %v3038 = vsel %vm3015, %v2997, 0
      %v3040 = vsel %vm3015, %v2999, 0
      %v3042 = vsel %vm3015, %v3001, 0
      %v3044 = vsel %vm3015, %v3003, 0
      %v3046 = vsel %vm3015, %v3005, 0
      %3048 = vmatpush.bf16.msra.mxu0 0
      %3049 = vmatpush.bf16.msra.mxu0 0
      %3050 = vmatpush.bf16.msra.mxu0 0
      %3051 = vmatpush.bf16.msra.mxu0 0
      %3052 = vmatpush.bf16.msra.mxu0 0
      %3053 = vmatpush.bf16.msra.mxu0 0
      %3054 = vmatpush.bf16.msra.mxu0 0
      %3055 = vmatpush.bf16.msra.mxu0 %v3013
      %3056 = vmatmul.bf16.gmra.mxu0 %v3016
      %v3057 = vpop.f32.mrf.mxu0
      %v3058 = vadd.f32 0.0, %v3057
      %v3059 = vpop.f32.mrf.mxu0
      %v3060 = vadd.f32 0.0, %v3059
      %3061 = vmatmul.bf16.gmra.mxu0 %v3018
      %v3062 = vpop.f32.mrf.mxu0
      %v3063 = vadd.f32 0.0, %v3062
      %v3064 = vpop.f32.mrf.mxu0
      %v3065 = vadd.f32 0.0, %v3064
      %3066 = vmatmul.bf16.gmra.mxu0 %v3020
      %v3067 = vpop.f32.mrf.mxu0
      %v3068 = vadd.f32 0.0, %v3067
      %v3069 = vpop.f32.mrf.mxu0
      %v3070 = vadd.f32 0.0, %v3069
      %3071 = vmatmul.bf16.gmra.mxu0 %v3022
      %v3072 = vpop.f32.mrf.mxu0
      %v3073 = vadd.f32 0.0, %v3072
      %v3074 = vpop.f32.mrf.mxu0
      %v3075 = vadd.f32 0.0, %v3074
      %3076 = vmatmul.bf16.gmra.mxu0 %v3024
      %v3077 = vpop.f32.mrf.mxu0
      %v3078 = vadd.f32 0.0, %v3077
      %v3079 = vpop.f32.mrf.mxu0
      %v3080 = vadd.f32 0.0, %v3079
      %3081 = vmatmul.bf16.gmra.mxu0 %v3026
      %v3082 = vpop.f32.mrf.mxu0
      %v3083 = vadd.f32 0.0, %v3082
      %v3084 = vpop.f32.mrf.mxu0
      %v3085 = vadd.f32 0.0, %v3084
      %3086 = vmatmul.bf16.gmra.mxu0 %v3028
      %v3087 = vpop.f32.mrf.mxu0
      %v3088 = vadd.f32 0.0, %v3087
      %v3089 = vpop.f32.mrf.mxu0
      %v3090 = vadd.f32 0.0, %v3089
      %3091 = vmatmul.bf16.gmra.mxu0 %v3030
      %v3092 = vpop.f32.mrf.mxu0
      %v3093 = vadd.f32 0.0, %v3092
      %v3094 = vpop.f32.mrf.mxu0
      %v3095 = vadd.f32 0.0, %v3094
      %3096 = vmatmul.bf16.gmra.mxu0 %v3032
      %v3097 = vpop.f32.mrf.mxu0
      %v3098 = vadd.f32 0.0, %v3097
      %v3099 = vpop.f32.mrf.mxu0
      %v3100 = vadd.f32 0.0, %v3099
      %3101 = vmatmul.bf16.gmra.mxu0 %v3034
      %v3102 = vpop.f32.mrf.mxu0
      %v3103 = vadd.f32 0.0, %v3102
      %v3104 = vpop.f32.mrf.mxu0
      %v3105 = vadd.f32 0.0, %v3104
      %3106 = vmatmul.bf16.gmra.mxu0 %v3036
      %v3107 = vpop.f32.mrf.mxu0
      %v3108 = vadd.f32 0.0, %v3107
      %v3109 = vpop.f32.mrf.mxu0
      %v3110 = vadd.f32 0.0, %v3109
      %3111 = vmatmul.bf16.gmra.mxu0 %v3038
      %v3112 = vpop.f32.mrf.mxu0
      %v3113 = vadd.f32 0.0, %v3112
      %v3114 = vpop.f32.mrf.mxu0
      %v3115 = vadd.f32 0.0, %v3114
      %3116 = vmatmul.bf16.gmra.mxu0 %v3040
      %v3117 = vpop.f32.mrf.mxu0
      %v3118 = vadd.f32 0.0, %v3117
      %v3119 = vpop.f32.mrf.mxu0
      %v3120 = vadd.f32 0.0, %v3119
      %3121 = vmatmul.bf16.gmra.mxu0 %v3042
      %v3122 = vpop.f32.mrf.mxu0
      %v3123 = vadd.f32 0.0, %v3122
      %v3124 = vpop.f32.mrf.mxu0
      %v3125 = vadd.f32 0.0, %v3124
      %3126 = vmatmul.bf16.gmra.mxu0 %v3044
      %v3127 = vpop.f32.mrf.mxu0
      %v3128 = vadd.f32 0.0, %v3127
      %v3129 = vpop.f32.mrf.mxu0
      %v3130 = vadd.f32 0.0, %v3129
      %3131 = vmatmul.bf16.gmra.mxu0 %v3046
      %v3132 = vpop.f32.mrf.mxu0
      %v3133 = vadd.f32 0.0, %v3132
      %v3134 = vpop.f32.mrf.mxu0
      %v3135 = vadd.f32 0.0, %v3134
      %3136 = vdwg.mxu0
      %v3139 = vunpack.c.l.b16 %v2684
      %v3140 = vunpack.c.l.b16 %v2685
      %v3141 = vpack.c.b16 %v3140, %v3139
      %v3144 = vsel %vm3015, %v2458, 0
      %v3147 = vsel %vm3015, %v2473, 0
      %v3150 = vsel %vm3015, %v2488, 0
      %v3153 = vsel %vm3015, %v2503, 0
      %v3156 = vsel %vm3015, %v2518, 0
      %v3159 = vsel %vm3015, %v2533, 0
      %v3162 = vsel %vm3015, %v2548, 0
      %v3165 = vsel %vm3015, %v2563, 0
      %v3168 = vsel %vm3015, %v2578, 0
      %v3171 = vsel %vm3015, %v2593, 0
      %v3174 = vsel %vm3015, %v2608, 0
      %v3177 = vsel %vm3015, %v2623, 0
      %v3180 = vsel %vm3015, %v2638, 0
      %v3183 = vsel %vm3015, %v2653, 0
      %v3186 = vsel %vm3015, %v2668, 0
      %v3189 = vsel %vm3015, %v2683, 0
      %3191 = vmatpush.bf16.msra.mxu0 0
      %3192 = vmatpush.bf16.msra.mxu0 0
      %3193 = vmatpush.bf16.msra.mxu0 0
      %3194 = vmatpush.bf16.msra.mxu0 0
      %3195 = vmatpush.bf16.msra.mxu0 0
      %3196 = vmatpush.bf16.msra.mxu0 0
      %3197 = vmatpush.bf16.msra.mxu0 0
      %3198 = vmatpush.bf16.msra.mxu0 %v3141
      %3199 = vmatmul.bf16.gmra.mxu0 %v3144
      %v3200 = vpop.f32.mrf.mxu0
      %v3201 = vadd.f32 %v3058, %v3200
      %v3202 = vpop.f32.mrf.mxu0
      %v3203 = vadd.f32 %v3060, %v3202
      %3204 = vmatmul.bf16.gmra.mxu0 %v3147
      %v3205 = vpop.f32.mrf.mxu0
      %v3206 = vadd.f32 %v3063, %v3205
      %v3207 = vpop.f32.mrf.mxu0
      %v3208 = vadd.f32 %v3065, %v3207
      %3209 = vmatmul.bf16.gmra.mxu0 %v3150
      %v3210 = vpop.f32.mrf.mxu0
      %v3211 = vadd.f32 %v3068, %v3210
      %v3212 = vpop.f32.mrf.mxu0
      %v3213 = vadd.f32 %v3070, %v3212
      %3214 = vmatmul.bf16.gmra.mxu0 %v3153
      %v3215 = vpop.f32.mrf.mxu0
      %v3216 = vadd.f32 %v3073, %v3215
      %v3217 = vpop.f32.mrf.mxu0
      %v3218 = vadd.f32 %v3075, %v3217
      %3219 = vmatmul.bf16.gmra.mxu0 %v3156
      %v3220 = vpop.f32.mrf.mxu0
      %v3221 = vadd.f32 %v3078, %v3220
      %v3222 = vpop.f32.mrf.mxu0
      %v3223 = vadd.f32 %v3080, %v3222
      %3224 = vmatmul.bf16.gmra.mxu0 %v3159
      %v3225 = vpop.f32.mrf.mxu0
      %v3226 = vadd.f32 %v3083, %v3225
      %v3227 = vpop.f32.mrf.mxu0
      %v3228 = vadd.f32 %v3085, %v3227
      %3229 = vmatmul.bf16.gmra.mxu0 %v3162
      %v3230 = vpop.f32.mrf.mxu0
      %v3231 = vadd.f32 %v3088, %v3230
      %v3232 = vpop.f32.mrf.mxu0
      %v3233 = vadd.f32 %v3090, %v3232
      %3234 = vmatmul.bf16.gmra.mxu0 %v3165
      %v3235 = vpop.f32.mrf.mxu0
      %v3236 = vadd.f32 %v3093, %v3235
      %v3237 = vpop.f32.mrf.mxu0
      %v3238 = vadd.f32 %v3095, %v3237
      %3239 = vmatmul.bf16.gmra.mxu0 %v3168
      %v3240 = vpop.f32.mrf.mxu0
      %v3241 = vadd.f32 %v3098, %v3240
      %v3242 = vpop.f32.mrf.mxu0
      %v3243 = vadd.f32 %v3100, %v3242
      %3244 = vmatmul.bf16.gmra.mxu0 %v3171
      %v3245 = vpop.f32.mrf.mxu0
      %v3246 = vadd.f32 %v3103, %v3245
      %v3247 = vpop.f32.mrf.mxu0
      %v3248 = vadd.f32 %v3105, %v3247
      %3249 = vmatmul.bf16.gmra.mxu0 %v3174
      %v3250 = vpop.f32.mrf.mxu0
      %v3251 = vadd.f32 %v3108, %v3250
      %v3252 = vpop.f32.mrf.mxu0
      %v3253 = vadd.f32 %v3110, %v3252
      %3254 = vmatmul.bf16.gmra.mxu0 %v3177
      %v3255 = vpop.f32.mrf.mxu0
      %v3256 = vadd.f32 %v3113, %v3255
      %v3257 = vpop.f32.mrf.mxu0
      %v3258 = vadd.f32 %v3115, %v3257
      %3259 = vmatmul.bf16.gmra.mxu0 %v3180
      %v3260 = vpop.f32.mrf.mxu0
      %v3261 = vadd.f32 %v3118, %v3260
      %v3262 = vpop.f32.mrf.mxu0
      %v3263 = vadd.f32 %v3120, %v3262
      %3264 = vmatmul.bf16.gmra.mxu0 %v3183
      %v3265 = vpop.f32.mrf.mxu0
      %v3266 = vadd.f32 %v3123, %v3265
      %v3267 = vpop.f32.mrf.mxu0
      %v3268 = vadd.f32 %v3125, %v3267
      %3269 = vmatmul.bf16.gmra.mxu0 %v3186
      %v3270 = vpop.f32.mrf.mxu0
      %v3271 = vadd.f32 %v3128, %v3270
      %v3272 = vpop.f32.mrf.mxu0
      %v3273 = vadd.f32 %v3130, %v3272
      %3274 = vmatmul.bf16.gmra.mxu0 %v3189
      %v3275 = vpop.f32.mrf.mxu0
      %v3276 = vadd.f32 %v3133, %v3275
      %v3277 = vpop.f32.mrf.mxu0
      %v3278 = vadd.f32 %v3135, %v3277
      %3279 = vdwg.mxu0
      %v3280 = vld [vmem:[%s948 + $0x4] sm:$0xf]
      %v3281 = vld [vmem:[%s948 + $0x8] sm:$0xf]
      %v3282 = vld [vmem:[%s948 + $0xc] sm:$0x1]
      %v3283 = vld [vmem:[%s948 + $0x14] sm:$0xf]
      %v3284 = vld [vmem:[%s948 + $0x18] sm:$0xf]
      %v3285 = vld [vmem:[%s948 + $0x1c] sm:$0x1]
      %v3286 = vld [vmem:[%s948 + $0x24] sm:$0xf]
      %v3287 = vld [vmem:[%s948 + $0x28] sm:$0xf]
      %v3288 = vld [vmem:[%s948 + $0x2c] sm:$0x1]
      %v3289 = vld [vmem:[%s948 + $0x34] sm:$0xf]
      %v3290 = vld [vmem:[%s948 + $0x38] sm:$0xf]
      %v3291 = vld [vmem:[%s948 + $0x3c] sm:$0x1]
      %v3292 = vld [vmem:[%s948 + $0x44] sm:$0xf]
      %v3293 = vld [vmem:[%s948 + $0x48] sm:$0xf]
      %v3294 = vld [vmem:[%s948 + $0x4c] sm:$0x1]
      %v3295 = vld [vmem:[%s948 + $0x54] sm:$0xf]
      %v3296 = vld [vmem:[%s948 + $0x58] sm:$0xf]
      %v3297 = vld [vmem:[%s948 + $0x5c] sm:$0x1]
      %v3298 = vld [vmem:[%s948 + $0x64] sm:$0xf]
      %v3299 = vld [vmem:[%s948 + $0x68] sm:$0xf]
      %v3300 = vld [vmem:[%s948 + $0x6c] sm:$0x1]
      %v3301 = vld [vmem:[%s948 + $0x74] sm:$0xf]
      %v3302 = vld [vmem:[%s948 + $0x78] sm:$0xf]
      %v3303 = vld [vmem:[%s948 + $0x7c] sm:$0x1]
      %v3304 = vld [vmem:[%s948 + $0x84] sm:$0xf]
      %v3305 = vld [vmem:[%s948 + $0x88] sm:$0xf]
      %v3306 = vld [vmem:[%s948 + $0x8c] sm:$0x1]
      %v3307 = vld [vmem:[%s948 + $0x94] sm:$0xf]
      %v3308 = vld [vmem:[%s948 + $0x98] sm:$0xf]
      %v3309 = vld [vmem:[%s948 + $0x9c] sm:$0x1]
      %v3310 = vld [vmem:[%s948 + $0xa4] sm:$0xf]
      %v3311 = vld [vmem:[%s948 + $0xa8] sm:$0xf]
      %v3312 = vld [vmem:[%s948 + $0xac] sm:$0x1]
      %v3313 = vld [vmem:[%s948 + $0xb4] sm:$0xf]
      %v3314 = vld [vmem:[%s948 + $0xb8] sm:$0xf]
      %v3315 = vld [vmem:[%s948 + $0xbc] sm:$0x1]
      %v3316 = vld [vmem:[%s948 + $0xc4] sm:$0xf]
      %v3317 = vld [vmem:[%s948 + $0xc8] sm:$0xf]
      %v3318 = vld [vmem:[%s948 + $0xcc] sm:$0x1]
      %v3319 = vld [vmem:[%s948 + $0xd4] sm:$0xf]
      %v3320 = vld [vmem:[%s948 + $0xd8] sm:$0xf]
      %v3321 = vld [vmem:[%s948 + $0xdc] sm:$0x1]
      %v3322 = vld [vmem:[%s948 + $0xe4] sm:$0xf]
      %v3323 = vld [vmem:[%s948 + $0xe8] sm:$0xf]
      %v3324 = vld [vmem:[%s948 + $0xec] sm:$0x1]
      %v3325 = vld [vmem:[%s948 + $0xf4] sm:$0xf]
      %v3326 = vld [vmem:[%s948 + $0xf8] sm:$0xf]
      %v3327 = vld [vmem:[%s948 + $0xfc] sm:$0x1]
      %v3328 = vld [vmem:[%s997 + $0x4] sm:$0xe]
      %v3329 = vld [vmem:[%s997 + $0x8] sm:$0xf]
      %v3330 = vld [vmem:[%s997 + $0xc] sm:$0x1]
      %v3331 = vld [vmem:[%s997 + $0x14] sm:$0xe]
      %v3332 = vld [vmem:[%s997 + $0x18] sm:$0xf]
      %v3333 = vld [vmem:[%s997 + $0x1c] sm:$0x1]
      %v3334 = vld [vmem:[%s997 + $0x24] sm:$0xe]
      %v3335 = vld [vmem:[%s997 + $0x28] sm:$0xf]
      %v3336 = vld [vmem:[%s997 + $0x2c] sm:$0x1]
      %v3337 = vld [vmem:[%s997 + $0x34] sm:$0xe]
      %v3338 = vld [vmem:[%s997 + $0x38] sm:$0xf]
      %v3339 = vld [vmem:[%s997 + $0x3c] sm:$0x1]
      %v3340 = vld [vmem:[%s997 + $0x44] sm:$0xe]
      %v3341 = vld [vmem:[%s997 + $0x48] sm:$0xf]
      %v3342 = vld [vmem:[%s997 + $0x4c] sm:$0x1]
      %v3343 = vld [vmem:[%s997 + $0x54] sm:$0xe]
      %v3344 = vld [vmem:[%s997 + $0x58] sm:$0xf]
      %v3345 = vld [vmem:[%s997 + $0x5c] sm:$0x1]
      %v3346 = vld [vmem:[%s997 + $0x64] sm:$0xe]
      %v3347 = vld [vmem:[%s997 + $0x68] sm:$0xf]
      %v3348 = vld [vmem:[%s997 + $0x6c] sm:$0x1]
      %v3349 = vld [vmem:[%s997 + $0x74] sm:$0xe]
      %v3350 = vld [vmem:[%s997 + $0x78] sm:$0xf]
      %v3351 = vld [vmem:[%s997 + $0x7c] sm:$0x1]
      %v3352 = vld [vmem:[%s997 + $0x84] sm:$0xe]
      %v3353 = vld [vmem:[%s997 + $0x88] sm:$0xf]
      %v3354 = vld [vmem:[%s997 + $0x8c] sm:$0x1]
      %v3355 = vld [vmem:[%s997 + $0x94] sm:$0xe]
      %v3356 = vld [vmem:[%s997 + $0x98] sm:$0xf]
      %v3357 = vld [vmem:[%s997 + $0x9c] sm:$0x1]
      %v3358 = vld [vmem:[%s997 + $0xa4] sm:$0xe]
      %v3359 = vld [vmem:[%s997 + $0xa8] sm:$0xf]
      %v3360 = vld [vmem:[%s997 + $0xac] sm:$0x1]
      %v3361 = vld [vmem:[%s997 + $0xb4] sm:$0xe]
      %v3362 = vld [vmem:[%s997 + $0xb8] sm:$0xf]
      %v3363 = vld [vmem:[%s997 + $0xbc] sm:$0x1]
      %v3364 = vld [vmem:[%s997 + $0xc4] sm:$0xe]
      %v3365 = vld [vmem:[%s997 + $0xc8] sm:$0xf]
      %v3366 = vld [vmem:[%s997 + $0xcc] sm:$0x1]
      %v3367 = vld [vmem:[%s997 + $0xd4] sm:$0xe]
      %v3368 = vld [vmem:[%s997 + $0xd8] sm:$0xf]
      %v3369 = vld [vmem:[%s997 + $0xdc] sm:$0x1]
      %v3370 = vld [vmem:[%s997 + $0xe4] sm:$0xe]
      %v3371 = vld [vmem:[%s997 + $0xe8] sm:$0xf]
      %v3372 = vld [vmem:[%s997 + $0xec] sm:$0x1]
      %v3373 = vld [vmem:[%s997 + $0xf4] sm:$0xe]
      %v3374 = vld [vmem:[%s997 + $0xf8] sm:$0xf]
      %v3375 = vld [vmem:[%s997 + $0xfc] sm:$0x1]
      %v3376 = vld [vmem:[%s1046 + $0x4] sm:$0xc]
      %v3377 = vld [vmem:[%s1046 + $0x8] sm:$0xf]
      %v3378 = vld [vmem:[%s1046 + $0xc] sm:$0x3]
      %v3379 = vld [vmem:[%s1046 + $0x14] sm:$0xc]
      %v3380 = vld [vmem:[%s1046 + $0x18] sm:$0xf]
      %v3381 = vld [vmem:[%s1046 + $0x1c] sm:$0x3]
      %v3382 = vld [vmem:[%s1046 + $0x24] sm:$0xc]
      %v3383 = vld [vmem:[%s1046 + $0x28] sm:$0xf]
      %v3384 = vld [vmem:[%s1046 + $0x2c] sm:$0x3]
      %v3385 = vld [vmem:[%s1046 + $0x34] sm:$0xc]
      %v3386 = vld [vmem:[%s1046 + $0x38] sm:$0xf]
      %v3387 = vld [vmem:[%s1046 + $0x3c] sm:$0x3]
      %v3388 = vld [vmem:[%s1046 + $0x44] sm:$0xc]
      %v3389 = vld [vmem:[%s1046 + $0x48] sm:$0xf]
      %v3390 = vld [vmem:[%s1046 + $0x4c] sm:$0x3]
      %v3391 = vld [vmem:[%s1046 + $0x54] sm:$0xc]
      %v3392 = vld [vmem:[%s1046 + $0x58] sm:$0xf]
      %v3393 = vld [vmem:[%s1046 + $0x5c] sm:$0x3]
      %v3394 = vld [vmem:[%s1046 + $0x64] sm:$0xc]
      %v3395 = vld [vmem:[%s1046 + $0x68] sm:$0xf]
      %v3396 = vld [vmem:[%s1046 + $0x6c] sm:$0x3]
      %v3397 = vld [vmem:[%s1046 + $0x74] sm:$0xc]
      %v3398 = vld [vmem:[%s1046 + $0x78] sm:$0xf]
      %v3399 = vld [vmem:[%s1046 + $0x7c] sm:$0x3]
      %v3400 = vld [vmem:[%s1046 + $0x84] sm:$0xc]
      %v3401 = vld [vmem:[%s1046 + $0x88] sm:$0xf]
      %v3402 = vld [vmem:[%s1046 + $0x8c] sm:$0x3]
      %v3403 = vld [vmem:[%s1046 + $0x94] sm:$0xc]
      %v3404 = vld [vmem:[%s1046 + $0x98] sm:$0xf]
      %v3405 = vld [vmem:[%s1046 + $0x9c] sm:$0x3]
      %v3406 = vld [vmem:[%s1046 + $0xa4] sm:$0xc]
      %v3407 = vld [vmem:[%s1046 + $0xa8] sm:$0xf]
      %v3408 = vld [vmem:[%s1046 + $0xac] sm:$0x3]
      %v3409 = vld [vmem:[%s1046 + $0xb4] sm:$0xc]
      %v3410 = vld [vmem:[%s1046 + $0xb8] sm:$0xf]
      %v3411 = vld [vmem:[%s1046 + $0xbc] sm:$0x3]
      %v3412 = vld [vmem:[%s1046 + $0xc4] sm:$0xc]
      %v3413 = vld [vmem:[%s1046 + $0xc8] sm:$0xf]
      %v3414 = vld [vmem:[%s1046 + $0xcc] sm:$0x3]
      %v3415 = vld [vmem:[%s1046 + $0xd4] sm:$0xc]
      %v3416 = vld [vmem:[%s1046 + $0xd8] sm:$0xf]
      %v3417 = vld [vmem:[%s1046 + $0xdc] sm:$0x3]
      %v3418 = vld [vmem:[%s1046 + $0xe4] sm:$0xc]
      %v3419 = vld [vmem:[%s1046 + $0xe8] sm:$0xf]
      %v3420 = vld [vmem:[%s1046 + $0xec] sm:$0x3]
      %v3421 = vld [vmem:[%s1046 + $0xf4] sm:$0xc]
      %v3422 = vld [vmem:[%s1046 + $0xf8] sm:$0xf]
      %v3423 = vld [vmem:[%s1046 + $0xfc] sm:$0x3]
      %v3424 = vld [vmem:[#allocation2 + $0x8] sm:$0xf]
      %v3425 = vld [vmem:[#allocation2 + $0xc] sm:$0xf]
      %v3426 = vld [vmem:[#allocation2 + $0x18] sm:$0xf]
      %v3427 = vld [vmem:[#allocation2 + $0x1c] sm:$0xf]
      %v3428 = vld [vmem:[#allocation2 + $0x28] sm:$0xf]
      %v3429 = vld [vmem:[#allocation2 + $0x2c] sm:$0xf]
      %v3430 = vld [vmem:[#allocation2 + $0x38] sm:$0xf]
      %v3431 = vld [vmem:[#allocation2 + $0x3c] sm:$0xf]
      %v3432 = vld [vmem:[#allocation2 + $0x48] sm:$0xf]
      %v3433 = vld [vmem:[#allocation2 + $0x4c] sm:$0xf]
      %v3434 = vld [vmem:[#allocation2 + $0x58] sm:$0xf]
      %v3435 = vld [vmem:[#allocation2 + $0x5c] sm:$0xf]
      %v3436 = vld [vmem:[#allocation2 + $0x68] sm:$0xf]
      %v3437 = vld [vmem:[#allocation2 + $0x6c] sm:$0xf]
      %v3438 = vld [vmem:[#allocation2 + $0x78] sm:$0xf]
      %v3439 = vld [vmem:[#allocation2 + $0x7c] sm:$0xf]
      %v3440 = vld [vmem:[#allocation2 + $0x88] sm:$0xf]
      %v3441 = vld [vmem:[#allocation2 + $0x8c] sm:$0xf]
      %v3442 = vld [vmem:[#allocation2 + $0x98] sm:$0xf]
      %v3443 = vld [vmem:[#allocation2 + $0x9c] sm:$0xf]
      %v3444 = vld [vmem:[#allocation2 + $0xa8] sm:$0xf]
      %v3445 = vld [vmem:[#allocation2 + $0xac] sm:$0xf]
      %v3446 = vld [vmem:[#allocation2 + $0xb8] sm:$0xf]
      %v3447 = vld [vmem:[#allocation2 + $0xbc] sm:$0xf]
      %v3448 = vld [vmem:[#allocation2 + $0xc8] sm:$0xf]
      %v3449 = vld [vmem:[#allocation2 + $0xcc] sm:$0xf]
      %v3450 = vld [vmem:[#allocation2 + $0xd8] sm:$0xf]
      %v3451 = vld [vmem:[#allocation2 + $0xdc] sm:$0xf]
      %v3452 = vld [vmem:[#allocation2 + $0xe8] sm:$0xf]
      %v3453 = vld [vmem:[#allocation2 + $0xec] sm:$0xf]
      %v3454 = vld [vmem:[#allocation2 + $0xf8] sm:$0xf]
      %v3455 = vld [vmem:[#allocation2 + $0xfc] sm:$0xf]
      %v3504 = vunpack.c.l.b16 %v3280
      %v3505 = vunpack.c.l.b16 %v3281
      %v3506 = vunpack.c.l.b16 %v3282
      %v3507 = vunpack.c.l.b16 %v3283
      %v3508 = vunpack.c.l.b16 %v3284
      %v3509 = vunpack.c.l.b16 %v3285
      %v3510 = vunpack.c.l.b16 %v3286
      %v3511 = vunpack.c.l.b16 %v3287
      %v3512 = vunpack.c.l.b16 %v3288
      %v3513 = vunpack.c.l.b16 %v3289
      %v3514 = vunpack.c.l.b16 %v3290
      %v3515 = vunpack.c.l.b16 %v3291
      %v3516 = vunpack.c.l.b16 %v3292
      %v3517 = vunpack.c.l.b16 %v3293
      %v3518 = vunpack.c.l.b16 %v3294
      %v3519 = vunpack.c.l.b16 %v3295
      %v3520 = vunpack.c.l.b16 %v3296
      %v3521 = vunpack.c.l.b16 %v3297
      %v3522 = vunpack.c.l.b16 %v3298
      %v3523 = vunpack.c.l.b16 %v3299
      %v3524 = vunpack.c.l.b16 %v3300
      %v3525 = vunpack.c.l.b16 %v3301
      %v3526 = vunpack.c.l.b16 %v3302
      %v3527 = vunpack.c.l.b16 %v3303
      %v3528 = vunpack.c.l.b16 %v3304
      %v3529 = vunpack.c.l.b16 %v3305
      %v3530 = vunpack.c.l.b16 %v3306
      %v3531 = vunpack.c.l.b16 %v3307
      %v3532 = vunpack.c.l.b16 %v3308
      %v3533 = vunpack.c.l.b16 %v3309
      %v3534 = vunpack.c.l.b16 %v3310
      %v3535 = vunpack.c.l.b16 %v3311
      %v3536 = vunpack.c.l.b16 %v3312
      %v3537 = vunpack.c.l.b16 %v3313
      %v3538 = vunpack.c.l.b16 %v3314
      %v3539 = vunpack.c.l.b16 %v3315
      %v3540 = vunpack.c.l.b16 %v3316
      %v3541 = vunpack.c.l.b16 %v3317
      %v3542 = vunpack.c.l.b16 %v3318
      %v3543 = vunpack.c.l.b16 %v3319
      %v3544 = vunpack.c.l.b16 %v3320
      %v3545 = vunpack.c.l.b16 %v3321
      %v3546 = vunpack.c.l.b16 %v3322
      %v3547 = vunpack.c.l.b16 %v3323
      %v3548 = vunpack.c.l.b16 %v3324
      %v3549 = vunpack.c.l.b16 %v3325
      %v3550 = vunpack.c.l.b16 %v3326
      %v3551 = vunpack.c.l.b16 %v3327
      %v3552 = vpack.c.b16 %v3505, %v3504
      %v3553 = vpack.c.b16 %v3506, %v3506
      %v3554 = vpack.c.b16 %v3508, %v3507
      %v3555 = vpack.c.b16 %v3509, %v3509
      %v3556 = vpack.c.b16 %v3511, %v3510
      %v3557 = vpack.c.b16 %v3512, %v3512
      %v3558 = vpack.c.b16 %v3514, %v3513
      %v3559 = vpack.c.b16 %v3515, %v3515
      %v3560 = vpack.c.b16 %v3517, %v3516
      %v3561 = vpack.c.b16 %v3518, %v3518
      %v3562 = vpack.c.b16 %v3520, %v3519
      %v3563 = vpack.c.b16 %v3521, %v3521
      %v3564 = vpack.c.b16 %v3523, %v3522
      %v3565 = vpack.c.b16 %v3524, %v3524
      %v3566 = vpack.c.b16 %v3526, %v3525
      %v3567 = vpack.c.b16 %v3527, %v3527
      %v3568 = vpack.c.b16 %v3529, %v3528
      %v3569 = vpack.c.b16 %v3530, %v3530
      %v3570 = vpack.c.b16 %v3532, %v3531
      %v3571 = vpack.c.b16 %v3533, %v3533
      %v3572 = vpack.c.b16 %v3535, %v3534
      %v3573 = vpack.c.b16 %v3536, %v3536
      %v3574 = vpack.c.b16 %v3538, %v3537
      %v3575 = vpack.c.b16 %v3539, %v3539
      %v3576 = vpack.c.b16 %v3541, %v3540
      %v3577 = vpack.c.b16 %v3542, %v3542
      %v3578 = vpack.c.b16 %v3544, %v3543
      %v3579 = vpack.c.b16 %v3545, %v3545
      %v3580 = vpack.c.b16 %v3547, %v3546
      %v3581 = vpack.c.b16 %v3548, %v3548
      %v3582 = vpack.c.b16 %v3550, %v3549
      %v3583 = vpack.c.b16 %v3551, %v3551
      %v3632 = vunpack.c.l.b16 %v3328
      %v3633 = vunpack.c.l.b16 %v3329
      %v3634 = vunpack.c.l.b16 %v3330
      %v3635 = vunpack.c.l.b16 %v3331
      %v3636 = vunpack.c.l.b16 %v3332
      %v3637 = vunpack.c.l.b16 %v3333
      %v3638 = vunpack.c.l.b16 %v3334
      %v3639 = vunpack.c.l.b16 %v3335
      %v3640 = vunpack.c.l.b16 %v3336
      %v3641 = vunpack.c.l.b16 %v3337
      %v3642 = vunpack.c.l.b16 %v3338
      %v3643 = vunpack.c.l.b16 %v3339
      %v3644 = vunpack.c.l.b16 %v3340
      %v3645 = vunpack.c.l.b16 %v3341
      %v3646 = vunpack.c.l.b16 %v3342
      %v3647 = vunpack.c.l.b16 %v3343
      %v3648 = vunpack.c.l.b16 %v3344
      %v3649 = vunpack.c.l.b16 %v3345
      %v3650 = vunpack.c.l.b16 %v3346
      %v3651 = vunpack.c.l.b16 %v3347
      %v3652 = vunpack.c.l.b16 %v3348
      %v3653 = vunpack.c.l.b16 %v3349
      %v3654 = vunpack.c.l.b16 %v3350
      %v3655 = vunpack.c.l.b16 %v3351
      %v3656 = vunpack.c.l.b16 %v3352
      %v3657 = vunpack.c.l.b16 %v3353
      %v3658 = vunpack.c.l.b16 %v3354
      %v3659 = vunpack.c.l.b16 %v3355
      %v3660 = vunpack.c.l.b16 %v3356
      %v3661 = vunpack.c.l.b16 %v3357
      %v3662 = vunpack.c.l.b16 %v3358
      %v3663 = vunpack.c.l.b16 %v3359
      %v3664 = vunpack.c.l.b16 %v3360
      %v3665 = vunpack.c.l.b16 %v3361
      %v3666 = vunpack.c.l.b16 %v3362
      %v3667 = vunpack.c.l.b16 %v3363
      %v3668 = vunpack.c.l.b16 %v3364
      %v3669 = vunpack.c.l.b16 %v3365
      %v3670 = vunpack.c.l.b16 %v3366
      %v3671 = vunpack.c.l.b16 %v3367
      %v3672 = vunpack.c.l.b16 %v3368
      %v3673 = vunpack.c.l.b16 %v3369
      %v3674 = vunpack.c.l.b16 %v3370
      %v3675 = vunpack.c.l.b16 %v3371
      %v3676 = vunpack.c.l.b16 %v3372
      %v3677 = vunpack.c.l.b16 %v3373
      %v3678 = vunpack.c.l.b16 %v3374
      %v3679 = vunpack.c.l.b16 %v3375
      %v3680 = vpack.c.b16 %v3633, %v3632
      %v3681 = vpack.c.b16 %v3634, %v3634
      %v3682 = vpack.c.b16 %v3636, %v3635
      %v3683 = vpack.c.b16 %v3637, %v3637
      %v3684 = vpack.c.b16 %v3639, %v3638
      %v3685 = vpack.c.b16 %v3640, %v3640
      %v3686 = vpack.c.b16 %v3642, %v3641
      %v3687 = vpack.c.b16 %v3643, %v3643
      %v3688 = vpack.c.b16 %v3645, %v3644
      %v3689 = vpack.c.b16 %v3646, %v3646
      %v3690 = vpack.c.b16 %v3648, %v3647
      %v3691 = vpack.c.b16 %v3649, %v3649
      %v3692 = vpack.c.b16 %v3651, %v3650
      %v3693 = vpack.c.b16 %v3652, %v3652
      %v3694 = vpack.c.b16 %v3654, %v3653
      %v3695 = vpack.c.b16 %v3655, %v3655
      %v3696 = vpack.c.b16 %v3657, %v3656
      %v3697 = vpack.c.b16 %v3658, %v3658
      %v3698 = vpack.c.b16 %v3660, %v3659
      %v3699 = vpack.c.b16 %v3661, %v3661
      %v3700 = vpack.c.b16 %v3663, %v3662
      %v3701 = vpack.c.b16 %v3664, %v3664
      %v3702 = vpack.c.b16 %v3666, %v3665
      %v3703 = vpack.c.b16 %v3667, %v3667
      %v3704 = vpack.c.b16 %v3669, %v3668
      %v3705 = vpack.c.b16 %v3670, %v3670
      %v3706 = vpack.c.b16 %v3672, %v3671
      %v3707 = vpack.c.b16 %v3673, %v3673
      %v3708 = vpack.c.b16 %v3675, %v3674
      %v3709 = vpack.c.b16 %v3676, %v3676
      %v3710 = vpack.c.b16 %v3678, %v3677
      %v3711 = vpack.c.b16 %v3679, %v3679
      %vm3712 = vsmask.f32 7424
      %v3714 = vshrl.u32 %v3680, 16
      %v3716 = vshll.u32 %v3680, 16
      %v3718 = vrot.slane %v3716, 1
      %v3719 = vor.u32 %v3714, %v3718
      %v3721 = vshll.u32 %v3681, 16
      %v3723 = vrot.slane %v3721, 1
      %v3724 = vsel %vm3712, %v3719, %v3723
      %v3725 = vshrl.u32 %v3681, 16
      %v3728 = vshrl.u32 %v3682, 16
      %v3730 = vshll.u32 %v3682, 16
      %v3732 = vrot.slane %v3730, 1
      %v3733 = vor.u32 %v3728, %v3732
      %v3735 = vshll.u32 %v3683, 16
      %v3737 = vrot.slane %v3735, 1
      %v3738 = vsel %vm3712, %v3733, %v3737
      %v3739 = vshrl.u32 %v3683, 16
      %v3742 = vshrl.u32 %v3684, 16
      %v3744 = vshll.u32 %v3684, 16
      %v3746 = vrot.slane %v3744, 1
      %v3747 = vor.u32 %v3742, %v3746
      %v3749 = vshll.u32 %v3685, 16
      %v3751 = vrot.slane %v3749, 1
      %v3752 = vsel %vm3712, %v3747, %v3751
      %v3753 = vshrl.u32 %v3685, 16
      %v3756 = vshrl.u32 %v3686, 16
      %v3758 = vshll.u32 %v3686, 16
      %v3760 = vrot.slane %v3758, 1
      %v3761 = vor.u32 %v3756, %v3760
      %v3763 = vshll.u32 %v3687, 16
      %v3765 = vrot.slane %v3763, 1
      %v3766 = vsel %vm3712, %v3761, %v3765
      %v3767 = vshrl.u32 %v3687, 16
      %v3770 = vshrl.u32 %v3688, 16
      %v3772 = vshll.u32 %v3688, 16
      %v3774 = vrot.slane %v3772, 1
      %v3775 = vor.u32 %v3770, %v3774
      %v3777 = vshll.u32 %v3689, 16
      %v3779 = vrot.slane %v3777, 1
      %v3780 = vsel %vm3712, %v3775, %v3779
      %v3781 = vshrl.u32 %v3689, 16
      %v3784 = vshrl.u32 %v3690, 16
      %v3786 = vshll.u32 %v3690, 16
      %v3788 = vrot.slane %v3786, 1
      %v3789 = vor.u32 %v3784, %v3788
      %v3791 = vshll.u32 %v3691, 16
      %v3793 = vrot.slane %v3791, 1
      %v3794 = vsel %vm3712, %v3789, %v3793
      %v3795 = vshrl.u32 %v3691, 16
      %v3798 = vshrl.u32 %v3692, 16
      %v3800 = vshll.u32 %v3692, 16
      %v3802 = vrot.slane %v3800, 1
      %v3803 = vor.u32 %v3798, %v3802
      %v3805 = vshll.u32 %v3693, 16
      %v3807 = vrot.slane %v3805, 1
      %v3808 = vsel %vm3712, %v3803, %v3807
      %v3809 = vshrl.u32 %v3693, 16
      %v3812 = vshrl.u32 %v3694, 16
      %v3814 = vshll.u32 %v3694, 16
      %v3816 = vrot.slane %v3814, 1
      %v3817 = vor.u32 %v3812, %v3816
      %v3819 = vshll.u32 %v3695, 16
      %v3821 = vrot.slane %v3819, 1
      %v3822 = vsel %vm3712, %v3817, %v3821
      %v3823 = vshrl.u32 %v3695, 16
      %v3826 = vshrl.u32 %v3696, 16
      %v3828 = vshll.u32 %v3696, 16
      %v3830 = vrot.slane %v3828, 1
      %v3831 = vor.u32 %v3826, %v3830
      %v3833 = vshll.u32 %v3697, 16
      %v3835 = vrot.slane %v3833, 1
      %v3836 = vsel %vm3712, %v3831, %v3835
      %v3837 = vshrl.u32 %v3697, 16
      %v3840 = vshrl.u32 %v3698, 16
      %v3842 = vshll.u32 %v3698, 16
      %v3844 = vrot.slane %v3842, 1
      %v3845 = vor.u32 %v3840, %v3844
      %v3847 = vshll.u32 %v3699, 16
      %v3849 = vrot.slane %v3847, 1
      %v3850 = vsel %vm3712, %v3845, %v3849
      %v3851 = vshrl.u32 %v3699, 16
      %v3854 = vshrl.u32 %v3700, 16
      %v3856 = vshll.u32 %v3700, 16
      %v3858 = vrot.slane %v3856, 1
      %v3859 = vor.u32 %v3854, %v3858
      %v3861 = vshll.u32 %v3701, 16
      %v3863 = vrot.slane %v3861, 1
      %v3864 = vsel %vm3712, %v3859, %v3863
      %v3865 = vshrl.u32 %v3701, 16
      %v3868 = vshrl.u32 %v3702, 16
      %v3870 = vshll.u32 %v3702, 16
      %v3872 = vrot.slane %v3870, 1
      %v3873 = vor.u32 %v3868, %v3872
      %v3875 = vshll.u32 %v3703, 16
      %v3877 = vrot.slane %v3875, 1
      %v3878 = vsel %vm3712, %v3873, %v3877
      %v3879 = vshrl.u32 %v3703, 16
      %v3882 = vshrl.u32 %v3704, 16
      %v3884 = vshll.u32 %v3704, 16
      %v3886 = vrot.slane %v3884, 1
      %v3887 = vor.u32 %v3882, %v3886
      %v3889 = vshll.u32 %v3705, 16
      %v3891 = vrot.slane %v3889, 1
      %v3892 = vsel %vm3712, %v3887, %v3891
      %v3893 = vshrl.u32 %v3705, 16
      %v3896 = vshrl.u32 %v3706, 16
      %v3898 = vshll.u32 %v3706, 16
      %v3900 = vrot.slane %v3898, 1
      %v3901 = vor.u32 %v3896, %v3900
      %v3903 = vshll.u32 %v3707, 16
      %v3905 = vrot.slane %v3903, 1
      %v3906 = vsel %vm3712, %v3901, %v3905
      %v3907 = vshrl.u32 %v3707, 16
      %v3910 = vshrl.u32 %v3708, 16
      %v3912 = vshll.u32 %v3708, 16
      %v3914 = vrot.slane %v3912, 1
      %v3915 = vor.u32 %v3910, %v3914
      %v3917 = vshll.u32 %v3709, 16
      %v3919 = vrot.slane %v3917, 1
      %v3920 = vsel %vm3712, %v3915, %v3919
      %v3921 = vshrl.u32 %v3709, 16
      %v3924 = vshrl.u32 %v3710, 16
      %v3926 = vshll.u32 %v3710, 16
      %v3928 = vrot.slane %v3926, 1
      %v3929 = vor.u32 %v3924, %v3928
      %v3931 = vshll.u32 %v3711, 16
      %v3933 = vrot.slane %v3931, 1
      %v3934 = vsel %vm3712, %v3929, %v3933
      %v3935 = vshrl.u32 %v3711, 16
      %v3985 = vunpack.c.l.b16 %v3376
      %v3986 = vunpack.c.l.b16 %v3377
      %v3987 = vunpack.c.l.b16 %v3378
      %v3988 = vunpack.c.l.b16 %v3379
      %v3989 = vunpack.c.l.b16 %v3380
      %v3990 = vunpack.c.l.b16 %v3381
      %v3991 = vunpack.c.l.b16 %v3382
      %v3992 = vunpack.c.l.b16 %v3383
      %v3993 = vunpack.c.l.b16 %v3384
      %v3994 = vunpack.c.l.b16 %v3385
      %v3995 = vunpack.c.l.b16 %v3386
      %v3996 = vunpack.c.l.b16 %v3387
      %v3997 = vunpack.c.l.b16 %v3388
      %v3998 = vunpack.c.l.b16 %v3389
      %v3999 = vunpack.c.l.b16 %v3390
      %v4000 = vunpack.c.l.b16 %v3391
      %v4001 = vunpack.c.l.b16 %v3392
      %v4002 = vunpack.c.l.b16 %v3393
      %v4003 = vunpack.c.l.b16 %v3394
      %v4004 = vunpack.c.l.b16 %v3395
      %v4005 = vunpack.c.l.b16 %v3396
      %v4006 = vunpack.c.l.b16 %v3397
      %v4007 = vunpack.c.l.b16 %v3398
      %v4008 = vunpack.c.l.b16 %v3399
      %v4009 = vunpack.c.l.b16 %v3400
      %v4010 = vunpack.c.l.b16 %v3401
      %v4011 = vunpack.c.l.b16 %v3402
      %v4012 = vunpack.c.l.b16 %v3403
      %v4013 = vunpack.c.l.b16 %v3404
      %v4014 = vunpack.c.l.b16 %v3405
      %v4015 = vunpack.c.l.b16 %v3406
      %v4016 = vunpack.c.l.b16 %v3407
      %v4017 = vunpack.c.l.b16 %v3408
      %v4018 = vunpack.c.l.b16 %v3409
      %v4019 = vunpack.c.l.b16 %v3410
      %v4020 = vunpack.c.l.b16 %v3411
      %v4021 = vunpack.c.l.b16 %v3412
      %v4022 = vunpack.c.l.b16 %v3413
      %v4023 = vunpack.c.l.b16 %v3414
      %v4024 = vunpack.c.l.b16 %v3415
      %v4025 = vunpack.c.l.b16 %v3416
      %v4026 = vunpack.c.l.b16 %v3417
      %v4027 = vunpack.c.l.b16 %v3418
      %v4028 = vunpack.c.l.b16 %v3419
      %v4029 = vunpack.c.l.b16 %v3420
      %v4030 = vunpack.c.l.b16 %v3421
      %v4031 = vunpack.c.l.b16 %v3422
      %v4032 = vunpack.c.l.b16 %v3423
      %v4033 = vpack.c.b16 %v3986, %v3985
      %v4034 = vpack.c.b16 %v3987, %v3987
      %v4035 = vpack.c.b16 %v3989, %v3988
      %v4036 = vpack.c.b16 %v3990, %v3990
      %v4037 = vpack.c.b16 %v3992, %v3991
      %v4038 = vpack.c.b16 %v3993, %v3993
      %v4039 = vpack.c.b16 %v3995, %v3994
      %v4040 = vpack.c.b16 %v3996, %v3996
      %v4041 = vpack.c.b16 %v3998, %v3997
      %v4042 = vpack.c.b16 %v3999, %v3999
      %v4043 = vpack.c.b16 %v4001, %v4000
      %v4044 = vpack.c.b16 %v4002, %v4002
      %v4045 = vpack.c.b16 %v4004, %v4003
      %v4046 = vpack.c.b16 %v4005, %v4005
      %v4047 = vpack.c.b16 %v4007, %v4006
      %v4048 = vpack.c.b16 %v4008, %v4008
      %v4049 = vpack.c.b16 %v4010, %v4009
      %v4050 = vpack.c.b16 %v4011, %v4011
      %v4051 = vpack.c.b16 %v4013, %v4012
      %v4052 = vpack.c.b16 %v4014, %v4014
      %v4053 = vpack.c.b16 %v4016, %v4015
      %v4054 = vpack.c.b16 %v4017, %v4017
      %v4055 = vpack.c.b16 %v4019, %v4018
      %v4056 = vpack.c.b16 %v4020, %v4020
      %v4057 = vpack.c.b16 %v4022, %v4021
      %v4058 = vpack.c.b16 %v4023, %v4023
      %v4059 = vpack.c.b16 %v4025, %v4024
      %v4060 = vpack.c.b16 %v4026, %v4026
      %v4061 = vpack.c.b16 %v4028, %v4027
      %v4062 = vpack.c.b16 %v4029, %v4029
      %v4063 = vpack.c.b16 %v4031, %v4030
      %v4064 = vpack.c.b16 %v4032, %v4032
      %vm4065 = vsmask.f32 6400
      %v4067 = vshrl.u32 %v4033, 16
      %v4069 = vrot.slane %v4067, 1
      %v4070 = vshll.u32 %v4033, 16
      %v4072 = vrot.slane %v4070, 2
      %v4073 = vor.u32 %v4069, %v4072
      %v4075 = vshrl.u32 %v4034, 16
      %v4077 = vrot.slane %v4075, 1
      %v4078 = vshll.u32 %v4034, 16
      %v4080 = vrot.slane %v4078, 2
      %v4081 = vor.u32 %v4077, %v4080
      %v4082 = vsel %vm4065, %v4073, %v4081
      %v4084 = vshrl.u32 %v4035, 16
      %v4086 = vrot.slane %v4084, 1
      %v4087 = vshll.u32 %v4035, 16
      %v4089 = vrot.slane %v4087, 2
      %v4090 = vor.u32 %v4086, %v4089
      %v4092 = vshrl.u32 %v4036, 16
      %v4094 = vrot.slane %v4092, 1
      %v4095 = vshll.u32 %v4036, 16
      %v4097 = vrot.slane %v4095, 2
      %v4098 = vor.u32 %v4094, %v4097
      %v4099 = vsel %vm4065, %v4090, %v4098
      %v4101 = vshrl.u32 %v4037, 16
      %v4103 = vrot.slane %v4101, 1
      %v4104 = vshll.u32 %v4037, 16
      %v4106 = vrot.slane %v4104, 2
      %v4107 = vor.u32 %v4103, %v4106
      %v4109 = vshrl.u32 %v4038, 16
      %v4111 = vrot.slane %v4109, 1
      %v4112 = vshll.u32 %v4038, 16
      %v4114 = vrot.slane %v4112, 2
      %v4115 = vor.u32 %v4111, %v4114
      %v4116 = vsel %vm4065, %v4107, %v4115
      %v4118 = vshrl.u32 %v4039, 16
      %v4120 = vrot.slane %v4118, 1
      %v4121 = vshll.u32 %v4039, 16
      %v4123 = vrot.slane %v4121, 2
      %v4124 = vor.u32 %v4120, %v4123
      %v4126 = vshrl.u32 %v4040, 16
      %v4128 = vrot.slane %v4126, 1
      %v4129 = vshll.u32 %v4040, 16
      %v4131 = vrot.slane %v4129, 2
      %v4132 = vor.u32 %v4128, %v4131
      %v4133 = vsel %vm4065, %v4124, %v4132
      %v4135 = vshrl.u32 %v4041, 16
      %v4137 = vrot.slane %v4135, 1
      %v4138 = vshll.u32 %v4041, 16
      %v4140 = vrot.slane %v4138, 2
      %v4141 = vor.u32 %v4137, %v4140
      %v4143 = vshrl.u32 %v4042, 16
      %v4145 = vrot.slane %v4143, 1
      %v4146 = vshll.u32 %v4042, 16
      %v4148 = vrot.slane %v4146, 2
      %v4149 = vor.u32 %v4145, %v4148
      %v4150 = vsel %vm4065, %v4141, %v4149
      %v4152 = vshrl.u32 %v4043, 16
      %v4154 = vrot.slane %v4152, 1
      %v4155 = vshll.u32 %v4043, 16
      %v4157 = vrot.slane %v4155, 2
      %v4158 = vor.u32 %v4154, %v4157
      %v4160 = vshrl.u32 %v4044, 16
      %v4162 = vrot.slane %v4160, 1
      %v4163 = vshll.u32 %v4044, 16
      %v4165 = vrot.slane %v4163, 2
      %v4166 = vor.u32 %v4162, %v4165
      %v4167 = vsel %vm4065, %v4158, %v4166
      %v4169 = vshrl.u32 %v4045, 16
      %v4171 = vrot.slane %v4169, 1
      %v4172 = vshll.u32 %v4045, 16
      %v4174 = vrot.slane %v4172, 2
      %v4175 = vor.u32 %v4171, %v4174
      %v4177 = vshrl.u32 %v4046, 16
      %v4179 = vrot.slane %v4177, 1
      %v4180 = vshll.u32 %v4046, 16
      %v4182 = vrot.slane %v4180, 2
      %v4183 = vor.u32 %v4179, %v4182
      %v4184 = vsel %vm4065, %v4175, %v4183
      %v4186 = vshrl.u32 %v4047, 16
      %v4188 = vrot.slane %v4186, 1
      %v4189 = vshll.u32 %v4047, 16
      %v4191 = vrot.slane %v4189, 2
      %v4192 = vor.u32 %v4188, %v4191
      %v4194 = vshrl.u32 %v4048, 16
      %v4196 = vrot.slane %v4194, 1
      %v4197 = vshll.u32 %v4048, 16
      %v4199 = vrot.slane %v4197, 2
      %v4200 = vor.u32 %v4196, %v4199
      %v4201 = vsel %vm4065, %v4192, %v4200
      %v4203 = vshrl.u32 %v4049, 16
      %v4205 = vrot.slane %v4203, 1
      %v4206 = vshll.u32 %v4049, 16
      %v4208 = vrot.slane %v4206, 2
      %v4209 = vor.u32 %v4205, %v4208
      %v4211 = vshrl.u32 %v4050, 16
      %v4213 = vrot.slane %v4211, 1
      %v4214 = vshll.u32 %v4050, 16
      %v4216 = vrot.slane %v4214, 2
      %v4217 = vor.u32 %v4213, %v4216
      %v4218 = vsel %vm4065, %v4209, %v4217
      %v4220 = vshrl.u32 %v4051, 16
      %v4222 = vrot.slane %v4220, 1
      %v4223 = vshll.u32 %v4051, 16
      %v4225 = vrot.slane %v4223, 2
      %v4226 = vor.u32 %v4222, %v4225
      %v4228 = vshrl.u32 %v4052, 16
      %v4230 = vrot.slane %v4228, 1
      %v4231 = vshll.u32 %v4052, 16
      %v4233 = vrot.slane %v4231, 2
      %v4234 = vor.u32 %v4230, %v4233
      %v4235 = vsel %vm4065, %v4226, %v4234
      %v4237 = vshrl.u32 %v4053, 16
      %v4239 = vrot.slane %v4237, 1
      %v4240 = vshll.u32 %v4053, 16
      %v4242 = vrot.slane %v4240, 2
      %v4243 = vor.u32 %v4239, %v4242
      %v4245 = vshrl.u32 %v4054, 16
      %v4247 = vrot.slane %v4245, 1
      %v4248 = vshll.u32 %v4054, 16
      %v4250 = vrot.slane %v4248, 2
      %v4251 = vor.u32 %v4247, %v4250
      %v4252 = vsel %vm4065, %v4243, %v4251
      %v4254 = vshrl.u32 %v4055, 16
      %v4256 = vrot.slane %v4254, 1
      %v4257 = vshll.u32 %v4055, 16
      %v4259 = vrot.slane %v4257, 2
      %v4260 = vor.u32 %v4256, %v4259
      %v4262 = vshrl.u32 %v4056, 16
      %v4264 = vrot.slane %v4262, 1
      %v4265 = vshll.u32 %v4056, 16
      %v4267 = vrot.slane %v4265, 2
      %v4268 = vor.u32 %v4264, %v4267
      %v4269 = vsel %vm4065, %v4260, %v4268
      %v4271 = vshrl.u32 %v4057, 16
      %v4273 = vrot.slane %v4271, 1
      %v4274 = vshll.u32 %v4057, 16
      %v4276 = vrot.slane %v4274, 2
      %v4277 = vor.u32 %v4273, %v4276
      %v4279 = vshrl.u32 %v4058, 16
      %v4281 = vrot.slane %v4279, 1
      %v4282 = vshll.u32 %v4058, 16
      %v4284 = vrot.slane %v4282, 2
      %v4285 = vor.u32 %v4281, %v4284
      %v4286 = vsel %vm4065, %v4277, %v4285
      %v4288 = vshrl.u32 %v4059, 16
      %v4290 = vrot.slane %v4288, 1
      %v4291 = vshll.u32 %v4059, 16
      %v4293 = vrot.slane %v4291, 2
      %v4294 = vor.u32 %v4290, %v4293
      %v4296 = vshrl.u32 %v4060, 16
      %v4298 = vrot.slane %v4296, 1
      %v4299 = vshll.u32 %v4060, 16
      %v4301 = vrot.slane %v4299, 2
      %v4302 = vor.u32 %v4298, %v4301
      %v4303 = vsel %vm4065, %v4294, %v4302
      %v4305 = vshrl.u32 %v4061, 16
      %v4307 = vrot.slane %v4305, 1
      %v4308 = vshll.u32 %v4061, 16
      %v4310 = vrot.slane %v4308, 2
      %v4311 = vor.u32 %v4307, %v4310
      %v4313 = vshrl.u32 %v4062, 16
      %v4315 = vrot.slane %v4313, 1
      %v4316 = vshll.u32 %v4062, 16
      %v4318 = vrot.slane %v4316, 2
      %v4319 = vor.u32 %v4315, %v4318
      %v4320 = vsel %vm4065, %v4311, %v4319
      %v4322 = vshrl.u32 %v4063, 16
      %v4324 = vrot.slane %v4322, 1
      %v4325 = vshll.u32 %v4063, 16
      %v4327 = vrot.slane %v4325, 2
      %v4328 = vor.u32 %v4324, %v4327
      %v4330 = vshrl.u32 %v4064, 16
      %v4332 = vrot.slane %v4330, 1
      %v4333 = vshll.u32 %v4064, 16
      %v4335 = vrot.slane %v4333, 2
      %v4336 = vor.u32 %v4332, %v4335
      %v4337 = vsel %vm4065, %v4328, %v4336
      %v4370 = vunpack.c.l.b16 %v3424
      %v4371 = vunpack.c.l.b16 %v3425
      %v4372 = vunpack.c.l.b16 %v3426
      %v4373 = vunpack.c.l.b16 %v3427
      %v4374 = vunpack.c.l.b16 %v3428
      %v4375 = vunpack.c.l.b16 %v3429
      %v4376 = vunpack.c.l.b16 %v3430
      %v4377 = vunpack.c.l.b16 %v3431
      %v4378 = vunpack.c.l.b16 %v3432
      %v4379 = vunpack.c.l.b16 %v3433
      %v4380 = vunpack.c.l.b16 %v3434
      %v4381 = vunpack.c.l.b16 %v3435
      %v4382 = vunpack.c.l.b16 %v3436
      %v4383 = vunpack.c.l.b16 %v3437
      %v4384 = vunpack.c.l.b16 %v3438
      %v4385 = vunpack.c.l.b16 %v3439
      %v4386 = vunpack.c.l.b16 %v3440
      %v4387 = vunpack.c.l.b16 %v3441
      %v4388 = vunpack.c.l.b16 %v3442
      %v4389 = vunpack.c.l.b16 %v3443
      %v4390 = vunpack.c.l.b16 %v3444
      %v4391 = vunpack.c.l.b16 %v3445
      %v4392 = vunpack.c.l.b16 %v3446
      %v4393 = vunpack.c.l.b16 %v3447
      %v4394 = vunpack.c.l.b16 %v3448
      %v4395 = vunpack.c.l.b16 %v3449
      %v4396 = vunpack.c.l.b16 %v3450
      %v4397 = vunpack.c.l.b16 %v3451
      %v4398 = vunpack.c.l.b16 %v3452
      %v4399 = vunpack.c.l.b16 %v3453
      %v4400 = vunpack.c.l.b16 %v3454
      %v4401 = vunpack.c.l.b16 %v3455
      %v4402 = vpack.c.b16 %v4371, %v4370
      %v4403 = vpack.c.b16 %v4373, %v4372
      %v4404 = vpack.c.b16 %v4375, %v4374
      %v4405 = vpack.c.b16 %v4377, %v4376
      %v4406 = vpack.c.b16 %v4379, %v4378
      %v4407 = vpack.c.b16 %v4381, %v4380
      %v4408 = vpack.c.b16 %v4383, %v4382
      %v4409 = vpack.c.b16 %v4385, %v4384
      %v4410 = vpack.c.b16 %v4387, %v4386
      %v4411 = vpack.c.b16 %v4389, %v4388
      %v4412 = vpack.c.b16 %v4391, %v4390
      %v4413 = vpack.c.b16 %v4393, %v4392
      %v4414 = vpack.c.b16 %v4395, %v4394
      %v4415 = vpack.c.b16 %v4397, %v4396
      %v4416 = vpack.c.b16 %v4399, %v4398
      %v4417 = vpack.c.b16 %v4401, %v4400
      %v4419 = vshrl.u32 %v4402, 16
      %v4421 = vrot.slane %v4419, 7
      %v4422 = vshll.u32 %v4402, 16
      %v4424 = vor.u32 %v4421, %v4422
      %v4426 = vshrl.u32 %v4403, 16
      %v4428 = vrot.slane %v4426, 7
      %v4429 = vshll.u32 %v4403, 16
      %v4431 = vor.u32 %v4428, %v4429
      %v4433 = vshrl.u32 %v4404, 16
      %v4435 = vrot.slane %v4433, 7
      %v4436 = vshll.u32 %v4404, 16
      %v4438 = vor.u32 %v4435, %v4436
      %v4440 = vshrl.u32 %v4405, 16
      %v4442 = vrot.slane %v4440, 7
      %v4443 = vshll.u32 %v4405, 16
      %v4445 = vor.u32 %v4442, %v4443
      %v4447 = vshrl.u32 %v4406, 16
      %v4449 = vrot.slane %v4447, 7
      %v4450 = vshll.u32 %v4406, 16
      %v4452 = vor.u32 %v4449, %v4450
      %v4454 = vshrl.u32 %v4407, 16
      %v4456 = vrot.slane %v4454, 7
      %v4457 = vshll.u32 %v4407, 16
      %v4459 = vor.u32 %v4456, %v4457
      %v4461 = vshrl.u32 %v4408, 16
      %v4463 = vrot.slane %v4461, 7
      %v4464 = vshll.u32 %v4408, 16
      %v4466 = vor.u32 %v4463, %v4464
      %v4468 = vshrl.u32 %v4409, 16
      %v4470 = vrot.slane %v4468, 7
      %v4471 = vshll.u32 %v4409, 16
      %v4473 = vor.u32 %v4470, %v4471
      %v4475 = vshrl.u32 %v4410, 16
      %v4477 = vrot.slane %v4475, 7
      %v4478 = vshll.u32 %v4410, 16
      %v4480 = vor.u32 %v4477, %v4478
      %v4482 = vshrl.u32 %v4411, 16
      %v4484 = vrot.slane %v4482, 7
      %v4485 = vshll.u32 %v4411, 16
      %v4487 = vor.u32 %v4484, %v4485
      %v4489 = vshrl.u32 %v4412, 16
      %v4491 = vrot.slane %v4489, 7
      %v4492 = vshll.u32 %v4412, 16
      %v4494 = vor.u32 %v4491, %v4492
      %v4496 = vshrl.u32 %v4413, 16
      %v4498 = vrot.slane %v4496, 7
      %v4499 = vshll.u32 %v4413, 16
      %v4501 = vor.u32 %v4498, %v4499
      %v4503 = vshrl.u32 %v4414, 16
      %v4505 = vrot.slane %v4503, 7
      %v4506 = vshll.u32 %v4414, 16
      %v4508 = vor.u32 %v4505, %v4506
      %v4510 = vshrl.u32 %v4415, 16
      %v4512 = vrot.slane %v4510, 7
      %v4513 = vshll.u32 %v4415, 16
      %v4515 = vor.u32 %v4512, %v4513
      %v4517 = vshrl.u32 %v4416, 16
      %v4519 = vrot.slane %v4517, 7
      %v4520 = vshll.u32 %v4416, 16
      %v4522 = vor.u32 %v4519, %v4520
      %v4524 = vshrl.u32 %v4417, 16
      %v4526 = vrot.slane %v4524, 7
      %v4527 = vshll.u32 %v4417, 16
      %v4529 = vor.u32 %v4526, %v4527
      %v4532 = vsel %vm451, %v3552, %v3724
      %v4535 = vsel %vm451, %v3553, %v3725
      %v4538 = vsel %vm451, %v3554, %v3738
      %v4541 = vsel %vm451, %v3555, %v3739
      %v4544 = vsel %vm451, %v3556, %v3752
      %v4547 = vsel %vm451, %v3557, %v3753
      %v4550 = vsel %vm451, %v3558, %v3766
      %v4553 = vsel %vm451, %v3559, %v3767
      %v4556 = vsel %vm451, %v3560, %v3780
      %v4559 = vsel %vm451, %v3561, %v3781
      %v4562 = vsel %vm451, %v3562, %v3794
      %v4565 = vsel %vm451, %v3563, %v3795
      %v4568 = vsel %vm451, %v3564, %v3808
      %v4571 = vsel %vm451, %v3565, %v3809
      %v4574 = vsel %vm451, %v3566, %v3822
      %v4577 = vsel %vm451, %v3567, %v3823
      %v4580 = vsel %vm451, %v3568, %v3836
      %v4583 = vsel %vm451, %v3569, %v3837
      %v4586 = vsel %vm451, %v3570, %v3850
      %v4589 = vsel %vm451, %v3571, %v3851
      %v4592 = vsel %vm451, %v3572, %v3864
      %v4595 = vsel %vm451, %v3573, %v3865
      %v4598 = vsel %vm451, %v3574, %v3878
      %v4601 = vsel %vm451, %v3575, %v3879
      %v4604 = vsel %vm451, %v3576, %v3892
      %v4607 = vsel %vm451, %v3577, %v3893
      %v4610 = vsel %vm451, %v3578, %v3906
      %v4613 = vsel %vm451, %v3579, %v3907
      %v4616 = vsel %vm451, %v3580, %v3920
      %v4619 = vsel %vm451, %v3581, %v3921
      %v4622 = vsel %vm451, %v3582, %v3934
      %v4625 = vsel %vm451, %v3583, %v3935
      %v4627 = vsel %vm2329, %v4532, %v4082
      %v4629 = vsel %vm2329, %v4535, %v4077
      %v4631 = vsel %vm2329, %v4538, %v4099
      %v4633 = vsel %vm2329, %v4541, %v4094
      %v4635 = vsel %vm2329, %v4544, %v4116
      %v4637 = vsel %vm2329, %v4547, %v4111
      %v4639 = vsel %vm2329, %v4550, %v4133
      %v4641 = vsel %vm2329, %v4553, %v4128
      %v4643 = vsel %vm2329, %v4556, %v4150
      %v4645 = vsel %vm2329, %v4559, %v4145
      %v4647 = vsel %vm2329, %v4562, %v4167
      %v4649 = vsel %vm2329, %v4565, %v4162
      %v4651 = vsel %vm2329, %v4568, %v4184
      %v4653 = vsel %vm2329, %v4571, %v4179
      %v4655 = vsel %vm2329, %v4574, %v4201
      %v4657 = vsel %vm2329, %v4577, %v4196
      %v4659 = vsel %vm2329, %v4580, %v4218
      %v4661 = vsel %vm2329, %v4583, %v4213
      %v4663 = vsel %vm2329, %v4586, %v4235
      %v4665 = vsel %vm2329, %v4589, %v4230
      %v4667 = vsel %vm2329, %v4592, %v4252
      %v4669 = vsel %vm2329, %v4595, %v4247
      %v4671 = vsel %vm2329, %v4598, %v4269
      %v4673 = vsel %vm2329, %v4601, %v4264
      %v4675 = vsel %vm2329, %v4604, %v4286
      %v4677 = vsel %vm2329, %v4607, %v4281
      %v4679 = vsel %vm2329, %v4610, %v4303
      %v4681 = vsel %vm2329, %v4613, %v4298
      %v4683 = vsel %vm2329, %v4616, %v4320
      %v4685 = vsel %vm2329, %v4619, %v4315
      %v4687 = vsel %vm2329, %v4622, %v4337
      %v4689 = vsel %vm2329, %v4625, %v4332
      %v4691 = vsel %vm2394, %v4627, %v4424
      %v4693 = vsel %vm2394, %v4629, %v4421
      %v4695 = vsel %vm2394, %v4631, %v4431
      %v4697 = vsel %vm2394, %v4633, %v4428
      %v4699 = vsel %vm2394, %v4635, %v4438
      %v4701 = vsel %vm2394, %v4637, %v4435
      %v4703 = vsel %vm2394, %v4639, %v4445
      %v4705 = vsel %vm2394, %v4641, %v4442
      %v4707 = vsel %vm2394, %v4643, %v4452
      %v4709 = vsel %vm2394, %v4645, %v4449
      %v4711 = vsel %vm2394, %v4647, %v4459
      %v4713 = vsel %vm2394, %v4649, %v4456
      %v4715 = vsel %vm2394, %v4651, %v4466
      %v4717 = vsel %vm2394, %v4653, %v4463
      %v4719 = vsel %vm2394, %v4655, %v4473
      %v4721 = vsel %vm2394, %v4657, %v4470
      %v4723 = vsel %vm2394, %v4659, %v4480
      %v4725 = vsel %vm2394, %v4661, %v4477
      %v4727 = vsel %vm2394, %v4663, %v4487
      %v4729 = vsel %vm2394, %v4665, %v4484
      %v4731 = vsel %vm2394, %v4667, %v4494
      %v4733 = vsel %vm2394, %v4669, %v4491
      %v4735 = vsel %vm2394, %v4671, %v4501
      %v4737 = vsel %vm2394, %v4673, %v4498
      %v4739 = vsel %vm2394, %v4675, %v4508
      %v4741 = vsel %vm2394, %v4677, %v4505
      %v4743 = vsel %vm2394, %v4679, %v4515
      %v4745 = vsel %vm2394, %v4681, %v4512
      %v4747 = vsel %vm2394, %v4683, %v4522
      %v4749 = vsel %vm2394, %v4685, %v4519
      %v4751 = vsel %vm2394, %v4687, %v4529
      %v4753 = vsel %vm2394, %v4689, %v4526
      %v4754 = vshrl.u32 %v4691, 16
      %v4756 = vshll.u32 %v4691, 16
      %v4758 = vrot.slane %v4756, 1
      %v4759 = vor.u32 %v4754, %v4758
      %v4760 = vshll.u32 %v4693, 16
      %v4762 = vrot.slane %v4760, 1
      %v4763 = vsel %vm3712, %v4759, %v4762
      %v4764 = vshrl.u32 %v4695, 16
      %v4766 = vshll.u32 %v4695, 16
      %v4768 = vrot.slane %v4766, 1
      %v4769 = vor.u32 %v4764, %v4768
      %v4770 = vshll.u32 %v4697, 16
      %v4772 = vrot.slane %v4770, 1
      %v4773 = vsel %vm3712, %v4769, %v4772
      %v4774 = vshrl.u32 %v4699, 16
      %v4776 = vshll.u32 %v4699, 16
      %v4778 = vrot.slane %v4776, 1
      %v4779 = vor.u32 %v4774, %v4778
      %v4780 = vshll.u32 %v4701, 16
      %v4782 = vrot.slane %v4780, 1
      %v4783 = vsel %vm3712, %v4779, %v4782
      %v4784 = vshrl.u32 %v4703, 16
      %v4786 = vshll.u32 %v4703, 16
      %v4788 = vrot.slane %v4786, 1
      %v4789 = vor.u32 %v4784, %v4788
      %v4790 = vshll.u32 %v4705, 16
      %v4792 = vrot.slane %v4790, 1
      %v4793 = vsel %vm3712, %v4789, %v4792
      %v4794 = vshrl.u32 %v4707, 16
      %v4796 = vshll.u32 %v4707, 16
      %v4798 = vrot.slane %v4796, 1
      %v4799 = vor.u32 %v4794, %v4798
      %v4800 = vshll.u32 %v4709, 16
      %v4802 = vrot.slane %v4800, 1
      %v4803 = vsel %vm3712, %v4799, %v4802
      %v4804 = vshrl.u32 %v4711, 16
      %v4806 = vshll.u32 %v4711, 16
      %v4808 = vrot.slane %v4806, 1
      %v4809 = vor.u32 %v4804, %v4808
      %v4810 = vshll.u32 %v4713, 16
      %v4812 = vrot.slane %v4810, 1
      %v4813 = vsel %vm3712, %v4809, %v4812
      %v4814 = vshrl.u32 %v4715, 16
      %v4816 = vshll.u32 %v4715, 16
      %v4818 = vrot.slane %v4816, 1
      %v4819 = vor.u32 %v4814, %v4818
      %v4820 = vshll.u32 %v4717, 16
      %v4822 = vrot.slane %v4820, 1
      %v4823 = vsel %vm3712, %v4819, %v4822
      %v4824 = vshrl.u32 %v4719, 16
      %v4826 = vshll.u32 %v4719, 16
      %v4828 = vrot.slane %v4826, 1
      %v4829 = vor.u32 %v4824, %v4828
      %v4830 = vshll.u32 %v4721, 16
      %v4832 = vrot.slane %v4830, 1
      %v4833 = vsel %vm3712, %v4829, %v4832
      %v4834 = vshrl.u32 %v4723, 16
      %v4836 = vshll.u32 %v4723, 16
      %v4838 = vrot.slane %v4836, 1
      %v4839 = vor.u32 %v4834, %v4838
      %v4840 = vshll.u32 %v4725, 16
      %v4842 = vrot.slane %v4840, 1
      %v4843 = vsel %vm3712, %v4839, %v4842
      %v4844 = vshrl.u32 %v4727, 16
      %v4846 = vshll.u32 %v4727, 16
      %v4848 = vrot.slane %v4846, 1
      %v4849 = vor.u32 %v4844, %v4848
      %v4850 = vshll.u32 %v4729, 16
      %v4852 = vrot.slane %v4850, 1
      %v4853 = vsel %vm3712, %v4849, %v4852
      %v4854 = vshrl.u32 %v4731, 16
      %v4856 = vshll.u32 %v4731, 16
      %v4858 = vrot.slane %v4856, 1
      %v4859 = vor.u32 %v4854, %v4858
      %v4860 = vshll.u32 %v4733, 16
      %v4862 = vrot.slane %v4860, 1
      %v4863 = vsel %vm3712, %v4859, %v4862
      %v4864 = vshrl.u32 %v4735, 16
      %v4866 = vshll.u32 %v4735, 16
      %v4868 = vrot.slane %v4866, 1
      %v4869 = vor.u32 %v4864, %v4868
      %v4870 = vshll.u32 %v4737, 16
      %v4872 = vrot.slane %v4870, 1
      %v4873 = vsel %vm3712, %v4869, %v4872
      %v4874 = vshrl.u32 %v4739, 16
      %v4876 = vshll.u32 %v4739, 16
      %v4878 = vrot.slane %v4876, 1
      %v4879 = vor.u32 %v4874, %v4878
      %v4880 = vshll.u32 %v4741, 16
      %v4882 = vrot.slane %v4880, 1
      %v4883 = vsel %vm3712, %v4879, %v4882
      %v4884 = vshrl.u32 %v4743, 16
      %v4886 = vshll.u32 %v4743, 16
      %v4888 = vrot.slane %v4886, 1
      %v4889 = vor.u32 %v4884, %v4888
      %v4890 = vshll.u32 %v4745, 16
      %v4892 = vrot.slane %v4890, 1
      %v4893 = vsel %vm3712, %v4889, %v4892
      %v4894 = vshrl.u32 %v4747, 16
      %v4896 = vshll.u32 %v4747, 16
      %v4898 = vrot.slane %v4896, 1
      %v4899 = vor.u32 %v4894, %v4898
      %v4900 = vshll.u32 %v4749, 16
      %v4902 = vrot.slane %v4900, 1
      %v4903 = vsel %vm3712, %v4899, %v4902
      %v4904 = vshrl.u32 %v4751, 16
      %v4906 = vshll.u32 %v4751, 16
      %v4908 = vrot.slane %v4906, 1
      %v4909 = vor.u32 %v4904, %v4908
      %v4910 = vshll.u32 %v4753, 16
      %v4912 = vrot.slane %v4910, 1
      %v4913 = vsel %vm3712, %v4909, %v4912
      %s4914 = scalar_lea.vmem %s3, 16
      %v4915 = vld [vmem:[%s4914] sm:$0xf]
      %v4916 = vld [vmem:[%s4914 + $0x4] sm:$0xf]
      %v4919 = vunpack.c.l.b16 %v4915
      %v4920 = vunpack.c.l.b16 %v4916
      %v4921 = vpack.c.b16 %v4920, %v4919
      %v4924 = vsel %vm3015, %v4763, 0
      %v4927 = vsel %vm3015, %v4773, 0
      %v4930 = vsel %vm3015, %v4783, 0
      %v4933 = vsel %vm3015, %v4793, 0
      %v4936 = vsel %vm3015, %v4803, 0
      %v4939 = vsel %vm3015, %v4813, 0
      %v4942 = vsel %vm3015, %v4823, 0
      %v4945 = vsel %vm3015, %v4833, 0
      %v4948 = vsel %vm3015, %v4843, 0
      %v4951 = vsel %vm3015, %v4853, 0
      %v4954 = vsel %vm3015, %v4863, 0
      %v4957 = vsel %vm3015, %v4873, 0
      %v4960 = vsel %vm3015, %v4883, 0
      %v4963 = vsel %vm3015, %v4893, 0
      %v4966 = vsel %vm3015, %v4903, 0
      %v4969 = vsel %vm3015, %v4913, 0
      %4971 = vmatpush.bf16.msra.mxu0 0
      %4972 = vmatpush.bf16.msra.mxu0 0
      %4973 = vmatpush.bf16.msra.mxu0 0
      %4974 = vmatpush.bf16.msra.mxu0 0
      %4975 = vmatpush.bf16.msra.mxu0 0
      %4976 = vmatpush.bf16.msra.mxu0 0
      %4977 = vmatpush.bf16.msra.mxu0 0
      %4978 = vmatpush.bf16.msra.mxu0 %v4921
      %4979 = vmatmul.bf16.gmra.mxu0 %v4924
      %v4980 = vpop.f32.mrf.mxu0
      %v4981 = vadd.f32 0.0, %v4980
      %v4982 = vpop.f32.mrf.mxu0
      %v4983 = vadd.f32 0.0, %v4982
      %4984 = vmatmul.bf16.gmra.mxu0 %v4927
      %v4985 = vpop.f32.mrf.mxu0
      %v4986 = vadd.f32 0.0, %v4985
      %v4987 = vpop.f32.mrf.mxu0
      %v4988 = vadd.f32 0.0, %v4987
      %4989 = vmatmul.bf16.gmra.mxu0 %v4930
      %v4990 = vpop.f32.mrf.mxu0
      %v4991 = vadd.f32 0.0, %v4990
      %v4992 = vpop.f32.mrf.mxu0
      %v4993 = vadd.f32 0.0, %v4992
      %4994 = vmatmul.bf16.gmra.mxu0 %v4933
      %v4995 = vpop.f32.mrf.mxu0
      %v4996 = vadd.f32 0.0, %v4995
      %v4997 = vpop.f32.mrf.mxu0
      %v4998 = vadd.f32 0.0, %v4997
      %4999 = vmatmul.bf16.gmra.mxu0 %v4936
      %v5000 = vpop.f32.mrf.mxu0
      %v5001 = vadd.f32 0.0, %v5000
      %v5002 = vpop.f32.mrf.mxu0
      %v5003 = vadd.f32 0.0, %v5002
      %5004 = vmatmul.bf16.gmra.mxu0 %v4939
      %v5005 = vpop.f32.mrf.mxu0
      %v5006 = vadd.f32 0.0, %v5005
      %v5007 = vpop.f32.mrf.mxu0
      %v5008 = vadd.f32 0.0, %v5007
      %5009 = vmatmul.bf16.gmra.mxu0 %v4942
      %v5010 = vpop.f32.mrf.mxu0
      %v5011 = vadd.f32 0.0, %v5010
      %v5012 = vpop.f32.mrf.mxu0
      %v5013 = vadd.f32 0.0, %v5012
      %5014 = vmatmul.bf16.gmra.mxu0 %v4945
      %v5015 = vpop.f32.mrf.mxu0
      %v5016 = vadd.f32 0.0, %v5015
      %v5017 = vpop.f32.mrf.mxu0
      %v5018 = vadd.f32 0.0, %v5017
      %5019 = vmatmul.bf16.gmra.mxu0 %v4948
      %v5020 = vpop.f32.mrf.mxu0
      %v5021 = vadd.f32 0.0, %v5020
      %v5022 = vpop.f32.mrf.mxu0
      %v5023 = vadd.f32 0.0, %v5022
      %5024 = vmatmul.bf16.gmra.mxu0 %v4951
      %v5025 = vpop.f32.mrf.mxu0
      %v5026 = vadd.f32 0.0, %v5025
      %v5027 = vpop.f32.mrf.mxu0
      %v5028 = vadd.f32 0.0, %v5027
      %5029 = vmatmul.bf16.gmra.mxu0 %v4954
      %v5030 = vpop.f32.mrf.mxu0
      %v5031 = vadd.f32 0.0, %v5030
      %v5032 = vpop.f32.mrf.mxu0
      %v5033 = vadd.f32 0.0, %v5032
      %5034 = vmatmul.bf16.gmra.mxu0 %v4957
      %v5035 = vpop.f32.mrf.mxu0
      %v5036 = vadd.f32 0.0, %v5035
      %v5037 = vpop.f32.mrf.mxu0
      %v5038 = vadd.f32 0.0, %v5037
      %5039 = vmatmul.bf16.gmra.mxu0 %v4960
      %v5040 = vpop.f32.mrf.mxu0
      %v5041 = vadd.f32 0.0, %v5040
      %v5042 = vpop.f32.mrf.mxu0
      %v5043 = vadd.f32 0.0, %v5042
      %5044 = vmatmul.bf16.gmra.mxu0 %v4963
      %v5045 = vpop.f32.mrf.mxu0
      %v5046 = vadd.f32 0.0, %v5045
      %v5047 = vpop.f32.mrf.mxu0
      %v5048 = vadd.f32 0.0, %v5047
      %5049 = vmatmul.bf16.gmra.mxu0 %v4966
      %v5050 = vpop.f32.mrf.mxu0
      %v5051 = vadd.f32 0.0, %v5050
      %v5052 = vpop.f32.mrf.mxu0
      %v5053 = vadd.f32 0.0, %v5052
      %5054 = vmatmul.bf16.gmra.mxu0 %v4969
      %v5055 = vpop.f32.mrf.mxu0
      %v5056 = vadd.f32 0.0, %v5055
      %v5057 = vpop.f32.mrf.mxu0
      %v5058 = vadd.f32 0.0, %v5057
      %5059 = vdwg.mxu0
      %v5060 = vadd.f32 %v3201, %v4981
      %v5061 = vadd.f32 %v3203, %v4983
      %v5062 = vadd.f32 %v3206, %v4986
      %v5063 = vadd.f32 %v3208, %v4988
      %v5064 = vadd.f32 %v3211, %v4991
      %v5065 = vadd.f32 %v3213, %v4993
      %v5066 = vadd.f32 %v3216, %v4996
      %v5067 = vadd.f32 %v3218, %v4998
      %v5068 = vadd.f32 %v3221, %v5001
      %v5069 = vadd.f32 %v3223, %v5003
      %v5070 = vadd.f32 %v3226, %v5006
      %v5071 = vadd.f32 %v3228, %v5008
      %v5072 = vadd.f32 %v3231, %v5011
      %v5073 = vadd.f32 %v3233, %v5013
      %v5074 = vadd.f32 %v3236, %v5016
      %v5075 = vadd.f32 %v3238, %v5018
      %v5076 = vadd.f32 %v3241, %v5021
      %v5077 = vadd.f32 %v3243, %v5023
      %v5078 = vadd.f32 %v3246, %v5026
      %v5079 = vadd.f32 %v3248, %v5028
      %v5080 = vadd.f32 %v3251, %v5031
      %v5081 = vadd.f32 %v3253, %v5033
      %v5082 = vadd.f32 %v3256, %v5036
      %v5083 = vadd.f32 %v3258, %v5038
      %v5084 = vadd.f32 %v3261, %v5041
      %v5085 = vadd.f32 %v3263, %v5043
      %v5086 = vadd.f32 %v3266, %v5046
      %v5087 = vadd.f32 %v3268, %v5048
      %v5088 = vadd.f32 %v3271, %v5051
      %v5089 = vadd.f32 %v3273, %v5053
      %v5090 = vadd.f32 %v3276, %v5056
      %v5091 = vadd.f32 %v3278, %v5058
      %v5092 = vld [vmem:[%s851] sm:$0x8]
      %v5093 = vld [vmem:[%s851 + $0x4] sm:$0xf]
      %v5094 = vld [vmem:[%s851 + $0x8] sm:$0xf]
      %v5095 = vld [vmem:[%s851 + $0x10] sm:$0x8]
      %v5096 = vld [vmem:[%s851 + $0x14] sm:$0xf]
      %v5097 = vld [vmem:[%s851 + $0x18] sm:$0xf]
      %v5098 = vld [vmem:[%s851 + $0x20] sm:$0x8]
      %v5099 = vld [vmem:[%s851 + $0x24] sm:$0xf]
      %v5100 = vld [vmem:[%s851 + $0x28] sm:$0xf]
      %v5101 = vld [vmem:[%s851 + $0x30] sm:$0x8]
      %v5102 = vld [vmem:[%s851 + $0x34] sm:$0xf]
      %v5103 = vld [vmem:[%s851 + $0x38] sm:$0xf]
      %v5104 = vld [vmem:[%s851 + $0x40] sm:$0x8]
      %v5105 = vld [vmem:[%s851 + $0x44] sm:$0xf]
      %v5106 = vld [vmem:[%s851 + $0x48] sm:$0xf]
      %v5107 = vld [vmem:[%s851 + $0x50] sm:$0x8]
      %v5108 = vld [vmem:[%s851 + $0x54] sm:$0xf]
      %v5109 = vld [vmem:[%s851 + $0x58] sm:$0xf]
      %v5110 = vld [vmem:[%s851 + $0x60] sm:$0x8]
      %v5111 = vld [vmem:[%s851 + $0x64] sm:$0xf]
      %v5112 = vld [vmem:[%s851 + $0x68] sm:$0xf]
      %v5113 = vld [vmem:[%s851 + $0x70] sm:$0x8]
      %v5114 = vld [vmem:[%s851 + $0x74] sm:$0xf]
      %v5115 = vld [vmem:[%s851 + $0x78] sm:$0xf]
      %v5116 = vld [vmem:[%s851 + $0x80] sm:$0x8]
      %v5117 = vld [vmem:[%s851 + $0x84] sm:$0xf]
      %v5118 = vld [vmem:[%s851 + $0x88] sm:$0xf]
      %v5119 = vld [vmem:[%s851 + $0x90] sm:$0x8]
      %v5120 = vld [vmem:[%s851 + $0x94] sm:$0xf]
      %v5121 = vld [vmem:[%s851 + $0x98] sm:$0xf]
      %v5122 = vld [vmem:[%s851 + $0xa0] sm:$0x8]
      %v5123 = vld [vmem:[%s851 + $0xa4] sm:$0xf]
      %v5124 = vld [vmem:[%s851 + $0xa8] sm:$0xf]
      %v5125 = vld [vmem:[%s851 + $0xb0] sm:$0x8]
      %v5126 = vld [vmem:[%s851 + $0xb4] sm:$0xf]
      %v5127 = vld [vmem:[%s851 + $0xb8] sm:$0xf]
      %v5128 = vld [vmem:[%s851 + $0xc0] sm:$0x8]
      %v5129 = vld [vmem:[%s851 + $0xc4] sm:$0xf]
      %v5130 = vld [vmem:[%s851 + $0xc8] sm:$0xf]
      %v5131 = vld [vmem:[%s851 + $0xd0] sm:$0x8]
      %v5132 = vld [vmem:[%s851 + $0xd4] sm:$0xf]
      %v5133 = vld [vmem:[%s851 + $0xd8] sm:$0xf]
      %v5134 = vld [vmem:[%s851 + $0xe0] sm:$0x8]
      %v5135 = vld [vmem:[%s851 + $0xe4] sm:$0xf]
      %v5136 = vld [vmem:[%s851 + $0xe8] sm:$0xf]
      %v5137 = vld [vmem:[%s851 + $0xf0] sm:$0x8]
      %v5138 = vld [vmem:[%s851 + $0xf4] sm:$0xf]
      %v5139 = vld [vmem:[%s851 + $0xf8] sm:$0xf]
      %v5140 = vld [vmem:[%s851 + $0x8] sm:$0x7]
      %v5141 = vld [vmem:[%s851 + $0x18] sm:$0x7]
      %v5142 = vld [vmem:[%s851 + $0x28] sm:$0x7]
      %v5143 = vld [vmem:[%s851 + $0x38] sm:$0x7]
      %v5144 = vld [vmem:[%s851 + $0x48] sm:$0x7]
      %v5145 = vld [vmem:[%s851 + $0x58] sm:$0x7]
      %v5146 = vld [vmem:[%s851 + $0x68] sm:$0x7]
      %v5147 = vld [vmem:[%s851 + $0x78] sm:$0x7]
      %v5148 = vld [vmem:[%s851 + $0x88] sm:$0x7]
      %v5149 = vld [vmem:[%s851 + $0x98] sm:$0x7]
      %v5150 = vld [vmem:[%s851 + $0xa8] sm:$0x7]
      %v5151 = vld [vmem:[%s851 + $0xb8] sm:$0x7]
      %v5152 = vld [vmem:[%s851 + $0xc8] sm:$0x7]
      %v5153 = vld [vmem:[%s851 + $0xd8] sm:$0x7]
      %v5154 = vld [vmem:[%s851 + $0xe8] sm:$0x7]
      %v5155 = vld [vmem:[%s851 + $0xf8] sm:$0x7]
      %v5156 = vld [vmem:[%s851] sm:$0xc]
      %v5157 = vld [vmem:[%s851 + $0x8] sm:$0x3]
      %v5158 = vld [vmem:[%s851 + $0x10] sm:$0xc]
      %v5159 = vld [vmem:[%s851 + $0x18] sm:$0x3]
      %v5160 = vld [vmem:[%s851 + $0x20] sm:$0xc]
      %v5161 = vld [vmem:[%s851 + $0x28] sm:$0x3]
      %v5162 = vld [vmem:[%s851 + $0x30] sm:$0xc]
      %v5163 = vld [vmem:[%s851 + $0x38] sm:$0x3]
      %v5164 = vld [vmem:[%s851 + $0x40] sm:$0xc]
      %v5165 = vld [vmem:[%s851 + $0x48] sm:$0x3]
      %v5166 = vld [vmem:[%s851 + $0x50] sm:$0xc]
      %v5167 = vld [vmem:[%s851 + $0x58] sm:$0x3]
      %v5168 = vld [vmem:[%s851 + $0x60] sm:$0xc]
      %v5169 = vld [vmem:[%s851 + $0x68] sm:$0x3]
      %v5170 = vld [vmem:[%s851 + $0x70] sm:$0xc]
      %v5171 = vld [vmem:[%s851 + $0x78] sm:$0x3]
      %v5172 = vld [vmem:[%s851 + $0x80] sm:$0xc]
      %v5173 = vld [vmem:[%s851 + $0x88] sm:$0x3]
      %v5174 = vld [vmem:[%s851 + $0x90] sm:$0xc]
      %v5175 = vld [vmem:[%s851 + $0x98] sm:$0x3]
      %v5176 = vld [vmem:[%s851 + $0xa0] sm:$0xc]
      %v5177 = vld [vmem:[%s851 + $0xa8] sm:$0x3]
      %v5178 = vld [vmem:[%s851 + $0xb0] sm:$0xc]
      %v5179 = vld [vmem:[%s851 + $0xb8] sm:$0x3]
      %v5180 = vld [vmem:[%s851 + $0xc0] sm:$0xc]
      %v5181 = vld [vmem:[%s851 + $0xc8] sm:$0x3]
      %v5182 = vld [vmem:[%s851 + $0xd0] sm:$0xc]
      %v5183 = vld [vmem:[%s851 + $0xd8] sm:$0x3]
      %v5184 = vld [vmem:[%s851 + $0xe0] sm:$0xc]
      %v5185 = vld [vmem:[%s851 + $0xe8] sm:$0x3]
      %v5186 = vld [vmem:[%s851 + $0xf0] sm:$0xc]
      %v5187 = vld [vmem:[%s851 + $0xf8] sm:$0x3]
      %v5188 = vld [vmem:[%s851] sm:$0xf]
      %v5189 = vld [vmem:[%s851 + $0x10] sm:$0xf]
      %v5190 = vld [vmem:[%s851 + $0x20] sm:$0xf]
      %v5191 = vld [vmem:[%s851 + $0x30] sm:$0xf]
      %v5192 = vld [vmem:[%s851 + $0x40] sm:$0xf]
      %v5193 = vld [vmem:[%s851 + $0x50] sm:$0xf]
      %v5194 = vld [vmem:[%s851 + $0x60] sm:$0xf]
      %v5195 = vld [vmem:[%s851 + $0x70] sm:$0xf]
      %v5196 = vld [vmem:[%s851 + $0x80] sm:$0xf]
      %v5197 = vld [vmem:[%s851 + $0x90] sm:$0xf]
      %v5198 = vld [vmem:[%s851 + $0xa0] sm:$0xf]
      %v5199 = vld [vmem:[%s851 + $0xb0] sm:$0xf]
      %v5200 = vld [vmem:[%s851 + $0xc0] sm:$0xf]
      %v5201 = vld [vmem:[%s851 + $0xd0] sm:$0xf]
      %v5202 = vld [vmem:[%s851 + $0xe0] sm:$0xf]
      %v5203 = vld [vmem:[%s851 + $0xf0] sm:$0xf]
      %v5252 = vunpack.c.l.b16 %v5092
      %v5253 = vunpack.c.l.b16 %v5093
      %v5254 = vunpack.c.l.b16 %v5094
      %v5255 = vunpack.c.l.b16 %v5095
      %v5256 = vunpack.c.l.b16 %v5096
      %v5257 = vunpack.c.l.b16 %v5097
      %v5258 = vunpack.c.l.b16 %v5098
      %v5259 = vunpack.c.l.b16 %v5099
      %v5260 = vunpack.c.l.b16 %v5100
      %v5261 = vunpack.c.l.b16 %v5101
      %v5262 = vunpack.c.l.b16 %v5102
      %v5263 = vunpack.c.l.b16 %v5103
      %v5264 = vunpack.c.l.b16 %v5104
      %v5265 = vunpack.c.l.b16 %v5105
      %v5266 = vunpack.c.l.b16 %v5106
      %v5267 = vunpack.c.l.b16 %v5107
      %v5268 = vunpack.c.l.b16 %v5108
      %v5269 = vunpack.c.l.b16 %v5109
      %v5270 = vunpack.c.l.b16 %v5110
      %v5271 = vunpack.c.l.b16 %v5111
      %v5272 = vunpack.c.l.b16 %v5112
      %v5273 = vunpack.c.l.b16 %v5113
      %v5274 = vunpack.c.l.b16 %v5114
      %v5275 = vunpack.c.l.b16 %v5115
      %v5276 = vunpack.c.l.b16 %v5116
      %v5277 = vunpack.c.l.b16 %v5117
      %v5278 = vunpack.c.l.b16 %v5118
      %v5279 = vunpack.c.l.b16 %v5119
      %v5280 = vunpack.c.l.b16 %v5120
      %v5281 = vunpack.c.l.b16 %v5121
      %v5282 = vunpack.c.l.b16 %v5122
      %v5283 = vunpack.c.l.b16 %v5123
      %v5284 = vunpack.c.l.b16 %v5124
      %v5285 = vunpack.c.l.b16 %v5125
      %v5286 = vunpack.c.l.b16 %v5126
      %v5287 = vunpack.c.l.b16 %v5127
      %v5288 = vunpack.c.l.b16 %v5128
      %v5289 = vunpack.c.l.b16 %v5129
      %v5290 = vunpack.c.l.b16 %v5130
      %v5291 = vunpack.c.l.b16 %v5131
      %v5292 = vunpack.c.l.b16 %v5132
      %v5293 = vunpack.c.l.b16 %v5133
      %v5294 = vunpack.c.l.b16 %v5134
      %v5295 = vunpack.c.l.b16 %v5135
      %v5296 = vunpack.c.l.b16 %v5136
      %v5297 = vunpack.c.l.b16 %v5137
      %v5298 = vunpack.c.l.b16 %v5138
      %v5299 = vunpack.c.l.b16 %v5139
      %v5300 = vpack.c.b16 %v5253, %v5252
      %v5301 = vpack.c.b16 %v5254, %v5254
      %v5302 = vpack.c.b16 %v5256, %v5255
      %v5303 = vpack.c.b16 %v5257, %v5257
      %v5304 = vpack.c.b16 %v5259, %v5258
      %v5305 = vpack.c.b16 %v5260, %v5260
      %v5306 = vpack.c.b16 %v5262, %v5261
      %v5307 = vpack.c.b16 %v5263, %v5263
      %v5308 = vpack.c.b16 %v5265, %v5264
      %v5309 = vpack.c.b16 %v5266, %v5266
      %v5310 = vpack.c.b16 %v5268, %v5267
      %v5311 = vpack.c.b16 %v5269, %v5269
      %v5312 = vpack.c.b16 %v5271, %v5270
      %v5313 = vpack.c.b16 %v5272, %v5272
      %v5314 = vpack.c.b16 %v5274, %v5273
      %v5315 = vpack.c.b16 %v5275, %v5275
      %v5316 = vpack.c.b16 %v5277, %v5276
      %v5317 = vpack.c.b16 %v5278, %v5278
      %v5318 = vpack.c.b16 %v5280, %v5279
      %v5319 = vpack.c.b16 %v5281, %v5281
      %v5320 = vpack.c.b16 %v5283, %v5282
      %v5321 = vpack.c.b16 %v5284, %v5284
      %v5322 = vpack.c.b16 %v5286, %v5285
      %v5323 = vpack.c.b16 %v5287, %v5287
      %v5324 = vpack.c.b16 %v5289, %v5288
      %v5325 = vpack.c.b16 %v5290, %v5290
      %v5326 = vpack.c.b16 %v5292, %v5291
      %v5327 = vpack.c.b16 %v5293, %v5293
      %v5328 = vpack.c.b16 %v5295, %v5294
      %v5329 = vpack.c.b16 %v5296, %v5296
      %v5330 = vpack.c.b16 %v5298, %v5297
      %v5331 = vpack.c.b16 %v5299, %v5299
      %v5348 = vunpack.c.l.b16 %v5140
      %v5349 = vunpack.c.l.b16 %v5141
      %v5350 = vunpack.c.l.b16 %v5142
      %v5351 = vunpack.c.l.b16 %v5143
      %v5352 = vunpack.c.l.b16 %v5144
      %v5353 = vunpack.c.l.b16 %v5145
      %v5354 = vunpack.c.l.b16 %v5146
      %v5355 = vunpack.c.l.b16 %v5147
      %v5356 = vunpack.c.l.b16 %v5148
      %v5357 = vunpack.c.l.b16 %v5149
      %v5358 = vunpack.c.l.b16 %v5150
      %v5359 = vunpack.c.l.b16 %v5151
      %v5360 = vunpack.c.l.b16 %v5152
      %v5361 = vunpack.c.l.b16 %v5153
      %v5362 = vunpack.c.l.b16 %v5154
      %v5363 = vunpack.c.l.b16 %v5155
      %v5364 = vpack.c.b16 %v5348, %v5348
      %v5365 = vpack.c.b16 %v5349, %v5349
      %v5366 = vpack.c.b16 %v5350, %v5350
      %v5367 = vpack.c.b16 %v5351, %v5351
      %v5368 = vpack.c.b16 %v5352, %v5352
      %v5369 = vpack.c.b16 %v5353, %v5353
      %v5370 = vpack.c.b16 %v5354, %v5354
      %v5371 = vpack.c.b16 %v5355, %v5355
      %v5372 = vpack.c.b16 %v5356, %v5356
      %v5373 = vpack.c.b16 %v5357, %v5357
      %v5374 = vpack.c.b16 %v5358, %v5358
      %v5375 = vpack.c.b16 %v5359, %v5359
      %v5376 = vpack.c.b16 %v5360, %v5360
      %v5377 = vpack.c.b16 %v5361, %v5361
      %v5378 = vpack.c.b16 %v5362, %v5362
      %v5379 = vpack.c.b16 %v5363, %v5363
      %v5381 = vshrl.u32 %v5300, 16
      %v5383 = vrot.slane %v5381, 7
      %v5384 = vshll.u32 %v5300, 16
      %v5386 = vor.u32 %v5383, %v5384
      %v5388 = vshrl.u32 %v5364, 16
      %v5390 = vrot.slane %v5388, 7
      %v5391 = vshll.u32 %v5364, 16
      %v5393 = vor.u32 %v5390, %v5391
      %v5394 = vsel %vm1383, %v5383, %v5393
      %v5396 = vshrl.u32 %v5302, 16
      %v5398 = vrot.slane %v5396, 7
      %v5399 = vshll.u32 %v5302, 16
      %v5401 = vor.u32 %v5398, %v5399
      %v5403 = vshrl.u32 %v5365, 16
      %v5405 = vrot.slane %v5403, 7
      %v5406 = vshll.u32 %v5365, 16
      %v5408 = vor.u32 %v5405, %v5406
      %v5409 = vsel %vm1383, %v5398, %v5408
      %v5411 = vshrl.u32 %v5304, 16
      %v5413 = vrot.slane %v5411, 7
      %v5414 = vshll.u32 %v5304, 16
      %v5416 = vor.u32 %v5413, %v5414
      %v5418 = vshrl.u32 %v5366, 16
      %v5420 = vrot.slane %v5418, 7
      %v5421 = vshll.u32 %v5366, 16
      %v5423 = vor.u32 %v5420, %v5421
      %v5424 = vsel %vm1383, %v5413, %v5423
      %v5426 = vshrl.u32 %v5306, 16
      %v5428 = vrot.slane %v5426, 7
      %v5429 = vshll.u32 %v5306, 16
      %v5431 = vor.u32 %v5428, %v5429
      %v5433 = vshrl.u32 %v5367, 16
      %v5435 = vrot.slane %v5433, 7
      %v5436 = vshll.u32 %v5367, 16
      %v5438 = vor.u32 %v5435, %v5436
      %v5439 = vsel %vm1383, %v5428, %v5438
      %v5441 = vshrl.u32 %v5308, 16
      %v5443 = vrot.slane %v5441, 7
      %v5444 = vshll.u32 %v5308, 16
      %v5446 = vor.u32 %v5443, %v5444
      %v5448 = vshrl.u32 %v5368, 16
      %v5450 = vrot.slane %v5448, 7
      %v5451 = vshll.u32 %v5368, 16
      %v5453 = vor.u32 %v5450, %v5451
      %v5454 = vsel %vm1383, %v5443, %v5453
      %v5456 = vshrl.u32 %v5310, 16
      %v5458 = vrot.slane %v5456, 7
      %v5459 = vshll.u32 %v5310, 16
      %v5461 = vor.u32 %v5458, %v5459
      %v5463 = vshrl.u32 %v5369, 16
      %v5465 = vrot.slane %v5463, 7
      %v5466 = vshll.u32 %v5369, 16
      %v5468 = vor.u32 %v5465, %v5466
      %v5469 = vsel %vm1383, %v5458, %v5468
      %v5471 = vshrl.u32 %v5312, 16
      %v5473 = vrot.slane %v5471, 7
      %v5474 = vshll.u32 %v5312, 16
      %v5476 = vor.u32 %v5473, %v5474
      %v5478 = vshrl.u32 %v5370, 16
      %v5480 = vrot.slane %v5478, 7
      %v5481 = vshll.u32 %v5370, 16
      %v5483 = vor.u32 %v5480, %v5481
      %v5484 = vsel %vm1383, %v5473, %v5483
      %v5486 = vshrl.u32 %v5314, 16
      %v5488 = vrot.slane %v5486, 7
      %v5489 = vshll.u32 %v5314, 16
      %v5491 = vor.u32 %v5488, %v5489
      %v5493 = vshrl.u32 %v5371, 16
      %v5495 = vrot.slane %v5493, 7
      %v5496 = vshll.u32 %v5371, 16
      %v5498 = vor.u32 %v5495, %v5496
      %v5499 = vsel %vm1383, %v5488, %v5498
      %v5501 = vshrl.u32 %v5316, 16
      %v5503 = vrot.slane %v5501, 7
      %v5504 = vshll.u32 %v5316, 16
      %v5506 = vor.u32 %v5503, %v5504
      %v5508 = vshrl.u32 %v5372, 16
      %v5510 = vrot.slane %v5508, 7
      %v5511 = vshll.u32 %v5372, 16
      %v5513 = vor.u32 %v5510, %v5511
      %v5514 = vsel %vm1383, %v5503, %v5513
      %v5516 = vshrl.u32 %v5318, 16
      %v5518 = vrot.slane %v5516, 7
      %v5519 = vshll.u32 %v5318, 16
      %v5521 = vor.u32 %v5518, %v5519
      %v5523 = vshrl.u32 %v5373, 16
      %v5525 = vrot.slane %v5523, 7
      %v5526 = vshll.u32 %v5373, 16
      %v5528 = vor.u32 %v5525, %v5526
      %v5529 = vsel %vm1383, %v5518, %v5528
      %v5531 = vshrl.u32 %v5320, 16
      %v5533 = vrot.slane %v5531, 7
      %v5534 = vshll.u32 %v5320, 16
      %v5536 = vor.u32 %v5533, %v5534
      %v5538 = vshrl.u32 %v5374, 16
      %v5540 = vrot.slane %v5538, 7
      %v5541 = vshll.u32 %v5374, 16
      %v5543 = vor.u32 %v5540, %v5541
      %v5544 = vsel %vm1383, %v5533, %v5543
      %v5546 = vshrl.u32 %v5322, 16
      %v5548 = vrot.slane %v5546, 7
      %v5549 = vshll.u32 %v5322, 16
      %v5551 = vor.u32 %v5548, %v5549
      %v5553 = vshrl.u32 %v5375, 16
      %v5555 = vrot.slane %v5553, 7
      %v5556 = vshll.u32 %v5375, 16
      %v5558 = vor.u32 %v5555, %v5556
      %v5559 = vsel %vm1383, %v5548, %v5558
      %v5561 = vshrl.u32 %v5324, 16
      %v5563 = vrot.slane %v5561, 7
      %v5564 = vshll.u32 %v5324, 16
      %v5566 = vor.u32 %v5563, %v5564
      %v5568 = vshrl.u32 %v5376, 16
      %v5570 = vrot.slane %v5568, 7
      %v5571 = vshll.u32 %v5376, 16
      %v5573 = vor.u32 %v5570, %v5571
      %v5574 = vsel %vm1383, %v5563, %v5573
      %v5576 = vshrl.u32 %v5326, 16
      %v5578 = vrot.slane %v5576, 7
      %v5579 = vshll.u32 %v5326, 16
      %v5581 = vor.u32 %v5578, %v5579
      %v5583 = vshrl.u32 %v5377, 16
      %v5585 = vrot.slane %v5583, 7
      %v5586 = vshll.u32 %v5377, 16
      %v5588 = vor.u32 %v5585, %v5586
      %v5589 = vsel %vm1383, %v5578, %v5588
      %v5591 = vshrl.u32 %v5328, 16
      %v5593 = vrot.slane %v5591, 7
      %v5594 = vshll.u32 %v5328, 16
      %v5596 = vor.u32 %v5593, %v5594
      %v5598 = vshrl.u32 %v5378, 16
      %v5600 = vrot.slane %v5598, 7
      %v5601 = vshll.u32 %v5378, 16
      %v5603 = vor.u32 %v5600, %v5601
      %v5604 = vsel %vm1383, %v5593, %v5603
      %v5606 = vshrl.u32 %v5330, 16
      %v5608 = vrot.slane %v5606, 7
      %v5609 = vshll.u32 %v5330, 16
      %v5611 = vor.u32 %v5608, %v5609
      %v5613 = vshrl.u32 %v5379, 16
      %v5615 = vrot.slane %v5613, 7
      %v5616 = vshll.u32 %v5379, 16
      %v5618 = vor.u32 %v5615, %v5616
      %v5619 = vsel %vm1383, %v5608, %v5618
      %v5652 = vunpack.c.l.b16 %v5156
      %v5653 = vunpack.c.l.b16 %v5157
      %v5654 = vunpack.c.l.b16 %v5158
      %v5655 = vunpack.c.l.b16 %v5159
      %v5656 = vunpack.c.l.b16 %v5160
      %v5657 = vunpack.c.l.b16 %v5161
      %v5658 = vunpack.c.l.b16 %v5162
      %v5659 = vunpack.c.l.b16 %v5163
      %v5660 = vunpack.c.l.b16 %v5164
      %v5661 = vunpack.c.l.b16 %v5165
      %v5662 = vunpack.c.l.b16 %v5166
      %v5663 = vunpack.c.l.b16 %v5167
      %v5664 = vunpack.c.l.b16 %v5168
      %v5665 = vunpack.c.l.b16 %v5169
      %v5666 = vunpack.c.l.b16 %v5170
      %v5667 = vunpack.c.l.b16 %v5171
      %v5668 = vunpack.c.l.b16 %v5172
      %v5669 = vunpack.c.l.b16 %v5173
      %v5670 = vunpack.c.l.b16 %v5174
      %v5671 = vunpack.c.l.b16 %v5175
      %v5672 = vunpack.c.l.b16 %v5176
      %v5673 = vunpack.c.l.b16 %v5177
      %v5674 = vunpack.c.l.b16 %v5178
      %v5675 = vunpack.c.l.b16 %v5179
      %v5676 = vunpack.c.l.b16 %v5180
      %v5677 = vunpack.c.l.b16 %v5181
      %v5678 = vunpack.c.l.b16 %v5182
      %v5679 = vunpack.c.l.b16 %v5183
      %v5680 = vunpack.c.l.b16 %v5184
      %v5681 = vunpack.c.l.b16 %v5185
      %v5682 = vunpack.c.l.b16 %v5186
      %v5683 = vunpack.c.l.b16 %v5187
      %v5684 = vpack.c.b16 %v5253, %v5652
      %v5685 = vpack.c.b16 %v5653, %v5653
      %v5686 = vpack.c.b16 %v5256, %v5654
      %v5687 = vpack.c.b16 %v5655, %v5655
      %v5688 = vpack.c.b16 %v5259, %v5656
      %v5689 = vpack.c.b16 %v5657, %v5657
      %v5690 = vpack.c.b16 %v5262, %v5658
      %v5691 = vpack.c.b16 %v5659, %v5659
      %v5692 = vpack.c.b16 %v5265, %v5660
      %v5693 = vpack.c.b16 %v5661, %v5661
      %v5694 = vpack.c.b16 %v5268, %v5662
      %v5695 = vpack.c.b16 %v5663, %v5663
      %v5696 = vpack.c.b16 %v5271, %v5664
      %v5697 = vpack.c.b16 %v5665, %v5665
      %v5698 = vpack.c.b16 %v5274, %v5666
      %v5699 = vpack.c.b16 %v5667, %v5667
      %v5700 = vpack.c.b16 %v5277, %v5668
      %v5701 = vpack.c.b16 %v5669, %v5669
      %v5702 = vpack.c.b16 %v5280, %v5670
      %v5703 = vpack.c.b16 %v5671, %v5671
      %v5704 = vpack.c.b16 %v5283, %v5672
      %v5705 = vpack.c.b16 %v5673, %v5673
      %v5706 = vpack.c.b16 %v5286, %v5674
      %v5707 = vpack.c.b16 %v5675, %v5675
      %v5708 = vpack.c.b16 %v5289, %v5676
      %v5709 = vpack.c.b16 %v5677, %v5677
      %v5710 = vpack.c.b16 %v5292, %v5678
      %v5711 = vpack.c.b16 %v5679, %v5679
      %v5712 = vpack.c.b16 %v5295, %v5680
      %v5713 = vpack.c.b16 %v5681, %v5681
      %v5714 = vpack.c.b16 %v5298, %v5682
      %v5715 = vpack.c.b16 %v5683, %v5683
      %v5717 = vshrl.u32 %v5684, 16
      %v5719 = vrot.slane %v5717, 6
      %v5720 = vshll.u32 %v5684, 16
      %v5722 = vrot.slane %v5720, 7
      %v5723 = vor.u32 %v5719, %v5722
      %v5725 = vshrl.u32 %v5685, 16
      %v5727 = vrot.slane %v5725, 6
      %v5728 = vshll.u32 %v5685, 16
      %v5730 = vrot.slane %v5728, 7
      %v5731 = vor.u32 %v5727, %v5730
      %v5732 = vsel %vm1752, %v5723, %v5731
      %v5734 = vshrl.u32 %v5686, 16
      %v5736 = vrot.slane %v5734, 6
      %v5737 = vshll.u32 %v5686, 16
      %v5739 = vrot.slane %v5737, 7
      %v5740 = vor.u32 %v5736, %v5739
      %v5742 = vshrl.u32 %v5687, 16
      %v5744 = vrot.slane %v5742, 6
      %v5745 = vshll.u32 %v5687, 16
      %v5747 = vrot.slane %v5745, 7
      %v5748 = vor.u32 %v5744, %v5747
      %v5749 = vsel %vm1752, %v5740, %v5748
      %v5751 = vshrl.u32 %v5688, 16
      %v5753 = vrot.slane %v5751, 6
      %v5754 = vshll.u32 %v5688, 16
      %v5756 = vrot.slane %v5754, 7
      %v5757 = vor.u32 %v5753, %v5756
      %v5759 = vshrl.u32 %v5689, 16
      %v5761 = vrot.slane %v5759, 6
      %v5762 = vshll.u32 %v5689, 16
      %v5764 = vrot.slane %v5762, 7
      %v5765 = vor.u32 %v5761, %v5764
      %v5766 = vsel %vm1752, %v5757, %v5765
      %v5768 = vshrl.u32 %v5690, 16
      %v5770 = vrot.slane %v5768, 6
      %v5771 = vshll.u32 %v5690, 16
      %v5773 = vrot.slane %v5771, 7
      %v5774 = vor.u32 %v5770, %v5773
      %v5776 = vshrl.u32 %v5691, 16
      %v5778 = vrot.slane %v5776, 6
      %v5779 = vshll.u32 %v5691, 16
      %v5781 = vrot.slane %v5779, 7
      %v5782 = vor.u32 %v5778, %v5781
      %v5783 = vsel %vm1752, %v5774, %v5782
      %v5785 = vshrl.u32 %v5692, 16
      %v5787 = vrot.slane %v5785, 6
      %v5788 = vshll.u32 %v5692, 16
      %v5790 = vrot.slane %v5788, 7
      %v5791 = vor.u32 %v5787, %v5790
      %v5793 = vshrl.u32 %v5693, 16
      %v5795 = vrot.slane %v5793, 6
      %v5796 = vshll.u32 %v5693, 16
      %v5798 = vrot.slane %v5796, 7
      %v5799 = vor.u32 %v5795, %v5798
      %v5800 = vsel %vm1752, %v5791, %v5799
      %v5802 = vshrl.u32 %v5694, 16
      %v5804 = vrot.slane %v5802, 6
      %v5805 = vshll.u32 %v5694, 16
      %v5807 = vrot.slane %v5805, 7
      %v5808 = vor.u32 %v5804, %v5807
      %v5810 = vshrl.u32 %v5695, 16
      %v5812 = vrot.slane %v5810, 6
      %v5813 = vshll.u32 %v5695, 16
      %v5815 = vrot.slane %v5813, 7
      %v5816 = vor.u32 %v5812, %v5815
      %v5817 = vsel %vm1752, %v5808, %v5816
      %v5819 = vshrl.u32 %v5696, 16
      %v5821 = vrot.slane %v5819, 6
      %v5822 = vshll.u32 %v5696, 16
      %v5824 = vrot.slane %v5822, 7
      %v5825 = vor.u32 %v5821, %v5824
      %v5827 = vshrl.u32 %v5697, 16
      %v5829 = vrot.slane %v5827, 6
      %v5830 = vshll.u32 %v5697, 16
      %v5832 = vrot.slane %v5830, 7
      %v5833 = vor.u32 %v5829, %v5832
      %v5834 = vsel %vm1752, %v5825, %v5833
      %v5836 = vshrl.u32 %v5698, 16
      %v5838 = vrot.slane %v5836, 6
      %v5839 = vshll.u32 %v5698, 16
      %v5841 = vrot.slane %v5839, 7
      %v5842 = vor.u32 %v5838, %v5841
      %v5844 = vshrl.u32 %v5699, 16
      %v5846 = vrot.slane %v5844, 6
      %v5847 = vshll.u32 %v5699, 16
      %v5849 = vrot.slane %v5847, 7
      %v5850 = vor.u32 %v5846, %v5849
      %v5851 = vsel %vm1752, %v5842, %v5850
      %v5853 = vshrl.u32 %v5700, 16
      %v5855 = vrot.slane %v5853, 6
      %v5856 = vshll.u32 %v5700, 16
      %v5858 = vrot.slane %v5856, 7
      %v5859 = vor.u32 %v5855, %v5858
      %v5861 = vshrl.u32 %v5701, 16
      %v5863 = vrot.slane %v5861, 6
      %v5864 = vshll.u32 %v5701, 16
      %v5866 = vrot.slane %v5864, 7
      %v5867 = vor.u32 %v5863, %v5866
      %v5868 = vsel %vm1752, %v5859, %v5867
      %v5870 = vshrl.u32 %v5702, 16
      %v5872 = vrot.slane %v5870, 6
      %v5873 = vshll.u32 %v5702, 16
      %v5875 = vrot.slane %v5873, 7
      %v5876 = vor.u32 %v5872, %v5875
      %v5878 = vshrl.u32 %v5703, 16
      %v5880 = vrot.slane %v5878, 6
      %v5881 = vshll.u32 %v5703, 16
      %v5883 = vrot.slane %v5881, 7
      %v5884 = vor.u32 %v5880, %v5883
      %v5885 = vsel %vm1752, %v5876, %v5884
      %v5887 = vshrl.u32 %v5704, 16
      %v5889 = vrot.slane %v5887, 6
      %v5890 = vshll.u32 %v5704, 16
      %v5892 = vrot.slane %v5890, 7
      %v5893 = vor.u32 %v5889, %v5892
      %v5895 = vshrl.u32 %v5705, 16
      %v5897 = vrot.slane %v5895, 6
      %v5898 = vshll.u32 %v5705, 16
      %v5900 = vrot.slane %v5898, 7
      %v5901 = vor.u32 %v5897, %v5900
      %v5902 = vsel %vm1752, %v5893, %v5901
      %v5904 = vshrl.u32 %v5706, 16
      %v5906 = vrot.slane %v5904, 6
      %v5907 = vshll.u32 %v5706, 16
      %v5909 = vrot.slane %v5907, 7
      %v5910 = vor.u32 %v5906, %v5909
      %v5912 = vshrl.u32 %v5707, 16
      %v5914 = vrot.slane %v5912, 6
      %v5915 = vshll.u32 %v5707, 16
      %v5917 = vrot.slane %v5915, 7
      %v5918 = vor.u32 %v5914, %v5917
      %v5919 = vsel %vm1752, %v5910, %v5918
      %v5921 = vshrl.u32 %v5708, 16
      %v5923 = vrot.slane %v5921, 6
      %v5924 = vshll.u32 %v5708, 16
      %v5926 = vrot.slane %v5924, 7
      %v5927 = vor.u32 %v5923, %v5926
      %v5929 = vshrl.u32 %v5709, 16
      %v5931 = vrot.slane %v5929, 6
      %v5932 = vshll.u32 %v5709, 16
      %v5934 = vrot.slane %v5932, 7
      %v5935 = vor.u32 %v5931, %v5934
      %v5936 = vsel %vm1752, %v5927, %v5935
      %v5938 = vshrl.u32 %v5710, 16
      %v5940 = vrot.slane %v5938, 6
      %v5941 = vshll.u32 %v5710, 16
      %v5943 = vrot.slane %v5941, 7
      %v5944 = vor.u32 %v5940, %v5943
      %v5946 = vshrl.u32 %v5711, 16
      %v5948 = vrot.slane %v5946, 6
      %v5949 = vshll.u32 %v5711, 16
      %v5951 = vrot.slane %v5949, 7
      %v5952 = vor.u32 %v5948, %v5951
      %v5953 = vsel %vm1752, %v5944, %v5952
      %v5955 = vshrl.u32 %v5712, 16
      %v5957 = vrot.slane %v5955, 6
      %v5958 = vshll.u32 %v5712, 16
      %v5960 = vrot.slane %v5958, 7
      %v5961 = vor.u32 %v5957, %v5960
      %v5963 = vshrl.u32 %v5713, 16
      %v5965 = vrot.slane %v5963, 6
      %v5966 = vshll.u32 %v5713, 16
      %v5968 = vrot.slane %v5966, 7
      %v5969 = vor.u32 %v5965, %v5968
      %v5970 = vsel %vm1752, %v5961, %v5969
      %v5972 = vshrl.u32 %v5714, 16
      %v5974 = vrot.slane %v5972, 6
      %v5975 = vshll.u32 %v5714, 16
      %v5977 = vrot.slane %v5975, 7
      %v5978 = vor.u32 %v5974, %v5977
      %v5980 = vshrl.u32 %v5715, 16
      %v5982 = vrot.slane %v5980, 6
      %v5983 = vshll.u32 %v5715, 16
      %v5985 = vrot.slane %v5983, 7
      %v5986 = vor.u32 %v5982, %v5985
      %v5987 = vsel %vm1752, %v5978, %v5986
      %v6004 = vunpack.c.l.b16 %v5188
      %v6005 = vunpack.c.l.b16 %v5189
      %v6006 = vunpack.c.l.b16 %v5190
      %v6007 = vunpack.c.l.b16 %v5191
      %v6008 = vunpack.c.l.b16 %v5192
      %v6009 = vunpack.c.l.b16 %v5193
      %v6010 = vunpack.c.l.b16 %v5194
      %v6011 = vunpack.c.l.b16 %v5195
      %v6012 = vunpack.c.l.b16 %v5196
      %v6013 = vunpack.c.l.b16 %v5197
      %v6014 = vunpack.c.l.b16 %v5198
      %v6015 = vunpack.c.l.b16 %v5199
      %v6016 = vunpack.c.l.b16 %v5200
      %v6017 = vunpack.c.l.b16 %v5201
      %v6018 = vunpack.c.l.b16 %v5202
      %v6019 = vunpack.c.l.b16 %v5203
      %v6020 = vpack.c.b16 %v5253, %v6004
      %v6021 = vpack.c.b16 %v5256, %v6005
      %v6022 = vpack.c.b16 %v5259, %v6006
      %v6023 = vpack.c.b16 %v5262, %v6007
      %v6024 = vpack.c.b16 %v5265, %v6008
      %v6025 = vpack.c.b16 %v5268, %v6009
      %v6026 = vpack.c.b16 %v5271, %v6010
      %v6027 = vpack.c.b16 %v5274, %v6011
      %v6028 = vpack.c.b16 %v5277, %v6012
      %v6029 = vpack.c.b16 %v5280, %v6013
      %v6030 = vpack.c.b16 %v5283, %v6014
      %v6031 = vpack.c.b16 %v5286, %v6015
      %v6032 = vpack.c.b16 %v5289, %v6016
      %v6033 = vpack.c.b16 %v5292, %v6017
      %v6034 = vpack.c.b16 %v5295, %v6018
      %v6035 = vpack.c.b16 %v5298, %v6019
      %v6037 = vshrl.u32 %v6020, 16
      %v6039 = vrot.slane %v6037, 4
      %v6040 = vshll.u32 %v6020, 16
      %v6042 = vrot.slane %v6040, 5
      %v6043 = vor.u32 %v6039, %v6042
      %v6045 = vshrl.u32 %v6021, 16
      %v6047 = vrot.slane %v6045, 4
      %v6048 = vshll.u32 %v6021, 16
      %v6050 = vrot.slane %v6048, 5
      %v6051 = vor.u32 %v6047, %v6050
      %v6053 = vshrl.u32 %v6022, 16
      %v6055 = vrot.slane %v6053, 4
      %v6056 = vshll.u32 %v6022, 16
      %v6058 = vrot.slane %v6056, 5
      %v6059 = vor.u32 %v6055, %v6058
      %v6061 = vshrl.u32 %v6023, 16
      %v6063 = vrot.slane %v6061, 4
      %v6064 = vshll.u32 %v6023, 16
      %v6066 = vrot.slane %v6064, 5
      %v6067 = vor.u32 %v6063, %v6066
      %v6069 = vshrl.u32 %v6024, 16
      %v6071 = vrot.slane %v6069, 4
      %v6072 = vshll.u32 %v6024, 16
      %v6074 = vrot.slane %v6072, 5
      %v6075 = vor.u32 %v6071, %v6074
      %v6077 = vshrl.u32 %v6025, 16
      %v6079 = vrot.slane %v6077, 4
      %v6080 = vshll.u32 %v6025, 16
      %v6082 = vrot.slane %v6080, 5
      %v6083 = vor.u32 %v6079, %v6082
      %v6085 = vshrl.u32 %v6026, 16
      %v6087 = vrot.slane %v6085, 4
      %v6088 = vshll.u32 %v6026, 16
      %v6090 = vrot.slane %v6088, 5
      %v6091 = vor.u32 %v6087, %v6090
      %v6093 = vshrl.u32 %v6027, 16
      %v6095 = vrot.slane %v6093, 4
      %v6096 = vshll.u32 %v6027, 16
      %v6098 = vrot.slane %v6096, 5
      %v6099 = vor.u32 %v6095, %v6098
      %v6101 = vshrl.u32 %v6028, 16
      %v6103 = vrot.slane %v6101, 4
      %v6104 = vshll.u32 %v6028, 16
      %v6106 = vrot.slane %v6104, 5
      %v6107 = vor.u32 %v6103, %v6106
      %v6109 = vshrl.u32 %v6029, 16
      %v6111 = vrot.slane %v6109, 4
      %v6112 = vshll.u32 %v6029, 16
      %v6114 = vrot.slane %v6112, 5
      %v6115 = vor.u32 %v6111, %v6114
      %v6117 = vshrl.u32 %v6030, 16
      %v6119 = vrot.slane %v6117, 4
      %v6120 = vshll.u32 %v6030, 16
      %v6122 = vrot.slane %v6120, 5
      %v6123 = vor.u32 %v6119, %v6122
      %v6125 = vshrl.u32 %v6031, 16
      %v6127 = vrot.slane %v6125, 4
      %v6128 = vshll.u32 %v6031, 16
      %v6130 = vrot.slane %v6128, 5
      %v6131 = vor.u32 %v6127, %v6130
      %v6133 = vshrl.u32 %v6032, 16
      %v6135 = vrot.slane %v6133, 4
      %v6136 = vshll.u32 %v6032, 16
      %v6138 = vrot.slane %v6136, 5
      %v6139 = vor.u32 %v6135, %v6138
      %v6141 = vshrl.u32 %v6033, 16
      %v6143 = vrot.slane %v6141, 4
      %v6144 = vshll.u32 %v6033, 16
      %v6146 = vrot.slane %v6144, 5
      %v6147 = vor.u32 %v6143, %v6146
      %v6149 = vshrl.u32 %v6034, 16
      %v6151 = vrot.slane %v6149, 4
      %v6152 = vshll.u32 %v6034, 16
      %v6154 = vrot.slane %v6152, 5
      %v6155 = vor.u32 %v6151, %v6154
      %v6157 = vshrl.u32 %v6035, 16
      %v6159 = vrot.slane %v6157, 4
      %v6160 = vshll.u32 %v6035, 16
      %v6162 = vrot.slane %v6160, 5
      %v6163 = vor.u32 %v6159, %v6162
      %v6165 = vsel %vm451, %v5300, %v5386
      %v6168 = vsel %vm451, %v5301, %v5394
      %v6170 = vsel %vm451, %v5302, %v5401
      %v6173 = vsel %vm451, %v5303, %v5409
      %v6175 = vsel %vm451, %v5304, %v5416
      %v6178 = vsel %vm451, %v5305, %v5424
      %v6180 = vsel %vm451, %v5306, %v5431
      %v6183 = vsel %vm451, %v5307, %v5439
      %v6185 = vsel %vm451, %v5308, %v5446
      %v6188 = vsel %vm451, %v5309, %v5454
      %v6190 = vsel %vm451, %v5310, %v5461
      %v6193 = vsel %vm451, %v5311, %v5469
      %v6195 = vsel %vm451, %v5312, %v5476
      %v6198 = vsel %vm451, %v5313, %v5484
      %v6200 = vsel %vm451, %v5314, %v5491
      %v6203 = vsel %vm451, %v5315, %v5499
      %v6205 = vsel %vm451, %v5316, %v5506
      %v6208 = vsel %vm451, %v5317, %v5514
      %v6210 = vsel %vm451, %v5318, %v5521
      %v6213 = vsel %vm451, %v5319, %v5529
      %v6215 = vsel %vm451, %v5320, %v5536
      %v6218 = vsel %vm451, %v5321, %v5544
      %v6220 = vsel %vm451, %v5322, %v5551
      %v6223 = vsel %vm451, %v5323, %v5559
      %v6225 = vsel %vm451, %v5324, %v5566
      %v6228 = vsel %vm451, %v5325, %v5574
      %v6230 = vsel %vm451, %v5326, %v5581
      %v6233 = vsel %vm451, %v5327, %v5589
      %v6235 = vsel %vm451, %v5328, %v5596
      %v6238 = vsel %vm451, %v5329, %v5604
      %v6240 = vsel %vm451, %v5330, %v5611
      %v6243 = vsel %vm451, %v5331, %v5619
      %v6245 = vsel %vm2329, %v6165, %v5723
      %v6247 = vsel %vm2329, %v6168, %v5732
      %v6249 = vsel %vm2329, %v6170, %v5740
      %v6251 = vsel %vm2329, %v6173, %v5749
      %v6253 = vsel %vm2329, %v6175, %v5757
      %v6255 = vsel %vm2329, %v6178, %v5766
      %v6257 = vsel %vm2329, %v6180, %v5774
      %v6259 = vsel %vm2329, %v6183, %v5783
      %v6261 = vsel %vm2329, %v6185, %v5791
      %v6263 = vsel %vm2329, %v6188, %v5800
      %v6265 = vsel %vm2329, %v6190, %v5808
      %v6267 = vsel %vm2329, %v6193, %v5817
      %v6269 = vsel %vm2329, %v6195, %v5825
      %v6271 = vsel %vm2329, %v6198, %v5834
      %v6273 = vsel %vm2329, %v6200, %v5842
      %v6275 = vsel %vm2329, %v6203, %v5851
      %v6277 = vsel %vm2329, %v6205, %v5859
      %v6279 = vsel %vm2329, %v6208, %v5868
      %v6281 = vsel %vm2329, %v6210, %v5876
      %v6283 = vsel %vm2329, %v6213, %v5885
      %v6285 = vsel %vm2329, %v6215, %v5893
      %v6287 = vsel %vm2329, %v6218, %v5902
      %v6289 = vsel %vm2329, %v6220, %v5910
      %v6291 = vsel %vm2329, %v6223, %v5919
      %v6293 = vsel %vm2329, %v6225, %v5927
      %v6295 = vsel %vm2329, %v6228, %v5936
      %v6297 = vsel %vm2329, %v6230, %v5944
      %v6299 = vsel %vm2329, %v6233, %v5953
      %v6301 = vsel %vm2329, %v6235, %v5961
      %v6303 = vsel %vm2329, %v6238, %v5970
      %v6305 = vsel %vm2329, %v6240, %v5978
      %v6307 = vsel %vm2329, %v6243, %v5987
      %v6309 = vsel %vm2394, %v6245, %v6043
      %v6310 = vsel %vm2394, %v6247, %v6043
      %v6312 = vsel %vm2394, %v6249, %v6051
      %v6313 = vsel %vm2394, %v6251, %v6051
      %v6315 = vsel %vm2394, %v6253, %v6059
      %v6316 = vsel %vm2394, %v6255, %v6059
      %v6318 = vsel %vm2394, %v6257, %v6067
      %v6319 = vsel %vm2394, %v6259, %v6067
      %v6321 = vsel %vm2394, %v6261, %v6075
      %v6322 = vsel %vm2394, %v6263, %v6075
      %v6324 = vsel %vm2394, %v6265, %v6083
      %v6325 = vsel %vm2394, %v6267, %v6083
      %v6327 = vsel %vm2394, %v6269, %v6091
      %v6328 = vsel %vm2394, %v6271, %v6091
      %v6330 = vsel %vm2394, %v6273, %v6099
      %v6331 = vsel %vm2394, %v6275, %v6099
      %v6333 = vsel %vm2394, %v6277, %v6107
      %v6334 = vsel %vm2394, %v6279, %v6107
      %v6336 = vsel %vm2394, %v6281, %v6115
      %v6337 = vsel %vm2394, %v6283, %v6115
      %v6339 = vsel %vm2394, %v6285, %v6123
      %v6340 = vsel %vm2394, %v6287, %v6123
      %v6342 = vsel %vm2394, %v6289, %v6131
      %v6343 = vsel %vm2394, %v6291, %v6131
      %v6345 = vsel %vm2394, %v6293, %v6139
      %v6346 = vsel %vm2394, %v6295, %v6139
      %v6348 = vsel %vm2394, %v6297, %v6147
      %v6349 = vsel %vm2394, %v6299, %v6147
      %v6351 = vsel %vm2394, %v6301, %v6155
      %v6352 = vsel %vm2394, %v6303, %v6155
      %v6354 = vsel %vm2394, %v6305, %v6163
      %v6355 = vsel %vm2394, %v6307, %v6163
      %v6356 = vshrl.u32 %v6309, 16
      %v6358 = vrot.slane %v6356, 3
      %v6359 = vshll.u32 %v6309, 16
      %v6361 = vrot.slane %v6359, 4
      %v6362 = vor.u32 %v6358, %v6361
      %v6363 = vshrl.u32 %v6310, 16
      %v6365 = vrot.slane %v6363, 3
      %v6366 = vshll.u32 %v6310, 16
      %v6368 = vrot.slane %v6366, 4
      %v6369 = vor.u32 %v6365, %v6368
      %v6370 = vsel %vm2443, %v6362, %v6369
      %v6371 = vshrl.u32 %v6312, 16
      %v6373 = vrot.slane %v6371, 3
      %v6374 = vshll.u32 %v6312, 16
      %v6376 = vrot.slane %v6374, 4
      %v6377 = vor.u32 %v6373, %v6376
      %v6378 = vshrl.u32 %v6313, 16
      %v6380 = vrot.slane %v6378, 3
      %v6381 = vshll.u32 %v6313, 16
      %v6383 = vrot.slane %v6381, 4
      %v6384 = vor.u32 %v6380, %v6383
      %v6385 = vsel %vm2443, %v6377, %v6384
      %v6386 = vshrl.u32 %v6315, 16
      %v6388 = vrot.slane %v6386, 3
      %v6389 = vshll.u32 %v6315, 16
      %v6391 = vrot.slane %v6389, 4
      %v6392 = vor.u32 %v6388, %v6391
      %v6393 = vshrl.u32 %v6316, 16
      %v6395 = vrot.slane %v6393, 3
      %v6396 = vshll.u32 %v6316, 16
      %v6398 = vrot.slane %v6396, 4
      %v6399 = vor.u32 %v6395, %v6398
      %v6400 = vsel %vm2443, %v6392, %v6399
      %v6401 = vshrl.u32 %v6318, 16
      %v6403 = vrot.slane %v6401, 3
      %v6404 = vshll.u32 %v6318, 16
      %v6406 = vrot.slane %v6404, 4
      %v6407 = vor.u32 %v6403, %v6406
      %v6408 = vshrl.u32 %v6319, 16
      %v6410 = vrot.slane %v6408, 3
      %v6411 = vshll.u32 %v6319, 16
      %v6413 = vrot.slane %v6411, 4
      %v6414 = vor.u32 %v6410, %v6413
      %v6415 = vsel %vm2443, %v6407, %v6414
      %v6416 = vshrl.u32 %v6321, 16
      %v6418 = vrot.slane %v6416, 3
      %v6419 = vshll.u32 %v6321, 16
      %v6421 = vrot.slane %v6419, 4
      %v6422 = vor.u32 %v6418, %v6421
      %v6423 = vshrl.u32 %v6322, 16
      %v6425 = vrot.slane %v6423, 3
      %v6426 = vshll.u32 %v6322, 16
      %v6428 = vrot.slane %v6426, 4
      %v6429 = vor.u32 %v6425, %v6428
      %v6430 = vsel %vm2443, %v6422, %v6429
      %v6431 = vshrl.u32 %v6324, 16
      %v6433 = vrot.slane %v6431, 3
      %v6434 = vshll.u32 %v6324, 16
      %v6436 = vrot.slane %v6434, 4
      %v6437 = vor.u32 %v6433, %v6436
      %v6438 = vshrl.u32 %v6325, 16
      %v6440 = vrot.slane %v6438, 3
      %v6441 = vshll.u32 %v6325, 16
      %v6443 = vrot.slane %v6441, 4
      %v6444 = vor.u32 %v6440, %v6443
      %v6445 = vsel %vm2443, %v6437, %v6444
      %v6446 = vshrl.u32 %v6327, 16
      %v6448 = vrot.slane %v6446, 3
      %v6449 = vshll.u32 %v6327, 16
      %v6451 = vrot.slane %v6449, 4
      %v6452 = vor.u32 %v6448, %v6451
      %v6453 = vshrl.u32 %v6328, 16
      %v6455 = vrot.slane %v6453, 3
      %v6456 = vshll.u32 %v6328, 16
      %v6458 = vrot.slane %v6456, 4
      %v6459 = vor.u32 %v6455, %v6458
      %v6460 = vsel %vm2443, %v6452, %v6459
      %v6461 = vshrl.u32 %v6330, 16
      %v6463 = vrot.slane %v6461, 3
      %v6464 = vshll.u32 %v6330, 16
      %v6466 = vrot.slane %v6464, 4
      %v6467 = vor.u32 %v6463, %v6466
      %v6468 = vshrl.u32 %v6331, 16
      %v6470 = vrot.slane %v6468, 3
      %v6471 = vshll.u32 %v6331, 16
      %v6473 = vrot.slane %v6471, 4
      %v6474 = vor.u32 %v6470, %v6473
      %v6475 = vsel %vm2443, %v6467, %v6474
      %v6476 = vshrl.u32 %v6333, 16
      %v6478 = vrot.slane %v6476, 3
      %v6479 = vshll.u32 %v6333, 16
      %v6481 = vrot.slane %v6479, 4
      %v6482 = vor.u32 %v6478, %v6481
      %v6483 = vshrl.u32 %v6334, 16
      %v6485 = vrot.slane %v6483, 3
      %v6486 = vshll.u32 %v6334, 16
      %v6488 = vrot.slane %v6486, 4
      %v6489 = vor.u32 %v6485, %v6488
      %v6490 = vsel %vm2443, %v6482, %v6489
      %v6491 = vshrl.u32 %v6336, 16
      %v6493 = vrot.slane %v6491, 3
      %v6494 = vshll.u32 %v6336, 16
      %v6496 = vrot.slane %v6494, 4
      %v6497 = vor.u32 %v6493, %v6496
      %v6498 = vshrl.u32 %v6337, 16
      %v6500 = vrot.slane %v6498, 3
      %v6501 = vshll.u32 %v6337, 16
      %v6503 = vrot.slane %v6501, 4
      %v6504 = vor.u32 %v6500, %v6503
      %v6505 = vsel %vm2443, %v6497, %v6504
      %v6506 = vshrl.u32 %v6339, 16
      %v6508 = vrot.slane %v6506, 3
      %v6509 = vshll.u32 %v6339, 16
      %v6511 = vrot.slane %v6509, 4
      %v6512 = vor.u32 %v6508, %v6511
      %v6513 = vshrl.u32 %v6340, 16
      %v6515 = vrot.slane %v6513, 3
      %v6516 = vshll.u32 %v6340, 16
      %v6518 = vrot.slane %v6516, 4
      %v6519 = vor.u32 %v6515, %v6518
      %v6520 = vsel %vm2443, %v6512, %v6519
      %v6521 = vshrl.u32 %v6342, 16
      %v6523 = vrot.slane %v6521, 3
      %v6524 = vshll.u32 %v6342, 16
      %v6526 = vrot.slane %v6524, 4
      %v6527 = vor.u32 %v6523, %v6526
      %v6528 = vshrl.u32 %v6343, 16
      %v6530 = vrot.slane %v6528, 3
      %v6531 = vshll.u32 %v6343, 16
      %v6533 = vrot.slane %v6531, 4
      %v6534 = vor.u32 %v6530, %v6533
      %v6535 = vsel %vm2443, %v6527, %v6534
      %v6536 = vshrl.u32 %v6345, 16
      %v6538 = vrot.slane %v6536, 3
      %v6539 = vshll.u32 %v6345, 16
      %v6541 = vrot.slane %v6539, 4
      %v6542 = vor.u32 %v6538, %v6541
      %v6543 = vshrl.u32 %v6346, 16
      %v6545 = vrot.slane %v6543, 3
      %v6546 = vshll.u32 %v6346, 16
      %v6548 = vrot.slane %v6546, 4
      %v6549 = vor.u32 %v6545, %v6548
      %v6550 = vsel %vm2443, %v6542, %v6549
      %v6551 = vshrl.u32 %v6348, 16
      %v6553 = vrot.slane %v6551, 3
      %v6554 = vshll.u32 %v6348, 16
      %v6556 = vrot.slane %v6554, 4
      %v6557 = vor.u32 %v6553, %v6556
      %v6558 = vshrl.u32 %v6349, 16
      %v6560 = vrot.slane %v6558, 3
      %v6561 = vshll.u32 %v6349, 16
      %v6563 = vrot.slane %v6561, 4
      %v6564 = vor.u32 %v6560, %v6563
      %v6565 = vsel %vm2443, %v6557, %v6564
      %v6566 = vshrl.u32 %v6351, 16
      %v6568 = vrot.slane %v6566, 3
      %v6569 = vshll.u32 %v6351, 16
      %v6571 = vrot.slane %v6569, 4
      %v6572 = vor.u32 %v6568, %v6571
      %v6573 = vshrl.u32 %v6352, 16
      %v6575 = vrot.slane %v6573, 3
      %v6576 = vshll.u32 %v6352, 16
      %v6578 = vrot.slane %v6576, 4
      %v6579 = vor.u32 %v6575, %v6578
      %v6580 = vsel %vm2443, %v6572, %v6579
      %v6581 = vshrl.u32 %v6354, 16
      %v6583 = vrot.slane %v6581, 3
      %v6584 = vshll.u32 %v6354, 16
      %v6586 = vrot.slane %v6584, 4
      %v6587 = vor.u32 %v6583, %v6586
      %v6588 = vshrl.u32 %v6355, 16
      %v6590 = vrot.slane %v6588, 3
      %v6591 = vshll.u32 %v6355, 16
      %v6593 = vrot.slane %v6591, 4
      %v6594 = vor.u32 %v6590, %v6593
      %v6595 = vsel %vm2443, %v6587, %v6594
      %s6596 = scalar_lea.vmem %s3, 24
      %v6597 = vld [vmem:[%s6596] sm:$0xf]
      %v6598 = vld [vmem:[%s6596 + $0x4] sm:$0xf]
      %v6601 = vunpack.c.l.b16 %v6597
      %v6602 = vunpack.c.l.b16 %v6598
      %v6603 = vpack.c.b16 %v6602, %v6601
      %v6606 = vsel %vm3015, %v6370, 0
      %v6609 = vsel %vm3015, %v6385, 0
      %v6612 = vsel %vm3015, %v6400, 0
      %v6615 = vsel %vm3015, %v6415, 0
      %v6618 = vsel %vm3015, %v6430, 0
      %v6621 = vsel %vm3015, %v6445, 0
      %v6624 = vsel %vm3015, %v6460, 0
      %v6627 = vsel %vm3015, %v6475, 0
      %v6630 = vsel %vm3015, %v6490, 0
      %v6633 = vsel %vm3015, %v6505, 0
      %v6636 = vsel %vm3015, %v6520, 0
      %v6639 = vsel %vm3015, %v6535, 0
      %v6642 = vsel %vm3015, %v6550, 0
      %v6645 = vsel %vm3015, %v6565, 0
      %v6648 = vsel %vm3015, %v6580, 0
      %v6651 = vsel %vm3015, %v6595, 0
      %6653 = vmatpush.bf16.msra.mxu0 0
      %6654 = vmatpush.bf16.msra.mxu0 0
      %6655 = vmatpush.bf16.msra.mxu0 0
      %6656 = vmatpush.bf16.msra.mxu0 0
      %6657 = vmatpush.bf16.msra.mxu0 0
      %6658 = vmatpush.bf16.msra.mxu0 0
      %6659 = vmatpush.bf16.msra.mxu0 0
      %6660 = vmatpush.bf16.msra.mxu0 %v6603
      %6661 = vmatmul.bf16.gmra.mxu0 %v6606
      %v6662 = vpop.f32.mrf.mxu0
      %v6663 = vadd.f32 0.0, %v6662
      %v6664 = vpop.f32.mrf.mxu0
      %v6665 = vadd.f32 0.0, %v6664
      %6666 = vmatmul.bf16.gmra.mxu0 %v6609
      %v6667 = vpop.f32.mrf.mxu0
      %v6668 = vadd.f32 0.0, %v6667
      %v6669 = vpop.f32.mrf.mxu0
      %v6670 = vadd.f32 0.0, %v6669
      %6671 = vmatmul.bf16.gmra.mxu0 %v6612
      %v6672 = vpop.f32.mrf.mxu0
      %v6673 = vadd.f32 0.0, %v6672
      %v6674 = vpop.f32.mrf.mxu0
      %v6675 = vadd.f32 0.0, %v6674
      %6676 = vmatmul.bf16.gmra.mxu0 %v6615
      %v6677 = vpop.f32.mrf.mxu0
      %v6678 = vadd.f32 0.0, %v6677
      %v6679 = vpop.f32.mrf.mxu0
      %v6680 = vadd.f32 0.0, %v6679
      %6681 = vmatmul.bf16.gmra.mxu0 %v6618
      %v6682 = vpop.f32.mrf.mxu0
      %v6683 = vadd.f32 0.0, %v6682
      %v6684 = vpop.f32.mrf.mxu0
      %v6685 = vadd.f32 0.0, %v6684
      %6686 = vmatmul.bf16.gmra.mxu0 %v6621
      %v6687 = vpop.f32.mrf.mxu0
      %v6688 = vadd.f32 0.0, %v6687
      %v6689 = vpop.f32.mrf.mxu0
      %v6690 = vadd.f32 0.0, %v6689
      %6691 = vmatmul.bf16.gmra.mxu0 %v6624
      %v6692 = vpop.f32.mrf.mxu0
      %v6693 = vadd.f32 0.0, %v6692
      %v6694 = vpop.f32.mrf.mxu0
      %v6695 = vadd.f32 0.0, %v6694
      %6696 = vmatmul.bf16.gmra.mxu0 %v6627
      %v6697 = vpop.f32.mrf.mxu0
      %v6698 = vadd.f32 0.0, %v6697
      %v6699 = vpop.f32.mrf.mxu0
      %v6700 = vadd.f32 0.0, %v6699
      %6701 = vmatmul.bf16.gmra.mxu0 %v6630
      %v6702 = vpop.f32.mrf.mxu0
      %v6703 = vadd.f32 0.0, %v6702
      %v6704 = vpop.f32.mrf.mxu0
      %v6705 = vadd.f32 0.0, %v6704
      %6706 = vmatmul.bf16.gmra.mxu0 %v6633
      %v6707 = vpop.f32.mrf.mxu0
      %v6708 = vadd.f32 0.0, %v6707
      %v6709 = vpop.f32.mrf.mxu0
      %v6710 = vadd.f32 0.0, %v6709
      %6711 = vmatmul.bf16.gmra.mxu0 %v6636
      %v6712 = vpop.f32.mrf.mxu0
      %v6713 = vadd.f32 0.0, %v6712
      %v6714 = vpop.f32.mrf.mxu0
      %v6715 = vadd.f32 0.0, %v6714
      %6716 = vmatmul.bf16.gmra.mxu0 %v6639
      %v6717 = vpop.f32.mrf.mxu0
      %v6718 = vadd.f32 0.0, %v6717
      %v6719 = vpop.f32.mrf.mxu0
      %v6720 = vadd.f32 0.0, %v6719
      %6721 = vmatmul.bf16.gmra.mxu0 %v6642
      %v6722 = vpop.f32.mrf.mxu0
      %v6723 = vadd.f32 0.0, %v6722
      %v6724 = vpop.f32.mrf.mxu0
      %v6725 = vadd.f32 0.0, %v6724
      %6726 = vmatmul.bf16.gmra.mxu0 %v6645
      %v6727 = vpop.f32.mrf.mxu0
      %v6728 = vadd.f32 0.0, %v6727
      %v6729 = vpop.f32.mrf.mxu0
      %v6730 = vadd.f32 0.0, %v6729
      %6731 = vmatmul.bf16.gmra.mxu0 %v6648
      %v6732 = vpop.f32.mrf.mxu0
      %v6733 = vadd.f32 0.0, %v6732
      %v6734 = vpop.f32.mrf.mxu0
      %v6735 = vadd.f32 0.0, %v6734
      %6736 = vmatmul.bf16.gmra.mxu0 %v6651
      %v6737 = vpop.f32.mrf.mxu0
      %v6738 = vadd.f32 0.0, %v6737
      %v6739 = vpop.f32.mrf.mxu0
      %v6740 = vadd.f32 0.0, %v6739
      %6741 = vdwg.mxu0
      %v6742 = vadd.f32 %v5060, %v6663
      %v6743 = vadd.f32 %v5061, %v6665
      %v6744 = vadd.f32 %v5062, %v6668
      %v6745 = vadd.f32 %v5063, %v6670
      %v6746 = vadd.f32 %v5064, %v6673
      %v6747 = vadd.f32 %v5065, %v6675
      %v6748 = vadd.f32 %v5066, %v6678
      %v6749 = vadd.f32 %v5067, %v6680
      %v6750 = vadd.f32 %v5068, %v6683
      %v6751 = vadd.f32 %v5069, %v6685
      %v6752 = vadd.f32 %v5070, %v6688
      %v6753 = vadd.f32 %v5071, %v6690
      %v6754 = vadd.f32 %v5072, %v6693
      %v6755 = vadd.f32 %v5073, %v6695
      %v6756 = vadd.f32 %v5074, %v6698
      %v6757 = vadd.f32 %v5075, %v6700
      %v6758 = vadd.f32 %v5076, %v6703
      %v6759 = vadd.f32 %v5077, %v6705
      %v6760 = vadd.f32 %v5078, %v6708
      %v6761 = vadd.f32 %v5079, %v6710
      %v6762 = vadd.f32 %v5080, %v6713
      %v6763 = vadd.f32 %v5081, %v6715
      %v6764 = vadd.f32 %v5082, %v6718
      %v6765 = vadd.f32 %v5083, %v6720
      %v6766 = vadd.f32 %v5084, %v6723
      %v6767 = vadd.f32 %v5085, %v6725
      %v6768 = vadd.f32 %v5086, %v6728
      %v6769 = vadd.f32 %v5087, %v6730
      %v6770 = vadd.f32 %v5088, %v6733
      %v6771 = vadd.f32 %v5089, %v6735
      %v6772 = vadd.f32 %v5090, %v6738
      %v6773 = vadd.f32 %v5091, %v6740
      %v6774 = vpack.c.b16 %v5254, %v5253
      %v6775 = vpack.c.b16 %v5257, %v5256
      %v6776 = vpack.c.b16 %v5260, %v5259
      %v6777 = vpack.c.b16 %v5263, %v5262
      %v6778 = vpack.c.b16 %v5266, %v5265
      %v6779 = vpack.c.b16 %v5269, %v5268
      %v6780 = vpack.c.b16 %v5272, %v5271
      %v6781 = vpack.c.b16 %v5275, %v5274
      %v6782 = vpack.c.b16 %v5278, %v5277
      %v6783 = vpack.c.b16 %v5281, %v5280
      %v6784 = vpack.c.b16 %v5284, %v5283
      %v6785 = vpack.c.b16 %v5287, %v5286
      %v6786 = vpack.c.b16 %v5290, %v5289
      %v6787 = vpack.c.b16 %v5293, %v5292
      %v6788 = vpack.c.b16 %v5296, %v5295
      %v6789 = vpack.c.b16 %v5299, %v5298
      %v6806 = vsel %vm2329, %v6774, %v6774
      %v6807 = vsel %vm2329, %v6775, %v6775
      %v6808 = vsel %vm2329, %v6776, %v6776
      %v6809 = vsel %vm2329, %v6777, %v6777
      %v6810 = vsel %vm2329, %v6778, %v6778
      %v6811 = vsel %vm2329, %v6779, %v6779
      %v6812 = vsel %vm2329, %v6780, %v6780
      %v6813 = vsel %vm2329, %v6781, %v6781
      %v6814 = vsel %vm2329, %v6782, %v6782
      %v6815 = vsel %vm2329, %v6783, %v6783
      %v6816 = vsel %vm2329, %v6784, %v6784
      %v6817 = vsel %vm2329, %v6785, %v6785
      %v6818 = vsel %vm2329, %v6786, %v6786
      %v6819 = vsel %vm2329, %v6787, %v6787
      %v6820 = vsel %vm2329, %v6788, %v6788
      %v6821 = vsel %vm2329, %v6789, %v6789
      %v6822 = vsel %vm2394, %v6806, %v6774
      %v6823 = vsel %vm2394, %v6807, %v6775
      %v6824 = vsel %vm2394, %v6808, %v6776
      %v6825 = vsel %vm2394, %v6809, %v6777
      %v6826 = vsel %vm2394, %v6810, %v6778
      %v6827 = vsel %vm2394, %v6811, %v6779
      %v6828 = vsel %vm2394, %v6812, %v6780
      %v6829 = vsel %vm2394, %v6813, %v6781
      %v6830 = vsel %vm2394, %v6814, %v6782
      %v6831 = vsel %vm2394, %v6815, %v6783
      %v6832 = vsel %vm2394, %v6816, %v6784
      %v6833 = vsel %vm2394, %v6817, %v6785
      %v6834 = vsel %vm2394, %v6818, %v6786
      %v6835 = vsel %vm2394, %v6819, %v6787
      %v6836 = vsel %vm2394, %v6820, %v6788
      %v6837 = vsel %vm2394, %v6821, %v6789
      %s6838 = scalar_lea.vmem %s3, 32
      %v6839 = vld [vmem:[%s6838] sm:$0xf]
      %v6840 = vld [vmem:[%s6838 + $0x4] sm:$0xf]
      %v6843 = vunpack.c.l.b16 %v6839
      %v6844 = vunpack.c.l.b16 %v6840
      %v6845 = vpack.c.b16 %v6844, %v6843
      %v6847 = vsel %vm3015, %v6822, 0
      %v6849 = vsel %vm3015, %v6823, 0
      %v6851 = vsel %vm3015, %v6824, 0
      %v6853 = vsel %vm3015, %v6825, 0
      %v6855 = vsel %vm3015, %v6826, 0
      %v6857 = vsel %vm3015, %v6827, 0
      %v6859 = vsel %vm3015, %v6828, 0
      %v6861 = vsel %vm3015, %v6829, 0
      %v6863 = vsel %vm3015, %v6830, 0
      %v6865 = vsel %vm3015, %v6831, 0
      %v6867 = vsel %vm3015, %v6832, 0
      %v6869 = vsel %vm3015, %v6833, 0
      %v6871 = vsel %vm3015, %v6834, 0
      %v6873 = vsel %vm3015, %v6835, 0
      %v6875 = vsel %vm3015, %v6836, 0
      %v6877 = vsel %vm3015, %v6837, 0
      %6879 = vmatpush.bf16.msra.mxu0 0
      %6880 = vmatpush.bf16.msra.mxu0 0
      %6881 = vmatpush.bf16.msra.mxu0 0
      %6882 = vmatpush.bf16.msra.mxu0 0
      %6883 = vmatpush.bf16.msra.mxu0 0
      %6884 = vmatpush.bf16.msra.mxu0 0
      %6885 = vmatpush.bf16.msra.mxu0 0
      %6886 = vmatpush.bf16.msra.mxu0 %v6845
      %6887 = vmatmul.bf16.gmra.mxu0 %v6847
      %v6888 = vpop.f32.mrf.mxu0
      %v6889 = vadd.f32 0.0, %v6888
      %v6890 = vpop.f32.mrf.mxu0
      %v6891 = vadd.f32 0.0, %v6890
      %6892 = vmatmul.bf16.gmra.mxu0 %v6849
      %v6893 = vpop.f32.mrf.mxu0
      %v6894 = vadd.f32 0.0, %v6893
      %v6895 = vpop.f32.mrf.mxu0
      %v6896 = vadd.f32 0.0, %v6895
      %6897 = vmatmul.bf16.gmra.mxu0 %v6851
      %v6898 = vpop.f32.mrf.mxu0
      %v6899 = vadd.f32 0.0, %v6898
      %v6900 = vpop.f32.mrf.mxu0
      %v6901 = vadd.f32 0.0, %v6900
      %6902 = vmatmul.bf16.gmra.mxu0 %v6853
      %v6903 = vpop.f32.mrf.mxu0
      %v6904 = vadd.f32 0.0, %v6903
      %v6905 = vpop.f32.mrf.mxu0
      %v6906 = vadd.f32 0.0, %v6905
      %6907 = vmatmul.bf16.gmra.mxu0 %v6855
      %v6908 = vpop.f32.mrf.mxu0
      %v6909 = vadd.f32 0.0, %v6908
      %v6910 = vpop.f32.mrf.mxu0
      %v6911 = vadd.f32 0.0, %v6910
      %6912 = vmatmul.bf16.gmra.mxu0 %v6857
      %v6913 = vpop.f32.mrf.mxu0
      %v6914 = vadd.f32 0.0, %v6913
      %v6915 = vpop.f32.mrf.mxu0
      %v6916 = vadd.f32 0.0, %v6915
      %6917 = vmatmul.bf16.gmra.mxu0 %v6859
      %v6918 = vpop.f32.mrf.mxu0
      %v6919 = vadd.f32 0.0, %v6918
      %v6920 = vpop.f32.mrf.mxu0
      %v6921 = vadd.f32 0.0, %v6920
      %6922 = vmatmul.bf16.gmra.mxu0 %v6861
      %v6923 = vpop.f32.mrf.mxu0
      %v6924 = vadd.f32 0.0, %v6923
      %v6925 = vpop.f32.mrf.mxu0
      %v6926 = vadd.f32 0.0, %v6925
      %6927 = vmatmul.bf16.gmra.mxu0 %v6863
      %v6928 = vpop.f32.mrf.mxu0
      %v6929 = vadd.f32 0.0, %v6928
      %v6930 = vpop.f32.mrf.mxu0
      %v6931 = vadd.f32 0.0, %v6930
      %6932 = vmatmul.bf16.gmra.mxu0 %v6865
      %v6933 = vpop.f32.mrf.mxu0
      %v6934 = vadd.f32 0.0, %v6933
      %v6935 = vpop.f32.mrf.mxu0
      %v6936 = vadd.f32 0.0, %v6935
      %6937 = vmatmul.bf16.gmra.mxu0 %v6867
      %v6938 = vpop.f32.mrf.mxu0
      %v6939 = vadd.f32 0.0, %v6938
      %v6940 = vpop.f32.mrf.mxu0
      %v6941 = vadd.f32 0.0, %v6940
      %6942 = vmatmul.bf16.gmra.mxu0 %v6869
      %v6943 = vpop.f32.mrf.mxu0
      %v6944 = vadd.f32 0.0, %v6943
      %v6945 = vpop.f32.mrf.mxu0
      %v6946 = vadd.f32 0.0, %v6945
      %6947 = vmatmul.bf16.gmra.mxu0 %v6871
      %v6948 = vpop.f32.mrf.mxu0
      %v6949 = vadd.f32 0.0, %v6948
      %v6950 = vpop.f32.mrf.mxu0
      %v6951 = vadd.f32 0.0, %v6950
      %6952 = vmatmul.bf16.gmra.mxu0 %v6873
      %v6953 = vpop.f32.mrf.mxu0
      %v6954 = vadd.f32 0.0, %v6953
      %v6955 = vpop.f32.mrf.mxu0
      %v6956 = vadd.f32 0.0, %v6955
      %6957 = vmatmul.bf16.gmra.mxu0 %v6875
      %v6958 = vpop.f32.mrf.mxu0
      %v6959 = vadd.f32 0.0, %v6958
      %v6960 = vpop.f32.mrf.mxu0
      %v6961 = vadd.f32 0.0, %v6960
      %6962 = vmatmul.bf16.gmra.mxu0 %v6877
      %v6963 = vpop.f32.mrf.mxu0
      %v6964 = vadd.f32 0.0, %v6963
      %v6965 = vpop.f32.mrf.mxu0
      %v6966 = vadd.f32 0.0, %v6965
      %6967 = vdwg.mxu0
      %v6968 = vadd.f32 %v6742, %v6889
      %v6969 = vadd.f32 %v6743, %v6891
      %v6970 = vadd.f32 %v6744, %v6894
      %v6971 = vadd.f32 %v6745, %v6896
      %v6972 = vadd.f32 %v6746, %v6899
      %v6973 = vadd.f32 %v6747, %v6901
      %v6974 = vadd.f32 %v6748, %v6904
      %v6975 = vadd.f32 %v6749, %v6906
      %v6976 = vadd.f32 %v6750, %v6909
      %v6977 = vadd.f32 %v6751, %v6911
      %v6978 = vadd.f32 %v6752, %v6914
      %v6979 = vadd.f32 %v6753, %v6916
      %v6980 = vadd.f32 %v6754, %v6919
      %v6981 = vadd.f32 %v6755, %v6921
      %v6982 = vadd.f32 %v6756, %v6924
      %v6983 = vadd.f32 %v6757, %v6926
      %v6984 = vadd.f32 %v6758, %v6929
      %v6985 = vadd.f32 %v6759, %v6931
      %v6986 = vadd.f32 %v6760, %v6934
      %v6987 = vadd.f32 %v6761, %v6936
      %v6988 = vadd.f32 %v6762, %v6939
      %v6989 = vadd.f32 %v6763, %v6941
      %v6990 = vadd.f32 %v6764, %v6944
      %v6991 = vadd.f32 %v6765, %v6946
      %v6992 = vadd.f32 %v6766, %v6949
      %v6993 = vadd.f32 %v6767, %v6951
      %v6994 = vadd.f32 %v6768, %v6954
      %v6995 = vadd.f32 %v6769, %v6956
      %v6996 = vadd.f32 %v6770, %v6959
      %v6997 = vadd.f32 %v6771, %v6961
      %v6998 = vadd.f32 %v6772, %v6964
      %v6999 = vadd.f32 %v6773, %v6966
      %v7000 = vld [vmem:[%s851 + $0x4] sm:$0xf]
      %v7001 = vld [vmem:[%s851 + $0x8] sm:$0xf]
      %v7002 = vld [vmem:[%s851 + $0xc] sm:$0x1]
      %v7003 = vld [vmem:[%s851 + $0x14] sm:$0xf]
      %v7004 = vld [vmem:[%s851 + $0x18] sm:$0xf]
      %v7005 = vld [vmem:[%s851 + $0x1c] sm:$0x1]
      %v7006 = vld [vmem:[%s851 + $0x24] sm:$0xf]
      %v7007 = vld [vmem:[%s851 + $0x28] sm:$0xf]
      %v7008 = vld [vmem:[%s851 + $0x2c] sm:$0x1]
      %v7009 = vld [vmem:[%s851 + $0x34] sm:$0xf]
      %v7010 = vld [vmem:[%s851 + $0x38] sm:$0xf]
      %v7011 = vld [vmem:[%s851 + $0x3c] sm:$0x1]
      %v7012 = vld [vmem:[%s851 + $0x44] sm:$0xf]
      %v7013 = vld [vmem:[%s851 + $0x48] sm:$0xf]
      %v7014 = vld [vmem:[%s851 + $0x4c] sm:$0x1]
      %v7015 = vld [vmem:[%s851 + $0x54] sm:$0xf]
      %v7016 = vld [vmem:[%s851 + $0x58] sm:$0xf]
      %v7017 = vld [vmem:[%s851 + $0x5c] sm:$0x1]
      %v7018 = vld [vmem:[%s851 + $0x64] sm:$0xf]
      %v7019 = vld [vmem:[%s851 + $0x68] sm:$0xf]
      %v7020 = vld [vmem:[%s851 + $0x6c] sm:$0x1]
      %v7021 = vld [vmem:[%s851 + $0x74] sm:$0xf]
      %v7022 = vld [vmem:[%s851 + $0x78] sm:$0xf]
      %v7023 = vld [vmem:[%s851 + $0x7c] sm:$0x1]
      %v7024 = vld [vmem:[%s851 + $0x84] sm:$0xf]
      %v7025 = vld [vmem:[%s851 + $0x88] sm:$0xf]
      %v7026 = vld [vmem:[%s851 + $0x8c] sm:$0x1]
      %v7027 = vld [vmem:[%s851 + $0x94] sm:$0xf]
      %v7028 = vld [vmem:[%s851 + $0x98] sm:$0xf]
      %v7029 = vld [vmem:[%s851 + $0x9c] sm:$0x1]
      %v7030 = vld [vmem:[%s851 + $0xa4] sm:$0xf]
      %v7031 = vld [vmem:[%s851 + $0xa8] sm:$0xf]
      %v7032 = vld [vmem:[%s851 + $0xac] sm:$0x1]
      %v7033 = vld [vmem:[%s851 + $0xb4] sm:$0xf]
      %v7034 = vld [vmem:[%s851 + $0xb8] sm:$0xf]
      %v7035 = vld [vmem:[%s851 + $0xbc] sm:$0x1]
      %v7036 = vld [vmem:[%s851 + $0xc4] sm:$0xf]
      %v7037 = vld [vmem:[%s851 + $0xc8] sm:$0xf]
      %v7038 = vld [vmem:[%s851 + $0xcc] sm:$0x1]
      %v7039 = vld [vmem:[%s851 + $0xd4] sm:$0xf]
      %v7040 = vld [vmem:[%s851 + $0xd8] sm:$0xf]
      %v7041 = vld [vmem:[%s851 + $0xdc] sm:$0x1]
      %v7042 = vld [vmem:[%s851 + $0xe4] sm:$0xf]
      %v7043 = vld [vmem:[%s851 + $0xe8] sm:$0xf]
      %v7044 = vld [vmem:[%s851 + $0xec] sm:$0x1]
      %v7045 = vld [vmem:[%s851 + $0xf4] sm:$0xf]
      %v7046 = vld [vmem:[%s851 + $0xf8] sm:$0xf]
      %v7047 = vld [vmem:[%s851 + $0xfc] sm:$0x1]
      %v7048 = vld [vmem:[%s851 + $0x4] sm:$0xe]
      %v7049 = vld [vmem:[%s851 + $0x14] sm:$0xe]
      %v7050 = vld [vmem:[%s851 + $0x24] sm:$0xe]
      %v7051 = vld [vmem:[%s851 + $0x34] sm:$0xe]
      %v7052 = vld [vmem:[%s851 + $0x44] sm:$0xe]
      %v7053 = vld [vmem:[%s851 + $0x54] sm:$0xe]
      %v7054 = vld [vmem:[%s851 + $0x64] sm:$0xe]
      %v7055 = vld [vmem:[%s851 + $0x74] sm:$0xe]
      %v7056 = vld [vmem:[%s851 + $0x84] sm:$0xe]
      %v7057 = vld [vmem:[%s851 + $0x94] sm:$0xe]
      %v7058 = vld [vmem:[%s851 + $0xa4] sm:$0xe]
      %v7059 = vld [vmem:[%s851 + $0xb4] sm:$0xe]
      %v7060 = vld [vmem:[%s851 + $0xc4] sm:$0xe]
      %v7061 = vld [vmem:[%s851 + $0xd4] sm:$0xe]
      %v7062 = vld [vmem:[%s851 + $0xe4] sm:$0xe]
      %v7063 = vld [vmem:[%s851 + $0xf4] sm:$0xe]
      %v7064 = vld [vmem:[%s851 + $0x4] sm:$0xc]
      %v7065 = vld [vmem:[%s851 + $0xc] sm:$0x3]
      %v7066 = vld [vmem:[%s851 + $0x14] sm:$0xc]
      %v7067 = vld [vmem:[%s851 + $0x1c] sm:$0x3]
      %v7068 = vld [vmem:[%s851 + $0x24] sm:$0xc]
      %v7069 = vld [vmem:[%s851 + $0x2c] sm:$0x3]
      %v7070 = vld [vmem:[%s851 + $0x34] sm:$0xc]
      %v7071 = vld [vmem:[%s851 + $0x3c] sm:$0x3]
      %v7072 = vld [vmem:[%s851 + $0x44] sm:$0xc]
      %v7073 = vld [vmem:[%s851 + $0x4c] sm:$0x3]
      %v7074 = vld [vmem:[%s851 + $0x54] sm:$0xc]
      %v7075 = vld [vmem:[%s851 + $0x5c] sm:$0x3]
      %v7076 = vld [vmem:[%s851 + $0x64] sm:$0xc]
      %v7077 = vld [vmem:[%s851 + $0x6c] sm:$0x3]
      %v7078 = vld [vmem:[%s851 + $0x74] sm:$0xc]
      %v7079 = vld [vmem:[%s851 + $0x7c] sm:$0x3]
      %v7080 = vld [vmem:[%s851 + $0x84] sm:$0xc]
      %v7081 = vld [vmem:[%s851 + $0x8c] sm:$0x3]
      %v7082 = vld [vmem:[%s851 + $0x94] sm:$0xc]
      %v7083 = vld [vmem:[%s851 + $0x9c] sm:$0x3]
      %v7084 = vld [vmem:[%s851 + $0xa4] sm:$0xc]
      %v7085 = vld [vmem:[%s851 + $0xac] sm:$0x3]
      %v7086 = vld [vmem:[%s851 + $0xb4] sm:$0xc]
      %v7087 = vld [vmem:[%s851 + $0xbc] sm:$0x3]
      %v7088 = vld [vmem:[%s851 + $0xc4] sm:$0xc]
      %v7089 = vld [vmem:[%s851 + $0xcc] sm:$0x3]
      %v7090 = vld [vmem:[%s851 + $0xd4] sm:$0xc]
      %v7091 = vld [vmem:[%s851 + $0xdc] sm:$0x3]
      %v7092 = vld [vmem:[%s851 + $0xe4] sm:$0xc]
      %v7093 = vld [vmem:[%s851 + $0xec] sm:$0x3]
      %v7094 = vld [vmem:[%s851 + $0xf4] sm:$0xc]
      %v7095 = vld [vmem:[%s851 + $0xfc] sm:$0x3]
      %v7096 = vld [vmem:[%s851 + $0xc] sm:$0xf]
      %v7097 = vld [vmem:[%s851 + $0x1c] sm:$0xf]
      %v7098 = vld [vmem:[%s851 + $0x2c] sm:$0xf]
      %v7099 = vld [vmem:[%s851 + $0x3c] sm:$0xf]
      %v7100 = vld [vmem:[%s851 + $0x4c] sm:$0xf]
      %v7101 = vld [vmem:[%s851 + $0x5c] sm:$0xf]
      %v7102 = vld [vmem:[%s851 + $0x6c] sm:$0xf]
      %v7103 = vld [vmem:[%s851 + $0x7c] sm:$0xf]
      %v7104 = vld [vmem:[%s851 + $0x8c] sm:$0xf]
      %v7105 = vld [vmem:[%s851 + $0x9c] sm:$0xf]
      %v7106 = vld [vmem:[%s851 + $0xac] sm:$0xf]
      %v7107 = vld [vmem:[%s851 + $0xbc] sm:$0xf]
      %v7108 = vld [vmem:[%s851 + $0xcc] sm:$0xf]
      %v7109 = vld [vmem:[%s851 + $0xdc] sm:$0xf]
      %v7110 = vld [vmem:[%s851 + $0xec] sm:$0xf]
      %v7111 = vld [vmem:[%s851 + $0xfc] sm:$0xf]
      %v7160 = vunpack.c.l.b16 %v7000
      %v7161 = vunpack.c.l.b16 %v7001
      %v7162 = vunpack.c.l.b16 %v7002
      %v7163 = vunpack.c.l.b16 %v7003
      %v7164 = vunpack.c.l.b16 %v7004
      %v7165 = vunpack.c.l.b16 %v7005
      %v7166 = vunpack.c.l.b16 %v7006
      %v7167 = vunpack.c.l.b16 %v7007
      %v7168 = vunpack.c.l.b16 %v7008
      %v7169 = vunpack.c.l.b16 %v7009
      %v7170 = vunpack.c.l.b16 %v7010
      %v7171 = vunpack.c.l.b16 %v7011
      %v7172 = vunpack.c.l.b16 %v7012
      %v7173 = vunpack.c.l.b16 %v7013
      %v7174 = vunpack.c.l.b16 %v7014
      %v7175 = vunpack.c.l.b16 %v7015
      %v7176 = vunpack.c.l.b16 %v7016
      %v7177 = vunpack.c.l.b16 %v7017
      %v7178 = vunpack.c.l.b16 %v7018
      %v7179 = vunpack.c.l.b16 %v7019
      %v7180 = vunpack.c.l.b16 %v7020
      %v7181 = vunpack.c.l.b16 %v7021
      %v7182 = vunpack.c.l.b16 %v7022
      %v7183 = vunpack.c.l.b16 %v7023
      %v7184 = vunpack.c.l.b16 %v7024
      %v7185 = vunpack.c.l.b16 %v7025
      %v7186 = vunpack.c.l.b16 %v7026
      %v7187 = vunpack.c.l.b16 %v7027
      %v7188 = vunpack.c.l.b16 %v7028
      %v7189 = vunpack.c.l.b16 %v7029
      %v7190 = vunpack.c.l.b16 %v7030
      %v7191 = vunpack.c.l.b16 %v7031
      %v7192 = vunpack.c.l.b16 %v7032
      %v7193 = vunpack.c.l.b16 %v7033
      %v7194 = vunpack.c.l.b16 %v7034
      %v7195 = vunpack.c.l.b16 %v7035
      %v7196 = vunpack.c.l.b16 %v7036
      %v7197 = vunpack.c.l.b16 %v7037
      %v7198 = vunpack.c.l.b16 %v7038
      %v7199 = vunpack.c.l.b16 %v7039
      %v7200 = vunpack.c.l.b16 %v7040
      %v7201 = vunpack.c.l.b16 %v7041
      %v7202 = vunpack.c.l.b16 %v7042
      %v7203 = vunpack.c.l.b16 %v7043
      %v7204 = vunpack.c.l.b16 %v7044
      %v7205 = vunpack.c.l.b16 %v7045
      %v7206 = vunpack.c.l.b16 %v7046
      %v7207 = vunpack.c.l.b16 %v7047
      %v7208 = vpack.c.b16 %v7161, %v7160
      %v7209 = vpack.c.b16 %v7162, %v7162
      %v7210 = vpack.c.b16 %v7164, %v7163
      %v7211 = vpack.c.b16 %v7165, %v7165
      %v7212 = vpack.c.b16 %v7167, %v7166
      %v7213 = vpack.c.b16 %v7168, %v7168
      %v7214 = vpack.c.b16 %v7170, %v7169
      %v7215 = vpack.c.b16 %v7171, %v7171
      %v7216 = vpack.c.b16 %v7173, %v7172
      %v7217 = vpack.c.b16 %v7174, %v7174
      %v7218 = vpack.c.b16 %v7176, %v7175
      %v7219 = vpack.c.b16 %v7177, %v7177
      %v7220 = vpack.c.b16 %v7179, %v7178
      %v7221 = vpack.c.b16 %v7180, %v7180
      %v7222 = vpack.c.b16 %v7182, %v7181
      %v7223 = vpack.c.b16 %v7183, %v7183
      %v7224 = vpack.c.b16 %v7185, %v7184
      %v7225 = vpack.c.b16 %v7186, %v7186
      %v7226 = vpack.c.b16 %v7188, %v7187
      %v7227 = vpack.c.b16 %v7189, %v7189
      %v7228 = vpack.c.b16 %v7191, %v7190
      %v7229 = vpack.c.b16 %v7192, %v7192
      %v7230 = vpack.c.b16 %v7194, %v7193
      %v7231 = vpack.c.b16 %v7195, %v7195
      %v7232 = vpack.c.b16 %v7197, %v7196
      %v7233 = vpack.c.b16 %v7198, %v7198
      %v7234 = vpack.c.b16 %v7200, %v7199
      %v7235 = vpack.c.b16 %v7201, %v7201
      %v7236 = vpack.c.b16 %v7203, %v7202
      %v7237 = vpack.c.b16 %v7204, %v7204
      %v7238 = vpack.c.b16 %v7206, %v7205
      %v7239 = vpack.c.b16 %v7207, %v7207
      %v7256 = vunpack.c.l.b16 %v7048
      %v7257 = vunpack.c.l.b16 %v7049
      %v7258 = vunpack.c.l.b16 %v7050
      %v7259 = vunpack.c.l.b16 %v7051
      %v7260 = vunpack.c.l.b16 %v7052
      %v7261 = vunpack.c.l.b16 %v7053
      %v7262 = vunpack.c.l.b16 %v7054
      %v7263 = vunpack.c.l.b16 %v7055
      %v7264 = vunpack.c.l.b16 %v7056
      %v7265 = vunpack.c.l.b16 %v7057
      %v7266 = vunpack.c.l.b16 %v7058
      %v7267 = vunpack.c.l.b16 %v7059
      %v7268 = vunpack.c.l.b16 %v7060
      %v7269 = vunpack.c.l.b16 %v7061
      %v7270 = vunpack.c.l.b16 %v7062
      %v7271 = vunpack.c.l.b16 %v7063
      %v7272 = vpack.c.b16 %v7161, %v7256
      %v7273 = vpack.c.b16 %v7164, %v7257
      %v7274 = vpack.c.b16 %v7167, %v7258
      %v7275 = vpack.c.b16 %v7170, %v7259
      %v7276 = vpack.c.b16 %v7173, %v7260
      %v7277 = vpack.c.b16 %v7176, %v7261
      %v7278 = vpack.c.b16 %v7179, %v7262
      %v7279 = vpack.c.b16 %v7182, %v7263
      %v7280 = vpack.c.b16 %v7185, %v7264
      %v7281 = vpack.c.b16 %v7188, %v7265
      %v7282 = vpack.c.b16 %v7191, %v7266
      %v7283 = vpack.c.b16 %v7194, %v7267
      %v7284 = vpack.c.b16 %v7197, %v7268
      %v7285 = vpack.c.b16 %v7200, %v7269
      %v7286 = vpack.c.b16 %v7203, %v7270
      %v7287 = vpack.c.b16 %v7206, %v7271
      %v7289 = vshrl.u32 %v7272, 16
      %v7291 = vshll.u32 %v7272, 16
      %v7293 = vrot.slane %v7291, 1
      %v7294 = vor.u32 %v7289, %v7293
      %v7296 = vshll.u32 %v7209, 16
      %v7298 = vrot.slane %v7296, 1
      %v7299 = vsel %vm3712, %v7294, %v7298
      %v7300 = vshrl.u32 %v7209, 16
      %v7303 = vshrl.u32 %v7273, 16
      %v7305 = vshll.u32 %v7273, 16
      %v7307 = vrot.slane %v7305, 1
      %v7308 = vor.u32 %v7303, %v7307
      %v7310 = vshll.u32 %v7211, 16
      %v7312 = vrot.slane %v7310, 1
      %v7313 = vsel %vm3712, %v7308, %v7312
      %v7314 = vshrl.u32 %v7211, 16
      %v7317 = vshrl.u32 %v7274, 16
      %v7319 = vshll.u32 %v7274, 16
      %v7321 = vrot.slane %v7319, 1
      %v7322 = vor.u32 %v7317, %v7321
      %v7324 = vshll.u32 %v7213, 16
      %v7326 = vrot.slane %v7324, 1
      %v7327 = vsel %vm3712, %v7322, %v7326
      %v7328 = vshrl.u32 %v7213, 16
      %v7331 = vshrl.u32 %v7275, 16
      %v7333 = vshll.u32 %v7275, 16
      %v7335 = vrot.slane %v7333, 1
      %v7336 = vor.u32 %v7331, %v7335
      %v7338 = vshll.u32 %v7215, 16
      %v7340 = vrot.slane %v7338, 1
      %v7341 = vsel %vm3712, %v7336, %v7340
      %v7342 = vshrl.u32 %v7215, 16
      %v7345 = vshrl.u32 %v7276, 16
      %v7347 = vshll.u32 %v7276, 16
      %v7349 = vrot.slane %v7347, 1
      %v7350 = vor.u32 %v7345, %v7349
      %v7352 = vshll.u32 %v7217, 16
      %v7354 = vrot.slane %v7352, 1
      %v7355 = vsel %vm3712, %v7350, %v7354
      %v7356 = vshrl.u32 %v7217, 16
      %v7359 = vshrl.u32 %v7277, 16
      %v7361 = vshll.u32 %v7277, 16
      %v7363 = vrot.slane %v7361, 1
      %v7364 = vor.u32 %v7359, %v7363
      %v7366 = vshll.u32 %v7219, 16
      %v7368 = vrot.slane %v7366, 1
      %v7369 = vsel %vm3712, %v7364, %v7368
      %v7370 = vshrl.u32 %v7219, 16
      %v7373 = vshrl.u32 %v7278, 16
      %v7375 = vshll.u32 %v7278, 16
      %v7377 = vrot.slane %v7375, 1
      %v7378 = vor.u32 %v7373, %v7377
      %v7380 = vshll.u32 %v7221, 16
      %v7382 = vrot.slane %v7380, 1
      %v7383 = vsel %vm3712, %v7378, %v7382
      %v7384 = vshrl.u32 %v7221, 16
      %v7387 = vshrl.u32 %v7279, 16
      %v7389 = vshll.u32 %v7279, 16
      %v7391 = vrot.slane %v7389, 1
      %v7392 = vor.u32 %v7387, %v7391
      %v7394 = vshll.u32 %v7223, 16
      %v7396 = vrot.slane %v7394, 1
      %v7397 = vsel %vm3712, %v7392, %v7396
      %v7398 = vshrl.u32 %v7223, 16
      %v7401 = vshrl.u32 %v7280, 16
      %v7403 = vshll.u32 %v7280, 16
      %v7405 = vrot.slane %v7403, 1
      %v7406 = vor.u32 %v7401, %v7405
      %v7408 = vshll.u32 %v7225, 16
      %v7410 = vrot.slane %v7408, 1
      %v7411 = vsel %vm3712, %v7406, %v7410
      %v7412 = vshrl.u32 %v7225, 16
      %v7415 = vshrl.u32 %v7281, 16
      %v7417 = vshll.u32 %v7281, 16
      %v7419 = vrot.slane %v7417, 1
      %v7420 = vor.u32 %v7415, %v7419
      %v7422 = vshll.u32 %v7227, 16
      %v7424 = vrot.slane %v7422, 1
      %v7425 = vsel %vm3712, %v7420, %v7424
      %v7426 = vshrl.u32 %v7227, 16
      %v7429 = vshrl.u32 %v7282, 16
      %v7431 = vshll.u32 %v7282, 16
      %v7433 = vrot.slane %v7431, 1
      %v7434 = vor.u32 %v7429, %v7433
      %v7436 = vshll.u32 %v7229, 16
      %v7438 = vrot.slane %v7436, 1
      %v7439 = vsel %vm3712, %v7434, %v7438
      %v7440 = vshrl.u32 %v7229, 16
      %v7443 = vshrl.u32 %v7283, 16
      %v7445 = vshll.u32 %v7283, 16
      %v7447 = vrot.slane %v7445, 1
      %v7448 = vor.u32 %v7443, %v7447
      %v7450 = vshll.u32 %v7231, 16
      %v7452 = vrot.slane %v7450, 1
      %v7453 = vsel %vm3712, %v7448, %v7452
      %v7454 = vshrl.u32 %v7231, 16
      %v7457 = vshrl.u32 %v7284, 16
      %v7459 = vshll.u32 %v7284, 16
      %v7461 = vrot.slane %v7459, 1
      %v7462 = vor.u32 %v7457, %v7461
      %v7464 = vshll.u32 %v7233, 16
      %v7466 = vrot.slane %v7464, 1
      %v7467 = vsel %vm3712, %v7462, %v7466
      %v7468 = vshrl.u32 %v7233, 16
      %v7471 = vshrl.u32 %v7285, 16
      %v7473 = vshll.u32 %v7285, 16
      %v7475 = vrot.slane %v7473, 1
      %v7476 = vor.u32 %v7471, %v7475
      %v7478 = vshll.u32 %v7235, 16
      %v7480 = vrot.slane %v7478, 1
      %v7481 = vsel %vm3712, %v7476, %v7480
      %v7482 = vshrl.u32 %v7235, 16
      %v7485 = vshrl.u32 %v7286, 16
      %v7487 = vshll.u32 %v7286, 16
      %v7489 = vrot.slane %v7487, 1
      %v7490 = vor.u32 %v7485, %v7489
      %v7492 = vshll.u32 %v7237, 16
      %v7494 = vrot.slane %v7492, 1
      %v7495 = vsel %vm3712, %v7490, %v7494
      %v7496 = vshrl.u32 %v7237, 16
      %v7499 = vshrl.u32 %v7287, 16
      %v7501 = vshll.u32 %v7287, 16
      %v7503 = vrot.slane %v7501, 1
      %v7504 = vor.u32 %v7499, %v7503
      %v7506 = vshll.u32 %v7239, 16
      %v7508 = vrot.slane %v7506, 1
      %v7509 = vsel %vm3712, %v7504, %v7508
      %v7510 = vshrl.u32 %v7239, 16
      %v7544 = vunpack.c.l.b16 %v7064
      %v7545 = vunpack.c.l.b16 %v7065
      %v7546 = vunpack.c.l.b16 %v7066
      %v7547 = vunpack.c.l.b16 %v7067
      %v7548 = vunpack.c.l.b16 %v7068
      %v7549 = vunpack.c.l.b16 %v7069
      %v7550 = vunpack.c.l.b16 %v7070
      %v7551 = vunpack.c.l.b16 %v7071
      %v7552 = vunpack.c.l.b16 %v7072
      %v7553 = vunpack.c.l.b16 %v7073
      %v7554 = vunpack.c.l.b16 %v7074
      %v7555 = vunpack.c.l.b16 %v7075
      %v7556 = vunpack.c.l.b16 %v7076
      %v7557 = vunpack.c.l.b16 %v7077
      %v7558 = vunpack.c.l.b16 %v7078
      %v7559 = vunpack.c.l.b16 %v7079
      %v7560 = vunpack.c.l.b16 %v7080
      %v7561 = vunpack.c.l.b16 %v7081
      %v7562 = vunpack.c.l.b16 %v7082
      %v7563 = vunpack.c.l.b16 %v7083
      %v7564 = vunpack.c.l.b16 %v7084
      %v7565 = vunpack.c.l.b16 %v7085
      %v7566 = vunpack.c.l.b16 %v7086
      %v7567 = vunpack.c.l.b16 %v7087
      %v7568 = vunpack.c.l.b16 %v7088
      %v7569 = vunpack.c.l.b16 %v7089
      %v7570 = vunpack.c.l.b16 %v7090
      %v7571 = vunpack.c.l.b16 %v7091
      %v7572 = vunpack.c.l.b16 %v7092
      %v7573 = vunpack.c.l.b16 %v7093
      %v7574 = vunpack.c.l.b16 %v7094
      %v7575 = vunpack.c.l.b16 %v7095
      %v7576 = vpack.c.b16 %v7161, %v7544
      %v7577 = vpack.c.b16 %v7545, %v7545
      %v7578 = vpack.c.b16 %v7164, %v7546
      %v7579 = vpack.c.b16 %v7547, %v7547
      %v7580 = vpack.c.b16 %v7167, %v7548
      %v7581 = vpack.c.b16 %v7549, %v7549
      %v7582 = vpack.c.b16 %v7170, %v7550
      %v7583 = vpack.c.b16 %v7551, %v7551
      %v7584 = vpack.c.b16 %v7173, %v7552
      %v7585 = vpack.c.b16 %v7553, %v7553
      %v7586 = vpack.c.b16 %v7176, %v7554
      %v7587 = vpack.c.b16 %v7555, %v7555
      %v7588 = vpack.c.b16 %v7179, %v7556
      %v7589 = vpack.c.b16 %v7557, %v7557
      %v7590 = vpack.c.b16 %v7182, %v7558
      %v7591 = vpack.c.b16 %v7559, %v7559
      %v7592 = vpack.c.b16 %v7185, %v7560
      %v7593 = vpack.c.b16 %v7561, %v7561
      %v7594 = vpack.c.b16 %v7188, %v7562
      %v7595 = vpack.c.b16 %v7563, %v7563
      %v7596 = vpack.c.b16 %v7191, %v7564
      %v7597 = vpack.c.b16 %v7565, %v7565
      %v7598 = vpack.c.b16 %v7194, %v7566
      %v7599 = vpack.c.b16 %v7567, %v7567
      %v7600 = vpack.c.b16 %v7197, %v7568
      %v7601 = vpack.c.b16 %v7569, %v7569
      %v7602 = vpack.c.b16 %v7200, %v7570
      %v7603 = vpack.c.b16 %v7571, %v7571
      %v7604 = vpack.c.b16 %v7203, %v7572
      %v7605 = vpack.c.b16 %v7573, %v7573
      %v7606 = vpack.c.b16 %v7206, %v7574
      %v7607 = vpack.c.b16 %v7575, %v7575
      %v7609 = vshrl.u32 %v7576, 16
      %v7611 = vrot.slane %v7609, 1
      %v7612 = vshll.u32 %v7576, 16
      %v7614 = vrot.slane %v7612, 2
      %v7615 = vor.u32 %v7611, %v7614
      %v7617 = vshrl.u32 %v7577, 16
      %v7619 = vrot.slane %v7617, 1
      %v7620 = vshll.u32 %v7577, 16
      %v7622 = vrot.slane %v7620, 2
      %v7623 = vor.u32 %v7619, %v7622
      %v7624 = vsel %vm4065, %v7615, %v7623
      %v7626 = vshrl.u32 %v7578, 16
      %v7628 = vrot.slane %v7626, 1
      %v7629 = vshll.u32 %v7578, 16
      %v7631 = vrot.slane %v7629, 2
      %v7632 = vor.u32 %v7628, %v7631
      %v7634 = vshrl.u32 %v7579, 16
      %v7636 = vrot.slane %v7634, 1
      %v7637 = vshll.u32 %v7579, 16
      %v7639 = vrot.slane %v7637, 2
      %v7640 = vor.u32 %v7636, %v7639
      %v7641 = vsel %vm4065, %v7632, %v7640
      %v7643 = vshrl.u32 %v7580, 16
      %v7645 = vrot.slane %v7643, 1
      %v7646 = vshll.u32 %v7580, 16
      %v7648 = vrot.slane %v7646, 2
      %v7649 = vor.u32 %v7645, %v7648
      %v7651 = vshrl.u32 %v7581, 16
      %v7653 = vrot.slane %v7651, 1
      %v7654 = vshll.u32 %v7581, 16
      %v7656 = vrot.slane %v7654, 2
      %v7657 = vor.u32 %v7653, %v7656
      %v7658 = vsel %vm4065, %v7649, %v7657
      %v7660 = vshrl.u32 %v7582, 16
      %v7662 = vrot.slane %v7660, 1
      %v7663 = vshll.u32 %v7582, 16
      %v7665 = vrot.slane %v7663, 2
      %v7666 = vor.u32 %v7662, %v7665
      %v7668 = vshrl.u32 %v7583, 16
      %v7670 = vrot.slane %v7668, 1
      %v7671 = vshll.u32 %v7583, 16
      %v7673 = vrot.slane %v7671, 2
      %v7674 = vor.u32 %v7670, %v7673
      %v7675 = vsel %vm4065, %v7666, %v7674
      %v7677 = vshrl.u32 %v7584, 16
      %v7679 = vrot.slane %v7677, 1
      %v7680 = vshll.u32 %v7584, 16
      %v7682 = vrot.slane %v7680, 2
      %v7683 = vor.u32 %v7679, %v7682
      %v7685 = vshrl.u32 %v7585, 16
      %v7687 = vrot.slane %v7685, 1
      %v7688 = vshll.u32 %v7585, 16
      %v7690 = vrot.slane %v7688, 2
      %v7691 = vor.u32 %v7687, %v7690
      %v7692 = vsel %vm4065, %v7683, %v7691
      %v7694 = vshrl.u32 %v7586, 16
      %v7696 = vrot.slane %v7694, 1
      %v7697 = vshll.u32 %v7586, 16
      %v7699 = vrot.slane %v7697, 2
      %v7700 = vor.u32 %v7696, %v7699
      %v7702 = vshrl.u32 %v7587, 16
      %v7704 = vrot.slane %v7702, 1
      %v7705 = vshll.u32 %v7587, 16
      %v7707 = vrot.slane %v7705, 2
      %v7708 = vor.u32 %v7704, %v7707
      %v7709 = vsel %vm4065, %v7700, %v7708
      %v7711 = vshrl.u32 %v7588, 16
      %v7713 = vrot.slane %v7711, 1
      %v7714 = vshll.u32 %v7588, 16
      %v7716 = vrot.slane %v7714, 2
      %v7717 = vor.u32 %v7713, %v7716
      %v7719 = vshrl.u32 %v7589, 16
      %v7721 = vrot.slane %v7719, 1
      %v7722 = vshll.u32 %v7589, 16
      %v7724 = vrot.slane %v7722, 2
      %v7725 = vor.u32 %v7721, %v7724
      %v7726 = vsel %vm4065, %v7717, %v7725
      %v7728 = vshrl.u32 %v7590, 16
      %v7730 = vrot.slane %v7728, 1
      %v7731 = vshll.u32 %v7590, 16
      %v7733 = vrot.slane %v7731, 2
      %v7734 = vor.u32 %v7730, %v7733
      %v7736 = vshrl.u32 %v7591, 16
      %v7738 = vrot.slane %v7736, 1
      %v7739 = vshll.u32 %v7591, 16
      %v7741 = vrot.slane %v7739, 2
      %v7742 = vor.u32 %v7738, %v7741
      %v7743 = vsel %vm4065, %v7734, %v7742
      %v7745 = vshrl.u32 %v7592, 16
      %v7747 = vrot.slane %v7745, 1
      %v7748 = vshll.u32 %v7592, 16
      %v7750 = vrot.slane %v7748, 2
      %v7751 = vor.u32 %v7747, %v7750
      %v7753 = vshrl.u32 %v7593, 16
      %v7755 = vrot.slane %v7753, 1
      %v7756 = vshll.u32 %v7593, 16
      %v7758 = vrot.slane %v7756, 2
      %v7759 = vor.u32 %v7755, %v7758
      %v7760 = vsel %vm4065, %v7751, %v7759
      %v7762 = vshrl.u32 %v7594, 16
      %v7764 = vrot.slane %v7762, 1
      %v7765 = vshll.u32 %v7594, 16
      %v7767 = vrot.slane %v7765, 2
      %v7768 = vor.u32 %v7764, %v7767
      %v7770 = vshrl.u32 %v7595, 16
      %v7772 = vrot.slane %v7770, 1
      %v7773 = vshll.u32 %v7595, 16
      %v7775 = vrot.slane %v7773, 2
      %v7776 = vor.u32 %v7772, %v7775
      %v7777 = vsel %vm4065, %v7768, %v7776
      %v7779 = vshrl.u32 %v7596, 16
      %v7781 = vrot.slane %v7779, 1
      %v7782 = vshll.u32 %v7596, 16
      %v7784 = vrot.slane %v7782, 2
      %v7785 = vor.u32 %v7781, %v7784
      %v7787 = vshrl.u32 %v7597, 16
      %v7789 = vrot.slane %v7787, 1
      %v7790 = vshll.u32 %v7597, 16
      %v7792 = vrot.slane %v7790, 2
      %v7793 = vor.u32 %v7789, %v7792
      %v7794 = vsel %vm4065, %v7785, %v7793
      %v7796 = vshrl.u32 %v7598, 16
      %v7798 = vrot.slane %v7796, 1
      %v7799 = vshll.u32 %v7598, 16
      %v7801 = vrot.slane %v7799, 2
      %v7802 = vor.u32 %v7798, %v7801
      %v7804 = vshrl.u32 %v7599, 16
      %v7806 = vrot.slane %v7804, 1
      %v7807 = vshll.u32 %v7599, 16
      %v7809 = vrot.slane %v7807, 2
      %v7810 = vor.u32 %v7806, %v7809
      %v7811 = vsel %vm4065, %v7802, %v7810
      %v7813 = vshrl.u32 %v7600, 16
      %v7815 = vrot.slane %v7813, 1
      %v7816 = vshll.u32 %v7600, 16
      %v7818 = vrot.slane %v7816, 2
      %v7819 = vor.u32 %v7815, %v7818
      %v7821 = vshrl.u32 %v7601, 16
      %v7823 = vrot.slane %v7821, 1
      %v7824 = vshll.u32 %v7601, 16
      %v7826 = vrot.slane %v7824, 2
      %v7827 = vor.u32 %v7823, %v7826
      %v7828 = vsel %vm4065, %v7819, %v7827
      %v7830 = vshrl.u32 %v7602, 16
      %v7832 = vrot.slane %v7830, 1
      %v7833 = vshll.u32 %v7602, 16
      %v7835 = vrot.slane %v7833, 2
      %v7836 = vor.u32 %v7832, %v7835
      %v7838 = vshrl.u32 %v7603, 16
      %v7840 = vrot.slane %v7838, 1
      %v7841 = vshll.u32 %v7603, 16
      %v7843 = vrot.slane %v7841, 2
      %v7844 = vor.u32 %v7840, %v7843
      %v7845 = vsel %vm4065, %v7836, %v7844
      %v7847 = vshrl.u32 %v7604, 16
      %v7849 = vrot.slane %v7847, 1
      %v7850 = vshll.u32 %v7604, 16
      %v7852 = vrot.slane %v7850, 2
      %v7853 = vor.u32 %v7849, %v7852
      %v7855 = vshrl.u32 %v7605, 16
      %v7857 = vrot.slane %v7855, 1
      %v7858 = vshll.u32 %v7605, 16
      %v7860 = vrot.slane %v7858, 2
      %v7861 = vor.u32 %v7857, %v7860
      %v7862 = vsel %vm4065, %v7853, %v7861
      %v7864 = vshrl.u32 %v7606, 16
      %v7866 = vrot.slane %v7864, 1
      %v7867 = vshll.u32 %v7606, 16
      %v7869 = vrot.slane %v7867, 2
      %v7870 = vor.u32 %v7866, %v7869
      %v7872 = vshrl.u32 %v7607, 16
      %v7874 = vrot.slane %v7872, 1
      %v7875 = vshll.u32 %v7607, 16
      %v7877 = vrot.slane %v7875, 2
      %v7878 = vor.u32 %v7874, %v7877
      %v7879 = vsel %vm4065, %v7870, %v7878
      %v7896 = vunpack.c.l.b16 %v7096
      %v7897 = vunpack.c.l.b16 %v7097
      %v7898 = vunpack.c.l.b16 %v7098
      %v7899 = vunpack.c.l.b16 %v7099
      %v7900 = vunpack.c.l.b16 %v7100
      %v7901 = vunpack.c.l.b16 %v7101
      %v7902 = vunpack.c.l.b16 %v7102
      %v7903 = vunpack.c.l.b16 %v7103
      %v7904 = vunpack.c.l.b16 %v7104
      %v7905 = vunpack.c.l.b16 %v7105
      %v7906 = vunpack.c.l.b16 %v7106
      %v7907 = vunpack.c.l.b16 %v7107
      %v7908 = vunpack.c.l.b16 %v7108
      %v7909 = vunpack.c.l.b16 %v7109
      %v7910 = vunpack.c.l.b16 %v7110
      %v7911 = vunpack.c.l.b16 %v7111
      %v7912 = vpack.c.b16 %v7896, %v7161
      %v7913 = vpack.c.b16 %v7897, %v7164
      %v7914 = vpack.c.b16 %v7898, %v7167
      %v7915 = vpack.c.b16 %v7899, %v7170
      %v7916 = vpack.c.b16 %v7900, %v7173
      %v7917 = vpack.c.b16 %v7901, %v7176
      %v7918 = vpack.c.b16 %v7902, %v7179
      %v7919 = vpack.c.b16 %v7903, %v7182
      %v7920 = vpack.c.b16 %v7904, %v7185
      %v7921 = vpack.c.b16 %v7905, %v7188
      %v7922 = vpack.c.b16 %v7906, %v7191
      %v7923 = vpack.c.b16 %v7907, %v7194
      %v7924 = vpack.c.b16 %v7908, %v7197
      %v7925 = vpack.c.b16 %v7909, %v7200
      %v7926 = vpack.c.b16 %v7910, %v7203
      %v7927 = vpack.c.b16 %v7911, %v7206
      %v7929 = vshrl.u32 %v7912, 16
      %v7931 = vrot.slane %v7929, 7
      %v7932 = vshll.u32 %v7912, 16
      %v7934 = vor.u32 %v7931, %v7932
      %v7936 = vshrl.u32 %v7913, 16
      %v7938 = vrot.slane %v7936, 7
      %v7939 = vshll.u32 %v7913, 16
      %v7941 = vor.u32 %v7938, %v7939
      %v7943 = vshrl.u32 %v7914, 16
      %v7945 = vrot.slane %v7943, 7
      %v7946 = vshll.u32 %v7914, 16
      %v7948 = vor.u32 %v7945, %v7946
      %v7950 = vshrl.u32 %v7915, 16
      %v7952 = vrot.slane %v7950, 7
      %v7953 = vshll.u32 %v7915, 16
      %v7955 = vor.u32 %v7952, %v7953
      %v7957 = vshrl.u32 %v7916, 16
      %v7959 = vrot.slane %v7957, 7
      %v7960 = vshll.u32 %v7916, 16
      %v7962 = vor.u32 %v7959, %v7960
      %v7964 = vshrl.u32 %v7917, 16
      %v7966 = vrot.slane %v7964, 7
      %v7967 = vshll.u32 %v7917, 16
      %v7969 = vor.u32 %v7966, %v7967
      %v7971 = vshrl.u32 %v7918, 16
      %v7973 = vrot.slane %v7971, 7
      %v7974 = vshll.u32 %v7918, 16
      %v7976 = vor.u32 %v7973, %v7974
      %v7978 = vshrl.u32 %v7919, 16
      %v7980 = vrot.slane %v7978, 7
      %v7981 = vshll.u32 %v7919, 16
      %v7983 = vor.u32 %v7980, %v7981
      %v7985 = vshrl.u32 %v7920, 16
      %v7987 = vrot.slane %v7985, 7
      %v7988 = vshll.u32 %v7920, 16
      %v7990 = vor.u32 %v7987, %v7988
      %v7992 = vshrl.u32 %v7921, 16
      %v7994 = vrot.slane %v7992, 7
      %v7995 = vshll.u32 %v7921, 16
      %v7997 = vor.u32 %v7994, %v7995
      %v7999 = vshrl.u32 %v7922, 16
      %v8001 = vrot.slane %v7999, 7
      %v8002 = vshll.u32 %v7922, 16
      %v8004 = vor.u32 %v8001, %v8002
      %v8006 = vshrl.u32 %v7923, 16
      %v8008 = vrot.slane %v8006, 7
      %v8009 = vshll.u32 %v7923, 16
      %v8011 = vor.u32 %v8008, %v8009
      %v8013 = vshrl.u32 %v7924, 16
      %v8015 = vrot.slane %v8013, 7
      %v8016 = vshll.u32 %v7924, 16
      %v8018 = vor.u32 %v8015, %v8016
      %v8020 = vshrl.u32 %v7925, 16
      %v8022 = vrot.slane %v8020, 7
      %v8023 = vshll.u32 %v7925, 16
      %v8025 = vor.u32 %v8022, %v8023
      %v8027 = vshrl.u32 %v7926, 16
      %v8029 = vrot.slane %v8027, 7
      %v8030 = vshll.u32 %v7926, 16
      %v8032 = vor.u32 %v8029, %v8030
      %v8034 = vshrl.u32 %v7927, 16
      %v8036 = vrot.slane %v8034, 7
      %v8037 = vshll.u32 %v7927, 16
      %v8039 = vor.u32 %v8036, %v8037
      %v8042 = vsel %vm451, %v7208, %v7299
      %v8044 = vsel %vm451, %v7209, %v7300
      %v8047 = vsel %vm451, %v7210, %v7313
      %v8049 = vsel %vm451, %v7211, %v7314
      %v8052 = vsel %vm451, %v7212, %v7327
      %v8054 = vsel %vm451, %v7213, %v7328
      %v8057 = vsel %vm451, %v7214, %v7341
      %v8059 = vsel %vm451, %v7215, %v7342
      %v8062 = vsel %vm451, %v7216, %v7355
      %v8064 = vsel %vm451, %v7217, %v7356
      %v8067 = vsel %vm451, %v7218, %v7369
      %v8069 = vsel %vm451, %v7219, %v7370
      %v8072 = vsel %vm451, %v7220, %v7383
      %v8074 = vsel %vm451, %v7221, %v7384
      %v8077 = vsel %vm451, %v7222, %v7397
      %v8079 = vsel %vm451, %v7223, %v7398
      %v8082 = vsel %vm451, %v7224, %v7411
      %v8084 = vsel %vm451, %v7225, %v7412
      %v8087 = vsel %vm451, %v7226, %v7425
      %v8089 = vsel %vm451, %v7227, %v7426
      %v8092 = vsel %vm451, %v7228, %v7439
      %v8094 = vsel %vm451, %v7229, %v7440
      %v8097 = vsel %vm451, %v7230, %v7453
      %v8099 = vsel %vm451, %v7231, %v7454
      %v8102 = vsel %vm451, %v7232, %v7467
      %v8104 = vsel %vm451, %v7233, %v7468
      %v8107 = vsel %vm451, %v7234, %v7481
      %v8109 = vsel %vm451, %v7235, %v7482
      %v8112 = vsel %vm451, %v7236, %v7495
      %v8114 = vsel %vm451, %v7237, %v7496
      %v8117 = vsel %vm451, %v7238, %v7509
      %v8119 = vsel %vm451, %v7239, %v7510
      %v8121 = vsel %vm2329, %v8042, %v7624
      %v8123 = vsel %vm2329, %v8044, %v7619
      %v8125 = vsel %vm2329, %v8047, %v7641
      %v8127 = vsel %vm2329, %v8049, %v7636
      %v8129 = vsel %vm2329, %v8052, %v7658
      %v8131 = vsel %vm2329, %v8054, %v7653
      %v8133 = vsel %vm2329, %v8057, %v7675
      %v8135 = vsel %vm2329, %v8059, %v7670
      %v8137 = vsel %vm2329, %v8062, %v7692
      %v8139 = vsel %vm2329, %v8064, %v7687
      %v8141 = vsel %vm2329, %v8067, %v7709
      %v8143 = vsel %vm2329, %v8069, %v7704
      %v8145 = vsel %vm2329, %v8072, %v7726
      %v8147 = vsel %vm2329, %v8074, %v7721
      %v8149 = vsel %vm2329, %v8077, %v7743
      %v8151 = vsel %vm2329, %v8079, %v7738
      %v8153 = vsel %vm2329, %v8082, %v7760
      %v8155 = vsel %vm2329, %v8084, %v7755
      %v8157 = vsel %vm2329, %v8087, %v7777
      %v8159 = vsel %vm2329, %v8089, %v7772
      %v8161 = vsel %vm2329, %v8092, %v7794
      %v8163 = vsel %vm2329, %v8094, %v7789
      %v8165 = vsel %vm2329, %v8097, %v7811
      %v8167 = vsel %vm2329, %v8099, %v7806
      %v8169 = vsel %vm2329, %v8102, %v7828
      %v8171 = vsel %vm2329, %v8104, %v7823
      %v8173 = vsel %vm2329, %v8107, %v7845
      %v8175 = vsel %vm2329, %v8109, %v7840
      %v8177 = vsel %vm2329, %v8112, %v7862
      %v8179 = vsel %vm2329, %v8114, %v7857
      %v8181 = vsel %vm2329, %v8117, %v7879
      %v8183 = vsel %vm2329, %v8119, %v7874
      %v8185 = vsel %vm2394, %v8121, %v7934
      %v8187 = vsel %vm2394, %v8123, %v7931
      %v8189 = vsel %vm2394, %v8125, %v7941
      %v8191 = vsel %vm2394, %v8127, %v7938
      %v8193 = vsel %vm2394, %v8129, %v7948
      %v8195 = vsel %vm2394, %v8131, %v7945
      %v8197 = vsel %vm2394, %v8133, %v7955
      %v8199 = vsel %vm2394, %v8135, %v7952
      %v8201 = vsel %vm2394, %v8137, %v7962
      %v8203 = vsel %vm2394, %v8139, %v7959
      %v8205 = vsel %vm2394, %v8141, %v7969
      %v8207 = vsel %vm2394, %v8143, %v7966
      %v8209 = vsel %vm2394, %v8145, %v7976
      %v8211 = vsel %vm2394, %v8147, %v7973
      %v8213 = vsel %vm2394, %v8149, %v7983
      %v8215 = vsel %vm2394, %v8151, %v7980
      %v8217 = vsel %vm2394, %v8153, %v7990
      %v8219 = vsel %vm2394, %v8155, %v7987
      %v8221 = vsel %vm2394, %v8157, %v7997
      %v8223 = vsel %vm2394, %v8159, %v7994
      %v8225 = vsel %vm2394, %v8161, %v8004
      %v8227 = vsel %vm2394, %v8163, %v8001
      %v8229 = vsel %vm2394, %v8165, %v8011
      %v8231 = vsel %vm2394, %v8167, %v8008
      %v8233 = vsel %vm2394, %v8169, %v8018
      %v8235 = vsel %vm2394, %v8171, %v8015
      %v8237 = vsel %vm2394, %v8173, %v8025
      %v8239 = vsel %vm2394, %v8175, %v8022
      %v8241 = vsel %vm2394, %v8177, %v8032
      %v8243 = vsel %vm2394, %v8179, %v8029
      %v8245 = vsel %vm2394, %v8181, %v8039
      %v8247 = vsel %vm2394, %v8183, %v8036
      %v8248 = vshrl.u32 %v8185, 16
      %v8250 = vshll.u32 %v8185, 16
      %v8252 = vrot.slane %v8250, 1
      %v8253 = vor.u32 %v8248, %v8252
      %v8254 = vshll.u32 %v8187, 16
      %v8256 = vrot.slane %v8254, 1
      %v8257 = vsel %vm3712, %v8253, %v8256
      %v8258 = vshrl.u32 %v8189, 16
      %v8260 = vshll.u32 %v8189, 16
      %v8262 = vrot.slane %v8260, 1
      %v8263 = vor.u32 %v8258, %v8262
      %v8264 = vshll.u32 %v8191, 16
      %v8266 = vrot.slane %v8264, 1
      %v8267 = vsel %vm3712, %v8263, %v8266
      %v8268 = vshrl.u32 %v8193, 16
      %v8270 = vshll.u32 %v8193, 16
      %v8272 = vrot.slane %v8270, 1
      %v8273 = vor.u32 %v8268, %v8272
      %v8274 = vshll.u32 %v8195, 16
      %v8276 = vrot.slane %v8274, 1
      %v8277 = vsel %vm3712, %v8273, %v8276
      %v8278 = vshrl.u32 %v8197, 16
      %v8280 = vshll.u32 %v8197, 16
      %v8282 = vrot.slane %v8280, 1
      %v8283 = vor.u32 %v8278, %v8282
      %v8284 = vshll.u32 %v8199, 16
      %v8286 = vrot.slane %v8284, 1
      %v8287 = vsel %vm3712, %v8283, %v8286
      %v8288 = vshrl.u32 %v8201, 16
      %v8290 = vshll.u32 %v8201, 16
      %v8292 = vrot.slane %v8290, 1
      %v8293 = vor.u32 %v8288, %v8292
      %v8294 = vshll.u32 %v8203, 16
      %v8296 = vrot.slane %v8294, 1
      %v8297 = vsel %vm3712, %v8293, %v8296
      %v8298 = vshrl.u32 %v8205, 16
      %v8300 = vshll.u32 %v8205, 16
      %v8302 = vrot.slane %v8300, 1
      %v8303 = vor.u32 %v8298, %v8302
      %v8304 = vshll.u32 %v8207, 16
      %v8306 = vrot.slane %v8304, 1
      %v8307 = vsel %vm3712, %v8303, %v8306
      %v8308 = vshrl.u32 %v8209, 16
      %v8310 = vshll.u32 %v8209, 16
      %v8312 = vrot.slane %v8310, 1
      %v8313 = vor.u32 %v8308, %v8312
      %v8314 = vshll.u32 %v8211, 16
      %v8316 = vrot.slane %v8314, 1
      %v8317 = vsel %vm3712, %v8313, %v8316
      %v8318 = vshrl.u32 %v8213, 16
      %v8320 = vshll.u32 %v8213, 16
      %v8322 = vrot.slane %v8320, 1
      %v8323 = vor.u32 %v8318, %v8322
      %v8324 = vshll.u32 %v8215, 16
      %v8326 = vrot.slane %v8324, 1
      %v8327 = vsel %vm3712, %v8323, %v8326
      %v8328 = vshrl.u32 %v8217, 16
      %v8330 = vshll.u32 %v8217, 16
      %v8332 = vrot.slane %v8330, 1
      %v8333 = vor.u32 %v8328, %v8332
      %v8334 = vshll.u32 %v8219, 16
      %v8336 = vrot.slane %v8334, 1
      %v8337 = vsel %vm3712, %v8333, %v8336
      %v8338 = vshrl.u32 %v8221, 16
      %v8340 = vshll.u32 %v8221, 16
      %v8342 = vrot.slane %v8340, 1
      %v8343 = vor.u32 %v8338, %v8342
      %v8344 = vshll.u32 %v8223, 16
      %v8346 = vrot.slane %v8344, 1
      %v8347 = vsel %vm3712, %v8343, %v8346
      %v8348 = vshrl.u32 %v8225, 16
      %v8350 = vshll.u32 %v8225, 16
      %v8352 = vrot.slane %v8350, 1
      %v8353 = vor.u32 %v8348, %v8352
      %v8354 = vshll.u32 %v8227, 16
      %v8356 = vrot.slane %v8354, 1
      %v8357 = vsel %vm3712, %v8353, %v8356
      %v8358 = vshrl.u32 %v8229, 16
      %v8360 = vshll.u32 %v8229, 16
      %v8362 = vrot.slane %v8360, 1
      %v8363 = vor.u32 %v8358, %v8362
      %v8364 = vshll.u32 %v8231, 16
      %v8366 = vrot.slane %v8364, 1
      %v8367 = vsel %vm3712, %v8363, %v8366
      %v8368 = vshrl.u32 %v8233, 16
      %v8370 = vshll.u32 %v8233, 16
      %v8372 = vrot.slane %v8370, 1
      %v8373 = vor.u32 %v8368, %v8372
      %v8374 = vshll.u32 %v8235, 16
      %v8376 = vrot.slane %v8374, 1
      %v8377 = vsel %vm3712, %v8373, %v8376
      %v8378 = vshrl.u32 %v8237, 16
      %v8380 = vshll.u32 %v8237, 16
      %v8382 = vrot.slane %v8380, 1
      %v8383 = vor.u32 %v8378, %v8382
      %v8384 = vshll.u32 %v8239, 16
      %v8386 = vrot.slane %v8384, 1
      %v8387 = vsel %vm3712, %v8383, %v8386
      %v8388 = vshrl.u32 %v8241, 16
      %v8390 = vshll.u32 %v8241, 16
      %v8392 = vrot.slane %v8390, 1
      %v8393 = vor.u32 %v8388, %v8392
      %v8394 = vshll.u32 %v8243, 16
      %v8396 = vrot.slane %v8394, 1
      %v8397 = vsel %vm3712, %v8393, %v8396
      %v8398 = vshrl.u32 %v8245, 16
      %v8400 = vshll.u32 %v8245, 16
      %v8402 = vrot.slane %v8400, 1
      %v8403 = vor.u32 %v8398, %v8402
      %v8404 = vshll.u32 %v8247, 16
      %v8406 = vrot.slane %v8404, 1
      %v8407 = vsel %vm3712, %v8403, %v8406
      %s8408 = scalar_lea.vmem %s3, 40
      %v8409 = vld [vmem:[%s8408] sm:$0xf]
      %v8410 = vld [vmem:[%s8408 + $0x4] sm:$0xf]
      %v8413 = vunpack.c.l.b16 %v8409
      %v8414 = vunpack.c.l.b16 %v8410
      %v8415 = vpack.c.b16 %v8414, %v8413
      %v8418 = vsel %vm3015, %v8257, 0
      %v8421 = vsel %vm3015, %v8267, 0
      %v8424 = vsel %vm3015, %v8277, 0
      %v8427 = vsel %vm3015, %v8287, 0
      %v8430 = vsel %vm3015, %v8297, 0
      %v8433 = vsel %vm3015, %v8307, 0
      %v8436 = vsel %vm3015, %v8317, 0
      %v8439 = vsel %vm3015, %v8327, 0
      %v8442 = vsel %vm3015, %v8337, 0
      %v8445 = vsel %vm3015, %v8347, 0
      %v8448 = vsel %vm3015, %v8357, 0
      %v8451 = vsel %vm3015, %v8367, 0
      %v8454 = vsel %vm3015, %v8377, 0
      %v8457 = vsel %vm3015, %v8387, 0
      %v8460 = vsel %vm3015, %v8397, 0
      %v8463 = vsel %vm3015, %v8407, 0
      %8465 = vmatpush.bf16.msra.mxu0 0
      %8466 = vmatpush.bf16.msra.mxu0 0
      %8467 = vmatpush.bf16.msra.mxu0 0
      %8468 = vmatpush.bf16.msra.mxu0 0
      %8469 = vmatpush.bf16.msra.mxu0 0
      %8470 = vmatpush.bf16.msra.mxu0 0
      %8471 = vmatpush.bf16.msra.mxu0 0
      %8472 = vmatpush.bf16.msra.mxu0 %v8415
      %8473 = vmatmul.bf16.gmra.mxu0 %v8418
      %v8474 = vpop.f32.mrf.mxu0
      %v8475 = vadd.f32 0.0, %v8474
      %v8476 = vpop.f32.mrf.mxu0
      %v8477 = vadd.f32 0.0, %v8476
      %8478 = vmatmul.bf16.gmra.mxu0 %v8421
      %v8479 = vpop.f32.mrf.mxu0
      %v8480 = vadd.f32 0.0, %v8479
      %v8481 = vpop.f32.mrf.mxu0
      %v8482 = vadd.f32 0.0, %v8481
      %8483 = vmatmul.bf16.gmra.mxu0 %v8424
      %v8484 = vpop.f32.mrf.mxu0
      %v8485 = vadd.f32 0.0, %v8484
      %v8486 = vpop.f32.mrf.mxu0
      %v8487 = vadd.f32 0.0, %v8486
      %8488 = vmatmul.bf16.gmra.mxu0 %v8427
      %v8489 = vpop.f32.mrf.mxu0
      %v8490 = vadd.f32 0.0, %v8489
      %v8491 = vpop.f32.mrf.mxu0
      %v8492 = vadd.f32 0.0, %v8491
      %8493 = vmatmul.bf16.gmra.mxu0 %v8430
      %v8494 = vpop.f32.mrf.mxu0
      %v8495 = vadd.f32 0.0, %v8494
      %v8496 = vpop.f32.mrf.mxu0
      %v8497 = vadd.f32 0.0, %v8496
      %8498 = vmatmul.bf16.gmra.mxu0 %v8433
      %v8499 = vpop.f32.mrf.mxu0
      %v8500 = vadd.f32 0.0, %v8499
      %v8501 = vpop.f32.mrf.mxu0
      %v8502 = vadd.f32 0.0, %v8501
      %8503 = vmatmul.bf16.gmra.mxu0 %v8436
      %v8504 = vpop.f32.mrf.mxu0
      %v8505 = vadd.f32 0.0, %v8504
      %v8506 = vpop.f32.mrf.mxu0
      %v8507 = vadd.f32 0.0, %v8506
      %8508 = vmatmul.bf16.gmra.mxu0 %v8439
      %v8509 = vpop.f32.mrf.mxu0
      %v8510 = vadd.f32 0.0, %v8509
      %v8511 = vpop.f32.mrf.mxu0
      %v8512 = vadd.f32 0.0, %v8511
      %8513 = vmatmul.bf16.gmra.mxu0 %v8442
      %v8514 = vpop.f32.mrf.mxu0
      %v8515 = vadd.f32 0.0, %v8514
      %v8516 = vpop.f32.mrf.mxu0
      %v8517 = vadd.f32 0.0, %v8516
      %8518 = vmatmul.bf16.gmra.mxu0 %v8445
      %v8519 = vpop.f32.mrf.mxu0
      %v8520 = vadd.f32 0.0, %v8519
      %v8521 = vpop.f32.mrf.mxu0
      %v8522 = vadd.f32 0.0, %v8521
      %8523 = vmatmul.bf16.gmra.mxu0 %v8448
      %v8524 = vpop.f32.mrf.mxu0
      %v8525 = vadd.f32 0.0, %v8524
      %v8526 = vpop.f32.mrf.mxu0
      %v8527 = vadd.f32 0.0, %v8526
      %8528 = vmatmul.bf16.gmra.mxu0 %v8451
      %v8529 = vpop.f32.mrf.mxu0
      %v8530 = vadd.f32 0.0, %v8529
      %v8531 = vpop.f32.mrf.mxu0
      %v8532 = vadd.f32 0.0, %v8531
      %8533 = vmatmul.bf16.gmra.mxu0 %v8454
      %v8534 = vpop.f32.mrf.mxu0
      %v8535 = vadd.f32 0.0, %v8534
      %v8536 = vpop.f32.mrf.mxu0
      %v8537 = vadd.f32 0.0, %v8536
      %8538 = vmatmul.bf16.gmra.mxu0 %v8457
      %v8539 = vpop.f32.mrf.mxu0
      %v8540 = vadd.f32 0.0, %v8539
      %v8541 = vpop.f32.mrf.mxu0
      %v8542 = vadd.f32 0.0, %v8541
      %8543 = vmatmul.bf16.gmra.mxu0 %v8460
      %v8544 = vpop.f32.mrf.mxu0
      %v8545 = vadd.f32 0.0, %v8544
      %v8546 = vpop.f32.mrf.mxu0
      %v8547 = vadd.f32 0.0, %v8546
      %8548 = vmatmul.bf16.gmra.mxu0 %v8463
      %v8549 = vpop.f32.mrf.mxu0
      %v8550 = vadd.f32 0.0, %v8549
      %v8551 = vpop.f32.mrf.mxu0
      %v8552 = vadd.f32 0.0, %v8551
      %8553 = vdwg.mxu0
      %v8554 = vadd.f32 %v6968, %v8475
      %v8555 = vadd.f32 %v6969, %v8477
      %v8556 = vadd.f32 %v6970, %v8480
      %v8557 = vadd.f32 %v6971, %v8482
      %v8558 = vadd.f32 %v6972, %v8485
      %v8559 = vadd.f32 %v6973, %v8487
      %v8560 = vadd.f32 %v6974, %v8490
      %v8561 = vadd.f32 %v6975, %v8492
      %v8562 = vadd.f32 %v6976, %v8495
      %v8563 = vadd.f32 %v6977, %v8497
      %v8564 = vadd.f32 %v6978, %v8500
      %v8565 = vadd.f32 %v6979, %v8502
      %v8566 = vadd.f32 %v6980, %v8505
      %v8567 = vadd.f32 %v6981, %v8507
      %v8568 = vadd.f32 %v6982, %v8510
      %v8569 = vadd.f32 %v6983, %v8512
      %v8570 = vadd.f32 %v6984, %v8515
      %v8571 = vadd.f32 %v6985, %v8517
      %v8572 = vadd.f32 %v6986, %v8520
      %v8573 = vadd.f32 %v6987, %v8522
      %v8574 = vadd.f32 %v6988, %v8525
      %v8575 = vadd.f32 %v6989, %v8527
      %v8576 = vadd.f32 %v6990, %v8530
      %v8577 = vadd.f32 %v6991, %v8532
      %v8578 = vadd.f32 %v6992, %v8535
      %v8579 = vadd.f32 %v6993, %v8537
      %v8580 = vadd.f32 %v6994, %v8540
      %v8581 = vadd.f32 %v6995, %v8542
      %v8582 = vadd.f32 %v6996, %v8545
      %v8583 = vadd.f32 %v6997, %v8547
      %v8584 = vadd.f32 %v6998, %v8550
      %v8585 = vadd.f32 %v6999, %v8552
      %s8586 = scalar_lea.vmem [#allocation2], 144
      %v8587 = vld [vmem:[%s8586] sm:$0x8]
      %v8588 = vld [vmem:[%s8586 + $0x4] sm:$0xf]
      %v8589 = vld [vmem:[%s8586 + $0x8] sm:$0xf]
      %v8590 = vld [vmem:[%s8586 + $0x10] sm:$0x8]
      %v8591 = vld [vmem:[%s8586 + $0x14] sm:$0xf]
      %v8592 = vld [vmem:[%s8586 + $0x18] sm:$0xf]
      %v8593 = vld [vmem:[%s8586 + $0x20] sm:$0x8]
      %v8594 = vld [vmem:[%s8586 + $0x24] sm:$0xf]
      %v8595 = vld [vmem:[%s8586 + $0x28] sm:$0xf]
      %v8596 = vld [vmem:[%s8586 + $0x30] sm:$0x8]
      %v8597 = vld [vmem:[%s8586 + $0x34] sm:$0xf]
      %v8598 = vld [vmem:[%s8586 + $0x38] sm:$0xf]
      %v8599 = vld [vmem:[%s8586 + $0x40] sm:$0x8]
      %v8600 = vld [vmem:[%s8586 + $0x44] sm:$0xf]
      %v8601 = vld [vmem:[%s8586 + $0x48] sm:$0xf]
      %v8602 = vld [vmem:[%s8586 + $0x50] sm:$0x8]
      %v8603 = vld [vmem:[%s8586 + $0x54] sm:$0xf]
      %v8604 = vld [vmem:[%s8586 + $0x58] sm:$0xf]
      %v8605 = vld [vmem:[%s8586 + $0x60] sm:$0x8]
      %v8606 = vld [vmem:[%s8586 + $0x64] sm:$0xf]
      %v8607 = vld [vmem:[%s8586 + $0x68] sm:$0xf]
      %v8608 = vld [vmem:[%s8586 + $0x70] sm:$0x8]
      %v8609 = vld [vmem:[%s8586 + $0x74] sm:$0xf]
      %v8610 = vld [vmem:[%s8586 + $0x78] sm:$0xf]
      %v8611 = vld [vmem:[%s8586 + $0x80] sm:$0x8]
      %v8612 = vld [vmem:[%s8586 + $0x84] sm:$0xf]
      %v8613 = vld [vmem:[%s8586 + $0x88] sm:$0xf]
      %v8614 = vld [vmem:[%s8586 + $0x90] sm:$0x8]
      %v8615 = vld [vmem:[%s8586 + $0x94] sm:$0xf]
      %v8616 = vld [vmem:[%s8586 + $0x98] sm:$0xf]
      %v8617 = vld [vmem:[%s8586 + $0xa0] sm:$0x8]
      %v8618 = vld [vmem:[%s8586 + $0xa4] sm:$0xf]
      %v8619 = vld [vmem:[%s8586 + $0xa8] sm:$0xf]
      %v8620 = vld [vmem:[%s8586 + $0xb0] sm:$0x8]
      %v8621 = vld [vmem:[%s8586 + $0xb4] sm:$0xf]
      %v8622 = vld [vmem:[%s8586 + $0xb8] sm:$0xf]
      %v8623 = vld [vmem:[%s8586 + $0xc0] sm:$0x8]
      %v8624 = vld [vmem:[%s8586 + $0xc4] sm:$0xf]
      %v8625 = vld [vmem:[%s8586 + $0xc8] sm:$0xf]
      %v8626 = vld [vmem:[%s8586 + $0xd0] sm:$0x8]
      %v8627 = vld [vmem:[%s8586 + $0xd4] sm:$0xf]
      %v8628 = vld [vmem:[%s8586 + $0xd8] sm:$0xf]
      %v8629 = vld [vmem:[%s8586 + $0xe0] sm:$0x8]
      %v8630 = vld [vmem:[%s8586 + $0xe4] sm:$0xf]
      %v8631 = vld [vmem:[%s8586 + $0xe8] sm:$0xf]
      %v8632 = vld [vmem:[%s8586 + $0xf0] sm:$0x8]
      %v8633 = vld [vmem:[%s8586 + $0xf4] sm:$0xf]
      %v8634 = vld [vmem:[%s8586 + $0xf8] sm:$0xf]
      %s8635 = scalar_lea.vmem [#allocation2], 160
      %v8636 = vld [vmem:[%s8635] sm:$0x8]
      %v8637 = vld [vmem:[%s8635 + $0x4] sm:$0xf]
      %v8638 = vld [vmem:[%s8635 + $0x8] sm:$0x7]
      %v8639 = vld [vmem:[%s8635 + $0x10] sm:$0x8]
      %v8640 = vld [vmem:[%s8635 + $0x14] sm:$0xf]
      %v8641 = vld [vmem:[%s8635 + $0x18] sm:$0x7]
      %v8642 = vld [vmem:[%s8635 + $0x20] sm:$0x8]
      %v8643 = vld [vmem:[%s8635 + $0x24] sm:$0xf]
      %v8644 = vld [vmem:[%s8635 + $0x28] sm:$0x7]
      %v8645 = vld [vmem:[%s8635 + $0x30] sm:$0x8]
      %v8646 = vld [vmem:[%s8635 + $0x34] sm:$0xf]
      %v8647 = vld [vmem:[%s8635 + $0x38] sm:$0x7]
      %v8648 = vld [vmem:[%s8635 + $0x40] sm:$0x8]
      %v8649 = vld [vmem:[%s8635 + $0x44] sm:$0xf]
      %v8650 = vld [vmem:[%s8635 + $0x48] sm:$0x7]
      %v8651 = vld [vmem:[%s8635 + $0x50] sm:$0x8]
      %v8652 = vld [vmem:[%s8635 + $0x54] sm:$0xf]
      %v8653 = vld [vmem:[%s8635 + $0x58] sm:$0x7]
      %v8654 = vld [vmem:[%s8635 + $0x60] sm:$0x8]
      %v8655 = vld [vmem:[%s8635 + $0x64] sm:$0xf]
      %v8656 = vld [vmem:[%s8635 + $0x68] sm:$0x7]
      %v8657 = vld [vmem:[%s8635 + $0x70] sm:$0x8]
      %v8658 = vld [vmem:[%s8635 + $0x74] sm:$0xf]
      %v8659 = vld [vmem:[%s8635 + $0x78] sm:$0x7]
      %v8660 = vld [vmem:[%s8635 + $0x80] sm:$0x8]
      %v8661 = vld [vmem:[%s8635 + $0x84] sm:$0xf]
      %v8662 = vld [vmem:[%s8635 + $0x88] sm:$0x7]
      %v8663 = vld [vmem:[%s8635 + $0x90] sm:$0x8]
      %v8664 = vld [vmem:[%s8635 + $0x94] sm:$0xf]
      %v8665 = vld [vmem:[%s8635 + $0x98] sm:$0x7]
      %v8666 = vld [vmem:[%s8635 + $0xa0] sm:$0x8]
      %v8667 = vld [vmem:[%s8635 + $0xa4] sm:$0xf]
      %v8668 = vld [vmem:[%s8635 + $0xa8] sm:$0x7]
      %v8669 = vld [vmem:[%s8635 + $0xb0] sm:$0x8]
      %v8670 = vld [vmem:[%s8635 + $0xb4] sm:$0xf]
      %v8671 = vld [vmem:[%s8635 + $0xb8] sm:$0x7]
      %v8672 = vld [vmem:[%s8635 + $0xc0] sm:$0x8]
      %v8673 = vld [vmem:[%s8635 + $0xc4] sm:$0xf]
      %v8674 = vld [vmem:[%s8635 + $0xc8] sm:$0x7]
      %v8675 = vld [vmem:[%s8635 + $0xd0] sm:$0x8]
      %v8676 = vld [vmem:[%s8635 + $0xd4] sm:$0xf]
      %v8677 = vld [vmem:[%s8635 + $0xd8] sm:$0x7]
      %v8678 = vld [vmem:[%s8635 + $0xe0] sm:$0x8]
      %v8679 = vld [vmem:[%s8635 + $0xe4] sm:$0xf]
      %v8680 = vld [vmem:[%s8635 + $0xe8] sm:$0x7]
      %v8681 = vld [vmem:[%s8635 + $0xf0] sm:$0x8]
      %v8682 = vld [vmem:[%s8635 + $0xf4] sm:$0xf]
      %v8683 = vld [vmem:[%s8635 + $0xf8] sm:$0x7]
      %s8684 = scalar_lea.vmem [#allocation2], 192
      %v8685 = vld [vmem:[%s8684] sm:$0xc]
      %v8686 = vld [vmem:[%s8684 + $0x4] sm:$0xf]
      %v8687 = vld [vmem:[%s8684 + $0x8] sm:$0x3]
      %v8688 = vld [vmem:[%s8684 + $0x10] sm:$0xc]
      %v8689 = vld [vmem:[%s8684 + $0x14] sm:$0xf]
      %v8690 = vld [vmem:[%s8684 + $0x18] sm:$0x3]
      %v8691 = vld [vmem:[%s8684 + $0x20] sm:$0xc]
      %v8692 = vld [vmem:[%s8684 + $0x24] sm:$0xf]
      %v8693 = vld [vmem:[%s8684 + $0x28] sm:$0x3]
      %v8694 = vld [vmem:[%s8684 + $0x30] sm:$0xc]
      %v8695 = vld [vmem:[%s8684 + $0x34] sm:$0xf]
      %v8696 = vld [vmem:[%s8684 + $0x38] sm:$0x3]
      %v8697 = vld [vmem:[%s8684 + $0x40] sm:$0xc]
      %v8698 = vld [vmem:[%s8684 + $0x44] sm:$0xf]
      %v8699 = vld [vmem:[%s8684 + $0x48] sm:$0x3]
      %v8700 = vld [vmem:[%s8684 + $0x50] sm:$0xc]
      %v8701 = vld [vmem:[%s8684 + $0x54] sm:$0xf]
      %v8702 = vld [vmem:[%s8684 + $0x58] sm:$0x3]
      %v8703 = vld [vmem:[%s8684 + $0x60] sm:$0xc]
      %v8704 = vld [vmem:[%s8684 + $0x64] sm:$0xf]
      %v8705 = vld [vmem:[%s8684 + $0x68] sm:$0x3]
      %v8706 = vld [vmem:[%s8684 + $0x70] sm:$0xc]
      %v8707 = vld [vmem:[%s8684 + $0x74] sm:$0xf]
      %v8708 = vld [vmem:[%s8684 + $0x78] sm:$0x3]
      %v8709 = vld [vmem:[%s8684 + $0x80] sm:$0xc]
      %v8710 = vld [vmem:[%s8684 + $0x84] sm:$0xf]
      %v8711 = vld [vmem:[%s8684 + $0x88] sm:$0x3]
      %v8712 = vld [vmem:[%s8684 + $0x90] sm:$0xc]
      %v8713 = vld [vmem:[%s8684 + $0x94] sm:$0xf]
      %v8714 = vld [vmem:[%s8684 + $0x98] sm:$0x3]
      %v8715 = vld [vmem:[%s8684 + $0xa0] sm:$0xc]
      %v8716 = vld [vmem:[%s8684 + $0xa4] sm:$0xf]
      %v8717 = vld [vmem:[%s8684 + $0xa8] sm:$0x3]
      %v8718 = vld [vmem:[%s8684 + $0xb0] sm:$0xc]
      %v8719 = vld [vmem:[%s8684 + $0xb4] sm:$0xf]
      %v8720 = vld [vmem:[%s8684 + $0xb8] sm:$0x3]
      %v8721 = vld [vmem:[%s8684 + $0xc0] sm:$0xc]
      %v8722 = vld [vmem:[%s8684 + $0xc4] sm:$0xf]
      %v8723 = vld [vmem:[%s8684 + $0xc8] sm:$0x3]
      %v8724 = vld [vmem:[%s8684 + $0xd0] sm:$0xc]
      %v8725 = vld [vmem:[%s8684 + $0xd4] sm:$0xf]
      %v8726 = vld [vmem:[%s8684 + $0xd8] sm:$0x3]
      %v8727 = vld [vmem:[%s8684 + $0xe0] sm:$0xc]
      %v8728 = vld [vmem:[%s8684 + $0xe4] sm:$0xf]
      %v8729 = vld [vmem:[%s8684 + $0xe8] sm:$0x3]
      %v8730 = vld [vmem:[%s8684 + $0xf0] sm:$0xc]
      %v8731 = vld [vmem:[%s8684 + $0xf4] sm:$0xf]
      %v8732 = vld [vmem:[%s8684 + $0xf8] sm:$0x3]
      %s8733 = scalar_lea.vmem [#allocation2], 256
      %v8734 = vld [vmem:[%s8733] sm:$0xf]
      %v8735 = vld [vmem:[%s8733 + $0x4] sm:$0xf]
      %v8736 = vld [vmem:[%s8733 + $0x10] sm:$0xf]
      %v8737 = vld [vmem:[%s8733 + $0x14] sm:$0xf]
      %v8738 = vld [vmem:[%s8733 + $0x20] sm:$0xf]
      %v8739 = vld [vmem:[%s8733 + $0x24] sm:$0xf]
      %v8740 = vld [vmem:[%s8733 + $0x30] sm:$0xf]
      %v8741 = vld [vmem:[%s8733 + $0x34] sm:$0xf]
      %v8742 = vld [vmem:[%s8733 + $0x40] sm:$0xf]
      %v8743 = vld [vmem:[%s8733 + $0x44] sm:$0xf]
      %v8744 = vld [vmem:[%s8733 + $0x50] sm:$0xf]
      %v8745 = vld [vmem:[%s8733 + $0x54] sm:$0xf]
      %v8746 = vld [vmem:[%s8733 + $0x60] sm:$0xf]
      %v8747 = vld [vmem:[%s8733 + $0x64] sm:$0xf]
      %v8748 = vld [vmem:[%s8733 + $0x70] sm:$0xf]
      %v8749 = vld [vmem:[%s8733 + $0x74] sm:$0xf]
      %v8750 = vld [vmem:[%s8733 + $0x80] sm:$0xf]
      %v8751 = vld [vmem:[%s8733 + $0x84] sm:$0xf]
      %v8752 = vld [vmem:[%s8733 + $0x90] sm:$0xf]
      %v8753 = vld [vmem:[%s8733 + $0x94] sm:$0xf]
      %v8754 = vld [vmem:[%s8733 + $0xa0] sm:$0xf]
      %v8755 = vld [vmem:[%s8733 + $0xa4] sm:$0xf]
      %v8756 = vld [vmem:[%s8733 + $0xb0] sm:$0xf]
      %v8757 = vld [vmem:[%s8733 + $0xb4] sm:$0xf]
      %v8758 = vld [vmem:[%s8733 + $0xc0] sm:$0xf]
      %v8759 = vld [vmem:[%s8733 + $0xc4] sm:$0xf]
      %v8760 = vld [vmem:[%s8733 + $0xd0] sm:$0xf]
      %v8761 = vld [vmem:[%s8733 + $0xd4] sm:$0xf]
      %v8762 = vld [vmem:[%s8733 + $0xe0] sm:$0xf]
      %v8763 = vld [vmem:[%s8733 + $0xe4] sm:$0xf]
      %v8764 = vld [vmem:[%s8733 + $0xf0] sm:$0xf]
      %v8765 = vld [vmem:[%s8733 + $0xf4] sm:$0xf]
      %v8814 = vunpack.c.l.b16 %v8587
      %v8815 = vunpack.c.l.b16 %v8588
      %v8816 = vunpack.c.l.b16 %v8589
      %v8817 = vunpack.c.l.b16 %v8590
      %v8818 = vunpack.c.l.b16 %v8591
      %v8819 = vunpack.c.l.b16 %v8592
      %v8820 = vunpack.c.l.b16 %v8593
      %v8821 = vunpack.c.l.b16 %v8594
      %v8822 = vunpack.c.l.b16 %v8595
      %v8823 = vunpack.c.l.b16 %v8596
      %v8824 = vunpack.c.l.b16 %v8597
      %v8825 = vunpack.c.l.b16 %v8598
      %v8826 = vunpack.c.l.b16 %v8599
      %v8827 = vunpack.c.l.b16 %v8600
      %v8828 = vunpack.c.l.b16 %v8601
      %v8829 = vunpack.c.l.b16 %v8602
      %v8830 = vunpack.c.l.b16 %v8603
      %v8831 = vunpack.c.l.b16 %v8604
      %v8832 = vunpack.c.l.b16 %v8605
      %v8833 = vunpack.c.l.b16 %v8606
      %v8834 = vunpack.c.l.b16 %v8607
      %v8835 = vunpack.c.l.b16 %v8608
      %v8836 = vunpack.c.l.b16 %v8609
      %v8837 = vunpack.c.l.b16 %v8610
      %v8838 = vunpack.c.l.b16 %v8611
      %v8839 = vunpack.c.l.b16 %v8612
      %v8840 = vunpack.c.l.b16 %v8613
      %v8841 = vunpack.c.l.b16 %v8614
      %v8842 = vunpack.c.l.b16 %v8615
      %v8843 = vunpack.c.l.b16 %v8616
      %v8844 = vunpack.c.l.b16 %v8617
      %v8845 = vunpack.c.l.b16 %v8618
      %v8846 = vunpack.c.l.b16 %v8619
      %v8847 = vunpack.c.l.b16 %v8620
      %v8848 = vunpack.c.l.b16 %v8621
      %v8849 = vunpack.c.l.b16 %v8622
      %v8850 = vunpack.c.l.b16 %v8623
      %v8851 = vunpack.c.l.b16 %v8624
      %v8852 = vunpack.c.l.b16 %v8625
      %v8853 = vunpack.c.l.b16 %v8626
      %v8854 = vunpack.c.l.b16 %v8627
      %v8855 = vunpack.c.l.b16 %v8628
      %v8856 = vunpack.c.l.b16 %v8629
      %v8857 = vunpack.c.l.b16 %v8630
      %v8858 = vunpack.c.l.b16 %v8631
      %v8859 = vunpack.c.l.b16 %v8632
      %v8860 = vunpack.c.l.b16 %v8633
      %v8861 = vunpack.c.l.b16 %v8634
      %v8862 = vpack.c.b16 %v8815, %v8814
      %v8863 = vpack.c.b16 %v8816, %v8816
      %v8864 = vpack.c.b16 %v8818, %v8817
      %v8865 = vpack.c.b16 %v8819, %v8819
      %v8866 = vpack.c.b16 %v8821, %v8820
      %v8867 = vpack.c.b16 %v8822, %v8822
      %v8868 = vpack.c.b16 %v8824, %v8823
      %v8869 = vpack.c.b16 %v8825, %v8825
      %v8870 = vpack.c.b16 %v8827, %v8826
      %v8871 = vpack.c.b16 %v8828, %v8828
      %v8872 = vpack.c.b16 %v8830, %v8829
      %v8873 = vpack.c.b16 %v8831, %v8831
      %v8874 = vpack.c.b16 %v8833, %v8832
      %v8875 = vpack.c.b16 %v8834, %v8834
      %v8876 = vpack.c.b16 %v8836, %v8835
      %v8877 = vpack.c.b16 %v8837, %v8837
      %v8878 = vpack.c.b16 %v8839, %v8838
      %v8879 = vpack.c.b16 %v8840, %v8840
      %v8880 = vpack.c.b16 %v8842, %v8841
      %v8881 = vpack.c.b16 %v8843, %v8843
      %v8882 = vpack.c.b16 %v8845, %v8844
      %v8883 = vpack.c.b16 %v8846, %v8846
      %v8884 = vpack.c.b16 %v8848, %v8847
      %v8885 = vpack.c.b16 %v8849, %v8849
      %v8886 = vpack.c.b16 %v8851, %v8850
      %v8887 = vpack.c.b16 %v8852, %v8852
      %v8888 = vpack.c.b16 %v8854, %v8853
      %v8889 = vpack.c.b16 %v8855, %v8855
      %v8890 = vpack.c.b16 %v8857, %v8856
      %v8891 = vpack.c.b16 %v8858, %v8858
      %v8892 = vpack.c.b16 %v8860, %v8859
      %v8893 = vpack.c.b16 %v8861, %v8861
      %v8942 = vunpack.c.l.b16 %v8636
      %v8943 = vunpack.c.l.b16 %v8637
      %v8944 = vunpack.c.l.b16 %v8638
      %v8945 = vunpack.c.l.b16 %v8639
      %v8946 = vunpack.c.l.b16 %v8640
      %v8947 = vunpack.c.l.b16 %v8641
      %v8948 = vunpack.c.l.b16 %v8642
      %v8949 = vunpack.c.l.b16 %v8643
      %v8950 = vunpack.c.l.b16 %v8644
      %v8951 = vunpack.c.l.b16 %v8645
      %v8952 = vunpack.c.l.b16 %v8646
      %v8953 = vunpack.c.l.b16 %v8647
      %v8954 = vunpack.c.l.b16 %v8648
      %v8955 = vunpack.c.l.b16 %v8649
      %v8956 = vunpack.c.l.b16 %v8650
      %v8957 = vunpack.c.l.b16 %v8651
      %v8958 = vunpack.c.l.b16 %v8652
      %v8959 = vunpack.c.l.b16 %v8653
      %v8960 = vunpack.c.l.b16 %v8654
      %v8961 = vunpack.c.l.b16 %v8655
      %v8962 = vunpack.c.l.b16 %v8656
      %v8963 = vunpack.c.l.b16 %v8657
      %v8964 = vunpack.c.l.b16 %v8658
      %v8965 = vunpack.c.l.b16 %v8659
      %v8966 = vunpack.c.l.b16 %v8660
      %v8967 = vunpack.c.l.b16 %v8661
      %v8968 = vunpack.c.l.b16 %v8662
      %v8969 = vunpack.c.l.b16 %v8663
      %v8970 = vunpack.c.l.b16 %v8664
      %v8971 = vunpack.c.l.b16 %v8665
      %v8972 = vunpack.c.l.b16 %v8666
      %v8973 = vunpack.c.l.b16 %v8667
      %v8974 = vunpack.c.l.b16 %v8668
      %v8975 = vunpack.c.l.b16 %v8669
      %v8976 = vunpack.c.l.b16 %v8670
      %v8977 = vunpack.c.l.b16 %v8671
      %v8978 = vunpack.c.l.b16 %v8672
      %v8979 = vunpack.c.l.b16 %v8673
      %v8980 = vunpack.c.l.b16 %v8674
      %v8981 = vunpack.c.l.b16 %v8675
      %v8982 = vunpack.c.l.b16 %v8676
      %v8983 = vunpack.c.l.b16 %v8677
      %v8984 = vunpack.c.l.b16 %v8678
      %v8985 = vunpack.c.l.b16 %v8679
      %v8986 = vunpack.c.l.b16 %v8680
      %v8987 = vunpack.c.l.b16 %v8681
      %v8988 = vunpack.c.l.b16 %v8682
      %v8989 = vunpack.c.l.b16 %v8683
      %v8990 = vpack.c.b16 %v8943, %v8942
      %v8991 = vpack.c.b16 %v8944, %v8944
      %v8992 = vpack.c.b16 %v8946, %v8945
      %v8993 = vpack.c.b16 %v8947, %v8947
      %v8994 = vpack.c.b16 %v8949, %v8948
      %v8995 = vpack.c.b16 %v8950, %v8950
      %v8996 = vpack.c.b16 %v8952, %v8951
      %v8997 = vpack.c.b16 %v8953, %v8953
      %v8998 = vpack.c.b16 %v8955, %v8954
      %v8999 = vpack.c.b16 %v8956, %v8956
      %v9000 = vpack.c.b16 %v8958, %v8957
      %v9001 = vpack.c.b16 %v8959, %v8959
      %v9002 = vpack.c.b16 %v8961, %v8960
      %v9003 = vpack.c.b16 %v8962, %v8962
      %v9004 = vpack.c.b16 %v8964, %v8963
      %v9005 = vpack.c.b16 %v8965, %v8965
      %v9006 = vpack.c.b16 %v8967, %v8966
      %v9007 = vpack.c.b16 %v8968, %v8968
      %v9008 = vpack.c.b16 %v8970, %v8969
      %v9009 = vpack.c.b16 %v8971, %v8971
      %v9010 = vpack.c.b16 %v8973, %v8972
      %v9011 = vpack.c.b16 %v8974, %v8974
      %v9012 = vpack.c.b16 %v8976, %v8975
      %v9013 = vpack.c.b16 %v8977, %v8977
      %v9014 = vpack.c.b16 %v8979, %v8978
      %v9015 = vpack.c.b16 %v8980, %v8980
      %v9016 = vpack.c.b16 %v8982, %v8981
      %v9017 = vpack.c.b16 %v8983, %v8983
      %v9018 = vpack.c.b16 %v8985, %v8984
      %v9019 = vpack.c.b16 %v8986, %v8986
      %v9020 = vpack.c.b16 %v8988, %v8987
      %v9021 = vpack.c.b16 %v8989, %v8989
      %v9023 = vshrl.u32 %v8990, 16
      %v9025 = vrot.slane %v9023, 7
      %v9026 = vshll.u32 %v8990, 16
      %v9028 = vor.u32 %v9025, %v9026
      %v9030 = vshrl.u32 %v8991, 16
      %v9032 = vrot.slane %v9030, 7
      %v9033 = vshll.u32 %v8991, 16
      %v9035 = vor.u32 %v9032, %v9033
      %v9036 = vsel %vm1383, %v9025, %v9035
      %v9038 = vshrl.u32 %v8992, 16
      %v9040 = vrot.slane %v9038, 7
      %v9041 = vshll.u32 %v8992, 16
      %v9043 = vor.u32 %v9040, %v9041
      %v9045 = vshrl.u32 %v8993, 16
      %v9047 = vrot.slane %v9045, 7
      %v9048 = vshll.u32 %v8993, 16
      %v9050 = vor.u32 %v9047, %v9048
      %v9051 = vsel %vm1383, %v9040, %v9050
      %v9053 = vshrl.u32 %v8994, 16
      %v9055 = vrot.slane %v9053, 7
      %v9056 = vshll.u32 %v8994, 16
      %v9058 = vor.u32 %v9055, %v9056
      %v9060 = vshrl.u32 %v8995, 16
      %v9062 = vrot.slane %v9060, 7
      %v9063 = vshll.u32 %v8995, 16
      %v9065 = vor.u32 %v9062, %v9063
      %v9066 = vsel %vm1383, %v9055, %v9065
      %v9068 = vshrl.u32 %v8996, 16
      %v9070 = vrot.slane %v9068, 7
      %v9071 = vshll.u32 %v8996, 16
      %v9073 = vor.u32 %v9070, %v9071
      %v9075 = vshrl.u32 %v8997, 16
      %v9077 = vrot.slane %v9075, 7
      %v9078 = vshll.u32 %v8997, 16
      %v9080 = vor.u32 %v9077, %v9078
      %v9081 = vsel %vm1383, %v9070, %v9080
      %v9083 = vshrl.u32 %v8998, 16
      %v9085 = vrot.slane %v9083, 7
      %v9086 = vshll.u32 %v8998, 16
      %v9088 = vor.u32 %v9085, %v9086
      %v9090 = vshrl.u32 %v8999, 16
      %v9092 = vrot.slane %v9090, 7
      %v9093 = vshll.u32 %v8999, 16
      %v9095 = vor.u32 %v9092, %v9093
      %v9096 = vsel %vm1383, %v9085, %v9095
      %v9098 = vshrl.u32 %v9000, 16
      %v9100 = vrot.slane %v9098, 7
      %v9101 = vshll.u32 %v9000, 16
      %v9103 = vor.u32 %v9100, %v9101
      %v9105 = vshrl.u32 %v9001, 16
      %v9107 = vrot.slane %v9105, 7
      %v9108 = vshll.u32 %v9001, 16
      %v9110 = vor.u32 %v9107, %v9108
      %v9111 = vsel %vm1383, %v9100, %v9110
      %v9113 = vshrl.u32 %v9002, 16
      %v9115 = vrot.slane %v9113, 7
      %v9116 = vshll.u32 %v9002, 16
      %v9118 = vor.u32 %v9115, %v9116
      %v9120 = vshrl.u32 %v9003, 16
      %v9122 = vrot.slane %v9120, 7
      %v9123 = vshll.u32 %v9003, 16
      %v9125 = vor.u32 %v9122, %v9123
      %v9126 = vsel %vm1383, %v9115, %v9125
      %v9128 = vshrl.u32 %v9004, 16
      %v9130 = vrot.slane %v9128, 7
      %v9131 = vshll.u32 %v9004, 16
      %v9133 = vor.u32 %v9130, %v9131
      %v9135 = vshrl.u32 %v9005, 16
      %v9137 = vrot.slane %v9135, 7
      %v9138 = vshll.u32 %v9005, 16
      %v9140 = vor.u32 %v9137, %v9138
      %v9141 = vsel %vm1383, %v9130, %v9140
      %v9143 = vshrl.u32 %v9006, 16
      %v9145 = vrot.slane %v9143, 7
      %v9146 = vshll.u32 %v9006, 16
      %v9148 = vor.u32 %v9145, %v9146
      %v9150 = vshrl.u32 %v9007, 16
      %v9152 = vrot.slane %v9150, 7
      %v9153 = vshll.u32 %v9007, 16
      %v9155 = vor.u32 %v9152, %v9153
      %v9156 = vsel %vm1383, %v9145, %v9155
      %v9158 = vshrl.u32 %v9008, 16
      %v9160 = vrot.slane %v9158, 7
      %v9161 = vshll.u32 %v9008, 16
      %v9163 = vor.u32 %v9160, %v9161
      %v9165 = vshrl.u32 %v9009, 16
      %v9167 = vrot.slane %v9165, 7
      %v9168 = vshll.u32 %v9009, 16
      %v9170 = vor.u32 %v9167, %v9168
      %v9171 = vsel %vm1383, %v9160, %v9170
      %v9173 = vshrl.u32 %v9010, 16
      %v9175 = vrot.slane %v9173, 7
      %v9176 = vshll.u32 %v9010, 16
      %v9178 = vor.u32 %v9175, %v9176
      %v9180 = vshrl.u32 %v9011, 16
      %v9182 = vrot.slane %v9180, 7
      %v9183 = vshll.u32 %v9011, 16
      %v9185 = vor.u32 %v9182, %v9183
      %v9186 = vsel %vm1383, %v9175, %v9185
      %v9188 = vshrl.u32 %v9012, 16
      %v9190 = vrot.slane %v9188, 7
      %v9191 = vshll.u32 %v9012, 16
      %v9193 = vor.u32 %v9190, %v9191
      %v9195 = vshrl.u32 %v9013, 16
      %v9197 = vrot.slane %v9195, 7
      %v9198 = vshll.u32 %v9013, 16
      %v9200 = vor.u32 %v9197, %v9198
      %v9201 = vsel %vm1383, %v9190, %v9200
      %v9203 = vshrl.u32 %v9014, 16
      %v9205 = vrot.slane %v9203, 7
      %v9206 = vshll.u32 %v9014, 16
      %v9208 = vor.u32 %v9205, %v9206
      %v9210 = vshrl.u32 %v9015, 16
      %v9212 = vrot.slane %v9210, 7
      %v9213 = vshll.u32 %v9015, 16
      %v9215 = vor.u32 %v9212, %v9213
      %v9216 = vsel %vm1383, %v9205, %v9215
      %v9218 = vshrl.u32 %v9016, 16
      %v9220 = vrot.slane %v9218, 7
      %v9221 = vshll.u32 %v9016, 16
      %v9223 = vor.u32 %v9220, %v9221
      %v9225 = vshrl.u32 %v9017, 16
      %v9227 = vrot.slane %v9225, 7
      %v9228 = vshll.u32 %v9017, 16
      %v9230 = vor.u32 %v9227, %v9228
      %v9231 = vsel %vm1383, %v9220, %v9230
      %v9233 = vshrl.u32 %v9018, 16
      %v9235 = vrot.slane %v9233, 7
      %v9236 = vshll.u32 %v9018, 16
      %v9238 = vor.u32 %v9235, %v9236
      %v9240 = vshrl.u32 %v9019, 16
      %v9242 = vrot.slane %v9240, 7
      %v9243 = vshll.u32 %v9019, 16
      %v9245 = vor.u32 %v9242, %v9243
      %v9246 = vsel %vm1383, %v9235, %v9245
      %v9248 = vshrl.u32 %v9020, 16
      %v9250 = vrot.slane %v9248, 7
      %v9251 = vshll.u32 %v9020, 16
      %v9253 = vor.u32 %v9250, %v9251
      %v9255 = vshrl.u32 %v9021, 16
      %v9257 = vrot.slane %v9255, 7
      %v9258 = vshll.u32 %v9021, 16
      %v9260 = vor.u32 %v9257, %v9258
      %v9261 = vsel %vm1383, %v9250, %v9260
      %v9310 = vunpack.c.l.b16 %v8685
      %v9311 = vunpack.c.l.b16 %v8686
      %v9312 = vunpack.c.l.b16 %v8687
      %v9313 = vunpack.c.l.b16 %v8688
      %v9314 = vunpack.c.l.b16 %v8689
      %v9315 = vunpack.c.l.b16 %v8690
      %v9316 = vunpack.c.l.b16 %v8691
      %v9317 = vunpack.c.l.b16 %v8692
      %v9318 = vunpack.c.l.b16 %v8693
      %v9319 = vunpack.c.l.b16 %v8694
      %v9320 = vunpack.c.l.b16 %v8695
      %v9321 = vunpack.c.l.b16 %v8696
      %v9322 = vunpack.c.l.b16 %v8697
      %v9323 = vunpack.c.l.b16 %v8698
      %v9324 = vunpack.c.l.b16 %v8699
      %v9325 = vunpack.c.l.b16 %v8700
      %v9326 = vunpack.c.l.b16 %v8701
      %v9327 = vunpack.c.l.b16 %v8702
      %v9328 = vunpack.c.l.b16 %v8703
      %v9329 = vunpack.c.l.b16 %v8704
      %v9330 = vunpack.c.l.b16 %v8705
      %v9331 = vunpack.c.l.b16 %v8706
      %v9332 = vunpack.c.l.b16 %v8707
      %v9333 = vunpack.c.l.b16 %v8708
      %v9334 = vunpack.c.l.b16 %v8709
      %v9335 = vunpack.c.l.b16 %v8710
      %v9336 = vunpack.c.l.b16 %v8711
      %v9337 = vunpack.c.l.b16 %v8712
      %v9338 = vunpack.c.l.b16 %v8713
      %v9339 = vunpack.c.l.b16 %v8714
      %v9340 = vunpack.c.l.b16 %v8715
      %v9341 = vunpack.c.l.b16 %v8716
      %v9342 = vunpack.c.l.b16 %v8717
      %v9343 = vunpack.c.l.b16 %v8718
      %v9344 = vunpack.c.l.b16 %v8719
      %v9345 = vunpack.c.l.b16 %v8720
      %v9346 = vunpack.c.l.b16 %v8721
      %v9347 = vunpack.c.l.b16 %v8722
      %v9348 = vunpack.c.l.b16 %v8723
      %v9349 = vunpack.c.l.b16 %v8724
      %v9350 = vunpack.c.l.b16 %v8725
      %v9351 = vunpack.c.l.b16 %v8726
      %v9352 = vunpack.c.l.b16 %v8727
      %v9353 = vunpack.c.l.b16 %v8728
      %v9354 = vunpack.c.l.b16 %v8729
      %v9355 = vunpack.c.l.b16 %v8730
      %v9356 = vunpack.c.l.b16 %v8731
      %v9357 = vunpack.c.l.b16 %v8732
      %v9358 = vpack.c.b16 %v9311, %v9310
      %v9359 = vpack.c.b16 %v9312, %v9312
      %v9360 = vpack.c.b16 %v9314, %v9313
      %v9361 = vpack.c.b16 %v9315, %v9315
      %v9362 = vpack.c.b16 %v9317, %v9316
      %v9363 = vpack.c.b16 %v9318, %v9318
      %v9364 = vpack.c.b16 %v9320, %v9319
      %v9365 = vpack.c.b16 %v9321, %v9321
      %v9366 = vpack.c.b16 %v9323, %v9322
      %v9367 = vpack.c.b16 %v9324, %v9324
      %v9368 = vpack.c.b16 %v9326, %v9325
      %v9369 = vpack.c.b16 %v9327, %v9327
      %v9370 = vpack.c.b16 %v9329, %v9328
      %v9371 = vpack.c.b16 %v9330, %v9330
      %v9372 = vpack.c.b16 %v9332, %v9331
      %v9373 = vpack.c.b16 %v9333, %v9333
      %v9374 = vpack.c.b16 %v9335, %v9334
      %v9375 = vpack.c.b16 %v9336, %v9336
      %v9376 = vpack.c.b16 %v9338, %v9337
      %v9377 = vpack.c.b16 %v9339, %v9339
      %v9378 = vpack.c.b16 %v9341, %v9340
      %v9379 = vpack.c.b16 %v9342, %v9342
      %v9380 = vpack.c.b16 %v9344, %v9343
      %v9381 = vpack.c.b16 %v9345, %v9345
      %v9382 = vpack.c.b16 %v9347, %v9346
      %v9383 = vpack.c.b16 %v9348, %v9348
      %v9384 = vpack.c.b16 %v9350, %v9349
      %v9385 = vpack.c.b16 %v9351, %v9351
      %v9386 = vpack.c.b16 %v9353, %v9352
      %v9387 = vpack.c.b16 %v9354, %v9354
      %v9388 = vpack.c.b16 %v9356, %v9355
      %v9389 = vpack.c.b16 %v9357, %v9357
      %v9391 = vshrl.u32 %v9358, 16
      %v9393 = vrot.slane %v9391, 6
      %v9394 = vshll.u32 %v9358, 16
      %v9396 = vrot.slane %v9394, 7
      %v9397 = vor.u32 %v9393, %v9396
      %v9399 = vshrl.u32 %v9359, 16
      %v9401 = vrot.slane %v9399, 6
      %v9402 = vshll.u32 %v9359, 16
      %v9404 = vrot.slane %v9402, 7
      %v9405 = vor.u32 %v9401, %v9404
      %v9406 = vsel %vm1752, %v9397, %v9405
      %v9408 = vshrl.u32 %v9360, 16
      %v9410 = vrot.slane %v9408, 6
      %v9411 = vshll.u32 %v9360, 16
      %v9413 = vrot.slane %v9411, 7
      %v9414 = vor.u32 %v9410, %v9413
      %v9416 = vshrl.u32 %v9361, 16
      %v9418 = vrot.slane %v9416, 6
      %v9419 = vshll.u32 %v9361, 16
      %v9421 = vrot.slane %v9419, 7
      %v9422 = vor.u32 %v9418, %v9421
      %v9423 = vsel %vm1752, %v9414, %v9422
      %v9425 = vshrl.u32 %v9362, 16
      %v9427 = vrot.slane %v9425, 6
      %v9428 = vshll.u32 %v9362, 16
      %v9430 = vrot.slane %v9428, 7
      %v9431 = vor.u32 %v9427, %v9430
      %v9433 = vshrl.u32 %v9363, 16
      %v9435 = vrot.slane %v9433, 6
      %v9436 = vshll.u32 %v9363, 16
      %v9438 = vrot.slane %v9436, 7
      %v9439 = vor.u32 %v9435, %v9438
      %v9440 = vsel %vm1752, %v9431, %v9439
      %v9442 = vshrl.u32 %v9364, 16
      %v9444 = vrot.slane %v9442, 6
      %v9445 = vshll.u32 %v9364, 16
      %v9447 = vrot.slane %v9445, 7
      %v9448 = vor.u32 %v9444, %v9447
      %v9450 = vshrl.u32 %v9365, 16
      %v9452 = vrot.slane %v9450, 6
      %v9453 = vshll.u32 %v9365, 16
      %v9455 = vrot.slane %v9453, 7
      %v9456 = vor.u32 %v9452, %v9455
      %v9457 = vsel %vm1752, %v9448, %v9456
      %v9459 = vshrl.u32 %v9366, 16
      %v9461 = vrot.slane %v9459, 6
      %v9462 = vshll.u32 %v9366, 16
      %v9464 = vrot.slane %v9462, 7
      %v9465 = vor.u32 %v9461, %v9464
      %v9467 = vshrl.u32 %v9367, 16
      %v9469 = vrot.slane %v9467, 6
      %v9470 = vshll.u32 %v9367, 16
      %v9472 = vrot.slane %v9470, 7
      %v9473 = vor.u32 %v9469, %v9472
      %v9474 = vsel %vm1752, %v9465, %v9473
      %v9476 = vshrl.u32 %v9368, 16
      %v9478 = vrot.slane %v9476, 6
      %v9479 = vshll.u32 %v9368, 16
      %v9481 = vrot.slane %v9479, 7
      %v9482 = vor.u32 %v9478, %v9481
      %v9484 = vshrl.u32 %v9369, 16
      %v9486 = vrot.slane %v9484, 6
      %v9487 = vshll.u32 %v9369, 16
      %v9489 = vrot.slane %v9487, 7
      %v9490 = vor.u32 %v9486, %v9489
      %v9491 = vsel %vm1752, %v9482, %v9490
      %v9493 = vshrl.u32 %v9370, 16
      %v9495 = vrot.slane %v9493, 6
      %v9496 = vshll.u32 %v9370, 16
      %v9498 = vrot.slane %v9496, 7
      %v9499 = vor.u32 %v9495, %v9498
      %v9501 = vshrl.u32 %v9371, 16
      %v9503 = vrot.slane %v9501, 6
      %v9504 = vshll.u32 %v9371, 16
      %v9506 = vrot.slane %v9504, 7
      %v9507 = vor.u32 %v9503, %v9506
      %v9508 = vsel %vm1752, %v9499, %v9507
      %v9510 = vshrl.u32 %v9372, 16
      %v9512 = vrot.slane %v9510, 6
      %v9513 = vshll.u32 %v9372, 16
      %v9515 = vrot.slane %v9513, 7
      %v9516 = vor.u32 %v9512, %v9515
      %v9518 = vshrl.u32 %v9373, 16
      %v9520 = vrot.slane %v9518, 6
      %v9521 = vshll.u32 %v9373, 16
      %v9523 = vrot.slane %v9521, 7
      %v9524 = vor.u32 %v9520, %v9523
      %v9525 = vsel %vm1752, %v9516, %v9524
      %v9527 = vshrl.u32 %v9374, 16
      %v9529 = vrot.slane %v9527, 6
      %v9530 = vshll.u32 %v9374, 16
      %v9532 = vrot.slane %v9530, 7
      %v9533 = vor.u32 %v9529, %v9532
      %v9535 = vshrl.u32 %v9375, 16
      %v9537 = vrot.slane %v9535, 6
      %v9538 = vshll.u32 %v9375, 16
      %v9540 = vrot.slane %v9538, 7
      %v9541 = vor.u32 %v9537, %v9540
      %v9542 = vsel %vm1752, %v9533, %v9541
      %v9544 = vshrl.u32 %v9376, 16
      %v9546 = vrot.slane %v9544, 6
      %v9547 = vshll.u32 %v9376, 16
      %v9549 = vrot.slane %v9547, 7
      %v9550 = vor.u32 %v9546, %v9549
      %v9552 = vshrl.u32 %v9377, 16
      %v9554 = vrot.slane %v9552, 6
      %v9555 = vshll.u32 %v9377, 16
      %v9557 = vrot.slane %v9555, 7
      %v9558 = vor.u32 %v9554, %v9557
      %v9559 = vsel %vm1752, %v9550, %v9558
      %v9561 = vshrl.u32 %v9378, 16
      %v9563 = vrot.slane %v9561, 6
      %v9564 = vshll.u32 %v9378, 16
      %v9566 = vrot.slane %v9564, 7
      %v9567 = vor.u32 %v9563, %v9566
      %v9569 = vshrl.u32 %v9379, 16
      %v9571 = vrot.slane %v9569, 6
      %v9572 = vshll.u32 %v9379, 16
      %v9574 = vrot.slane %v9572, 7
      %v9575 = vor.u32 %v9571, %v9574
      %v9576 = vsel %vm1752, %v9567, %v9575
      %v9578 = vshrl.u32 %v9380, 16
      %v9580 = vrot.slane %v9578, 6
      %v9581 = vshll.u32 %v9380, 16
      %v9583 = vrot.slane %v9581, 7
      %v9584 = vor.u32 %v9580, %v9583
      %v9586 = vshrl.u32 %v9381, 16
      %v9588 = vrot.slane %v9586, 6
      %v9589 = vshll.u32 %v9381, 16
      %v9591 = vrot.slane %v9589, 7
      %v9592 = vor.u32 %v9588, %v9591
      %v9593 = vsel %vm1752, %v9584, %v9592
      %v9595 = vshrl.u32 %v9382, 16
      %v9597 = vrot.slane %v9595, 6
      %v9598 = vshll.u32 %v9382, 16
      %v9600 = vrot.slane %v9598, 7
      %v9601 = vor.u32 %v9597, %v9600
      %v9603 = vshrl.u32 %v9383, 16
      %v9605 = vrot.slane %v9603, 6
      %v9606 = vshll.u32 %v9383, 16
      %v9608 = vrot.slane %v9606, 7
      %v9609 = vor.u32 %v9605, %v9608
      %v9610 = vsel %vm1752, %v9601, %v9609
      %v9612 = vshrl.u32 %v9384, 16
      %v9614 = vrot.slane %v9612, 6
      %v9615 = vshll.u32 %v9384, 16
      %v9617 = vrot.slane %v9615, 7
      %v9618 = vor.u32 %v9614, %v9617
      %v9620 = vshrl.u32 %v9385, 16
      %v9622 = vrot.slane %v9620, 6
      %v9623 = vshll.u32 %v9385, 16
      %v9625 = vrot.slane %v9623, 7
      %v9626 = vor.u32 %v9622, %v9625
      %v9627 = vsel %vm1752, %v9618, %v9626
      %v9629 = vshrl.u32 %v9386, 16
      %v9631 = vrot.slane %v9629, 6
      %v9632 = vshll.u32 %v9386, 16
      %v9634 = vrot.slane %v9632, 7
      %v9635 = vor.u32 %v9631, %v9634
      %v9637 = vshrl.u32 %v9387, 16
      %v9639 = vrot.slane %v9637, 6
      %v9640 = vshll.u32 %v9387, 16
      %v9642 = vrot.slane %v9640, 7
      %v9643 = vor.u32 %v9639, %v9642
      %v9644 = vsel %vm1752, %v9635, %v9643
      %v9646 = vshrl.u32 %v9388, 16
      %v9648 = vrot.slane %v9646, 6
      %v9649 = vshll.u32 %v9388, 16
      %v9651 = vrot.slane %v9649, 7
      %v9652 = vor.u32 %v9648, %v9651
      %v9654 = vshrl.u32 %v9389, 16
      %v9656 = vrot.slane %v9654, 6
      %v9657 = vshll.u32 %v9389, 16
      %v9659 = vrot.slane %v9657, 7
      %v9660 = vor.u32 %v9656, %v9659
      %v9661 = vsel %vm1752, %v9652, %v9660
      %v9694 = vunpack.c.l.b16 %v8734
      %v9695 = vunpack.c.l.b16 %v8735
      %v9696 = vunpack.c.l.b16 %v8736
      %v9697 = vunpack.c.l.b16 %v8737
      %v9698 = vunpack.c.l.b16 %v8738
      %v9699 = vunpack.c.l.b16 %v8739
      %v9700 = vunpack.c.l.b16 %v8740
      %v9701 = vunpack.c.l.b16 %v8741
      %v9702 = vunpack.c.l.b16 %v8742
      %v9703 = vunpack.c.l.b16 %v8743
      %v9704 = vunpack.c.l.b16 %v8744
      %v9705 = vunpack.c.l.b16 %v8745
      %v9706 = vunpack.c.l.b16 %v8746
      %v9707 = vunpack.c.l.b16 %v8747
      %v9708 = vunpack.c.l.b16 %v8748
      %v9709 = vunpack.c.l.b16 %v8749
      %v9710 = vunpack.c.l.b16 %v8750
      %v9711 = vunpack.c.l.b16 %v8751
      %v9712 = vunpack.c.l.b16 %v8752
      %v9713 = vunpack.c.l.b16 %v8753
      %v9714 = vunpack.c.l.b16 %v8754
      %v9715 = vunpack.c.l.b16 %v8755
      %v9716 = vunpack.c.l.b16 %v8756
      %v9717 = vunpack.c.l.b16 %v8757
      %v9718 = vunpack.c.l.b16 %v8758
      %v9719 = vunpack.c.l.b16 %v8759
      %v9720 = vunpack.c.l.b16 %v8760
      %v9721 = vunpack.c.l.b16 %v8761
      %v9722 = vunpack.c.l.b16 %v8762
      %v9723 = vunpack.c.l.b16 %v8763
      %v9724 = vunpack.c.l.b16 %v8764
      %v9725 = vunpack.c.l.b16 %v8765
      %v9726 = vpack.c.b16 %v9695, %v9694
      %v9727 = vpack.c.b16 %v9697, %v9696
      %v9728 = vpack.c.b16 %v9699, %v9698
      %v9729 = vpack.c.b16 %v9701, %v9700
      %v9730 = vpack.c.b16 %v9703, %v9702
      %v9731 = vpack.c.b16 %v9705, %v9704
      %v9732 = vpack.c.b16 %v9707, %v9706
      %v9733 = vpack.c.b16 %v9709, %v9708
      %v9734 = vpack.c.b16 %v9711, %v9710
      %v9735 = vpack.c.b16 %v9713, %v9712
      %v9736 = vpack.c.b16 %v9715, %v9714
      %v9737 = vpack.c.b16 %v9717, %v9716
      %v9738 = vpack.c.b16 %v9719, %v9718
      %v9739 = vpack.c.b16 %v9721, %v9720
      %v9740 = vpack.c.b16 %v9723, %v9722
      %v9741 = vpack.c.b16 %v9725, %v9724
      %v9743 = vshrl.u32 %v9726, 16
      %v9745 = vrot.slane %v9743, 4
      %v9746 = vshll.u32 %v9726, 16
      %v9748 = vrot.slane %v9746, 5
      %v9749 = vor.u32 %v9745, %v9748
      %v9751 = vshrl.u32 %v9727, 16
      %v9753 = vrot.slane %v9751, 4
      %v9754 = vshll.u32 %v9727, 16
      %v9756 = vrot.slane %v9754, 5
      %v9757 = vor.u32 %v9753, %v9756
      %v9759 = vshrl.u32 %v9728, 16
      %v9761 = vrot.slane %v9759, 4
      %v9762 = vshll.u32 %v9728, 16
      %v9764 = vrot.slane %v9762, 5
      %v9765 = vor.u32 %v9761, %v9764
      %v9767 = vshrl.u32 %v9729, 16
      %v9769 = vrot.slane %v9767, 4
      %v9770 = vshll.u32 %v9729, 16
      %v9772 = vrot.slane %v9770, 5
      %v9773 = vor.u32 %v9769, %v9772
      %v9775 = vshrl.u32 %v9730, 16
      %v9777 = vrot.slane %v9775, 4
      %v9778 = vshll.u32 %v9730, 16
      %v9780 = vrot.slane %v9778, 5
      %v9781 = vor.u32 %v9777, %v9780
      %v9783 = vshrl.u32 %v9731, 16
      %v9785 = vrot.slane %v9783, 4
      %v9786 = vshll.u32 %v9731, 16
      %v9788 = vrot.slane %v9786, 5
      %v9789 = vor.u32 %v9785, %v9788
      %v9791 = vshrl.u32 %v9732, 16
      %v9793 = vrot.slane %v9791, 4
      %v9794 = vshll.u32 %v9732, 16
      %v9796 = vrot.slane %v9794, 5
      %v9797 = vor.u32 %v9793, %v9796
      %v9799 = vshrl.u32 %v9733, 16
      %v9801 = vrot.slane %v9799, 4
      %v9802 = vshll.u32 %v9733, 16
      %v9804 = vrot.slane %v9802, 5
      %v9805 = vor.u32 %v9801, %v9804
      %v9807 = vshrl.u32 %v9734, 16
      %v9809 = vrot.slane %v9807, 4
      %v9810 = vshll.u32 %v9734, 16
      %v9812 = vrot.slane %v9810, 5
      %v9813 = vor.u32 %v9809, %v9812
      %v9815 = vshrl.u32 %v9735, 16
      %v9817 = vrot.slane %v9815, 4
      %v9818 = vshll.u32 %v9735, 16
      %v9820 = vrot.slane %v9818, 5
      %v9821 = vor.u32 %v9817, %v9820
      %v9823 = vshrl.u32 %v9736, 16
      %v9825 = vrot.slane %v9823, 4
      %v9826 = vshll.u32 %v9736, 16
      %v9828 = vrot.slane %v9826, 5
      %v9829 = vor.u32 %v9825, %v9828
      %v9831 = vshrl.u32 %v9737, 16
      %v9833 = vrot.slane %v9831, 4
      %v9834 = vshll.u32 %v9737, 16
      %v9836 = vrot.slane %v9834, 5
      %v9837 = vor.u32 %v9833, %v9836
      %v9839 = vshrl.u32 %v9738, 16
      %v9841 = vrot.slane %v9839, 4
      %v9842 = vshll.u32 %v9738, 16
      %v9844 = vrot.slane %v9842, 5
      %v9845 = vor.u32 %v9841, %v9844
      %v9847 = vshrl.u32 %v9739, 16
      %v9849 = vrot.slane %v9847, 4
      %v9850 = vshll.u32 %v9739, 16
      %v9852 = vrot.slane %v9850, 5
      %v9853 = vor.u32 %v9849, %v9852
      %v9855 = vshrl.u32 %v9740, 16
      %v9857 = vrot.slane %v9855, 4
      %v9858 = vshll.u32 %v9740, 16
      %v9860 = vrot.slane %v9858, 5
      %v9861 = vor.u32 %v9857, %v9860
      %v9863 = vshrl.u32 %v9741, 16
      %v9865 = vrot.slane %v9863, 4
      %v9866 = vshll.u32 %v9741, 16
      %v9868 = vrot.slane %v9866, 5
      %v9869 = vor.u32 %v9865, %v9868
      %v9872 = vsel %vm451, %v8862, %v9028
      %v9875 = vsel %vm451, %v8863, %v9036
      %v9878 = vsel %vm451, %v8864, %v9043
      %v9881 = vsel %vm451, %v8865, %v9051
      %v9884 = vsel %vm451, %v8866, %v9058
      %v9887 = vsel %vm451, %v8867, %v9066
      %v9890 = vsel %vm451, %v8868, %v9073
      %v9893 = vsel %vm451, %v8869, %v9081
      %v9896 = vsel %vm451, %v8870, %v9088
      %v9899 = vsel %vm451, %v8871, %v9096
      %v9902 = vsel %vm451, %v8872, %v9103
      %v9905 = vsel %vm451, %v8873, %v9111
      %v9908 = vsel %vm451, %v8874, %v9118
      %v9911 = vsel %vm451, %v8875, %v9126
      %v9914 = vsel %vm451, %v8876, %v9133
      %v9917 = vsel %vm451, %v8877, %v9141
      %v9920 = vsel %vm451, %v8878, %v9148
      %v9923 = vsel %vm451, %v8879, %v9156
      %v9926 = vsel %vm451, %v8880, %v9163
      %v9929 = vsel %vm451, %v8881, %v9171
      %v9932 = vsel %vm451, %v8882, %v9178
      %v9935 = vsel %vm451, %v8883, %v9186
      %v9938 = vsel %vm451, %v8884, %v9193
      %v9941 = vsel %vm451, %v8885, %v9201
      %v9944 = vsel %vm451, %v8886, %v9208
      %v9947 = vsel %vm451, %v8887, %v9216
      %v9950 = vsel %vm451, %v8888, %v9223
      %v9953 = vsel %vm451, %v8889, %v9231
      %v9956 = vsel %vm451, %v8890, %v9238
      %v9959 = vsel %vm451, %v8891, %v9246
      %v9962 = vsel %vm451, %v8892, %v9253
      %v9965 = vsel %vm451, %v8893, %v9261
      %v9967 = vsel %vm2329, %v9872, %v9397
      %v9969 = vsel %vm2329, %v9875, %v9406
      %v9971 = vsel %vm2329, %v9878, %v9414
      %v9973 = vsel %vm2329, %v9881, %v9423
      %v9975 = vsel %vm2329, %v9884, %v9431
      %v9977 = vsel %vm2329, %v9887, %v9440
      %v9979 = vsel %vm2329, %v9890, %v9448
      %v9981 = vsel %vm2329, %v9893, %v9457
      %v9983 = vsel %vm2329, %v9896, %v9465
      %v9985 = vsel %vm2329, %v9899, %v9474
      %v9987 = vsel %vm2329, %v9902, %v9482
      %v9989 = vsel %vm2329, %v9905, %v9491
      %v9991 = vsel %vm2329, %v9908, %v9499
      %v9993 = vsel %vm2329, %v9911, %v9508
      %v9995 = vsel %vm2329, %v9914, %v9516
      %v9997 = vsel %vm2329, %v9917, %v9525
      %v9999 = vsel %vm2329, %v9920, %v9533
      %v10001 = vsel %vm2329, %v9923, %v9542
      %v10003 = vsel %vm2329, %v9926, %v9550
      %v10005 = vsel %vm2329, %v9929, %v9559
      %v10007 = vsel %vm2329, %v9932, %v9567
      %v10009 = vsel %vm2329, %v9935, %v9576
      %v10011 = vsel %vm2329, %v9938, %v9584
      %v10013 = vsel %vm2329, %v9941, %v9593
      %v10015 = vsel %vm2329, %v9944, %v9601
      %v10017 = vsel %vm2329, %v9947, %v9610
      %v10019 = vsel %vm2329, %v9950, %v9618
      %v10021 = vsel %vm2329, %v9953, %v9627
      %v10023 = vsel %vm2329, %v9956, %v9635
      %v10025 = vsel %vm2329, %v9959, %v9644
      %v10027 = vsel %vm2329, %v9962, %v9652
      %v10029 = vsel %vm2329, %v9965, %v9661
      %v10031 = vsel %vm2394, %v9967, %v9749
      %v10032 = vsel %vm2394, %v9969, %v9749
      %v10034 = vsel %vm2394, %v9971, %v9757
      %v10035 = vsel %vm2394, %v9973, %v9757
      %v10037 = vsel %vm2394, %v9975, %v9765
      %v10038 = vsel %vm2394, %v9977, %v9765
      %v10040 = vsel %vm2394, %v9979, %v9773
      %v10041 = vsel %vm2394, %v9981, %v9773
      %v10043 = vsel %vm2394, %v9983, %v9781
      %v10044 = vsel %vm2394, %v9985, %v9781
      %v10046 = vsel %vm2394, %v9987, %v9789
      %v10047 = vsel %vm2394, %v9989, %v9789
      %v10049 = vsel %vm2394, %v9991, %v9797
      %v10050 = vsel %vm2394, %v9993, %v9797
      %v10052 = vsel %vm2394, %v9995, %v9805
      %v10053 = vsel %vm2394, %v9997, %v9805
      %v10055 = vsel %vm2394, %v9999, %v9813
      %v10056 = vsel %vm2394, %v10001, %v9813
      %v10058 = vsel %vm2394, %v10003, %v9821
      %v10059 = vsel %vm2394, %v10005, %v9821
      %v10061 = vsel %vm2394, %v10007, %v9829
      %v10062 = vsel %vm2394, %v10009, %v9829
      %v10064 = vsel %vm2394, %v10011, %v9837
      %v10065 = vsel %vm2394, %v10013, %v9837
      %v10067 = vsel %vm2394, %v10015, %v9845
      %v10068 = vsel %vm2394, %v10017, %v9845
      %v10070 = vsel %vm2394, %v10019, %v9853
      %v10071 = vsel %vm2394, %v10021, %v9853
      %v10073 = vsel %vm2394, %v10023, %v9861
      %v10074 = vsel %vm2394, %v10025, %v9861
      %v10076 = vsel %vm2394, %v10027, %v9869
      %v10077 = vsel %vm2394, %v10029, %v9869
      %v10078 = vshrl.u32 %v10031, 16
      %v10080 = vrot.slane %v10078, 3
      %v10081 = vshll.u32 %v10031, 16
      %v10083 = vrot.slane %v10081, 4
      %v10084 = vor.u32 %v10080, %v10083
      %v10085 = vshrl.u32 %v10032, 16
      %v10087 = vrot.slane %v10085, 3
      %v10088 = vshll.u32 %v10032, 16
      %v10090 = vrot.slane %v10088, 4
      %v10091 = vor.u32 %v10087, %v10090
      %v10092 = vsel %vm2443, %v10084, %v10091
      %v10093 = vshrl.u32 %v10034, 16
      %v10095 = vrot.slane %v10093, 3
      %v10096 = vshll.u32 %v10034, 16
      %v10098 = vrot.slane %v10096, 4
      %v10099 = vor.u32 %v10095, %v10098
      %v10100 = vshrl.u32 %v10035, 16
      %v10102 = vrot.slane %v10100, 3
      %v10103 = vshll.u32 %v10035, 16
      %v10105 = vrot.slane %v10103, 4
      %v10106 = vor.u32 %v10102, %v10105
      %v10107 = vsel %vm2443, %v10099, %v10106
      %v10108 = vshrl.u32 %v10037, 16
      %v10110 = vrot.slane %v10108, 3
      %v10111 = vshll.u32 %v10037, 16
      %v10113 = vrot.slane %v10111, 4
      %v10114 = vor.u32 %v10110, %v10113
      %v10115 = vshrl.u32 %v10038, 16
      %v10117 = vrot.slane %v10115, 3
      %v10118 = vshll.u32 %v10038, 16
      %v10120 = vrot.slane %v10118, 4
      %v10121 = vor.u32 %v10117, %v10120
      %v10122 = vsel %vm2443, %v10114, %v10121
      %v10123 = vshrl.u32 %v10040, 16
      %v10125 = vrot.slane %v10123, 3
      %v10126 = vshll.u32 %v10040, 16
      %v10128 = vrot.slane %v10126, 4
      %v10129 = vor.u32 %v10125, %v10128
      %v10130 = vshrl.u32 %v10041, 16
      %v10132 = vrot.slane %v10130, 3
      %v10133 = vshll.u32 %v10041, 16
      %v10135 = vrot.slane %v10133, 4
      %v10136 = vor.u32 %v10132, %v10135
      %v10137 = vsel %vm2443, %v10129, %v10136
      %v10138 = vshrl.u32 %v10043, 16
      %v10140 = vrot.slane %v10138, 3
      %v10141 = vshll.u32 %v10043, 16
      %v10143 = vrot.slane %v10141, 4
      %v10144 = vor.u32 %v10140, %v10143
      %v10145 = vshrl.u32 %v10044, 16
      %v10147 = vrot.slane %v10145, 3
      %v10148 = vshll.u32 %v10044, 16
      %v10150 = vrot.slane %v10148, 4
      %v10151 = vor.u32 %v10147, %v10150
      %v10152 = vsel %vm2443, %v10144, %v10151
      %v10153 = vshrl.u32 %v10046, 16
      %v10155 = vrot.slane %v10153, 3
      %v10156 = vshll.u32 %v10046, 16
      %v10158 = vrot.slane %v10156, 4
      %v10159 = vor.u32 %v10155, %v10158
      %v10160 = vshrl.u32 %v10047, 16
      %v10162 = vrot.slane %v10160, 3
      %v10163 = vshll.u32 %v10047, 16
      %v10165 = vrot.slane %v10163, 4
      %v10166 = vor.u32 %v10162, %v10165
      %v10167 = vsel %vm2443, %v10159, %v10166
      %v10168 = vshrl.u32 %v10049, 16
      %v10170 = vrot.slane %v10168, 3
      %v10171 = vshll.u32 %v10049, 16
      %v10173 = vrot.slane %v10171, 4
      %v10174 = vor.u32 %v10170, %v10173
      %v10175 = vshrl.u32 %v10050, 16
      %v10177 = vrot.slane %v10175, 3
      %v10178 = vshll.u32 %v10050, 16
      %v10180 = vrot.slane %v10178, 4
      %v10181 = vor.u32 %v10177, %v10180
      %v10182 = vsel %vm2443, %v10174, %v10181
      %v10183 = vshrl.u32 %v10052, 16
      %v10185 = vrot.slane %v10183, 3
      %v10186 = vshll.u32 %v10052, 16
      %v10188 = vrot.slane %v10186, 4
      %v10189 = vor.u32 %v10185, %v10188
      %v10190 = vshrl.u32 %v10053, 16
      %v10192 = vrot.slane %v10190, 3
      %v10193 = vshll.u32 %v10053, 16
      %v10195 = vrot.slane %v10193, 4
      %v10196 = vor.u32 %v10192, %v10195
      %v10197 = vsel %vm2443, %v10189, %v10196
      %v10198 = vshrl.u32 %v10055, 16
      %v10200 = vrot.slane %v10198, 3
      %v10201 = vshll.u32 %v10055, 16
      %v10203 = vrot.slane %v10201, 4
      %v10204 = vor.u32 %v10200, %v10203
      %v10205 = vshrl.u32 %v10056, 16
      %v10207 = vrot.slane %v10205, 3
      %v10208 = vshll.u32 %v10056, 16
      %v10210 = vrot.slane %v10208, 4
      %v10211 = vor.u32 %v10207, %v10210
      %v10212 = vsel %vm2443, %v10204, %v10211
      %v10213 = vshrl.u32 %v10058, 16
      %v10215 = vrot.slane %v10213, 3
      %v10216 = vshll.u32 %v10058, 16
      %v10218 = vrot.slane %v10216, 4
      %v10219 = vor.u32 %v10215, %v10218
      %v10220 = vshrl.u32 %v10059, 16
      %v10222 = vrot.slane %v10220, 3
      %v10223 = vshll.u32 %v10059, 16
      %v10225 = vrot.slane %v10223, 4
      %v10226 = vor.u32 %v10222, %v10225
      %v10227 = vsel %vm2443, %v10219, %v10226
      %v10228 = vshrl.u32 %v10061, 16
      %v10230 = vrot.slane %v10228, 3
      %v10231 = vshll.u32 %v10061, 16
      %v10233 = vrot.slane %v10231, 4
      %v10234 = vor.u32 %v10230, %v10233
      %v10235 = vshrl.u32 %v10062, 16
      %v10237 = vrot.slane %v10235, 3
      %v10238 = vshll.u32 %v10062, 16
      %v10240 = vrot.slane %v10238, 4
      %v10241 = vor.u32 %v10237, %v10240
      %v10242 = vsel %vm2443, %v10234, %v10241
      %v10243 = vshrl.u32 %v10064, 16
      %v10245 = vrot.slane %v10243, 3
      %v10246 = vshll.u32 %v10064, 16
      %v10248 = vrot.slane %v10246, 4
      %v10249 = vor.u32 %v10245, %v10248
      %v10250 = vshrl.u32 %v10065, 16
      %v10252 = vrot.slane %v10250, 3
      %v10253 = vshll.u32 %v10065, 16
      %v10255 = vrot.slane %v10253, 4
      %v10256 = vor.u32 %v10252, %v10255
      %v10257 = vsel %vm2443, %v10249, %v10256
      %v10258 = vshrl.u32 %v10067, 16
      %v10260 = vrot.slane %v10258, 3
      %v10261 = vshll.u32 %v10067, 16
      %v10263 = vrot.slane %v10261, 4
      %v10264 = vor.u32 %v10260, %v10263
      %v10265 = vshrl.u32 %v10068, 16
      %v10267 = vrot.slane %v10265, 3
      %v10268 = vshll.u32 %v10068, 16
      %v10270 = vrot.slane %v10268, 4
      %v10271 = vor.u32 %v10267, %v10270
      %v10272 = vsel %vm2443, %v10264, %v10271
      %v10273 = vshrl.u32 %v10070, 16
      %v10275 = vrot.slane %v10273, 3
      %v10276 = vshll.u32 %v10070, 16
      %v10278 = vrot.slane %v10276, 4
      %v10279 = vor.u32 %v10275, %v10278
      %v10280 = vshrl.u32 %v10071, 16
      %v10282 = vrot.slane %v10280, 3
      %v10283 = vshll.u32 %v10071, 16
      %v10285 = vrot.slane %v10283, 4
      %v10286 = vor.u32 %v10282, %v10285
      %v10287 = vsel %vm2443, %v10279, %v10286
      %v10288 = vshrl.u32 %v10073, 16
      %v10290 = vrot.slane %v10288, 3
      %v10291 = vshll.u32 %v10073, 16
      %v10293 = vrot.slane %v10291, 4
      %v10294 = vor.u32 %v10290, %v10293
      %v10295 = vshrl.u32 %v10074, 16
      %v10297 = vrot.slane %v10295, 3
      %v10298 = vshll.u32 %v10074, 16
      %v10300 = vrot.slane %v10298, 4
      %v10301 = vor.u32 %v10297, %v10300
      %v10302 = vsel %vm2443, %v10294, %v10301
      %v10303 = vshrl.u32 %v10076, 16
      %v10305 = vrot.slane %v10303, 3
      %v10306 = vshll.u32 %v10076, 16
      %v10308 = vrot.slane %v10306, 4
      %v10309 = vor.u32 %v10305, %v10308
      %v10310 = vshrl.u32 %v10077, 16
      %v10312 = vrot.slane %v10310, 3
      %v10313 = vshll.u32 %v10077, 16
      %v10315 = vrot.slane %v10313, 4
      %v10316 = vor.u32 %v10312, %v10315
      %v10317 = vsel %vm2443, %v10309, %v10316
      %s10318 = scalar_lea.vmem %s3, 48
      %v10319 = vld [vmem:[%s10318] sm:$0xf]
      %v10320 = vld [vmem:[%s10318 + $0x4] sm:$0xf]
      %v10323 = vunpack.c.l.b16 %v10319
      %v10324 = vunpack.c.l.b16 %v10320
      %v10325 = vpack.c.b16 %v10324, %v10323
      %v10328 = vsel %vm3015, %v10092, 0
      %v10331 = vsel %vm3015, %v10107, 0
      %v10334 = vsel %vm3015, %v10122, 0
      %v10337 = vsel %vm3015, %v10137, 0
      %v10340 = vsel %vm3015, %v10152, 0
      %v10343 = vsel %vm3015, %v10167, 0
      %v10346 = vsel %vm3015, %v10182, 0
      %v10349 = vsel %vm3015, %v10197, 0
      %v10352 = vsel %vm3015, %v10212, 0
      %v10355 = vsel %vm3015, %v10227, 0
      %v10358 = vsel %vm3015, %v10242, 0
      %v10361 = vsel %vm3015, %v10257, 0
      %v10364 = vsel %vm3015, %v10272, 0
      %v10367 = vsel %vm3015, %v10287, 0
      %v10370 = vsel %vm3015, %v10302, 0
      %v10373 = vsel %vm3015, %v10317, 0
      %10375 = vmatpush.bf16.msra.mxu0 0
      %10376 = vmatpush.bf16.msra.mxu0 0
      %10377 = vmatpush.bf16.msra.mxu0 0
      %10378 = vmatpush.bf16.msra.mxu0 0
      %10379 = vmatpush.bf16.msra.mxu0 0
      %10380 = vmatpush.bf16.msra.mxu0 0
      %10381 = vmatpush.bf16.msra.mxu0 0
      %10382 = vmatpush.bf16.msra.mxu0 %v10325
      %10383 = vmatmul.bf16.gmra.mxu0 %v10328
      %v10384 = vpop.f32.mrf.mxu0
      %v10385 = vadd.f32 0.0, %v10384
      %v10386 = vpop.f32.mrf.mxu0
      %v10387 = vadd.f32 0.0, %v10386
      %10388 = vmatmul.bf16.gmra.mxu0 %v10331
      %v10389 = vpop.f32.mrf.mxu0
      %v10390 = vadd.f32 0.0, %v10389
      %v10391 = vpop.f32.mrf.mxu0
      %v10392 = vadd.f32 0.0, %v10391
      %10393 = vmatmul.bf16.gmra.mxu0 %v10334
      %v10394 = vpop.f32.mrf.mxu0
      %v10395 = vadd.f32 0.0, %v10394
      %v10396 = vpop.f32.mrf.mxu0
      %v10397 = vadd.f32 0.0, %v10396
      %10398 = vmatmul.bf16.gmra.mxu0 %v10337
      %v10399 = vpop.f32.mrf.mxu0
      %v10400 = vadd.f32 0.0, %v10399
      %v10401 = vpop.f32.mrf.mxu0
      %v10402 = vadd.f32 0.0, %v10401
      %10403 = vmatmul.bf16.gmra.mxu0 %v10340
      %v10404 = vpop.f32.mrf.mxu0
      %v10405 = vadd.f32 0.0, %v10404
      %v10406 = vpop.f32.mrf.mxu0
      %v10407 = vadd.f32 0.0, %v10406
      %10408 = vmatmul.bf16.gmra.mxu0 %v10343
      %v10409 = vpop.f32.mrf.mxu0
      %v10410 = vadd.f32 0.0, %v10409
      %v10411 = vpop.f32.mrf.mxu0
      %v10412 = vadd.f32 0.0, %v10411
      %10413 = vmatmul.bf16.gmra.mxu0 %v10346
      %v10414 = vpop.f32.mrf.mxu0
      %v10415 = vadd.f32 0.0, %v10414
      %v10416 = vpop.f32.mrf.mxu0
      %v10417 = vadd.f32 0.0, %v10416
      %10418 = vmatmul.bf16.gmra.mxu0 %v10349
      %v10419 = vpop.f32.mrf.mxu0
      %v10420 = vadd.f32 0.0, %v10419
      %v10421 = vpop.f32.mrf.mxu0
      %v10422 = vadd.f32 0.0, %v10421
      %10423 = vmatmul.bf16.gmra.mxu0 %v10352
      %v10424 = vpop.f32.mrf.mxu0
      %v10425 = vadd.f32 0.0, %v10424
      %v10426 = vpop.f32.mrf.mxu0
      %v10427 = vadd.f32 0.0, %v10426
      %10428 = vmatmul.bf16.gmra.mxu0 %v10355
      %v10429 = vpop.f32.mrf.mxu0
      %v10430 = vadd.f32 0.0, %v10429
      %v10431 = vpop.f32.mrf.mxu0
      %v10432 = vadd.f32 0.0, %v10431
      %10433 = vmatmul.bf16.gmra.mxu0 %v10358
      %v10434 = vpop.f32.mrf.mxu0
      %v10435 = vadd.f32 0.0, %v10434
      %v10436 = vpop.f32.mrf.mxu0
      %v10437 = vadd.f32 0.0, %v10436
      %10438 = vmatmul.bf16.gmra.mxu0 %v10361
      %v10439 = vpop.f32.mrf.mxu0
      %v10440 = vadd.f32 0.0, %v10439
      %v10441 = vpop.f32.mrf.mxu0
      %v10442 = vadd.f32 0.0, %v10441
      %10443 = vmatmul.bf16.gmra.mxu0 %v10364
      %v10444 = vpop.f32.mrf.mxu0
      %v10445 = vadd.f32 0.0, %v10444
      %v10446 = vpop.f32.mrf.mxu0
      %v10447 = vadd.f32 0.0, %v10446
      %10448 = vmatmul.bf16.gmra.mxu0 %v10367
      %v10449 = vpop.f32.mrf.mxu0
      %v10450 = vadd.f32 0.0, %v10449
      %v10451 = vpop.f32.mrf.mxu0
      %v10452 = vadd.f32 0.0, %v10451
      %10453 = vmatmul.bf16.gmra.mxu0 %v10370
      %v10454 = vpop.f32.mrf.mxu0
      %v10455 = vadd.f32 0.0, %v10454
      %v10456 = vpop.f32.mrf.mxu0
      %v10457 = vadd.f32 0.0, %v10456
      %10458 = vmatmul.bf16.gmra.mxu0 %v10373
      %v10459 = vpop.f32.mrf.mxu0
      %v10460 = vadd.f32 0.0, %v10459
      %v10461 = vpop.f32.mrf.mxu0
      %v10462 = vadd.f32 0.0, %v10461
      %10463 = vdwg.mxu0
      %v10464 = vadd.f32 %v8554, %v10385
      %v10465 = vadd.f32 %v8555, %v10387
      %v10466 = vadd.f32 %v8556, %v10390
      %v10467 = vadd.f32 %v8557, %v10392
      %v10468 = vadd.f32 %v8558, %v10395
      %v10469 = vadd.f32 %v8559, %v10397
      %v10470 = vadd.f32 %v8560, %v10400
      %v10471 = vadd.f32 %v8561, %v10402
      %v10472 = vadd.f32 %v8562, %v10405
      %v10473 = vadd.f32 %v8563, %v10407
      %v10474 = vadd.f32 %v8564, %v10410
      %v10475 = vadd.f32 %v8565, %v10412
      %v10476 = vadd.f32 %v8566, %v10415
      %v10477 = vadd.f32 %v8567, %v10417
      %v10478 = vadd.f32 %v8568, %v10420
      %v10479 = vadd.f32 %v8569, %v10422
      %v10480 = vadd.f32 %v8570, %v10425
      %v10481 = vadd.f32 %v8571, %v10427
      %v10482 = vadd.f32 %v8572, %v10430
      %v10483 = vadd.f32 %v8573, %v10432
      %v10484 = vadd.f32 %v8574, %v10435
      %v10485 = vadd.f32 %v8575, %v10437
      %v10486 = vadd.f32 %v8576, %v10440
      %v10487 = vadd.f32 %v8577, %v10442
      %v10488 = vadd.f32 %v8578, %v10445
      %v10489 = vadd.f32 %v8579, %v10447
      %v10490 = vadd.f32 %v8580, %v10450
      %v10491 = vadd.f32 %v8581, %v10452
      %v10492 = vadd.f32 %v8582, %v10455
      %v10493 = vadd.f32 %v8583, %v10457
      %v10494 = vadd.f32 %v8584, %v10460
      %v10495 = vadd.f32 %v8585, %v10462
      %v10496 = vld [vmem:[%s8635 + $0x8] sm:$0xf]
      %v10497 = vld [vmem:[%s8635 + $0x18] sm:$0xf]
      %v10498 = vld [vmem:[%s8635 + $0x28] sm:$0xf]
      %v10499 = vld [vmem:[%s8635 + $0x38] sm:$0xf]
      %v10500 = vld [vmem:[%s8635 + $0x48] sm:$0xf]
      %v10501 = vld [vmem:[%s8635 + $0x58] sm:$0xf]
      %v10502 = vld [vmem:[%s8635 + $0x68] sm:$0xf]
      %v10503 = vld [vmem:[%s8635 + $0x78] sm:$0xf]
      %v10504 = vld [vmem:[%s8635 + $0x88] sm:$0xf]
      %v10505 = vld [vmem:[%s8635 + $0x98] sm:$0xf]
      %v10506 = vld [vmem:[%s8635 + $0xa8] sm:$0xf]
      %v10507 = vld [vmem:[%s8635 + $0xb8] sm:$0xf]
      %v10508 = vld [vmem:[%s8635 + $0xc8] sm:$0xf]
      %v10509 = vld [vmem:[%s8635 + $0xd8] sm:$0xf]
      %v10510 = vld [vmem:[%s8635 + $0xe8] sm:$0xf]
      %v10511 = vld [vmem:[%s8635 + $0xf8] sm:$0xf]
      %v10512 = vld [vmem:[%s8684 + $0x8] sm:$0xf]
      %v10513 = vld [vmem:[%s8684 + $0x18] sm:$0xf]
      %v10514 = vld [vmem:[%s8684 + $0x28] sm:$0xf]
      %v10515 = vld [vmem:[%s8684 + $0x38] sm:$0xf]
      %v10516 = vld [vmem:[%s8684 + $0x48] sm:$0xf]
      %v10517 = vld [vmem:[%s8684 + $0x58] sm:$0xf]
      %v10518 = vld [vmem:[%s8684 + $0x68] sm:$0xf]
      %v10519 = vld [vmem:[%s8684 + $0x78] sm:$0xf]
      %v10520 = vld [vmem:[%s8684 + $0x88] sm:$0xf]
      %v10521 = vld [vmem:[%s8684 + $0x98] sm:$0xf]
      %v10522 = vld [vmem:[%s8684 + $0xa8] sm:$0xf]
      %v10523 = vld [vmem:[%s8684 + $0xb8] sm:$0xf]
      %v10524 = vld [vmem:[%s8684 + $0xc8] sm:$0xf]
      %v10525 = vld [vmem:[%s8684 + $0xd8] sm:$0xf]
      %v10526 = vld [vmem:[%s8684 + $0xe8] sm:$0xf]
      %v10527 = vld [vmem:[%s8684 + $0xf8] sm:$0xf]
      %v10528 = vld [vmem:[%s8733 + $0x4] sm:$0xf]
      %v10529 = vld [vmem:[%s8733 + $0x8] sm:$0xf]
      %v10530 = vld [vmem:[%s8733 + $0x14] sm:$0xf]
      %v10531 = vld [vmem:[%s8733 + $0x18] sm:$0xf]
      %v10532 = vld [vmem:[%s8733 + $0x24] sm:$0xf]
      %v10533 = vld [vmem:[%s8733 + $0x28] sm:$0xf]
      %v10534 = vld [vmem:[%s8733 + $0x34] sm:$0xf]
      %v10535 = vld [vmem:[%s8733 + $0x38] sm:$0xf]
      %v10536 = vld [vmem:[%s8733 + $0x44] sm:$0xf]
      %v10537 = vld [vmem:[%s8733 + $0x48] sm:$0xf]
      %v10538 = vld [vmem:[%s8733 + $0x54] sm:$0xf]
      %v10539 = vld [vmem:[%s8733 + $0x58] sm:$0xf]
      %v10540 = vld [vmem:[%s8733 + $0x64] sm:$0xf]
      %v10541 = vld [vmem:[%s8733 + $0x68] sm:$0xf]
      %v10542 = vld [vmem:[%s8733 + $0x74] sm:$0xf]
      %v10543 = vld [vmem:[%s8733 + $0x78] sm:$0xf]
      %v10544 = vld [vmem:[%s8733 + $0x84] sm:$0xf]
      %v10545 = vld [vmem:[%s8733 + $0x88] sm:$0xf]
      %v10546 = vld [vmem:[%s8733 + $0x94] sm:$0xf]
      %v10547 = vld [vmem:[%s8733 + $0x98] sm:$0xf]
      %v10548 = vld [vmem:[%s8733 + $0xa4] sm:$0xf]
      %v10549 = vld [vmem:[%s8733 + $0xa8] sm:$0xf]
      %v10550 = vld [vmem:[%s8733 + $0xb4] sm:$0xf]
      %v10551 = vld [vmem:[%s8733 + $0xb8] sm:$0xf]
      %v10552 = vld [vmem:[%s8733 + $0xc4] sm:$0xf]
      %v10553 = vld [vmem:[%s8733 + $0xc8] sm:$0xf]
      %v10554 = vld [vmem:[%s8733 + $0xd4] sm:$0xf]
      %v10555 = vld [vmem:[%s8733 + $0xd8] sm:$0xf]
      %v10556 = vld [vmem:[%s8733 + $0xe4] sm:$0xf]
      %v10557 = vld [vmem:[%s8733 + $0xe8] sm:$0xf]
      %v10558 = vld [vmem:[%s8733 + $0xf4] sm:$0xf]
      %v10559 = vld [vmem:[%s8733 + $0xf8] sm:$0xf]
      %v10560 = vpack.c.b16 %v8816, %v8815
      %v10561 = vpack.c.b16 %v8819, %v8818
      %v10562 = vpack.c.b16 %v8822, %v8821
      %v10563 = vpack.c.b16 %v8825, %v8824
      %v10564 = vpack.c.b16 %v8828, %v8827
      %v10565 = vpack.c.b16 %v8831, %v8830
      %v10566 = vpack.c.b16 %v8834, %v8833
      %v10567 = vpack.c.b16 %v8837, %v8836
      %v10568 = vpack.c.b16 %v8840, %v8839
      %v10569 = vpack.c.b16 %v8843, %v8842
      %v10570 = vpack.c.b16 %v8846, %v8845
      %v10571 = vpack.c.b16 %v8849, %v8848
      %v10572 = vpack.c.b16 %v8852, %v8851
      %v10573 = vpack.c.b16 %v8855, %v8854
      %v10574 = vpack.c.b16 %v8858, %v8857
      %v10575 = vpack.c.b16 %v8861, %v8860
      %v10592 = vunpack.c.l.b16 %v10496
      %v10593 = vunpack.c.l.b16 %v10497
      %v10594 = vunpack.c.l.b16 %v10498
      %v10595 = vunpack.c.l.b16 %v10499
      %v10596 = vunpack.c.l.b16 %v10500
      %v10597 = vunpack.c.l.b16 %v10501
      %v10598 = vunpack.c.l.b16 %v10502
      %v10599 = vunpack.c.l.b16 %v10503
      %v10600 = vunpack.c.l.b16 %v10504
      %v10601 = vunpack.c.l.b16 %v10505
      %v10602 = vunpack.c.l.b16 %v10506
      %v10603 = vunpack.c.l.b16 %v10507
      %v10604 = vunpack.c.l.b16 %v10508
      %v10605 = vunpack.c.l.b16 %v10509
      %v10606 = vunpack.c.l.b16 %v10510
      %v10607 = vunpack.c.l.b16 %v10511
      %v10608 = vpack.c.b16 %v10592, %v8943
      %v10609 = vpack.c.b16 %v10593, %v8946
      %v10610 = vpack.c.b16 %v10594, %v8949
      %v10611 = vpack.c.b16 %v10595, %v8952
      %v10612 = vpack.c.b16 %v10596, %v8955
      %v10613 = vpack.c.b16 %v10597, %v8958
      %v10614 = vpack.c.b16 %v10598, %v8961
      %v10615 = vpack.c.b16 %v10599, %v8964
      %v10616 = vpack.c.b16 %v10600, %v8967
      %v10617 = vpack.c.b16 %v10601, %v8970
      %v10618 = vpack.c.b16 %v10602, %v8973
      %v10619 = vpack.c.b16 %v10603, %v8976
      %v10620 = vpack.c.b16 %v10604, %v8979
      %v10621 = vpack.c.b16 %v10605, %v8982
      %v10622 = vpack.c.b16 %v10606, %v8985
      %v10623 = vpack.c.b16 %v10607, %v8988
      %v10640 = vunpack.c.l.b16 %v10512
      %v10641 = vunpack.c.l.b16 %v10513
      %v10642 = vunpack.c.l.b16 %v10514
      %v10643 = vunpack.c.l.b16 %v10515
      %v10644 = vunpack.c.l.b16 %v10516
      %v10645 = vunpack.c.l.b16 %v10517
      %v10646 = vunpack.c.l.b16 %v10518
      %v10647 = vunpack.c.l.b16 %v10519
      %v10648 = vunpack.c.l.b16 %v10520
      %v10649 = vunpack.c.l.b16 %v10521
      %v10650 = vunpack.c.l.b16 %v10522
      %v10651 = vunpack.c.l.b16 %v10523
      %v10652 = vunpack.c.l.b16 %v10524
      %v10653 = vunpack.c.l.b16 %v10525
      %v10654 = vunpack.c.l.b16 %v10526
      %v10655 = vunpack.c.l.b16 %v10527
      %v10656 = vpack.c.b16 %v10640, %v9311
      %v10657 = vpack.c.b16 %v10641, %v9314
      %v10658 = vpack.c.b16 %v10642, %v9317
      %v10659 = vpack.c.b16 %v10643, %v9320
      %v10660 = vpack.c.b16 %v10644, %v9323
      %v10661 = vpack.c.b16 %v10645, %v9326
      %v10662 = vpack.c.b16 %v10646, %v9329
      %v10663 = vpack.c.b16 %v10647, %v9332
      %v10664 = vpack.c.b16 %v10648, %v9335
      %v10665 = vpack.c.b16 %v10649, %v9338
      %v10666 = vpack.c.b16 %v10650, %v9341
      %v10667 = vpack.c.b16 %v10651, %v9344
      %v10668 = vpack.c.b16 %v10652, %v9347
      %v10669 = vpack.c.b16 %v10653, %v9350
      %v10670 = vpack.c.b16 %v10654, %v9353
      %v10671 = vpack.c.b16 %v10655, %v9356
      %v10704 = vunpack.c.l.b16 %v10528
      %v10705 = vunpack.c.l.b16 %v10529
      %v10706 = vunpack.c.l.b16 %v10530
      %v10707 = vunpack.c.l.b16 %v10531
      %v10708 = vunpack.c.l.b16 %v10532
      %v10709 = vunpack.c.l.b16 %v10533
      %v10710 = vunpack.c.l.b16 %v10534
      %v10711 = vunpack.c.l.b16 %v10535
      %v10712 = vunpack.c.l.b16 %v10536
      %v10713 = vunpack.c.l.b16 %v10537
      %v10714 = vunpack.c.l.b16 %v10538
      %v10715 = vunpack.c.l.b16 %v10539
      %v10716 = vunpack.c.l.b16 %v10540
      %v10717 = vunpack.c.l.b16 %v10541
      %v10718 = vunpack.c.l.b16 %v10542
      %v10719 = vunpack.c.l.b16 %v10543
      %v10720 = vunpack.c.l.b16 %v10544
      %v10721 = vunpack.c.l.b16 %v10545
      %v10722 = vunpack.c.l.b16 %v10546
      %v10723 = vunpack.c.l.b16 %v10547
      %v10724 = vunpack.c.l.b16 %v10548
      %v10725 = vunpack.c.l.b16 %v10549
      %v10726 = vunpack.c.l.b16 %v10550
      %v10727 = vunpack.c.l.b16 %v10551
      %v10728 = vunpack.c.l.b16 %v10552
      %v10729 = vunpack.c.l.b16 %v10553
      %v10730 = vunpack.c.l.b16 %v10554
      %v10731 = vunpack.c.l.b16 %v10555
      %v10732 = vunpack.c.l.b16 %v10556
      %v10733 = vunpack.c.l.b16 %v10557
      %v10734 = vunpack.c.l.b16 %v10558
      %v10735 = vunpack.c.l.b16 %v10559
      %v10736 = vpack.c.b16 %v10705, %v10704
      %v10737 = vpack.c.b16 %v10707, %v10706
      %v10738 = vpack.c.b16 %v10709, %v10708
      %v10739 = vpack.c.b16 %v10711, %v10710
      %v10740 = vpack.c.b16 %v10713, %v10712
      %v10741 = vpack.c.b16 %v10715, %v10714
      %v10742 = vpack.c.b16 %v10717, %v10716
      %v10743 = vpack.c.b16 %v10719, %v10718
      %v10744 = vpack.c.b16 %v10721, %v10720
      %v10745 = vpack.c.b16 %v10723, %v10722
      %v10746 = vpack.c.b16 %v10725, %v10724
      %v10747 = vpack.c.b16 %v10727, %v10726
      %v10748 = vpack.c.b16 %v10729, %v10728
      %v10749 = vpack.c.b16 %v10731, %v10730
      %v10750 = vpack.c.b16 %v10733, %v10732
      %v10751 = vpack.c.b16 %v10735, %v10734
      %v10754 = vsel %vm451, %v10560, %v10608
      %v10757 = vsel %vm451, %v10561, %v10609
      %v10760 = vsel %vm451, %v10562, %v10610
      %v10763 = vsel %vm451, %v10563, %v10611
      %v10766 = vsel %vm451, %v10564, %v10612
      %v10769 = vsel %vm451, %v10565, %v10613
      %v10772 = vsel %vm451, %v10566, %v10614
      %v10775 = vsel %vm451, %v10567, %v10615
      %v10778 = vsel %vm451, %v10568, %v10616
      %v10781 = vsel %vm451, %v10569, %v10617
      %v10784 = vsel %vm451, %v10570, %v10618
      %v10787 = vsel %vm451, %v10571, %v10619
      %v10790 = vsel %vm451, %v10572, %v10620
      %v10793 = vsel %vm451, %v10573, %v10621
      %v10796 = vsel %vm451, %v10574, %v10622
      %v10799 = vsel %vm451, %v10575, %v10623
      %v10801 = vsel %vm2329, %v10754, %v10656
      %v10803 = vsel %vm2329, %v10757, %v10657
      %v10805 = vsel %vm2329, %v10760, %v10658
      %v10807 = vsel %vm2329, %v10763, %v10659
      %v10809 = vsel %vm2329, %v10766, %v10660
      %v10811 = vsel %vm2329, %v10769, %v10661
      %v10813 = vsel %vm2329, %v10772, %v10662
      %v10815 = vsel %vm2329, %v10775, %v10663
      %v10817 = vsel %vm2329, %v10778, %v10664
      %v10819 = vsel %vm2329, %v10781, %v10665
      %v10821 = vsel %vm2329, %v10784, %v10666
      %v10823 = vsel %vm2329, %v10787, %v10667
      %v10825 = vsel %vm2329, %v10790, %v10668
      %v10827 = vsel %vm2329, %v10793, %v10669
      %v10829 = vsel %vm2329, %v10796, %v10670
      %v10831 = vsel %vm2329, %v10799, %v10671
      %v10833 = vsel %vm2394, %v10801, %v10736
      %v10835 = vsel %vm2394, %v10803, %v10737
      %v10837 = vsel %vm2394, %v10805, %v10738
      %v10839 = vsel %vm2394, %v10807, %v10739
      %v10841 = vsel %vm2394, %v10809, %v10740
      %v10843 = vsel %vm2394, %v10811, %v10741
      %v10845 = vsel %vm2394, %v10813, %v10742
      %v10847 = vsel %vm2394, %v10815, %v10743
      %v10849 = vsel %vm2394, %v10817, %v10744
      %v10851 = vsel %vm2394, %v10819, %v10745
      %v10853 = vsel %vm2394, %v10821, %v10746
      %v10855 = vsel %vm2394, %v10823, %v10747
      %v10857 = vsel %vm2394, %v10825, %v10748
      %v10859 = vsel %vm2394, %v10827, %v10749
      %v10861 = vsel %vm2394, %v10829, %v10750
      %v10863 = vsel %vm2394, %v10831, %v10751
      %s10864 = scalar_lea.vmem %s3, 56
      %v10865 = vld [vmem:[%s10864] sm:$0xf]
      %v10866 = vld [vmem:[%s10864 + $0x4] sm:$0xf]
      %v10869 = vunpack.c.l.b16 %v10865
      %v10870 = vunpack.c.l.b16 %v10866
      %v10871 = vpack.c.b16 %v10870, %v10869
      %v10873 = vsel %vm3015, %v10833, 0
      %v10875 = vsel %vm3015, %v10835, 0
      %v10877 = vsel %vm3015, %v10837, 0
      %v10879 = vsel %vm3015, %v10839, 0
      %v10881 = vsel %vm3015, %v10841, 0
      %v10883 = vsel %vm3015, %v10843, 0
      %v10885 = vsel %vm3015, %v10845, 0
      %v10887 = vsel %vm3015, %v10847, 0
      %v10889 = vsel %vm3015, %v10849, 0
      %v10891 = vsel %vm3015, %v10851, 0
      %v10893 = vsel %vm3015, %v10853, 0
      %v10895 = vsel %vm3015, %v10855, 0
      %v10897 = vsel %vm3015, %v10857, 0
      %v10899 = vsel %vm3015, %v10859, 0
      %v10901 = vsel %vm3015, %v10861, 0
      %v10903 = vsel %vm3015, %v10863, 0
      %10905 = vmatpush.bf16.msra.mxu0 0
      %10906 = vmatpush.bf16.msra.mxu0 0
      %10907 = vmatpush.bf16.msra.mxu0 0
      %10908 = vmatpush.bf16.msra.mxu0 0
      %10909 = vmatpush.bf16.msra.mxu0 0
      %10910 = vmatpush.bf16.msra.mxu0 0
      %10911 = vmatpush.bf16.msra.mxu0 0
      %10912 = vmatpush.bf16.msra.mxu0 %v10871
      %10913 = vmatmul.bf16.gmra.mxu0 %v10873
      %v10914 = vpop.f32.mrf.mxu0
      %v10915 = vadd.f32 0.0, %v10914
      %v10916 = vpop.f32.mrf.mxu0
      %v10917 = vadd.f32 0.0, %v10916
      %10918 = vmatmul.bf16.gmra.mxu0 %v10875
      %v10919 = vpop.f32.mrf.mxu0
      %v10920 = vadd.f32 0.0, %v10919
      %v10921 = vpop.f32.mrf.mxu0
      %v10922 = vadd.f32 0.0, %v10921
      %10923 = vmatmul.bf16.gmra.mxu0 %v10877
      %v10924 = vpop.f32.mrf.mxu0
      %v10925 = vadd.f32 0.0, %v10924
      %v10926 = vpop.f32.mrf.mxu0
      %v10927 = vadd.f32 0.0, %v10926
      %10928 = vmatmul.bf16.gmra.mxu0 %v10879
      %v10929 = vpop.f32.mrf.mxu0
      %v10930 = vadd.f32 0.0, %v10929
      %v10931 = vpop.f32.mrf.mxu0
      %v10932 = vadd.f32 0.0, %v10931
      %10933 = vmatmul.bf16.gmra.mxu0 %v10881
      %v10934 = vpop.f32.mrf.mxu0
      %v10935 = vadd.f32 0.0, %v10934
      %v10936 = vpop.f32.mrf.mxu0
      %v10937 = vadd.f32 0.0, %v10936
      %10938 = vmatmul.bf16.gmra.mxu0 %v10883
      %v10939 = vpop.f32.mrf.mxu0
      %v10940 = vadd.f32 0.0, %v10939
      %v10941 = vpop.f32.mrf.mxu0
      %v10942 = vadd.f32 0.0, %v10941
      %10943 = vmatmul.bf16.gmra.mxu0 %v10885
      %v10944 = vpop.f32.mrf.mxu0
      %v10945 = vadd.f32 0.0, %v10944
      %v10946 = vpop.f32.mrf.mxu0
      %v10947 = vadd.f32 0.0, %v10946
      %10948 = vmatmul.bf16.gmra.mxu0 %v10887
      %v10949 = vpop.f32.mrf.mxu0
      %v10950 = vadd.f32 0.0, %v10949
      %v10951 = vpop.f32.mrf.mxu0
      %v10952 = vadd.f32 0.0, %v10951
      %10953 = vmatmul.bf16.gmra.mxu0 %v10889
      %v10954 = vpop.f32.mrf.mxu0
      %v10955 = vadd.f32 0.0, %v10954
      %v10956 = vpop.f32.mrf.mxu0
      %v10957 = vadd.f32 0.0, %v10956
      %10958 = vmatmul.bf16.gmra.mxu0 %v10891
      %v10959 = vpop.f32.mrf.mxu0
      %v10960 = vadd.f32 0.0, %v10959
      %v10961 = vpop.f32.mrf.mxu0
      %v10962 = vadd.f32 0.0, %v10961
      %10963 = vmatmul.bf16.gmra.mxu0 %v10893
      %v10964 = vpop.f32.mrf.mxu0
      %v10965 = vadd.f32 0.0, %v10964
      %v10966 = vpop.f32.mrf.mxu0
      %v10967 = vadd.f32 0.0, %v10966
      %10968 = vmatmul.bf16.gmra.mxu0 %v10895
      %v10969 = vpop.f32.mrf.mxu0
      %v10970 = vadd.f32 0.0, %v10969
      %v10971 = vpop.f32.mrf.mxu0
      %v10972 = vadd.f32 0.0, %v10971
      %10973 = vmatmul.bf16.gmra.mxu0 %v10897
      %v10974 = vpop.f32.mrf.mxu0
      %v10975 = vadd.f32 0.0, %v10974
      %v10976 = vpop.f32.mrf.mxu0
      %v10977 = vadd.f32 0.0, %v10976
      %10978 = vmatmul.bf16.gmra.mxu0 %v10899
      %v10979 = vpop.f32.mrf.mxu0
      %v10980 = vadd.f32 0.0, %v10979
      %v10981 = vpop.f32.mrf.mxu0
      %v10982 = vadd.f32 0.0, %v10981
      %10983 = vmatmul.bf16.gmra.mxu0 %v10901
      %v10984 = vpop.f32.mrf.mxu0
      %v10985 = vadd.f32 0.0, %v10984
      %v10986 = vpop.f32.mrf.mxu0
      %v10987 = vadd.f32 0.0, %v10986
      %10988 = vmatmul.bf16.gmra.mxu0 %v10903
      %v10989 = vpop.f32.mrf.mxu0
      %v10990 = vadd.f32 0.0, %v10989
      %v10991 = vpop.f32.mrf.mxu0
      %v10992 = vadd.f32 0.0, %v10991
      %10993 = vdwg.mxu0
      %v10994 = vadd.f32 %v10464, %v10915
      %v10995 = vadd.f32 %v10465, %v10917
      %v10996 = vadd.f32 %v10466, %v10920
      %v10997 = vadd.f32 %v10467, %v10922
      %v10998 = vadd.f32 %v10468, %v10925
      %v10999 = vadd.f32 %v10469, %v10927
      %v11000 = vadd.f32 %v10470, %v10930
      %v11001 = vadd.f32 %v10471, %v10932
      %v11002 = vadd.f32 %v10472, %v10935
      %v11003 = vadd.f32 %v10473, %v10937
      %v11004 = vadd.f32 %v10474, %v10940
      %v11005 = vadd.f32 %v10475, %v10942
      %v11006 = vadd.f32 %v10476, %v10945
      %v11007 = vadd.f32 %v10477, %v10947
      %v11008 = vadd.f32 %v10478, %v10950
      %v11009 = vadd.f32 %v10479, %v10952
      %v11010 = vadd.f32 %v10480, %v10955
      %v11011 = vadd.f32 %v10481, %v10957
      %v11012 = vadd.f32 %v10482, %v10960
      %v11013 = vadd.f32 %v10483, %v10962
      %v11014 = vadd.f32 %v10484, %v10965
      %v11015 = vadd.f32 %v10485, %v10967
      %v11016 = vadd.f32 %v10486, %v10970
      %v11017 = vadd.f32 %v10487, %v10972
      %v11018 = vadd.f32 %v10488, %v10975
      %v11019 = vadd.f32 %v10489, %v10977
      %v11020 = vadd.f32 %v10490, %v10980
      %v11021 = vadd.f32 %v10491, %v10982
      %v11022 = vadd.f32 %v10492, %v10985
      %v11023 = vadd.f32 %v10493, %v10987
      %v11024 = vadd.f32 %v10494, %v10990
      %v11025 = vadd.f32 %v10495, %v10992
      %v11026 = vld [vmem:[%s8586 + $0x4] sm:$0xf]
      %v11027 = vld [vmem:[%s8586 + $0x8] sm:$0xf]
      %v11028 = vld [vmem:[%s8586 + $0xc] sm:$0x1]
      %v11029 = vld [vmem:[%s8586 + $0x14] sm:$0xf]
      %v11030 = vld [vmem:[%s8586 + $0x18] sm:$0xf]
      %v11031 = vld [vmem:[%s8586 + $0x1c] sm:$0x1]
      %v11032 = vld [vmem:[%s8586 + $0x24] sm:$0xf]
      %v11033 = vld [vmem:[%s8586 + $0x28] sm:$0xf]
      %v11034 = vld [vmem:[%s8586 + $0x2c] sm:$0x1]
      %v11035 = vld [vmem:[%s8586 + $0x34] sm:$0xf]
      %v11036 = vld [vmem:[%s8586 + $0x38] sm:$0xf]
      %v11037 = vld [vmem:[%s8586 + $0x3c] sm:$0x1]
      %v11038 = vld [vmem:[%s8586 + $0x44] sm:$0xf]
      %v11039 = vld [vmem:[%s8586 + $0x48] sm:$0xf]
      %v11040 = vld [vmem:[%s8586 + $0x4c] sm:$0x1]
      %v11041 = vld [vmem:[%s8586 + $0x54] sm:$0xf]
      %v11042 = vld [vmem:[%s8586 + $0x58] sm:$0xf]
      %v11043 = vld [vmem:[%s8586 + $0x5c] sm:$0x1]
      %v11044 = vld [vmem:[%s8586 + $0x64] sm:$0xf]
      %v11045 = vld [vmem:[%s8586 + $0x68] sm:$0xf]
      %v11046 = vld [vmem:[%s8586 + $0x6c] sm:$0x1]
      %v11047 = vld [vmem:[%s8586 + $0x74] sm:$0xf]
      %v11048 = vld [vmem:[%s8586 + $0x78] sm:$0xf]
      %v11049 = vld [vmem:[%s8586 + $0x7c] sm:$0x1]
      %v11050 = vld [vmem:[%s8586 + $0x84] sm:$0xf]
      %v11051 = vld [vmem:[%s8586 + $0x88] sm:$0xf]
      %v11052 = vld [vmem:[%s8586 + $0x8c] sm:$0x1]
      %v11053 = vld [vmem:[%s8586 + $0x94] sm:$0xf]
      %v11054 = vld [vmem:[%s8586 + $0x98] sm:$0xf]
      %v11055 = vld [vmem:[%s8586 + $0x9c] sm:$0x1]
      %v11056 = vld [vmem:[%s8586 + $0xa4] sm:$0xf]
      %v11057 = vld [vmem:[%s8586 + $0xa8] sm:$0xf]
      %v11058 = vld [vmem:[%s8586 + $0xac] sm:$0x1]
      %v11059 = vld [vmem:[%s8586 + $0xb4] sm:$0xf]
      %v11060 = vld [vmem:[%s8586 + $0xb8] sm:$0xf]
      %v11061 = vld [vmem:[%s8586 + $0xbc] sm:$0x1]
      %v11062 = vld [vmem:[%s8586 + $0xc4] sm:$0xf]
      %v11063 = vld [vmem:[%s8586 + $0xc8] sm:$0xf]
      %v11064 = vld [vmem:[%s8586 + $0xcc] sm:$0x1]
      %v11065 = vld [vmem:[%s8586 + $0xd4] sm:$0xf]
      %v11066 = vld [vmem:[%s8586 + $0xd8] sm:$0xf]
      %v11067 = vld [vmem:[%s8586 + $0xdc] sm:$0x1]
      %v11068 = vld [vmem:[%s8586 + $0xe4] sm:$0xf]
      %v11069 = vld [vmem:[%s8586 + $0xe8] sm:$0xf]
      %v11070 = vld [vmem:[%s8586 + $0xec] sm:$0x1]
      %v11071 = vld [vmem:[%s8586 + $0xf4] sm:$0xf]
      %v11072 = vld [vmem:[%s8586 + $0xf8] sm:$0xf]
      %v11073 = vld [vmem:[%s8586 + $0xfc] sm:$0x1]
      %v11074 = vld [vmem:[%s8635 + $0x4] sm:$0xe]
      %v11075 = vld [vmem:[%s8635 + $0x8] sm:$0xf]
      %v11076 = vld [vmem:[%s8635 + $0xc] sm:$0x1]
      %v11077 = vld [vmem:[%s8635 + $0x14] sm:$0xe]
      %v11078 = vld [vmem:[%s8635 + $0x18] sm:$0xf]
      %v11079 = vld [vmem:[%s8635 + $0x1c] sm:$0x1]
      %v11080 = vld [vmem:[%s8635 + $0x24] sm:$0xe]
      %v11081 = vld [vmem:[%s8635 + $0x28] sm:$0xf]
      %v11082 = vld [vmem:[%s8635 + $0x2c] sm:$0x1]
      %v11083 = vld [vmem:[%s8635 + $0x34] sm:$0xe]
      %v11084 = vld [vmem:[%s8635 + $0x38] sm:$0xf]
      %v11085 = vld [vmem:[%s8635 + $0x3c] sm:$0x1]
      %v11086 = vld [vmem:[%s8635 + $0x44] sm:$0xe]
      %v11087 = vld [vmem:[%s8635 + $0x48] sm:$0xf]
      %v11088 = vld [vmem:[%s8635 + $0x4c] sm:$0x1]
      %v11089 = vld [vmem:[%s8635 + $0x54] sm:$0xe]
      %v11090 = vld [vmem:[%s8635 + $0x58] sm:$0xf]
      %v11091 = vld [vmem:[%s8635 + $0x5c] sm:$0x1]
      %v11092 = vld [vmem:[%s8635 + $0x64] sm:$0xe]
      %v11093 = vld [vmem:[%s8635 + $0x68] sm:$0xf]
      %v11094 = vld [vmem:[%s8635 + $0x6c] sm:$0x1]
      %v11095 = vld [vmem:[%s8635 + $0x74] sm:$0xe]
      %v11096 = vld [vmem:[%s8635 + $0x78] sm:$0xf]
      %v11097 = vld [vmem:[%s8635 + $0x7c] sm:$0x1]
      %v11098 = vld [vmem:[%s8635 + $0x84] sm:$0xe]
      %v11099 = vld [vmem:[%s8635 + $0x88] sm:$0xf]
      %v11100 = vld [vmem:[%s8635 + $0x8c] sm:$0x1]
      %v11101 = vld [vmem:[%s8635 + $0x94] sm:$0xe]
      %v11102 = vld [vmem:[%s8635 + $0x98] sm:$0xf]
      %v11103 = vld [vmem:[%s8635 + $0x9c] sm:$0x1]
      %v11104 = vld [vmem:[%s8635 + $0xa4] sm:$0xe]
      %v11105 = vld [vmem:[%s8635 + $0xa8] sm:$0xf]
      %v11106 = vld [vmem:[%s8635 + $0xac] sm:$0x1]
      %v11107 = vld [vmem:[%s8635 + $0xb4] sm:$0xe]
      %v11108 = vld [vmem:[%s8635 + $0xb8] sm:$0xf]
      %v11109 = vld [vmem:[%s8635 + $0xbc] sm:$0x1]
      %v11110 = vld [vmem:[%s8635 + $0xc4] sm:$0xe]
      %v11111 = vld [vmem:[%s8635 + $0xc8] sm:$0xf]
      %v11112 = vld [vmem:[%s8635 + $0xcc] sm:$0x1]
      %v11113 = vld [vmem:[%s8635 + $0xd4] sm:$0xe]
      %v11114 = vld [vmem:[%s8635 + $0xd8] sm:$0xf]
      %v11115 = vld [vmem:[%s8635 + $0xdc] sm:$0x1]
      %v11116 = vld [vmem:[%s8635 + $0xe4] sm:$0xe]
      %v11117 = vld [vmem:[%s8635 + $0xe8] sm:$0xf]
      %v11118 = vld [vmem:[%s8635 + $0xec] sm:$0x1]
      %v11119 = vld [vmem:[%s8635 + $0xf4] sm:$0xe]
      %v11120 = vld [vmem:[%s8635 + $0xf8] sm:$0xf]
      %v11121 = vld [vmem:[%s8635 + $0xfc] sm:$0x1]
      %v11122 = vld [vmem:[%s8684 + $0x4] sm:$0xc]
      %v11123 = vld [vmem:[%s8684 + $0x8] sm:$0xf]
      %v11124 = vld [vmem:[%s8684 + $0xc] sm:$0x3]
      %v11125 = vld [vmem:[%s8684 + $0x14] sm:$0xc]
      %v11126 = vld [vmem:[%s8684 + $0x18] sm:$0xf]
      %v11127 = vld [vmem:[%s8684 + $0x1c] sm:$0x3]
      %v11128 = vld [vmem:[%s8684 + $0x24] sm:$0xc]
      %v11129 = vld [vmem:[%s8684 + $0x28] sm:$0xf]
      %v11130 = vld [vmem:[%s8684 + $0x2c] sm:$0x3]
      %v11131 = vld [vmem:[%s8684 + $0x34] sm:$0xc]
      %v11132 = vld [vmem:[%s8684 + $0x38] sm:$0xf]
      %v11133 = vld [vmem:[%s8684 + $0x3c] sm:$0x3]
      %v11134 = vld [vmem:[%s8684 + $0x44] sm:$0xc]
      %v11135 = vld [vmem:[%s8684 + $0x48] sm:$0xf]
      %v11136 = vld [vmem:[%s8684 + $0x4c] sm:$0x3]
      %v11137 = vld [vmem:[%s8684 + $0x54] sm:$0xc]
      %v11138 = vld [vmem:[%s8684 + $0x58] sm:$0xf]
      %v11139 = vld [vmem:[%s8684 + $0x5c] sm:$0x3]
      %v11140 = vld [vmem:[%s8684 + $0x64] sm:$0xc]
      %v11141 = vld [vmem:[%s8684 + $0x68] sm:$0xf]
      %v11142 = vld [vmem:[%s8684 + $0x6c] sm:$0x3]
      %v11143 = vld [vmem:[%s8684 + $0x74] sm:$0xc]
      %v11144 = vld [vmem:[%s8684 + $0x78] sm:$0xf]
      %v11145 = vld [vmem:[%s8684 + $0x7c] sm:$0x3]
      %v11146 = vld [vmem:[%s8684 + $0x84] sm:$0xc]
      %v11147 = vld [vmem:[%s8684 + $0x88] sm:$0xf]
      %v11148 = vld [vmem:[%s8684 + $0x8c] sm:$0x3]
      %v11149 = vld [vmem:[%s8684 + $0x94] sm:$0xc]
      %v11150 = vld [vmem:[%s8684 + $0x98] sm:$0xf]
      %v11151 = vld [vmem:[%s8684 + $0x9c] sm:$0x3]
      %v11152 = vld [vmem:[%s8684 + $0xa4] sm:$0xc]
      %v11153 = vld [vmem:[%s8684 + $0xa8] sm:$0xf]
      %v11154 = vld [vmem:[%s8684 + $0xac] sm:$0x3]
      %v11155 = vld [vmem:[%s8684 + $0xb4] sm:$0xc]
      %v11156 = vld [vmem:[%s8684 + $0xb8] sm:$0xf]
      %v11157 = vld [vmem:[%s8684 + $0xbc] sm:$0x3]
      %v11158 = vld [vmem:[%s8684 + $0xc4] sm:$0xc]
      %v11159 = vld [vmem:[%s8684 + $0xc8] sm:$0xf]
      %v11160 = vld [vmem:[%s8684 + $0xcc] sm:$0x3]
      %v11161 = vld [vmem:[%s8684 + $0xd4] sm:$0xc]
      %v11162 = vld [vmem:[%s8684 + $0xd8] sm:$0xf]
      %v11163 = vld [vmem:[%s8684 + $0xdc] sm:$0x3]
      %v11164 = vld [vmem:[%s8684 + $0xe4] sm:$0xc]
      %v11165 = vld [vmem:[%s8684 + $0xe8] sm:$0xf]
      %v11166 = vld [vmem:[%s8684 + $0xec] sm:$0x3]
      %v11167 = vld [vmem:[%s8684 + $0xf4] sm:$0xc]
      %v11168 = vld [vmem:[%s8684 + $0xf8] sm:$0xf]
      %v11169 = vld [vmem:[%s8684 + $0xfc] sm:$0x3]
      %v11170 = vld [vmem:[%s8733 + $0x8] sm:$0xf]
      %v11171 = vld [vmem:[%s8733 + $0xc] sm:$0xf]
      %v11172 = vld [vmem:[%s8733 + $0x18] sm:$0xf]
      %v11173 = vld [vmem:[%s8733 + $0x1c] sm:$0xf]
      %v11174 = vld [vmem:[%s8733 + $0x28] sm:$0xf]
      %v11175 = vld [vmem:[%s8733 + $0x2c] sm:$0xf]
      %v11176 = vld [vmem:[%s8733 + $0x38] sm:$0xf]
      %v11177 = vld [vmem:[%s8733 + $0x3c] sm:$0xf]
      %v11178 = vld [vmem:[%s8733 + $0x48] sm:$0xf]
      %v11179 = vld [vmem:[%s8733 + $0x4c] sm:$0xf]
      %v11180 = vld [vmem:[%s8733 + $0x58] sm:$0xf]
      %v11181 = vld [vmem:[%s8733 + $0x5c] sm:$0xf]
      %v11182 = vld [vmem:[%s8733 + $0x68] sm:$0xf]
      %v11183 = vld [vmem:[%s8733 + $0x6c] sm:$0xf]
      %v11184 = vld [vmem:[%s8733 + $0x78] sm:$0xf]
      %v11185 = vld [vmem:[%s8733 + $0x7c] sm:$0xf]
      %v11186 = vld [vmem:[%s8733 + $0x88] sm:$0xf]
      %v11187 = vld [vmem:[%s8733 + $0x8c] sm:$0xf]
      %v11188 = vld [vmem:[%s8733 + $0x98] sm:$0xf]
      %v11189 = vld [vmem:[%s8733 + $0x9c] sm:$0xf]
      %v11190 = vld [vmem:[%s8733 + $0xa8] sm:$0xf]
      %v11191 = vld [vmem:[%s8733 + $0xac] sm:$0xf]
      %v11192 = vld [vmem:[%s8733 + $0xb8] sm:$0xf]
      %v11193 = vld [vmem:[%s8733 + $0xbc] sm:$0xf]
      %v11194 = vld [vmem:[%s8733 + $0xc8] sm:$0xf]
      %v11195 = vld [vmem:[%s8733 + $0xcc] sm:$0xf]
      %v11196 = vld [vmem:[%s8733 + $0xd8] sm:$0xf]
      %v11197 = vld [vmem:[%s8733 + $0xdc] sm:$0xf]
      %v11198 = vld [vmem:[%s8733 + $0xe8] sm:$0xf]
      %v11199 = vld [vmem:[%s8733 + $0xec] sm:$0xf]
      %v11200 = vld [vmem:[%s8733 + $0xf8] sm:$0xf]
      %v11201 = vld [vmem:[%s8733 + $0xfc] sm:$0xf]
      %v11250 = vunpack.c.l.b16 %v11026
      %v11251 = vunpack.c.l.b16 %v11027
      %v11252 = vunpack.c.l.b16 %v11028
      %v11253 = vunpack.c.l.b16 %v11029
      %v11254 = vunpack.c.l.b16 %v11030
      %v11255 = vunpack.c.l.b16 %v11031
      %v11256 = vunpack.c.l.b16 %v11032
      %v11257 = vunpack.c.l.b16 %v11033
      %v11258 = vunpack.c.l.b16 %v11034
      %v11259 = vunpack.c.l.b16 %v11035
      %v11260 = vunpack.c.l.b16 %v11036
      %v11261 = vunpack.c.l.b16 %v11037
      %v11262 = vunpack.c.l.b16 %v11038
      %v11263 = vunpack.c.l.b16 %v11039
      %v11264 = vunpack.c.l.b16 %v11040
      %v11265 = vunpack.c.l.b16 %v11041
      %v11266 = vunpack.c.l.b16 %v11042
      %v11267 = vunpack.c.l.b16 %v11043
      %v11268 = vunpack.c.l.b16 %v11044
      %v11269 = vunpack.c.l.b16 %v11045
      %v11270 = vunpack.c.l.b16 %v11046
      %v11271 = vunpack.c.l.b16 %v11047
      %v11272 = vunpack.c.l.b16 %v11048
      %v11273 = vunpack.c.l.b16 %v11049
      %v11274 = vunpack.c.l.b16 %v11050
      %v11275 = vunpack.c.l.b16 %v11051
      %v11276 = vunpack.c.l.b16 %v11052
      %v11277 = vunpack.c.l.b16 %v11053
      %v11278 = vunpack.c.l.b16 %v11054
      %v11279 = vunpack.c.l.b16 %v11055
      %v11280 = vunpack.c.l.b16 %v11056
      %v11281 = vunpack.c.l.b16 %v11057
      %v11282 = vunpack.c.l.b16 %v11058
      %v11283 = vunpack.c.l.b16 %v11059
      %v11284 = vunpack.c.l.b16 %v11060
      %v11285 = vunpack.c.l.b16 %v11061
      %v11286 = vunpack.c.l.b16 %v11062
      %v11287 = vunpack.c.l.b16 %v11063
      %v11288 = vunpack.c.l.b16 %v11064
      %v11289 = vunpack.c.l.b16 %v11065
      %v11290 = vunpack.c.l.b16 %v11066
      %v11291 = vunpack.c.l.b16 %v11067
      %v11292 = vunpack.c.l.b16 %v11068
      %v11293 = vunpack.c.l.b16 %v11069
      %v11294 = vunpack.c.l.b16 %v11070
      %v11295 = vunpack.c.l.b16 %v11071
      %v11296 = vunpack.c.l.b16 %v11072
      %v11297 = vunpack.c.l.b16 %v11073
      %v11298 = vpack.c.b16 %v11251, %v11250
      %v11299 = vpack.c.b16 %v11252, %v11252
      %v11300 = vpack.c.b16 %v11254, %v11253
      %v11301 = vpack.c.b16 %v11255, %v11255
      %v11302 = vpack.c.b16 %v11257, %v11256
      %v11303 = vpack.c.b16 %v11258, %v11258
      %v11304 = vpack.c.b16 %v11260, %v11259
      %v11305 = vpack.c.b16 %v11261, %v11261
      %v11306 = vpack.c.b16 %v11263, %v11262
      %v11307 = vpack.c.b16 %v11264, %v11264
      %v11308 = vpack.c.b16 %v11266, %v11265
      %v11309 = vpack.c.b16 %v11267, %v11267
      %v11310 = vpack.c.b16 %v11269, %v11268
      %v11311 = vpack.c.b16 %v11270, %v11270
      %v11312 = vpack.c.b16 %v11272, %v11271
      %v11313 = vpack.c.b16 %v11273, %v11273
      %v11314 = vpack.c.b16 %v11275, %v11274
      %v11315 = vpack.c.b16 %v11276, %v11276
      %v11316 = vpack.c.b16 %v11278, %v11277
      %v11317 = vpack.c.b16 %v11279, %v11279
      %v11318 = vpack.c.b16 %v11281, %v11280
      %v11319 = vpack.c.b16 %v11282, %v11282
      %v11320 = vpack.c.b16 %v11284, %v11283
      %v11321 = vpack.c.b16 %v11285, %v11285
      %v11322 = vpack.c.b16 %v11287, %v11286
      %v11323 = vpack.c.b16 %v11288, %v11288
      %v11324 = vpack.c.b16 %v11290, %v11289
      %v11325 = vpack.c.b16 %v11291, %v11291
      %v11326 = vpack.c.b16 %v11293, %v11292
      %v11327 = vpack.c.b16 %v11294, %v11294
      %v11328 = vpack.c.b16 %v11296, %v11295
      %v11329 = vpack.c.b16 %v11297, %v11297
      %v11378 = vunpack.c.l.b16 %v11074
      %v11379 = vunpack.c.l.b16 %v11075
      %v11380 = vunpack.c.l.b16 %v11076
      %v11381 = vunpack.c.l.b16 %v11077
      %v11382 = vunpack.c.l.b16 %v11078
      %v11383 = vunpack.c.l.b16 %v11079
      %v11384 = vunpack.c.l.b16 %v11080
      %v11385 = vunpack.c.l.b16 %v11081
      %v11386 = vunpack.c.l.b16 %v11082
      %v11387 = vunpack.c.l.b16 %v11083
      %v11388 = vunpack.c.l.b16 %v11084
      %v11389 = vunpack.c.l.b16 %v11085
      %v11390 = vunpack.c.l.b16 %v11086
      %v11391 = vunpack.c.l.b16 %v11087
      %v11392 = vunpack.c.l.b16 %v11088
      %v11393 = vunpack.c.l.b16 %v11089
      %v11394 = vunpack.c.l.b16 %v11090
      %v11395 = vunpack.c.l.b16 %v11091
      %v11396 = vunpack.c.l.b16 %v11092
      %v11397 = vunpack.c.l.b16 %v11093
      %v11398 = vunpack.c.l.b16 %v11094
      %v11399 = vunpack.c.l.b16 %v11095
      %v11400 = vunpack.c.l.b16 %v11096
      %v11401 = vunpack.c.l.b16 %v11097
      %v11402 = vunpack.c.l.b16 %v11098
      %v11403 = vunpack.c.l.b16 %v11099
      %v11404 = vunpack.c.l.b16 %v11100
      %v11405 = vunpack.c.l.b16 %v11101
      %v11406 = vunpack.c.l.b16 %v11102
      %v11407 = vunpack.c.l.b16 %v11103
      %v11408 = vunpack.c.l.b16 %v11104
      %v11409 = vunpack.c.l.b16 %v11105
      %v11410 = vunpack.c.l.b16 %v11106
      %v11411 = vunpack.c.l.b16 %v11107
      %v11412 = vunpack.c.l.b16 %v11108
      %v11413 = vunpack.c.l.b16 %v11109
      %v11414 = vunpack.c.l.b16 %v11110
      %v11415 = vunpack.c.l.b16 %v11111
      %v11416 = vunpack.c.l.b16 %v11112
      %v11417 = vunpack.c.l.b16 %v11113
      %v11418 = vunpack.c.l.b16 %v11114
      %v11419 = vunpack.c.l.b16 %v11115
      %v11420 = vunpack.c.l.b16 %v11116
      %v11421 = vunpack.c.l.b16 %v11117
      %v11422 = vunpack.c.l.b16 %v11118
      %v11423 = vunpack.c.l.b16 %v11119
      %v11424 = vunpack.c.l.b16 %v11120
      %v11425 = vunpack.c.l.b16 %v11121
      %v11426 = vpack.c.b16 %v11379, %v11378
      %v11427 = vpack.c.b16 %v11380, %v11380
      %v11428 = vpack.c.b16 %v11382, %v11381
      %v11429 = vpack.c.b16 %v11383, %v11383
      %v11430 = vpack.c.b16 %v11385, %v11384
      %v11431 = vpack.c.b16 %v11386, %v11386
      %v11432 = vpack.c.b16 %v11388, %v11387
      %v11433 = vpack.c.b16 %v11389, %v11389
      %v11434 = vpack.c.b16 %v11391, %v11390
      %v11435 = vpack.c.b16 %v11392, %v11392
      %v11436 = vpack.c.b16 %v11394, %v11393
      %v11437 = vpack.c.b16 %v11395, %v11395
      %v11438 = vpack.c.b16 %v11397, %v11396
      %v11439 = vpack.c.b16 %v11398, %v11398
      %v11440 = vpack.c.b16 %v11400, %v11399
      %v11441 = vpack.c.b16 %v11401, %v11401
      %v11442 = vpack.c.b16 %v11403, %v11402
      %v11443 = vpack.c.b16 %v11404, %v11404
      %v11444 = vpack.c.b16 %v11406, %v11405
      %v11445 = vpack.c.b16 %v11407, %v11407
      %v11446 = vpack.c.b16 %v11409, %v11408
      %v11447 = vpack.c.b16 %v11410, %v11410
      %v11448 = vpack.c.b16 %v11412, %v11411
      %v11449 = vpack.c.b16 %v11413, %v11413
      %v11450 = vpack.c.b16 %v11415, %v11414
      %v11451 = vpack.c.b16 %v11416, %v11416
      %v11452 = vpack.c.b16 %v11418, %v11417
      %v11453 = vpack.c.b16 %v11419, %v11419
      %v11454 = vpack.c.b16 %v11421, %v11420
      %v11455 = vpack.c.b16 %v11422, %v11422
      %v11456 = vpack.c.b16 %v11424, %v11423
      %v11457 = vpack.c.b16 %v11425, %v11425
      %v11459 = vshrl.u32 %v11426, 16
      %v11461 = vshll.u32 %v11426, 16
      %v11463 = vrot.slane %v11461, 1
      %v11464 = vor.u32 %v11459, %v11463
      %v11466 = vshll.u32 %v11427, 16
      %v11468 = vrot.slane %v11466, 1
      %v11469 = vsel %vm3712, %v11464, %v11468
      %v11470 = vshrl.u32 %v11427, 16
      %v11473 = vshrl.u32 %v11428, 16
      %v11475 = vshll.u32 %v11428, 16
      %v11477 = vrot.slane %v11475, 1
      %v11478 = vor.u32 %v11473, %v11477
      %v11480 = vshll.u32 %v11429, 16
      %v11482 = vrot.slane %v11480, 1
      %v11483 = vsel %vm3712, %v11478, %v11482
      %v11484 = vshrl.u32 %v11429, 16
      %v11487 = vshrl.u32 %v11430, 16
      %v11489 = vshll.u32 %v11430, 16
      %v11491 = vrot.slane %v11489, 1
      %v11492 = vor.u32 %v11487, %v11491
      %v11494 = vshll.u32 %v11431, 16
      %v11496 = vrot.slane %v11494, 1
      %v11497 = vsel %vm3712, %v11492, %v11496
      %v11498 = vshrl.u32 %v11431, 16
      %v11501 = vshrl.u32 %v11432, 16
      %v11503 = vshll.u32 %v11432, 16
      %v11505 = vrot.slane %v11503, 1
      %v11506 = vor.u32 %v11501, %v11505
      %v11508 = vshll.u32 %v11433, 16
      %v11510 = vrot.slane %v11508, 1
      %v11511 = vsel %vm3712, %v11506, %v11510
      %v11512 = vshrl.u32 %v11433, 16
      %v11515 = vshrl.u32 %v11434, 16
      %v11517 = vshll.u32 %v11434, 16
      %v11519 = vrot.slane %v11517, 1
      %v11520 = vor.u32 %v11515, %v11519
      %v11522 = vshll.u32 %v11435, 16
      %v11524 = vrot.slane %v11522, 1
      %v11525 = vsel %vm3712, %v11520, %v11524
      %v11526 = vshrl.u32 %v11435, 16
      %v11529 = vshrl.u32 %v11436, 16
      %v11531 = vshll.u32 %v11436, 16
      %v11533 = vrot.slane %v11531, 1
      %v11534 = vor.u32 %v11529, %v11533
      %v11536 = vshll.u32 %v11437, 16
      %v11538 = vrot.slane %v11536, 1
      %v11539 = vsel %vm3712, %v11534, %v11538
      %v11540 = vshrl.u32 %v11437, 16
      %v11543 = vshrl.u32 %v11438, 16
      %v11545 = vshll.u32 %v11438, 16
      %v11547 = vrot.slane %v11545, 1
      %v11548 = vor.u32 %v11543, %v11547
      %v11550 = vshll.u32 %v11439, 16
      %v11552 = vrot.slane %v11550, 1
      %v11553 = vsel %vm3712, %v11548, %v11552
      %v11554 = vshrl.u32 %v11439, 16
      %v11557 = vshrl.u32 %v11440, 16
      %v11559 = vshll.u32 %v11440, 16
      %v11561 = vrot.slane %v11559, 1
      %v11562 = vor.u32 %v11557, %v11561
      %v11564 = vshll.u32 %v11441, 16
      %v11566 = vrot.slane %v11564, 1
      %v11567 = vsel %vm3712, %v11562, %v11566
      %v11568 = vshrl.u32 %v11441, 16
      %v11571 = vshrl.u32 %v11442, 16
      %v11573 = vshll.u32 %v11442, 16
      %v11575 = vrot.slane %v11573, 1
      %v11576 = vor.u32 %v11571, %v11575
      %v11578 = vshll.u32 %v11443, 16
      %v11580 = vrot.slane %v11578, 1
      %v11581 = vsel %vm3712, %v11576, %v11580
      %v11582 = vshrl.u32 %v11443, 16
      %v11585 = vshrl.u32 %v11444, 16
      %v11587 = vshll.u32 %v11444, 16
      %v11589 = vrot.slane %v11587, 1
      %v11590 = vor.u32 %v11585, %v11589
      %v11592 = vshll.u32 %v11445, 16
      %v11594 = vrot.slane %v11592, 1
      %v11595 = vsel %vm3712, %v11590, %v11594
      %v11596 = vshrl.u32 %v11445, 16
      %v11599 = vshrl.u32 %v11446, 16
      %v11601 = vshll.u32 %v11446, 16
      %v11603 = vrot.slane %v11601, 1
      %v11604 = vor.u32 %v11599, %v11603
      %v11606 = vshll.u32 %v11447, 16
      %v11608 = vrot.slane %v11606, 1
      %v11609 = vsel %vm3712, %v11604, %v11608
      %v11610 = vshrl.u32 %v11447, 16
      %v11613 = vshrl.u32 %v11448, 16
      %v11615 = vshll.u32 %v11448, 16
      %v11617 = vrot.slane %v11615, 1
      %v11618 = vor.u32 %v11613, %v11617
      %v11620 = vshll.u32 %v11449, 16
      %v11622 = vrot.slane %v11620, 1
      %v11623 = vsel %vm3712, %v11618, %v11622
      %v11624 = vshrl.u32 %v11449, 16
      %v11627 = vshrl.u32 %v11450, 16
      %v11629 = vshll.u32 %v11450, 16
      %v11631 = vrot.slane %v11629, 1
      %v11632 = vor.u32 %v11627, %v11631
      %v11634 = vshll.u32 %v11451, 16
      %v11636 = vrot.slane %v11634, 1
      %v11637 = vsel %vm3712, %v11632, %v11636
      %v11638 = vshrl.u32 %v11451, 16
      %v11641 = vshrl.u32 %v11452, 16
      %v11643 = vshll.u32 %v11452, 16
      %v11645 = vrot.slane %v11643, 1
      %v11646 = vor.u32 %v11641, %v11645
      %v11648 = vshll.u32 %v11453, 16
      %v11650 = vrot.slane %v11648, 1
      %v11651 = vsel %vm3712, %v11646, %v11650
      %v11652 = vshrl.u32 %v11453, 16
      %v11655 = vshrl.u32 %v11454, 16
      %v11657 = vshll.u32 %v11454, 16
      %v11659 = vrot.slane %v11657, 1
      %v11660 = vor.u32 %v11655, %v11659
      %v11662 = vshll.u32 %v11455, 16
      %v11664 = vrot.slane %v11662, 1
      %v11665 = vsel %vm3712, %v11660, %v11664
      %v11666 = vshrl.u32 %v11455, 16
      %v11669 = vshrl.u32 %v11456, 16
      %v11671 = vshll.u32 %v11456, 16
      %v11673 = vrot.slane %v11671, 1
      %v11674 = vor.u32 %v11669, %v11673
      %v11676 = vshll.u32 %v11457, 16
      %v11678 = vrot.slane %v11676, 1
      %v11679 = vsel %vm3712, %v11674, %v11678
      %v11680 = vshrl.u32 %v11457, 16
      %v11730 = vunpack.c.l.b16 %v11122
      %v11731 = vunpack.c.l.b16 %v11123
      %v11732 = vunpack.c.l.b16 %v11124
      %v11733 = vunpack.c.l.b16 %v11125
      %v11734 = vunpack.c.l.b16 %v11126
      %v11735 = vunpack.c.l.b16 %v11127
      %v11736 = vunpack.c.l.b16 %v11128
      %v11737 = vunpack.c.l.b16 %v11129
      %v11738 = vunpack.c.l.b16 %v11130
      %v11739 = vunpack.c.l.b16 %v11131
      %v11740 = vunpack.c.l.b16 %v11132
      %v11741 = vunpack.c.l.b16 %v11133
      %v11742 = vunpack.c.l.b16 %v11134
      %v11743 = vunpack.c.l.b16 %v11135
      %v11744 = vunpack.c.l.b16 %v11136
      %v11745 = vunpack.c.l.b16 %v11137
      %v11746 = vunpack.c.l.b16 %v11138
      %v11747 = vunpack.c.l.b16 %v11139
      %v11748 = vunpack.c.l.b16 %v11140
      %v11749 = vunpack.c.l.b16 %v11141
      %v11750 = vunpack.c.l.b16 %v11142
      %v11751 = vunpack.c.l.b16 %v11143
      %v11752 = vunpack.c.l.b16 %v11144
      %v11753 = vunpack.c.l.b16 %v11145
      %v11754 = vunpack.c.l.b16 %v11146
      %v11755 = vunpack.c.l.b16 %v11147
      %v11756 = vunpack.c.l.b16 %v11148
      %v11757 = vunpack.c.l.b16 %v11149
      %v11758 = vunpack.c.l.b16 %v11150
      %v11759 = vunpack.c.l.b16 %v11151
      %v11760 = vunpack.c.l.b16 %v11152
      %v11761 = vunpack.c.l.b16 %v11153
      %v11762 = vunpack.c.l.b16 %v11154
      %v11763 = vunpack.c.l.b16 %v11155
      %v11764 = vunpack.c.l.b16 %v11156
      %v11765 = vunpack.c.l.b16 %v11157
      %v11766 = vunpack.c.l.b16 %v11158
      %v11767 = vunpack.c.l.b16 %v11159
      %v11768 = vunpack.c.l.b16 %v11160
      %v11769 = vunpack.c.l.b16 %v11161
      %v11770 = vunpack.c.l.b16 %v11162
      %v11771 = vunpack.c.l.b16 %v11163
      %v11772 = vunpack.c.l.b16 %v11164
      %v11773 = vunpack.c.l.b16 %v11165
      %v11774 = vunpack.c.l.b16 %v11166
      %v11775 = vunpack.c.l.b16 %v11167
      %v11776 = vunpack.c.l.b16 %v11168
      %v11777 = vunpack.c.l.b16 %v11169
      %v11778 = vpack.c.b16 %v11731, %v11730
      %v11779 = vpack.c.b16 %v11732, %v11732
      %v11780 = vpack.c.b16 %v11734, %v11733
      %v11781 = vpack.c.b16 %v11735, %v11735
      %v11782 = vpack.c.b16 %v11737, %v11736
      %v11783 = vpack.c.b16 %v11738, %v11738
      %v11784 = vpack.c.b16 %v11740, %v11739
      %v11785 = vpack.c.b16 %v11741, %v11741
      %v11786 = vpack.c.b16 %v11743, %v11742
      %v11787 = vpack.c.b16 %v11744, %v11744
      %v11788 = vpack.c.b16 %v11746, %v11745
      %v11789 = vpack.c.b16 %v11747, %v11747
      %v11790 = vpack.c.b16 %v11749, %v11748
      %v11791 = vpack.c.b16 %v11750, %v11750
      %v11792 = vpack.c.b16 %v11752, %v11751
      %v11793 = vpack.c.b16 %v11753, %v11753
      %v11794 = vpack.c.b16 %v11755, %v11754
      %v11795 = vpack.c.b16 %v11756, %v11756
      %v11796 = vpack.c.b16 %v11758, %v11757
      %v11797 = vpack.c.b16 %v11759, %v11759
      %v11798 = vpack.c.b16 %v11761, %v11760
      %v11799 = vpack.c.b16 %v11762, %v11762
      %v11800 = vpack.c.b16 %v11764, %v11763
      %v11801 = vpack.c.b16 %v11765, %v11765
      %v11802 = vpack.c.b16 %v11767, %v11766
      %v11803 = vpack.c.b16 %v11768, %v11768
      %v11804 = vpack.c.b16 %v11770, %v11769
      %v11805 = vpack.c.b16 %v11771, %v11771
      %v11806 = vpack.c.b16 %v11773, %v11772
      %v11807 = vpack.c.b16 %v11774, %v11774
      %v11808 = vpack.c.b16 %v11776, %v11775
      %v11809 = vpack.c.b16 %v11777, %v11777
      %v11811 = vshrl.u32 %v11778, 16
      %v11813 = vrot.slane %v11811, 1
      %v11814 = vshll.u32 %v11778, 16
      %v11816 = vrot.slane %v11814, 2
      %v11817 = vor.u32 %v11813, %v11816
      %v11819 = vshrl.u32 %v11779, 16
      %v11821 = vrot.slane %v11819, 1
      %v11822 = vshll.u32 %v11779, 16
      %v11824 = vrot.slane %v11822, 2
      %v11825 = vor.u32 %v11821, %v11824
      %v11826 = vsel %vm4065, %v11817, %v11825
      %v11828 = vshrl.u32 %v11780, 16
      %v11830 = vrot.slane %v11828, 1
      %v11831 = vshll.u32 %v11780, 16
      %v11833 = vrot.slane %v11831, 2
      %v11834 = vor.u32 %v11830, %v11833
      %v11836 = vshrl.u32 %v11781, 16
      %v11838 = vrot.slane %v11836, 1
      %v11839 = vshll.u32 %v11781, 16
      %v11841 = vrot.slane %v11839, 2
      %v11842 = vor.u32 %v11838, %v11841
      %v11843 = vsel %vm4065, %v11834, %v11842
      %v11845 = vshrl.u32 %v11782, 16
      %v11847 = vrot.slane %v11845, 1
      %v11848 = vshll.u32 %v11782, 16
      %v11850 = vrot.slane %v11848, 2
      %v11851 = vor.u32 %v11847, %v11850
      %v11853 = vshrl.u32 %v11783, 16
      %v11855 = vrot.slane %v11853, 1
      %v11856 = vshll.u32 %v11783, 16
      %v11858 = vrot.slane %v11856, 2
      %v11859 = vor.u32 %v11855, %v11858
      %v11860 = vsel %vm4065, %v11851, %v11859
      %v11862 = vshrl.u32 %v11784, 16
      %v11864 = vrot.slane %v11862, 1
      %v11865 = vshll.u32 %v11784, 16
      %v11867 = vrot.slane %v11865, 2
      %v11868 = vor.u32 %v11864, %v11867
      %v11870 = vshrl.u32 %v11785, 16
      %v11872 = vrot.slane %v11870, 1
      %v11873 = vshll.u32 %v11785, 16
      %v11875 = vrot.slane %v11873, 2
      %v11876 = vor.u32 %v11872, %v11875
      %v11877 = vsel %vm4065, %v11868, %v11876
      %v11879 = vshrl.u32 %v11786, 16
      %v11881 = vrot.slane %v11879, 1
      %v11882 = vshll.u32 %v11786, 16
      %v11884 = vrot.slane %v11882, 2
      %v11885 = vor.u32 %v11881, %v11884
      %v11887 = vshrl.u32 %v11787, 16
      %v11889 = vrot.slane %v11887, 1
      %v11890 = vshll.u32 %v11787, 16
      %v11892 = vrot.slane %v11890, 2
      %v11893 = vor.u32 %v11889, %v11892
      %v11894 = vsel %vm4065, %v11885, %v11893
      %v11896 = vshrl.u32 %v11788, 16
      %v11898 = vrot.slane %v11896, 1
      %v11899 = vshll.u32 %v11788, 16
      %v11901 = vrot.slane %v11899, 2
      %v11902 = vor.u32 %v11898, %v11901
      %v11904 = vshrl.u32 %v11789, 16
      %v11906 = vrot.slane %v11904, 1
      %v11907 = vshll.u32 %v11789, 16
      %v11909 = vrot.slane %v11907, 2
      %v11910 = vor.u32 %v11906, %v11909
      %v11911 = vsel %vm4065, %v11902, %v11910
      %v11913 = vshrl.u32 %v11790, 16
      %v11915 = vrot.slane %v11913, 1
      %v11916 = vshll.u32 %v11790, 16
      %v11918 = vrot.slane %v11916, 2
      %v11919 = vor.u32 %v11915, %v11918
      %v11921 = vshrl.u32 %v11791, 16
      %v11923 = vrot.slane %v11921, 1
      %v11924 = vshll.u32 %v11791, 16
      %v11926 = vrot.slane %v11924, 2
      %v11927 = vor.u32 %v11923, %v11926
      %v11928 = vsel %vm4065, %v11919, %v11927
      %v11930 = vshrl.u32 %v11792, 16
      %v11932 = vrot.slane %v11930, 1
      %v11933 = vshll.u32 %v11792, 16
      %v11935 = vrot.slane %v11933, 2
      %v11936 = vor.u32 %v11932, %v11935
      %v11938 = vshrl.u32 %v11793, 16
      %v11940 = vrot.slane %v11938, 1
      %v11941 = vshll.u32 %v11793, 16
      %v11943 = vrot.slane %v11941, 2
      %v11944 = vor.u32 %v11940, %v11943
      %v11945 = vsel %vm4065, %v11936, %v11944
      %v11947 = vshrl.u32 %v11794, 16
      %v11949 = vrot.slane %v11947, 1
      %v11950 = vshll.u32 %v11794, 16
      %v11952 = vrot.slane %v11950, 2
      %v11953 = vor.u32 %v11949, %v11952
      %v11955 = vshrl.u32 %v11795, 16
      %v11957 = vrot.slane %v11955, 1
      %v11958 = vshll.u32 %v11795, 16
      %v11960 = vrot.slane %v11958, 2
      %v11961 = vor.u32 %v11957, %v11960
      %v11962 = vsel %vm4065, %v11953, %v11961
      %v11964 = vshrl.u32 %v11796, 16
      %v11966 = vrot.slane %v11964, 1
      %v11967 = vshll.u32 %v11796, 16
      %v11969 = vrot.slane %v11967, 2
      %v11970 = vor.u32 %v11966, %v11969
      %v11972 = vshrl.u32 %v11797, 16
      %v11974 = vrot.slane %v11972, 1
      %v11975 = vshll.u32 %v11797, 16
      %v11977 = vrot.slane %v11975, 2
      %v11978 = vor.u32 %v11974, %v11977
      %v11979 = vsel %vm4065, %v11970, %v11978
      %v11981 = vshrl.u32 %v11798, 16
      %v11983 = vrot.slane %v11981, 1
      %v11984 = vshll.u32 %v11798, 16
      %v11986 = vrot.slane %v11984, 2
      %v11987 = vor.u32 %v11983, %v11986
      %v11989 = vshrl.u32 %v11799, 16
      %v11991 = vrot.slane %v11989, 1
      %v11992 = vshll.u32 %v11799, 16
      %v11994 = vrot.slane %v11992, 2
      %v11995 = vor.u32 %v11991, %v11994
      %v11996 = vsel %vm4065, %v11987, %v11995
      %v11998 = vshrl.u32 %v11800, 16
      %v12000 = vrot.slane %v11998, 1
      %v12001 = vshll.u32 %v11800, 16
      %v12003 = vrot.slane %v12001, 2
      %v12004 = vor.u32 %v12000, %v12003
      %v12006 = vshrl.u32 %v11801, 16
      %v12008 = vrot.slane %v12006, 1
      %v12009 = vshll.u32 %v11801, 16
      %v12011 = vrot.slane %v12009, 2
      %v12012 = vor.u32 %v12008, %v12011
      %v12013 = vsel %vm4065, %v12004, %v12012
      %v12015 = vshrl.u32 %v11802, 16
      %v12017 = vrot.slane %v12015, 1
      %v12018 = vshll.u32 %v11802, 16
      %v12020 = vrot.slane %v12018, 2
      %v12021 = vor.u32 %v12017, %v12020
      %v12023 = vshrl.u32 %v11803, 16
      %v12025 = vrot.slane %v12023, 1
      %v12026 = vshll.u32 %v11803, 16
      %v12028 = vrot.slane %v12026, 2
      %v12029 = vor.u32 %v12025, %v12028
      %v12030 = vsel %vm4065, %v12021, %v12029
      %v12032 = vshrl.u32 %v11804, 16
      %v12034 = vrot.slane %v12032, 1
      %v12035 = vshll.u32 %v11804, 16
      %v12037 = vrot.slane %v12035, 2
      %v12038 = vor.u32 %v12034, %v12037
      %v12040 = vshrl.u32 %v11805, 16
      %v12042 = vrot.slane %v12040, 1
      %v12043 = vshll.u32 %v11805, 16
      %v12045 = vrot.slane %v12043, 2
      %v12046 = vor.u32 %v12042, %v12045
      %v12047 = vsel %vm4065, %v12038, %v12046
      %v12049 = vshrl.u32 %v11806, 16
      %v12051 = vrot.slane %v12049, 1
      %v12052 = vshll.u32 %v11806, 16
      %v12054 = vrot.slane %v12052, 2
      %v12055 = vor.u32 %v12051, %v12054
      %v12057 = vshrl.u32 %v11807, 16
      %v12059 = vrot.slane %v12057, 1
      %v12060 = vshll.u32 %v11807, 16
      %v12062 = vrot.slane %v12060, 2
      %v12063 = vor.u32 %v12059, %v12062
      %v12064 = vsel %vm4065, %v12055, %v12063
      %v12066 = vshrl.u32 %v11808, 16
      %v12068 = vrot.slane %v12066, 1
      %v12069 = vshll.u32 %v11808, 16
      %v12071 = vrot.slane %v12069, 2
      %v12072 = vor.u32 %v12068, %v12071
      %v12074 = vshrl.u32 %v11809, 16
      %v12076 = vrot.slane %v12074, 1
      %v12077 = vshll.u32 %v11809, 16
      %v12079 = vrot.slane %v12077, 2
      %v12080 = vor.u32 %v12076, %v12079
      %v12081 = vsel %vm4065, %v12072, %v12080
      %v12114 = vunpack.c.l.b16 %v11170
      %v12115 = vunpack.c.l.b16 %v11171
      %v12116 = vunpack.c.l.b16 %v11172
      %v12117 = vunpack.c.l.b16 %v11173
      %v12118 = vunpack.c.l.b16 %v11174
      %v12119 = vunpack.c.l.b16 %v11175
      %v12120 = vunpack.c.l.b16 %v11176
      %v12121 = vunpack.c.l.b16 %v11177
      %v12122 = vunpack.c.l.b16 %v11178
      %v12123 = vunpack.c.l.b16 %v11179
      %v12124 = vunpack.c.l.b16 %v11180
      %v12125 = vunpack.c.l.b16 %v11181
      %v12126 = vunpack.c.l.b16 %v11182
      %v12127 = vunpack.c.l.b16 %v11183
      %v12128 = vunpack.c.l.b16 %v11184
      %v12129 = vunpack.c.l.b16 %v11185
      %v12130 = vunpack.c.l.b16 %v11186
      %v12131 = vunpack.c.l.b16 %v11187
      %v12132 = vunpack.c.l.b16 %v11188
      %v12133 = vunpack.c.l.b16 %v11189
      %v12134 = vunpack.c.l.b16 %v11190
      %v12135 = vunpack.c.l.b16 %v11191
      %v12136 = vunpack.c.l.b16 %v11192
      %v12137 = vunpack.c.l.b16 %v11193
      %v12138 = vunpack.c.l.b16 %v11194
      %v12139 = vunpack.c.l.b16 %v11195
      %v12140 = vunpack.c.l.b16 %v11196
      %v12141 = vunpack.c.l.b16 %v11197
      %v12142 = vunpack.c.l.b16 %v11198
      %v12143 = vunpack.c.l.b16 %v11199
      %v12144 = vunpack.c.l.b16 %v11200
      %v12145 = vunpack.c.l.b16 %v11201
      %v12146 = vpack.c.b16 %v12115, %v12114
      %v12147 = vpack.c.b16 %v12117, %v12116
      %v12148 = vpack.c.b16 %v12119, %v12118
      %v12149 = vpack.c.b16 %v12121, %v12120
      %v12150 = vpack.c.b16 %v12123, %v12122
      %v12151 = vpack.c.b16 %v12125, %v12124
      %v12152 = vpack.c.b16 %v12127, %v12126
      %v12153 = vpack.c.b16 %v12129, %v12128
      %v12154 = vpack.c.b16 %v12131, %v12130
      %v12155 = vpack.c.b16 %v12133, %v12132
      %v12156 = vpack.c.b16 %v12135, %v12134
      %v12157 = vpack.c.b16 %v12137, %v12136
      %v12158 = vpack.c.b16 %v12139, %v12138
      %v12159 = vpack.c.b16 %v12141, %v12140
      %v12160 = vpack.c.b16 %v12143, %v12142
      %v12161 = vpack.c.b16 %v12145, %v12144
      %v12163 = vshrl.u32 %v12146, 16
      %v12165 = vrot.slane %v12163, 7
      %v12166 = vshll.u32 %v12146, 16
      %v12168 = vor.u32 %v12165, %v12166
      %v12170 = vshrl.u32 %v12147, 16
      %v12172 = vrot.slane %v12170, 7
      %v12173 = vshll.u32 %v12147, 16
      %v12175 = vor.u32 %v12172, %v12173
      %v12177 = vshrl.u32 %v12148, 16
      %v12179 = vrot.slane %v12177, 7
      %v12180 = vshll.u32 %v12148, 16
      %v12182 = vor.u32 %v12179, %v12180
      %v12184 = vshrl.u32 %v12149, 16
      %v12186 = vrot.slane %v12184, 7
      %v12187 = vshll.u32 %v12149, 16
      %v12189 = vor.u32 %v12186, %v12187
      %v12191 = vshrl.u32 %v12150, 16
      %v12193 = vrot.slane %v12191, 7
      %v12194 = vshll.u32 %v12150, 16
      %v12196 = vor.u32 %v12193, %v12194
      %v12198 = vshrl.u32 %v12151, 16
      %v12200 = vrot.slane %v12198, 7
      %v12201 = vshll.u32 %v12151, 16
      %v12203 = vor.u32 %v12200, %v12201
      %v12205 = vshrl.u32 %v12152, 16
      %v12207 = vrot.slane %v12205, 7
      %v12208 = vshll.u32 %v12152, 16
      %v12210 = vor.u32 %v12207, %v12208
      %v12212 = vshrl.u32 %v12153, 16
      %v12214 = vrot.slane %v12212, 7
      %v12215 = vshll.u32 %v12153, 16
      %v12217 = vor.u32 %v12214, %v12215
      %v12219 = vshrl.u32 %v12154, 16
      %v12221 = vrot.slane %v12219, 7
      %v12222 = vshll.u32 %v12154, 16
      %v12224 = vor.u32 %v12221, %v12222
      %v12226 = vshrl.u32 %v12155, 16
      %v12228 = vrot.slane %v12226, 7
      %v12229 = vshll.u32 %v12155, 16
      %v12231 = vor.u32 %v12228, %v12229
      %v12233 = vshrl.u32 %v12156, 16
      %v12235 = vrot.slane %v12233, 7
      %v12236 = vshll.u32 %v12156, 16
      %v12238 = vor.u32 %v12235, %v12236
      %v12240 = vshrl.u32 %v12157, 16
      %v12242 = vrot.slane %v12240, 7
      %v12243 = vshll.u32 %v12157, 16
      %v12245 = vor.u32 %v12242, %v12243
      %v12247 = vshrl.u32 %v12158, 16
      %v12249 = vrot.slane %v12247, 7
      %v12250 = vshll.u32 %v12158, 16
      %v12252 = vor.u32 %v12249, %v12250
      %v12254 = vshrl.u32 %v12159, 16
      %v12256 = vrot.slane %v12254, 7
      %v12257 = vshll.u32 %v12159, 16
      %v12259 = vor.u32 %v12256, %v12257
      %v12261 = vshrl.u32 %v12160, 16
      %v12263 = vrot.slane %v12261, 7
      %v12264 = vshll.u32 %v12160, 16
      %v12266 = vor.u32 %v12263, %v12264
      %v12268 = vshrl.u32 %v12161, 16
      %v12270 = vrot.slane %v12268, 7
      %v12271 = vshll.u32 %v12161, 16
      %v12273 = vor.u32 %v12270, %v12271
      %v12276 = vsel %vm451, %v11298, %v11469
      %v12279 = vsel %vm451, %v11299, %v11470
      %v12282 = vsel %vm451, %v11300, %v11483
      %v12285 = vsel %vm451, %v11301, %v11484
      %v12288 = vsel %vm451, %v11302, %v11497
      %v12291 = vsel %vm451, %v11303, %v11498
      %v12294 = vsel %vm451, %v11304, %v11511
      %v12297 = vsel %vm451, %v11305, %v11512
      %v12300 = vsel %vm451, %v11306, %v11525
      %v12303 = vsel %vm451, %v11307, %v11526
      %v12306 = vsel %vm451, %v11308, %v11539
      %v12309 = vsel %vm451, %v11309, %v11540
      %v12312 = vsel %vm451, %v11310, %v11553
      %v12315 = vsel %vm451, %v11311, %v11554
      %v12318 = vsel %vm451, %v11312, %v11567
      %v12321 = vsel %vm451, %v11313, %v11568
      %v12324 = vsel %vm451, %v11314, %v11581
      %v12327 = vsel %vm451, %v11315, %v11582
      %v12330 = vsel %vm451, %v11316, %v11595
      %v12333 = vsel %vm451, %v11317, %v11596
      %v12336 = vsel %vm451, %v11318, %v11609
      %v12339 = vsel %vm451, %v11319, %v11610
      %v12342 = vsel %vm451, %v11320, %v11623
      %v12345 = vsel %vm451, %v11321, %v11624
      %v12348 = vsel %vm451, %v11322, %v11637
      %v12351 = vsel %vm451, %v11323, %v11638
      %v12354 = vsel %vm451, %v11324, %v11651
      %v12357 = vsel %vm451, %v11325, %v11652
      %v12360 = vsel %vm451, %v11326, %v11665
      %v12363 = vsel %vm451, %v11327, %v11666
      %v12366 = vsel %vm451, %v11328, %v11679
      %v12369 = vsel %vm451, %v11329, %v11680
      %v12371 = vsel %vm2329, %v12276, %v11826
      %v12373 = vsel %vm2329, %v12279, %v11821
      %v12375 = vsel %vm2329, %v12282, %v11843
      %v12377 = vsel %vm2329, %v12285, %v11838
      %v12379 = vsel %vm2329, %v12288, %v11860
      %v12381 = vsel %vm2329, %v12291, %v11855
      %v12383 = vsel %vm2329, %v12294, %v11877
      %v12385 = vsel %vm2329, %v12297, %v11872
      %v12387 = vsel %vm2329, %v12300, %v11894
      %v12389 = vsel %vm2329, %v12303, %v11889
      %v12391 = vsel %vm2329, %v12306, %v11911
      %v12393 = vsel %vm2329, %v12309, %v11906
      %v12395 = vsel %vm2329, %v12312, %v11928
      %v12397 = vsel %vm2329, %v12315, %v11923
      %v12399 = vsel %vm2329, %v12318, %v11945
      %v12401 = vsel %vm2329, %v12321, %v11940
      %v12403 = vsel %vm2329, %v12324, %v11962
      %v12405 = vsel %vm2329, %v12327, %v11957
      %v12407 = vsel %vm2329, %v12330, %v11979
      %v12409 = vsel %vm2329, %v12333, %v11974
      %v12411 = vsel %vm2329, %v12336, %v11996
      %v12413 = vsel %vm2329, %v12339, %v11991
      %v12415 = vsel %vm2329, %v12342, %v12013
      %v12417 = vsel %vm2329, %v12345, %v12008
      %v12419 = vsel %vm2329, %v12348, %v12030
      %v12421 = vsel %vm2329, %v12351, %v12025
      %v12423 = vsel %vm2329, %v12354, %v12047
      %v12425 = vsel %vm2329, %v12357, %v12042
      %v12427 = vsel %vm2329, %v12360, %v12064
      %v12429 = vsel %vm2329, %v12363, %v12059
      %v12431 = vsel %vm2329, %v12366, %v12081
      %v12433 = vsel %vm2329, %v12369, %v12076
      %v12435 = vsel %vm2394, %v12371, %v12168
      %v12437 = vsel %vm2394, %v12373, %v12165
      %v12439 = vsel %vm2394, %v12375, %v12175
      %v12441 = vsel %vm2394, %v12377, %v12172
      %v12443 = vsel %vm2394, %v12379, %v12182
      %v12445 = vsel %vm2394, %v12381, %v12179
      %v12447 = vsel %vm2394, %v12383, %v12189
      %v12449 = vsel %vm2394, %v12385, %v12186
      %v12451 = vsel %vm2394, %v12387, %v12196
      %v12453 = vsel %vm2394, %v12389, %v12193
      %v12455 = vsel %vm2394, %v12391, %v12203
      %v12457 = vsel %vm2394, %v12393, %v12200
      %v12459 = vsel %vm2394, %v12395, %v12210
      %v12461 = vsel %vm2394, %v12397, %v12207
      %v12463 = vsel %vm2394, %v12399, %v12217
      %v12465 = vsel %vm2394, %v12401, %v12214
      %v12467 = vsel %vm2394, %v12403, %v12224
      %v12469 = vsel %vm2394, %v12405, %v12221
      %v12471 = vsel %vm2394, %v12407, %v12231
      %v12473 = vsel %vm2394, %v12409, %v12228
      %v12475 = vsel %vm2394, %v12411, %v12238
      %v12477 = vsel %vm2394, %v12413, %v12235
      %v12479 = vsel %vm2394, %v12415, %v12245
      %v12481 = vsel %vm2394, %v12417, %v12242
      %v12483 = vsel %vm2394, %v12419, %v12252
      %v12485 = vsel %vm2394, %v12421, %v12249
      %v12487 = vsel %vm2394, %v12423, %v12259
      %v12489 = vsel %vm2394, %v12425, %v12256
      %v12491 = vsel %vm2394, %v12427, %v12266
      %v12493 = vsel %vm2394, %v12429, %v12263
      %v12495 = vsel %vm2394, %v12431, %v12273
      %v12497 = vsel %vm2394, %v12433, %v12270
      %v12498 = vshrl.u32 %v12435, 16
      %v12500 = vshll.u32 %v12435, 16
      %v12502 = vrot.slane %v12500, 1
      %v12503 = vor.u32 %v12498, %v12502
      %v12504 = vshll.u32 %v12437, 16
      %v12506 = vrot.slane %v12504, 1
      %v12507 = vsel %vm3712, %v12503, %v12506
      %v12508 = vshrl.u32 %v12439, 16
      %v12510 = vshll.u32 %v12439, 16
      %v12512 = vrot.slane %v12510, 1
      %v12513 = vor.u32 %v12508, %v12512
      %v12514 = vshll.u32 %v12441, 16
      %v12516 = vrot.slane %v12514, 1
      %v12517 = vsel %vm3712, %v12513, %v12516
      %v12518 = vshrl.u32 %v12443, 16
      %v12520 = vshll.u32 %v12443, 16
      %v12522 = vrot.slane %v12520, 1
      %v12523 = vor.u32 %v12518, %v12522
      %v12524 = vshll.u32 %v12445, 16
      %v12526 = vrot.slane %v12524, 1
      %v12527 = vsel %vm3712, %v12523, %v12526
      %v12528 = vshrl.u32 %v12447, 16
      %v12530 = vshll.u32 %v12447, 16
      %v12532 = vrot.slane %v12530, 1
      %v12533 = vor.u32 %v12528, %v12532
      %v12534 = vshll.u32 %v12449, 16
      %v12536 = vrot.slane %v12534, 1
      %v12537 = vsel %vm3712, %v12533, %v12536
      %v12538 = vshrl.u32 %v12451, 16
      %v12540 = vshll.u32 %v12451, 16
      %v12542 = vrot.slane %v12540, 1
      %v12543 = vor.u32 %v12538, %v12542
      %v12544 = vshll.u32 %v12453, 16
      %v12546 = vrot.slane %v12544, 1
      %v12547 = vsel %vm3712, %v12543, %v12546
      %v12548 = vshrl.u32 %v12455, 16
      %v12550 = vshll.u32 %v12455, 16
      %v12552 = vrot.slane %v12550, 1
      %v12553 = vor.u32 %v12548, %v12552
      %v12554 = vshll.u32 %v12457, 16
      %v12556 = vrot.slane %v12554, 1
      %v12557 = vsel %vm3712, %v12553, %v12556
      %v12558 = vshrl.u32 %v12459, 16
      %v12560 = vshll.u32 %v12459, 16
      %v12562 = vrot.slane %v12560, 1
      %v12563 = vor.u32 %v12558, %v12562
      %v12564 = vshll.u32 %v12461, 16
      %v12566 = vrot.slane %v12564, 1
      %v12567 = vsel %vm3712, %v12563, %v12566
      %v12568 = vshrl.u32 %v12463, 16
      %v12570 = vshll.u32 %v12463, 16
      %v12572 = vrot.slane %v12570, 1
      %v12573 = vor.u32 %v12568, %v12572
      %v12574 = vshll.u32 %v12465, 16
      %v12576 = vrot.slane %v12574, 1
      %v12577 = vsel %vm3712, %v12573, %v12576
      %v12578 = vshrl.u32 %v12467, 16
      %v12580 = vshll.u32 %v12467, 16
      %v12582 = vrot.slane %v12580, 1
      %v12583 = vor.u32 %v12578, %v12582
      %v12584 = vshll.u32 %v12469, 16
      %v12586 = vrot.slane %v12584, 1
      %v12587 = vsel %vm3712, %v12583, %v12586
      %v12588 = vshrl.u32 %v12471, 16
      %v12590 = vshll.u32 %v12471, 16
      %v12592 = vrot.slane %v12590, 1
      %v12593 = vor.u32 %v12588, %v12592
      %v12594 = vshll.u32 %v12473, 16
      %v12596 = vrot.slane %v12594, 1
      %v12597 = vsel %vm3712, %v12593, %v12596
      %v12598 = vshrl.u32 %v12475, 16
      %v12600 = vshll.u32 %v12475, 16
      %v12602 = vrot.slane %v12600, 1
      %v12603 = vor.u32 %v12598, %v12602
      %v12604 = vshll.u32 %v12477, 16
      %v12606 = vrot.slane %v12604, 1
      %v12607 = vsel %vm3712, %v12603, %v12606
      %v12608 = vshrl.u32 %v12479, 16
      %v12610 = vshll.u32 %v12479, 16
      %v12612 = vrot.slane %v12610, 1
      %v12613 = vor.u32 %v12608, %v12612
      %v12614 = vshll.u32 %v12481, 16
      %v12616 = vrot.slane %v12614, 1
      %v12617 = vsel %vm3712, %v12613, %v12616
      %v12618 = vshrl.u32 %v12483, 16
      %v12620 = vshll.u32 %v12483, 16
      %v12622 = vrot.slane %v12620, 1
      %v12623 = vor.u32 %v12618, %v12622
      %v12624 = vshll.u32 %v12485, 16
      %v12626 = vrot.slane %v12624, 1
      %v12627 = vsel %vm3712, %v12623, %v12626
      %v12628 = vshrl.u32 %v12487, 16
      %v12630 = vshll.u32 %v12487, 16
      %v12632 = vrot.slane %v12630, 1
      %v12633 = vor.u32 %v12628, %v12632
      %v12634 = vshll.u32 %v12489, 16
      %v12636 = vrot.slane %v12634, 1
      %v12637 = vsel %vm3712, %v12633, %v12636
      %v12638 = vshrl.u32 %v12491, 16
      %v12640 = vshll.u32 %v12491, 16
      %v12642 = vrot.slane %v12640, 1
      %v12643 = vor.u32 %v12638, %v12642
      %v12644 = vshll.u32 %v12493, 16
      %v12646 = vrot.slane %v12644, 1
      %v12647 = vsel %vm3712, %v12643, %v12646
      %v12648 = vshrl.u32 %v12495, 16
      %v12650 = vshll.u32 %v12495, 16
      %v12652 = vrot.slane %v12650, 1
      %v12653 = vor.u32 %v12648, %v12652
      %v12654 = vshll.u32 %v12497, 16
      %v12656 = vrot.slane %v12654, 1
      %v12657 = vsel %vm3712, %v12653, %v12656
      %s12658 = scalar_lea.vmem %s3, 64
      %v12659 = vld [vmem:[%s12658] sm:$0xf]
      %v12660 = vld [vmem:[%s12658 + $0x4] sm:$0xf]
      %v12663 = vunpack.c.l.b16 %v12659
      %v12664 = vunpack.c.l.b16 %v12660
      %v12665 = vpack.c.b16 %v12664, %v12663
      %v12668 = vsel %vm3015, %v12507, 0
      %v12671 = vsel %vm3015, %v12517, 0
      %v12674 = vsel %vm3015, %v12527, 0
      %v12677 = vsel %vm3015, %v12537, 0
      %v12680 = vsel %vm3015, %v12547, 0
      %v12683 = vsel %vm3015, %v12557, 0
      %v12686 = vsel %vm3015, %v12567, 0
      %v12689 = vsel %vm3015, %v12577, 0
      %v12692 = vsel %vm3015, %v12587, 0
      %v12695 = vsel %vm3015, %v12597, 0
      %v12698 = vsel %vm3015, %v12607, 0
      %v12701 = vsel %vm3015, %v12617, 0
      %v12704 = vsel %vm3015, %v12627, 0
      %v12707 = vsel %vm3015, %v12637, 0
      %v12710 = vsel %vm3015, %v12647, 0
      %v12713 = vsel %vm3015, %v12657, 0
      %12715 = vmatpush.bf16.msra.mxu0 0
      %12716 = vmatpush.bf16.msra.mxu0 0
      %12717 = vmatpush.bf16.msra.mxu0 0
      %12718 = vmatpush.bf16.msra.mxu0 0
      %12719 = vmatpush.bf16.msra.mxu0 0
      %12720 = vmatpush.bf16.msra.mxu0 0
      %12721 = vmatpush.bf16.msra.mxu0 0
      %12722 = vmatpush.bf16.msra.mxu0 %v12665
      %12723 = vmatmul.bf16.gmra.mxu0 %v12668
      %v12724 = vpop.f32.mrf.mxu0
      %v12725 = vadd.f32 0.0, %v12724
      %v12726 = vpop.f32.mrf.mxu0
      %v12727 = vadd.f32 0.0, %v12726
      %12728 = vmatmul.bf16.gmra.mxu0 %v12671
      %v12729 = vpop.f32.mrf.mxu0
      %v12730 = vadd.f32 0.0, %v12729
      %v12731 = vpop.f32.mrf.mxu0
      %v12732 = vadd.f32 0.0, %v12731
      %12733 = vmatmul.bf16.gmra.mxu0 %v12674
      %v12734 = vpop.f32.mrf.mxu0
      %v12735 = vadd.f32 0.0, %v12734
      %v12736 = vpop.f32.mrf.mxu0
      %v12737 = vadd.f32 0.0, %v12736
      %12738 = vmatmul.bf16.gmra.mxu0 %v12677
      %v12739 = vpop.f32.mrf.mxu0
      %v12740 = vadd.f32 0.0, %v12739
      %v12741 = vpop.f32.mrf.mxu0
      %v12742 = vadd.f32 0.0, %v12741
      %12743 = vmatmul.bf16.gmra.mxu0 %v12680
      %v12744 = vpop.f32.mrf.mxu0
      %v12745 = vadd.f32 0.0, %v12744
      %v12746 = vpop.f32.mrf.mxu0
      %v12747 = vadd.f32 0.0, %v12746
      %12748 = vmatmul.bf16.gmra.mxu0 %v12683
      %v12749 = vpop.f32.mrf.mxu0
      %v12750 = vadd.f32 0.0, %v12749
      %v12751 = vpop.f32.mrf.mxu0
      %v12752 = vadd.f32 0.0, %v12751
      %12753 = vmatmul.bf16.gmra.mxu0 %v12686
      %v12754 = vpop.f32.mrf.mxu0
      %v12755 = vadd.f32 0.0, %v12754
      %v12756 = vpop.f32.mrf.mxu0
      %v12757 = vadd.f32 0.0, %v12756
      %12758 = vmatmul.bf16.gmra.mxu0 %v12689
      %v12759 = vpop.f32.mrf.mxu0
      %v12760 = vadd.f32 0.0, %v12759
      %v12761 = vpop.f32.mrf.mxu0
      %v12762 = vadd.f32 0.0, %v12761
      %12763 = vmatmul.bf16.gmra.mxu0 %v12692
      %v12764 = vpop.f32.mrf.mxu0
      %v12765 = vadd.f32 0.0, %v12764
      %v12766 = vpop.f32.mrf.mxu0
      %v12767 = vadd.f32 0.0, %v12766
      %12768 = vmatmul.bf16.gmra.mxu0 %v12695
      %v12769 = vpop.f32.mrf.mxu0
      %v12770 = vadd.f32 0.0, %v12769
      %v12771 = vpop.f32.mrf.mxu0
      %v12772 = vadd.f32 0.0, %v12771
      %12773 = vmatmul.bf16.gmra.mxu0 %v12698
      %v12774 = vpop.f32.mrf.mxu0
      %v12775 = vadd.f32 0.0, %v12774
      %v12776 = vpop.f32.mrf.mxu0
      %v12777 = vadd.f32 0.0, %v12776
      %12778 = vmatmul.bf16.gmra.mxu0 %v12701
      %v12779 = vpop.f32.mrf.mxu0
      %v12780 = vadd.f32 0.0, %v12779
      %v12781 = vpop.f32.mrf.mxu0
      %v12782 = vadd.f32 0.0, %v12781
      %12783 = vmatmul.bf16.gmra.mxu0 %v12704
      %v12784 = vpop.f32.mrf.mxu0
      %v12785 = vadd.f32 0.0, %v12784
      %v12786 = vpop.f32.mrf.mxu0
      %v12787 = vadd.f32 0.0, %v12786
      %12788 = vmatmul.bf16.gmra.mxu0 %v12707
      %v12789 = vpop.f32.mrf.mxu0
      %v12790 = vadd.f32 0.0, %v12789
      %v12791 = vpop.f32.mrf.mxu0
      %v12792 = vadd.f32 0.0, %v12791
      %12793 = vmatmul.bf16.gmra.mxu0 %v12710
      %v12794 = vpop.f32.mrf.mxu0
      %v12795 = vadd.f32 0.0, %v12794
      %v12796 = vpop.f32.mrf.mxu0
      %v12797 = vadd.f32 0.0, %v12796
      %12798 = vmatmul.bf16.gmra.mxu0 %v12713
      %v12799 = vpop.f32.mrf.mxu0
      %v12800 = vadd.f32 0.0, %v12799
      %v12801 = vpop.f32.mrf.mxu0
      %v12802 = vadd.f32 0.0, %v12801
      %12803 = vdwg.mxu0
      %v12804 = vadd.f32 %v10994, %v12725
      %v12805 = vadd.f32 %v10995, %v12727
      %v12806 = vadd.f32 %v10996, %v12730
      %v12807 = vadd.f32 %v10997, %v12732
      %v12808 = vadd.f32 %v10998, %v12735
      %v12809 = vadd.f32 %v10999, %v12737
      %v12810 = vadd.f32 %v11000, %v12740
      %v12811 = vadd.f32 %v11001, %v12742
      %v12812 = vadd.f32 %v11002, %v12745
      %v12813 = vadd.f32 %v11003, %v12747
      %v12814 = vadd.f32 %v11004, %v12750
      %v12815 = vadd.f32 %v11005, %v12752
      %v12816 = vadd.f32 %v11006, %v12755
      %v12817 = vadd.f32 %v11007, %v12757
      %v12818 = vadd.f32 %v11008, %v12760
      %v12819 = vadd.f32 %v11009, %v12762
      %v12820 = vadd.f32 %v11010, %v12765
      %v12821 = vadd.f32 %v11011, %v12767
      %v12822 = vadd.f32 %v11012, %v12770
      %v12823 = vadd.f32 %v11013, %v12772
      %v12824 = vadd.f32 %v11014, %v12775
      %v12825 = vadd.f32 %v11015, %v12777
      %v12826 = vadd.f32 %v11016, %v12780
      %v12827 = vadd.f32 %v11017, %v12782
      %v12828 = vadd.f32 %v11018, %v12785
      %v12829 = vadd.f32 %v11019, %v12787
      %v12830 = vadd.f32 %v11020, %v12790
      %v12831 = vadd.f32 %v11021, %v12792
      %v12832 = vadd.f32 %v11022, %v12795
      %v12833 = vadd.f32 %v11023, %v12797
      %v12834 = vadd.f32 %v11024, %v12800
      %v12835 = vadd.f32 %v11025, %v12802
      %v12836 = vld [vmem:[%s4] sm:$0x1]
      %v12838 = vperm.slane %v12836, 0
      %v12840 = vadd.f32 %v12804, %v12838
      %v12841 = vadd.f32 %v12805, %v12838
      %v12842 = vadd.f32 %v12806, %v12838
      %v12843 = vadd.f32 %v12807, %v12838
      %v12844 = vadd.f32 %v12808, %v12838
      %v12845 = vadd.f32 %v12809, %v12838
      %v12846 = vadd.f32 %v12810, %v12838
      %v12847 = vadd.f32 %v12811, %v12838
      %v12848 = vadd.f32 %v12812, %v12838
      %v12849 = vadd.f32 %v12813, %v12838
      %v12850 = vadd.f32 %v12814, %v12838
      %v12851 = vadd.f32 %v12815, %v12838
      %v12852 = vadd.f32 %v12816, %v12838
      %v12853 = vadd.f32 %v12817, %v12838
      %v12854 = vadd.f32 %v12818, %v12838
      %v12855 = vadd.f32 %v12819, %v12838
      %v12856 = vadd.f32 %v12820, %v12838
      %v12857 = vadd.f32 %v12821, %v12838
      %v12858 = vadd.f32 %v12822, %v12838
      %v12859 = vadd.f32 %v12823, %v12838
      %v12860 = vadd.f32 %v12824, %v12838
      %v12861 = vadd.f32 %v12825, %v12838
      %v12862 = vadd.f32 %v12826, %v12838
      %v12863 = vadd.f32 %v12827, %v12838
      %v12864 = vadd.f32 %v12828, %v12838
      %v12865 = vadd.f32 %v12829, %v12838
      %v12866 = vadd.f32 %v12830, %v12838
      %v12867 = vadd.f32 %v12831, %v12838
      %v12868 = vadd.f32 %v12832, %v12838
      %v12869 = vadd.f32 %v12833, %v12838
      %v12870 = vadd.f32 %v12834, %v12838
      %v12871 = vadd.f32 %v12835, %v12838
      %v12872 = vmax.f32 %v12840, 0.0
      %v12873 = vmax.f32 %v12841, 0.0
      %v12874 = vmax.f32 %v12842, 0.0
      %v12875 = vmax.f32 %v12843, 0.0
      %v12876 = vmax.f32 %v12844, 0.0
      %v12877 = vmax.f32 %v12845, 0.0
      %v12878 = vmax.f32 %v12846, 0.0
      %v12879 = vmax.f32 %v12847, 0.0
      %v12880 = vmax.f32 %v12848, 0.0
      %v12881 = vmax.f32 %v12849, 0.0
      %v12882 = vmax.f32 %v12850, 0.0
      %v12883 = vmax.f32 %v12851, 0.0
      %v12884 = vmax.f32 %v12852, 0.0
      %v12885 = vmax.f32 %v12853, 0.0
      %v12886 = vmax.f32 %v12854, 0.0
      %v12887 = vmax.f32 %v12855, 0.0
      %v12888 = vmax.f32 %v12856, 0.0
      %v12889 = vmax.f32 %v12857, 0.0
      %v12890 = vmax.f32 %v12858, 0.0
      %v12891 = vmax.f32 %v12859, 0.0
      %v12892 = vmax.f32 %v12860, 0.0
      %v12893 = vmax.f32 %v12861, 0.0
      %v12894 = vmax.f32 %v12862, 0.0
      %v12895 = vmax.f32 %v12863, 0.0
      %v12896 = vmax.f32 %v12864, 0.0
      %v12897 = vmax.f32 %v12865, 0.0
      %v12898 = vmax.f32 %v12866, 0.0
      %v12899 = vmax.f32 %v12867, 0.0
      %v12900 = vmax.f32 %v12868, 0.0
      %v12901 = vmax.f32 %v12869, 0.0
      %v12902 = vmax.f32 %v12870, 0.0
      %v12903 = vmax.f32 %v12871, 0.0
      %12936 = vrot.lane.b32.xlu0 %v753, 4
      %v12937 = vpop.permute.xlu0 %12936
      %12938 = vrot.lane.b32.xlu0 %v754, 4
      %v12939 = vpop.permute.xlu0 %12938
      %12940 = vrot.lane.b32.xlu0 %v755, 4
      %v12941 = vpop.permute.xlu0 %12940
      %12942 = vrot.lane.b32.xlu0 %v756, 4
      %v12943 = vpop.permute.xlu0 %12942
      %12944 = vrot.lane.b32.xlu0 %v757, 4
      %v12945 = vpop.permute.xlu0 %12944
      %12946 = vrot.lane.b32.xlu0 %v758, 4
      %v12947 = vpop.permute.xlu0 %12946
      %12948 = vrot.lane.b32.xlu0 %v759, 4
      %v12949 = vpop.permute.xlu0 %12948
      %12950 = vrot.lane.b32.xlu0 %v760, 4
      %v12951 = vpop.permute.xlu0 %12950
      %12952 = vrot.lane.b32.xlu0 %v761, 4
      %v12953 = vpop.permute.xlu0 %12952
      %12954 = vrot.lane.b32.xlu0 %v762, 4
      %v12955 = vpop.permute.xlu0 %12954
      %12956 = vrot.lane.b32.xlu0 %v763, 4
      %v12957 = vpop.permute.xlu0 %12956
      %12958 = vrot.lane.b32.xlu0 %v764, 4
      %v12959 = vpop.permute.xlu0 %12958
      %12960 = vrot.lane.b32.xlu0 %v765, 4
      %v12961 = vpop.permute.xlu0 %12960
      %12962 = vrot.lane.b32.xlu0 %v766, 4
      %v12963 = vpop.permute.xlu0 %12962
      %12964 = vrot.lane.b32.xlu0 %v767, 4
      %v12965 = vpop.permute.xlu0 %12964
      %12966 = vrot.lane.b32.xlu0 %v768, 4
      %v12967 = vpop.permute.xlu0 %12966
      %12968 = vrot.lane.b32.xlu0 %v769, 4
      %v12969 = vpop.permute.xlu0 %12968
      %12970 = vrot.lane.b32.xlu0 %v770, 4
      %v12971 = vpop.permute.xlu0 %12970
      %12972 = vrot.lane.b32.xlu0 %v771, 4
      %v12973 = vpop.permute.xlu0 %12972
      %12974 = vrot.lane.b32.xlu0 %v772, 4
      %v12975 = vpop.permute.xlu0 %12974
      %12976 = vrot.lane.b32.xlu0 %v773, 4
      %v12977 = vpop.permute.xlu0 %12976
      %12978 = vrot.lane.b32.xlu0 %v774, 4
      %v12979 = vpop.permute.xlu0 %12978
      %12980 = vrot.lane.b32.xlu0 %v775, 4
      %v12981 = vpop.permute.xlu0 %12980
      %12982 = vrot.lane.b32.xlu0 %v776, 4
      %v12983 = vpop.permute.xlu0 %12982
      %12984 = vrot.lane.b32.xlu0 %v777, 4
      %v12985 = vpop.permute.xlu0 %12984
      %12986 = vrot.lane.b32.xlu0 %v778, 4
      %v12987 = vpop.permute.xlu0 %12986
      %12988 = vrot.lane.b32.xlu0 %v779, 4
      %v12989 = vpop.permute.xlu0 %12988
      %12990 = vrot.lane.b32.xlu0 %v780, 4
      %v12991 = vpop.permute.xlu0 %12990
      %12992 = vrot.lane.b32.xlu0 %v781, 4
      %v12993 = vpop.permute.xlu0 %12992
      %12994 = vrot.lane.b32.xlu0 %v782, 4
      %v12995 = vpop.permute.xlu0 %12994
      %12996 = vrot.lane.b32.xlu0 %v783, 4
      %v12997 = vpop.permute.xlu0 %12996
      %12998 = vrot.lane.b32.xlu0 %v784, 4
      %v12999 = vpop.permute.xlu0 %12998
      %v13032 = vsel %vm451, %v753, %v12937
      %v13033 = vsel %vm451, %v754, %v12939
      %v13034 = vsel %vm451, %v755, %v12941
      %v13035 = vsel %vm451, %v756, %v12943
      %v13036 = vsel %vm451, %v757, %v12945
      %v13037 = vsel %vm451, %v758, %v12947
      %v13038 = vsel %vm451, %v759, %v12949
      %v13039 = vsel %vm451, %v760, %v12951
      %v13040 = vsel %vm451, %v761, %v12953
      %v13041 = vsel %vm451, %v762, %v12955
      %v13042 = vsel %vm451, %v763, %v12957
      %v13043 = vsel %vm451, %v764, %v12959
      %v13044 = vsel %vm451, %v765, %v12961
      %v13045 = vsel %vm451, %v766, %v12963
      %v13046 = vsel %vm451, %v767, %v12965
      %v13047 = vsel %vm451, %v768, %v12967
      %v13048 = vsel %vm451, %v769, %v12969
      %v13049 = vsel %vm451, %v770, %v12971
      %v13050 = vsel %vm451, %v771, %v12973
      %v13051 = vsel %vm451, %v772, %v12975
      %v13052 = vsel %vm451, %v773, %v12977
      %v13053 = vsel %vm451, %v774, %v12979
      %v13054 = vsel %vm451, %v775, %v12981
      %v13055 = vsel %vm451, %v776, %v12983
      %v13056 = vsel %vm451, %v777, %v12985
      %v13057 = vsel %vm451, %v778, %v12987
      %v13058 = vsel %vm451, %v779, %v12989
      %v13059 = vsel %vm451, %v780, %v12991
      %v13060 = vsel %vm451, %v781, %v12993
      %v13061 = vsel %vm451, %v782, %v12995
      %v13062 = vsel %vm451, %v783, %v12997
      %v13063 = vsel %vm451, %v784, %v12999
      %v13064 = vsel %vm2329, %v13032, %v753
      %v13065 = vsel %vm2329, %v13033, %v754
      %v13066 = vsel %vm2329, %v13034, %v755
      %v13067 = vsel %vm2329, %v13035, %v756
      %v13068 = vsel %vm2329, %v13036, %v757
      %v13069 = vsel %vm2329, %v13037, %v758
      %v13070 = vsel %vm2329, %v13038, %v759
      %v13071 = vsel %vm2329, %v13039, %v760
      %v13072 = vsel %vm2329, %v13040, %v761
      %v13073 = vsel %vm2329, %v13041, %v762
      %v13074 = vsel %vm2329, %v13042, %v763
      %v13075 = vsel %vm2329, %v13043, %v764
      %v13076 = vsel %vm2329, %v13044, %v765
      %v13077 = vsel %vm2329, %v13045, %v766
      %v13078 = vsel %vm2329, %v13046, %v767
      %v13079 = vsel %vm2329, %v13047, %v768
      %v13080 = vsel %vm2329, %v13048, %v769
      %v13081 = vsel %vm2329, %v13049, %v770
      %v13082 = vsel %vm2329, %v13050, %v771
      %v13083 = vsel %vm2329, %v13051, %v772
      %v13084 = vsel %vm2329, %v13052, %v773
      %v13085 = vsel %vm2329, %v13053, %v774
      %v13086 = vsel %vm2329, %v13054, %v775
      %v13087 = vsel %vm2329, %v13055, %v776
      %v13088 = vsel %vm2329, %v13056, %v777
      %v13089 = vsel %vm2329, %v13057, %v778
      %v13090 = vsel %vm2329, %v13058, %v779
      %v13091 = vsel %vm2329, %v13059, %v780
      %v13092 = vsel %vm2329, %v13060, %v781
      %v13093 = vsel %vm2329, %v13061, %v782
      %v13094 = vsel %vm2329, %v13062, %v783
      %v13095 = vsel %vm2329, %v13063, %v784
      %v13096 = vsel %vm2394, %v13064, %v12937
      %v13097 = vsel %vm2394, %v13065, %v12939
      %v13098 = vsel %vm2394, %v13066, %v12941
      %v13099 = vsel %vm2394, %v13067, %v12943
      %v13100 = vsel %vm2394, %v13068, %v12945
      %v13101 = vsel %vm2394, %v13069, %v12947
      %v13102 = vsel %vm2394, %v13070, %v12949
      %v13103 = vsel %vm2394, %v13071, %v12951
      %v13104 = vsel %vm2394, %v13072, %v12953
      %v13105 = vsel %vm2394, %v13073, %v12955
      %v13106 = vsel %vm2394, %v13074, %v12957
      %v13107 = vsel %vm2394, %v13075, %v12959
      %v13108 = vsel %vm2394, %v13076, %v12961
      %v13109 = vsel %vm2394, %v13077, %v12963
      %v13110 = vsel %vm2394, %v13078, %v12965
      %v13111 = vsel %vm2394, %v13079, %v12967
      %v13112 = vsel %vm2394, %v13080, %v12969
      %v13113 = vsel %vm2394, %v13081, %v12971
      %v13114 = vsel %vm2394, %v13082, %v12973
      %v13115 = vsel %vm2394, %v13083, %v12975
      %v13116 = vsel %vm2394, %v13084, %v12977
      %v13117 = vsel %vm2394, %v13085, %v12979
      %v13118 = vsel %vm2394, %v13086, %v12981
      %v13119 = vsel %vm2394, %v13087, %v12983
      %v13120 = vsel %vm2394, %v13088, %v12985
      %v13121 = vsel %vm2394, %v13089, %v12987
      %v13122 = vsel %vm2394, %v13090, %v12989
      %v13123 = vsel %vm2394, %v13091, %v12991
      %v13124 = vsel %vm2394, %v13092, %v12993
      %v13125 = vsel %vm2394, %v13093, %v12995
      %v13126 = vsel %vm2394, %v13094, %v12997
      %v13127 = vsel %vm2394, %v13095, %v12999
      %v13128 = vadd.f32 %v12872, %v13096
      %v13129 = vadd.f32 %v12873, %v13097
      %v13130 = vadd.f32 %v12874, %v13098
      %v13131 = vadd.f32 %v12875, %v13099
      %v13132 = vadd.f32 %v12876, %v13100
      %v13133 = vadd.f32 %v12877, %v13101
      %v13134 = vadd.f32 %v12878, %v13102
      %v13135 = vadd.f32 %v12879, %v13103
      %v13136 = vadd.f32 %v12880, %v13104
      %v13137 = vadd.f32 %v12881, %v13105
      %v13138 = vadd.f32 %v12882, %v13106
      %v13139 = vadd.f32 %v12883, %v13107
      %v13140 = vadd.f32 %v12884, %v13108
      %v13141 = vadd.f32 %v12885, %v13109
      %v13142 = vadd.f32 %v12886, %v13110
      %v13143 = vadd.f32 %v12887, %v13111
      %v13144 = vadd.f32 %v12888, %v13112
      %v13145 = vadd.f32 %v12889, %v13113
      %v13146 = vadd.f32 %v12890, %v13114
      %v13147 = vadd.f32 %v12891, %v13115
      %v13148 = vadd.f32 %v12892, %v13116
      %v13149 = vadd.f32 %v12893, %v13117
      %v13150 = vadd.f32 %v12894, %v13118
      %v13151 = vadd.f32 %v12895, %v13119
      %v13152 = vadd.f32 %v12896, %v13120
      %v13153 = vadd.f32 %v12897, %v13121
      %v13154 = vadd.f32 %v12898, %v13122
      %v13155 = vadd.f32 %v12899, %v13123
      %v13156 = vadd.f32 %v12900, %v13124
      %v13157 = vadd.f32 %v12901, %v13125
      %v13158 = vadd.f32 %v12902, %v13126
      %v13159 = vadd.f32 %v12903, %v13127
      %v13160 = vpack.c.bf16 %v13129, %v13128
      %v13161 = vpack.c.bf16 %v13131, %v13130
      %v13162 = vpack.c.bf16 %v13133, %v13132
      %v13163 = vpack.c.bf16 %v13135, %v13134
      %v13164 = vpack.c.bf16 %v13137, %v13136
      %v13165 = vpack.c.bf16 %v13139, %v13138
      %v13166 = vpack.c.bf16 %v13141, %v13140
      %v13167 = vpack.c.bf16 %v13143, %v13142
      %v13168 = vpack.c.bf16 %v13145, %v13144
      %v13169 = vpack.c.bf16 %v13147, %v13146
      %v13170 = vpack.c.bf16 %v13149, %v13148
      %v13171 = vpack.c.bf16 %v13151, %v13150
      %v13172 = vpack.c.bf16 %v13153, %v13152
      %v13173 = vpack.c.bf16 %v13155, %v13154
      %v13174 = vpack.c.bf16 %v13157, %v13156
      %v13175 = vpack.c.bf16 %v13159, %v13158
      %v13176 = vld [vmem:[%s5] sm:$0xf]
      %v13177 = vld [vmem:[%s5 + $0x4] sm:$0xf]
      %v13178 = vld [vmem:[%s6] sm:$0x1]
      %v13180 = vperm.slane %v13178, 0
      %v13184 = vunpack.c.l.b16 %v13176
      %v13185 = vunpack.c.l.b16 %v13177
      %v13186 = vpack.c.b16 %v13185, %v13184
      %v13189 = vsel %vm3015, %v13160, 0
      %v13192 = vsel %vm3015, %v13161, 0
      %v13195 = vsel %vm3015, %v13162, 0
      %v13198 = vsel %vm3015, %v13163, 0
      %v13201 = vsel %vm3015, %v13164, 0
      %v13204 = vsel %vm3015, %v13165, 0
      %v13207 = vsel %vm3015, %v13166, 0
      %v13210 = vsel %vm3015, %v13167, 0
      %v13213 = vsel %vm3015, %v13168, 0
      %v13216 = vsel %vm3015, %v13169, 0
      %v13219 = vsel %vm3015, %v13170, 0
      %v13222 = vsel %vm3015, %v13171, 0
      %v13225 = vsel %vm3015, %v13172, 0
      %v13228 = vsel %vm3015, %v13173, 0
      %v13231 = vsel %vm3015, %v13174, 0
      %v13234 = vsel %vm3015, %v13175, 0
      %13236 = vmatpush.bf16.msra.mxu0 0
      %13237 = vmatpush.bf16.msra.mxu0 0
      %13238 = vmatpush.bf16.msra.mxu0 0
      %13239 = vmatpush.bf16.msra.mxu0 0
      %13240 = vmatpush.bf16.msra.mxu0 0
      %13241 = vmatpush.bf16.msra.mxu0 0
      %13242 = vmatpush.bf16.msra.mxu0 0
      %13243 = vmatpush.bf16.msra.mxu0 %v13186
      %13244 = vmatmul.bf16.gmra.mxu0 %v13189
      %v13245 = vpop.f32.mrf.mxu0
      %v13246 = vadd.f32 %v13180, %v13245
      %v13247 = vpop.f32.mrf.mxu0
      %v13248 = vadd.f32 %v13180, %v13247
      %13249 = vmatmul.bf16.gmra.mxu0 %v13192
      %v13250 = vpop.f32.mrf.mxu0
      %v13251 = vadd.f32 %v13180, %v13250
      %v13252 = vpop.f32.mrf.mxu0
      %v13253 = vadd.f32 %v13180, %v13252
      %13254 = vmatmul.bf16.gmra.mxu0 %v13195
      %v13255 = vpop.f32.mrf.mxu0
      %v13256 = vadd.f32 %v13180, %v13255
      %v13257 = vpop.f32.mrf.mxu0
      %v13258 = vadd.f32 %v13180, %v13257
      %13259 = vmatmul.bf16.gmra.mxu0 %v13198
      %v13260 = vpop.f32.mrf.mxu0
      %v13261 = vadd.f32 %v13180, %v13260
      %v13262 = vpop.f32.mrf.mxu0
      %v13263 = vadd.f32 %v13180, %v13262
      %13264 = vmatmul.bf16.gmra.mxu0 %v13201
      %v13265 = vpop.f32.mrf.mxu0
      %v13266 = vadd.f32 %v13180, %v13265
      %v13267 = vpop.f32.mrf.mxu0
      %v13268 = vadd.f32 %v13180, %v13267
      %13269 = vmatmul.bf16.gmra.mxu0 %v13204
      %v13270 = vpop.f32.mrf.mxu0
      %v13271 = vadd.f32 %v13180, %v13270
      %v13272 = vpop.f32.mrf.mxu0
      %v13273 = vadd.f32 %v13180, %v13272
      %13274 = vmatmul.bf16.gmra.mxu0 %v13207
      %v13275 = vpop.f32.mrf.mxu0
      %v13276 = vadd.f32 %v13180, %v13275
      %v13277 = vpop.f32.mrf.mxu0
      %v13278 = vadd.f32 %v13180, %v13277
      %13279 = vmatmul.bf16.gmra.mxu0 %v13210
      %v13280 = vpop.f32.mrf.mxu0
      %v13281 = vadd.f32 %v13180, %v13280
      %v13282 = vpop.f32.mrf.mxu0
      %v13283 = vadd.f32 %v13180, %v13282
      %13284 = vmatmul.bf16.gmra.mxu0 %v13213
      %v13285 = vpop.f32.mrf.mxu0
      %v13286 = vadd.f32 %v13180, %v13285
      %v13287 = vpop.f32.mrf.mxu0
      %v13288 = vadd.f32 %v13180, %v13287
      %13289 = vmatmul.bf16.gmra.mxu0 %v13216
      %v13290 = vpop.f32.mrf.mxu0
      %v13291 = vadd.f32 %v13180, %v13290
      %v13292 = vpop.f32.mrf.mxu0
      %v13293 = vadd.f32 %v13180, %v13292
      %13294 = vmatmul.bf16.gmra.mxu0 %v13219
      %v13295 = vpop.f32.mrf.mxu0
      %v13296 = vadd.f32 %v13180, %v13295
      %v13297 = vpop.f32.mrf.mxu0
      %v13298 = vadd.f32 %v13180, %v13297
      %13299 = vmatmul.bf16.gmra.mxu0 %v13222
      %v13300 = vpop.f32.mrf.mxu0
      %v13301 = vadd.f32 %v13180, %v13300
      %v13302 = vpop.f32.mrf.mxu0
      %v13303 = vadd.f32 %v13180, %v13302
      %13304 = vmatmul.bf16.gmra.mxu0 %v13225
      %v13305 = vpop.f32.mrf.mxu0
      %v13306 = vadd.f32 %v13180, %v13305
      %v13307 = vpop.f32.mrf.mxu0
      %v13308 = vadd.f32 %v13180, %v13307
      %13309 = vmatmul.bf16.gmra.mxu0 %v13228
      %v13310 = vpop.f32.mrf.mxu0
      %v13311 = vadd.f32 %v13180, %v13310
      %v13312 = vpop.f32.mrf.mxu0
      %v13313 = vadd.f32 %v13180, %v13312
      %13314 = vmatmul.bf16.gmra.mxu0 %v13231
      %v13315 = vpop.f32.mrf.mxu0
      %v13316 = vadd.f32 %v13180, %v13315
      %v13317 = vpop.f32.mrf.mxu0
      %v13318 = vadd.f32 %v13180, %v13317
      %13319 = vmatmul.bf16.gmra.mxu0 %v13234
      %v13320 = vpop.f32.mrf.mxu0
      %v13321 = vadd.f32 %v13180, %v13320
      %v13322 = vpop.f32.mrf.mxu0
      %v13323 = vadd.f32 %v13180, %v13322
      %13324 = vdwg.mxu0
      %v13325 = vmax.f32 %v13246, 0.0
      %v13326 = vmax.f32 %v13248, 0.0
      %v13327 = vmax.f32 %v13251, 0.0
      %v13328 = vmax.f32 %v13253, 0.0
      %v13329 = vmax.f32 %v13256, 0.0
      %v13330 = vmax.f32 %v13258, 0.0
      %v13331 = vmax.f32 %v13261, 0.0
      %v13332 = vmax.f32 %v13263, 0.0
      %v13333 = vmax.f32 %v13266, 0.0
      %v13334 = vmax.f32 %v13268, 0.0
      %v13335 = vmax.f32 %v13271, 0.0
      %v13336 = vmax.f32 %v13273, 0.0
      %v13337 = vmax.f32 %v13276, 0.0
      %v13338 = vmax.f32 %v13278, 0.0
      %v13339 = vmax.f32 %v13281, 0.0
      %v13340 = vmax.f32 %v13283, 0.0
      %v13341 = vmax.f32 %v13286, 0.0
      %v13342 = vmax.f32 %v13288, 0.0
      %v13343 = vmax.f32 %v13291, 0.0
      %v13344 = vmax.f32 %v13293, 0.0
      %v13345 = vmax.f32 %v13296, 0.0
      %v13346 = vmax.f32 %v13298, 0.0
      %v13347 = vmax.f32 %v13301, 0.0
      %v13348 = vmax.f32 %v13303, 0.0
      %v13349 = vmax.f32 %v13306, 0.0
      %v13350 = vmax.f32 %v13308, 0.0
      %v13351 = vmax.f32 %v13311, 0.0
      %v13352 = vmax.f32 %v13313, 0.0
      %v13353 = vmax.f32 %v13316, 0.0
      %v13354 = vmax.f32 %v13318, 0.0
      %v13355 = vmax.f32 %v13321, 0.0
      %v13356 = vmax.f32 %v13323, 0.0
      %v13357 = vpack.c.bf16 %v13326, %v13325
      %v13358 = vpack.c.bf16 %v13328, %v13327
      %v13359 = vpack.c.bf16 %v13330, %v13329
      %v13360 = vpack.c.bf16 %v13332, %v13331
      %v13361 = vpack.c.bf16 %v13334, %v13333
      %v13362 = vpack.c.bf16 %v13336, %v13335
      %v13363 = vpack.c.bf16 %v13338, %v13337
      %v13364 = vpack.c.bf16 %v13340, %v13339
      %v13365 = vpack.c.bf16 %v13342, %v13341
      %v13366 = vpack.c.bf16 %v13344, %v13343
      %v13367 = vpack.c.bf16 %v13346, %v13345
      %v13368 = vpack.c.bf16 %v13348, %v13347
      %v13369 = vpack.c.bf16 %v13350, %v13349
      %v13370 = vpack.c.bf16 %v13352, %v13351
      %v13371 = vpack.c.bf16 %v13354, %v13353
      %v13372 = vpack.c.bf16 %v13356, %v13355
      %v13373 = vld [vmem:[%s7] sm:$0xf]
      %v13374 = vld [vmem:[%s7 + $0x4] sm:$0xf]
      %v13375 = vld [vmem:[%s8] sm:$0x1]
      %v13377 = vperm.slane %v13375, 0
      %v13381 = vunpack.c.l.b16 %v13373
      %v13382 = vunpack.c.l.b16 %v13374
      %v13383 = vpack.c.b16 %v13382, %v13381
      %v13386 = vsel %vm3015, %v13357, 0
      %v13389 = vsel %vm3015, %v13358, 0
      %v13392 = vsel %vm3015, %v13359, 0
      %v13395 = vsel %vm3015, %v13360, 0
      %v13398 = vsel %vm3015, %v13361, 0
      %v13401 = vsel %vm3015, %v13362, 0
      %v13404 = vsel %vm3015, %v13363, 0
      %v13407 = vsel %vm3015, %v13364, 0
      %v13410 = vsel %vm3015, %v13365, 0
      %v13413 = vsel %vm3015, %v13366, 0
      %v13416 = vsel %vm3015, %v13367, 0
      %v13419 = vsel %vm3015, %v13368, 0
      %v13422 = vsel %vm3015, %v13369, 0
      %v13425 = vsel %vm3015, %v13370, 0
      %v13428 = vsel %vm3015, %v13371, 0
      %v13431 = vsel %vm3015, %v13372, 0
      %13433 = vmatpush.bf16.msra.mxu0 0
      %13434 = vmatpush.bf16.msra.mxu0 0
      %13435 = vmatpush.bf16.msra.mxu0 0
      %13436 = vmatpush.bf16.msra.mxu0 0
      %13437 = vmatpush.bf16.msra.mxu0 0
      %13438 = vmatpush.bf16.msra.mxu0 0
      %13439 = vmatpush.bf16.msra.mxu0 0
      %13440 = vmatpush.bf16.msra.mxu0 %v13383
      %13441 = vmatmul.bf16.gmra.mxu0 %v13386
      %v13442 = vpop.f32.mrf.mxu0
      %v13443 = vadd.f32 %v13377, %v13442
      %v13444 = vpop.f32.mrf.mxu0
      %v13445 = vadd.f32 %v13377, %v13444
      %13446 = vmatmul.bf16.gmra.mxu0 %v13389
      %v13447 = vpop.f32.mrf.mxu0
      %v13448 = vadd.f32 %v13377, %v13447
      %v13449 = vpop.f32.mrf.mxu0
      %v13450 = vadd.f32 %v13377, %v13449
      %13451 = vmatmul.bf16.gmra.mxu0 %v13392
      %v13452 = vpop.f32.mrf.mxu0
      %v13453 = vadd.f32 %v13377, %v13452
      %v13454 = vpop.f32.mrf.mxu0
      %v13455 = vadd.f32 %v13377, %v13454
      %13456 = vmatmul.bf16.gmra.mxu0 %v13395
      %v13457 = vpop.f32.mrf.mxu0
      %v13458 = vadd.f32 %v13377, %v13457
      %v13459 = vpop.f32.mrf.mxu0
      %v13460 = vadd.f32 %v13377, %v13459
      %13461 = vmatmul.bf16.gmra.mxu0 %v13398
      %v13462 = vpop.f32.mrf.mxu0
      %v13463 = vadd.f32 %v13377, %v13462
      %v13464 = vpop.f32.mrf.mxu0
      %v13465 = vadd.f32 %v13377, %v13464
      %13466 = vmatmul.bf16.gmra.mxu0 %v13401
      %v13467 = vpop.f32.mrf.mxu0
      %v13468 = vadd.f32 %v13377, %v13467
      %v13469 = vpop.f32.mrf.mxu0
      %v13470 = vadd.f32 %v13377, %v13469
      %13471 = vmatmul.bf16.gmra.mxu0 %v13404
      %v13472 = vpop.f32.mrf.mxu0
      %v13473 = vadd.f32 %v13377, %v13472
      %v13474 = vpop.f32.mrf.mxu0
      %v13475 = vadd.f32 %v13377, %v13474
      %13476 = vmatmul.bf16.gmra.mxu0 %v13407
      %v13477 = vpop.f32.mrf.mxu0
      %v13478 = vadd.f32 %v13377, %v13477
      %v13479 = vpop.f32.mrf.mxu0
      %v13480 = vadd.f32 %v13377, %v13479
      %13481 = vmatmul.bf16.gmra.mxu0 %v13410
      %v13482 = vpop.f32.mrf.mxu0
      %v13483 = vadd.f32 %v13377, %v13482
      %v13484 = vpop.f32.mrf.mxu0
      %v13485 = vadd.f32 %v13377, %v13484
      %13486 = vmatmul.bf16.gmra.mxu0 %v13413
      %v13487 = vpop.f32.mrf.mxu0
      %v13488 = vadd.f32 %v13377, %v13487
      %v13489 = vpop.f32.mrf.mxu0
      %v13490 = vadd.f32 %v13377, %v13489
      %13491 = vmatmul.bf16.gmra.mxu0 %v13416
      %v13492 = vpop.f32.mrf.mxu0
      %v13493 = vadd.f32 %v13377, %v13492
      %v13494 = vpop.f32.mrf.mxu0
      %v13495 = vadd.f32 %v13377, %v13494
      %13496 = vmatmul.bf16.gmra.mxu0 %v13419
      %v13497 = vpop.f32.mrf.mxu0
      %v13498 = vadd.f32 %v13377, %v13497
      %v13499 = vpop.f32.mrf.mxu0
      %v13500 = vadd.f32 %v13377, %v13499
      %13501 = vmatmul.bf16.gmra.mxu0 %v13422
      %v13502 = vpop.f32.mrf.mxu0
      %v13503 = vadd.f32 %v13377, %v13502
      %v13504 = vpop.f32.mrf.mxu0
      %v13505 = vadd.f32 %v13377, %v13504
      %13506 = vmatmul.bf16.gmra.mxu0 %v13425
      %v13507 = vpop.f32.mrf.mxu0
      %v13508 = vadd.f32 %v13377, %v13507
      %v13509 = vpop.f32.mrf.mxu0
      %v13510 = vadd.f32 %v13377, %v13509
      %13511 = vmatmul.bf16.gmra.mxu0 %v13428
      %v13512 = vpop.f32.mrf.mxu0
      %v13513 = vadd.f32 %v13377, %v13512
      %v13514 = vpop.f32.mrf.mxu0
      %v13515 = vadd.f32 %v13377, %v13514
      %13516 = vmatmul.bf16.gmra.mxu0 %v13431
      %v13517 = vpop.f32.mrf.mxu0
      %v13518 = vadd.f32 %v13377, %v13517
      %v13519 = vpop.f32.mrf.mxu0
      %v13520 = vadd.f32 %v13377, %v13519
      %13521 = vdwg.mxu0
      %v13522 = vmax.f32 %v13443, 0.0
      %v13523 = vmax.f32 %v13445, 0.0
      %v13524 = vmax.f32 %v13448, 0.0
      %v13525 = vmax.f32 %v13450, 0.0
      %v13526 = vmax.f32 %v13453, 0.0
      %v13527 = vmax.f32 %v13455, 0.0
      %v13528 = vmax.f32 %v13458, 0.0
      %v13529 = vmax.f32 %v13460, 0.0
      %v13530 = vmax.f32 %v13463, 0.0
      %v13531 = vmax.f32 %v13465, 0.0
      %v13532 = vmax.f32 %v13468, 0.0
      %v13533 = vmax.f32 %v13470, 0.0
      %v13534 = vmax.f32 %v13473, 0.0
      %v13535 = vmax.f32 %v13475, 0.0
      %v13536 = vmax.f32 %v13478, 0.0
      %v13537 = vmax.f32 %v13480, 0.0
      %v13538 = vmax.f32 %v13483, 0.0
      %v13539 = vmax.f32 %v13485, 0.0
      %v13540 = vmax.f32 %v13488, 0.0
      %v13541 = vmax.f32 %v13490, 0.0
      %v13542 = vmax.f32 %v13493, 0.0
      %v13543 = vmax.f32 %v13495, 0.0
      %v13544 = vmax.f32 %v13498, 0.0
      %v13545 = vmax.f32 %v13500, 0.0
      %v13546 = vmax.f32 %v13503, 0.0
      %v13547 = vmax.f32 %v13505, 0.0
      %v13548 = vmax.f32 %v13508, 0.0
      %v13549 = vmax.f32 %v13510, 0.0
      %v13550 = vmax.f32 %v13513, 0.0
      %v13551 = vmax.f32 %v13515, 0.0
      %v13552 = vmax.f32 %v13518, 0.0
      %v13553 = vmax.f32 %v13520, 0.0
      %13554 = vst.msk [vmem:[%s332] sm:$0xff] %vm3015, %v13522
      %13555 = vst.msk [vmem:[%s332 + $0x8] sm:$0xff] %vm3015, %v13523
      %13556 = vst.msk [vmem:[%s332 + $0x10] sm:$0xff] %vm3015, %v13524
      %13557 = vst.msk [vmem:[%s332 + $0x18] sm:$0xff] %vm3015, %v13525
      %13558 = vst.msk [vmem:[%s332 + $0x20] sm:$0xff] %vm3015, %v13526
      %13559 = vst.msk [vmem:[%s332 + $0x28] sm:$0xff] %vm3015, %v13527
      %13560 = vst.msk [vmem:[%s332 + $0x30] sm:$0xff] %vm3015, %v13528
      %13561 = vst.msk [vmem:[%s332 + $0x38] sm:$0xff] %vm3015, %v13529
      %13562 = vst.msk [vmem:[%s332 + $0x40] sm:$0xff] %vm3015, %v13530
      %13563 = vst.msk [vmem:[%s332 + $0x48] sm:$0xff] %vm3015, %v13531
      %13564 = vst.msk [vmem:[%s332 + $0x50] sm:$0xff] %vm3015, %v13532
      %13565 = vst.msk [vmem:[%s332 + $0x58] sm:$0xff] %vm3015, %v13533
      %13566 = vst.msk [vmem:[%s332 + $0x60] sm:$0xff] %vm3015, %v13534
      %13567 = vst.msk [vmem:[%s332 + $0x68] sm:$0xff] %vm3015, %v13535
      %13568 = vst.msk [vmem:[%s332 + $0x70] sm:$0xff] %vm3015, %v13536
      %13569 = vst.msk [vmem:[%s332 + $0x78] sm:$0xff] %vm3015, %v13537
      %13570 = vst.msk [vmem:[%s332 + $0x80] sm:$0xff] %vm3015, %v13538
      %13571 = vst.msk [vmem:[%s332 + $0x88] sm:$0xff] %vm3015, %v13539
      %13572 = vst.msk [vmem:[%s332 + $0x90] sm:$0xff] %vm3015, %v13540
      %13573 = vst.msk [vmem:[%s332 + $0x98] sm:$0xff] %vm3015, %v13541
      %13574 = vst.msk [vmem:[%s332 + $0xa0] sm:$0xff] %vm3015, %v13542
      %13575 = vst.msk [vmem:[%s332 + $0xa8] sm:$0xff] %vm3015, %v13543
      %13576 = vst.msk [vmem:[%s332 + $0xb0] sm:$0xff] %vm3015, %v13544
      %13577 = vst.msk [vmem:[%s332 + $0xb8] sm:$0xff] %vm3015, %v13545
      %13578 = vst.msk [vmem:[%s332 + $0xc0] sm:$0xff] %vm3015, %v13546
      %13579 = vst.msk [vmem:[%s332 + $0xc8] sm:$0xff] %vm3015, %v13547
      %13580 = vst.msk [vmem:[%s332 + $0xd0] sm:$0xff] %vm3015, %v13548
      %13581 = vst.msk [vmem:[%s332 + $0xd8] sm:$0xff] %vm3015, %v13549
      %13582 = vst.msk [vmem:[%s332 + $0xe0] sm:$0xff] %vm3015, %v13550
      %13583 = vst.msk [vmem:[%s332 + $0xe8] sm:$0xff] %vm3015, %v13551
      %13584 = vst.msk [vmem:[%s332 + $0xf0] sm:$0xff] %vm3015, %v13552
      %13585 = vst.msk [vmem:[%s332 + $0xf8] sm:$0xff] %vm3015, %v13553
      %p13586 = scmp.lt.s32.totalorder %s20, 1
      %s13587 = scalar_select %p13586, %s20, 1
      %s13588 = smul.addr %s13587, 32
      %s13589 = smul.addr %s13588, 8
      %s13590 = scalar_lea.vmem %s9, %s13589
      // Predicated region
      $region57: #{tpu_custom_call.1} parent=55 // pred_check
        %p13591 = pneg %p232
      $region58: #{tpu_custom_call.1} parent=55 // pred_check_branch
        %13593 = sbr.rel (%p13591) target = $region60
      $region59: #{tpu_custom_call.1} parent=55 // pred_region
        _
      $region60: #{tpu_custom_call.1} parent=55 // pred_fallthru
        _
    $region56: #{tpu_custom_call.1} parent=5 // pred_fallthru
      _
    %p13594 = scmp.le.s32.totalorder 2, %s15
    // Predicated region
    $region61: #{tpu_custom_call.1} parent=5 // pred_check
      %p13595 = pneg %p13594
    $region62: #{tpu_custom_call.1} parent=5 // pred_check_branch
      %13597 = sbr.rel (%p13595) target = $region64
    $region63: #{tpu_custom_call.1} parent=5 // pred_region
      %s13598 = ssub.s32 %s15, 2
      // Predicated region
      $region65: #{tpu_custom_call.1} parent=63 // pred_check
        %p13599 = pneg %p238
      $region66: #{tpu_custom_call.1} parent=63 // pred_check_branch
        %13601 = sbr.rel (%p13599) target = $region68
      $region67: #{tpu_custom_call.1} parent=63 // pred_region
        %p13602 = scmp.lt.s32.totalorder %s21, 1
        %s13603 = scalar_select %p13602, %s21, 1
        %s13604 = smul.addr %s13603, 32
        %s13605 = smul.addr %s13604, 8
        %s13606 = scalar_lea.vmem %s9, %s13605
      $region68: #{tpu_custom_call.1} parent=63 // pred_fallthru
        _
    $region64: #{tpu_custom_call.1} parent=5 // pred_fallthru
      _
  $region6: #{tpu_custom_call.1} parent=0 // loop_footer
    %s19 = sadd.s32 1, %s15
  $region7: #{tpu_custom_call.1} parent=0 // loop_footer_branch
    %14 = sbr.rel target = $region3
  $region8: #{tpu_custom_call.1} parent=0 // loop_exit
    _

</llo_original>
